<compile_context>
chip_gen: v7x
topology: tpu7x:2x2x1
jax: 0.10.0
libtpu: 0.0.40
codegen_flags: <defaults>
</compile_context>

<pallas_src>
import numpy as np
import jax
import jax.numpy as jnp
from jax import lax
from jax.experimental import pallas as pl
from jax.experimental.pallas import tpu as pltpu

H = 100            # LSTM hidden dim (model definition)
HP = 128           # lane-padded hidden dim used inside the kernel
IN = 48            # LSTM input dim
G4 = 4 * HP        # packed gate width (i, f, g, o), each gate padded to 128
MLP_DIMS = [H, H, 80, 60, 40, 20, 10, 2]
N_MLP = len(MLP_DIMS) - 1
T_BUCKET = 16      # sequence-length bucket (limits recompiles)
B_SUBLANES = 8     # batch rows carried through the recurrence (one f32 vreg)


def _round_up(x, m):
    return ((x + m - 1) // m) * m


# ----------------------------------------------------------------------------
# Fused kernel: LSTM (batched recurrence) -> compaction -> MLP -> softmax ->
# 5-tap row pooling.  All static shape parameters are baked into the closure.
#   x_ref     : (T_pad*B_pad, 48)   bf16, time-major (row = t*B_pad + b)
#   gmap_ref  : (N_pad, T_pad*B_pad) bf16 one-hot compaction map
#   wih_ref   : (48, 512)  bf16 packed+padded W_ih^T (gate order i,f,g,o)
#   whh_ref   : (128, 512) bf16 packed+padded W_hh^T
#   blstm_ref : (1, 512)   f32  b_ih + b_hh, packed+padded
#   w*/b*     : bf16 weights (in 128-padded), f32 biases; last layer (128, 2)
#   out_ref   : (N_total, 2) f32
#   pre_ref   : VMEM (T_pad*B_pad, 512) f32 hoisted input projection
#   hall_ref  : VMEM (T_pad*B_pad, 128) f32 per-step hidden states
# ----------------------------------------------------------------------------
def _make_fused_kernel(T_pad, B_pad, N_total, N_pad):

    def kernel(x_ref, gmap_ref, wih_ref, whh_ref, blstm_ref,
               w1, b1, w2, b2, w3, b3, w4, b4, w5, b5, w6, b6, w7, b7,
               out_ref, pre_ref, hall_ref):
        # ---------------- LSTM ----------------
        # Hoisted input projection for ALL timesteps/sequences: one MXU matmul.
        pre_ref[...] = (
            jnp.dot(x_ref[...], wih_ref[...],
                    preferred_element_type=jnp.float32)
            + blstm_ref[...])

        # TODO(synk): W_hh could be kept resident in MXU weight registers with
        # pltpu.matmul_push_rhs across the unrolled recurrence.
        def step(t, carry):
            h, c = carry                                    # (B_pad, HP) f32
            row = pl.multiple_of(t * B_pad, B_pad)
            gates = pre_ref[pl.ds(row, B_pad), :] + jnp.dot(
                h.astype(jnp.bfloat16), whh_ref[...],
                preferred_element_type=jnp.float32)         # (B_pad, 512)
            i_g = jax.nn.sigmoid(gates[:, 0 * HP:1 * HP])
            f_g = jax.nn.sigmoid(gates[:, 1 * HP:2 * HP])
            g_g = jnp.tanh(gates[:, 2 * HP:3 * HP])
            o_g = jax.nn.sigmoid(gates[:, 3 * HP:4 * HP])
            c_new = f_g * c + i_g * g_g
            h_new = o_g * jnp.tanh(c_new)
            hall_ref[pl.ds(row, B_pad), :] = h_new          # aligned 8x128 store
            return (h_new, c_new)

        h0 = jnp.zeros((B_pad, HP), jnp.float32)
        c0 = jnp.zeros((B_pad, HP), jnp.float32)
        lax.fori_loop(0, T_pad, step, (h0, c0),
                      unroll=(True if T_pad <= 32 else 8))

        # ------- pack/unpack/cat compaction (one-hot gather matmul) -------
        # gmap[n, t*B_pad + b] == 1 selects timestep t of sequence b as the
        # n-th row of the concatenated features; padded rows stay zero.
        feats = jnp.dot(gmap_ref[...], hall_ref[...].astype(jnp.bfloat16),
                        preferred_element_type=jnp.float32)   # (N_pad, HP)

        # ---------------- MLP (all widths padded to 128 lanes) ----------------
        def lin(h, w, b):
            return jnp.dot(h.astype(jnp.bfloat16), w[...],
                           preferred_element_type=jnp.float32) + b[...]

        h = feats
        h = jnp.maximum(lin(h, w1, b1), 0.0)
        h = jnp.maximum(lin(h, w2, b2), 0.0)
        h = jnp.maximum(lin(h, w3, b3), 0.0)
        h = jnp.maximum(lin(h, w4, b4), 0.0)
        h = jnp.maximum(lin(h, w5, b5), 0.0)
        h = jnp.maximum(lin(h, w6, b6), 0.0)
        logits = lin(h, w7, b7)                               # (N_pad, 2)

        # Softmax over dim=1 (the 2 classes).
        m = jnp.max(logits, axis=1, keepdims=True)
        e = jnp.exp(logits - m)
        probs = e / jnp.sum(e, axis=1, keepdims=True)

        # postprocess: avg_pool1d(kernel=5, stride=1, padding=2) over rows,
        # done fully in registers via zero-pad concat + shifted static slices
        # (no VMEM halo scratch, no masked dynamic stores).  First 2 / last 2
        # rows are then restored to the un-pooled values (as in PyTorch).
        zpad = jnp.zeros((2, 2), jnp.float32)
        padded = jnp.concatenate([zpad, probs, zpad], axis=0)  # (N_pad+4, 2)
        pooled = 0.2 * (padded[0:N_pad, :] + padded[1:N_pad + 1, :] +
                        padded[2:N_pad + 2, :] + padded[3:N_pad + 3, :] +
                        padded[4:N_pad + 4, :])
        ridx = lax.broadcasted_iota(jnp.int32, (N_pad, 2), 0)
        keep_orig = (ridx < 2) | (ridx >= N_total - 2)
        result = jnp.where(keep_orig, probs, pooled)
        out_ref[...] = result[0:N_total, :]

    return kernel


# ----------------------------------------------------------------------------
# Wrapper: host-side packing + single fused pallas_call.
# ----------------------------------------------------------------------------
def model_forward(seqs, params):
    """pack_sequence -> LSTM -> unpack -> cat -> fc -> softmax -> postprocess."""
    lens = [int(s.shape[0]) for s in seqs]
    N_total = int(sum(lens))
    T_pad = _round_up(max(lens), T_BUCKET)
    B_pad = _round_up(len(seqs), B_SUBLANES)
    N_pad = _round_up(N_total, 8)
    TB = T_pad * B_pad

    # Host-side (numpy) packing: one time-major zero-padded block, bf16.
    x_tm = np.zeros((T_pad, B_pad, IN), np.float32)
    for b, s in enumerate(seqs):
        x_tm[:lens[b], b, :] = np.asarray(s, np.float32)
    x_flat = jnp.asarray(x_tm.reshape(TB, IN), dtype=jnp.bfloat16)

    # One-hot compaction map: concatenated row n <- (timestep t, sequence b).
    gmap_np = np.zeros((N_pad, TB), np.float32)
    off = 0
    for b, L in enumerate(lens):
        for t in range(L):
            gmap_np[off + t, t * B_pad + b] = 1.0
        off += L
    gmap = jnp.asarray(gmap_np, dtype=jnp.bfloat16)

    flat_wb = []
    for w_t, bias in params["mlp"]:
        flat_wb.extend([w_t, bias])
    args = [x_flat, gmap, params["wih"], params["whh"], params["b_lstm"]] + flat_wb

    kernel = _make_fused_kernel(T_pad, B_pad, N_total, N_pad)
    # TODO(synk): on v7x the single fused call runs on one TensorCore; a 2-way
    # batch split with cross-core handoff for the pooling could use both TCs.
    return pl.pallas_call(
        kernel,
        out_shape=jax.ShapeDtypeStruct((N_total, 2), jnp.float32),
        in_specs=[pl.BlockSpec(memory_space=pltpu.MemorySpace.VMEM)] * len(args),
        out_specs=pl.BlockSpec(memory_space=pltpu.MemorySpace.VMEM),
        scratch_shapes=[pltpu.VMEM((TB, G4), jnp.float32),   # hoisted pre-acts
                        pltpu.VMEM((TB, HP), jnp.float32)],  # per-step hidden
    )(*args)


# ----------------------------------------------------------------------------
# Parameter init (deterministic, PyTorch-like uniform ranges) + packing.
# LSTM gates packed ifgo into lane-padded transposed bf16 weights; MLP widths
# zero-padded to 128 lanes (padded rows/cols/bias entries are exactly zero so
# padded lanes stay identically 0 through the whole network).
# ----------------------------------------------------------------------------
def init_params(key):
    keys = jax.random.split(key, 4 + 2 * N_MLP)
    s = 1.0 / jnp.sqrt(H)

    def u(k, shape, bound):
        return jax.random.uniform(k, shape, jnp.float32, -bound, bound)

    # PyTorch LSTM layout: W_ih (4H, IN), W_hh (4H, H), biases (4H,), order ifgo
    w_ih = u(keys[0], (4 * H, IN), s)
    w_hh = u(keys[1], (4 * H, H), s)
    b_ih = u(keys[2], (4 * H,), s)
    b_hh = u(keys[3], (4 * H,), s)

    wih_p = jnp.zeros((IN, G4), jnp.float32)
    whh_p = jnp.zeros((HP, G4), jnp.float32)
    b_p = jnp.zeros((1, G4), jnp.float32)
    for g in range(4):
        wih_p = wih_p.at[:, g * HP:g * HP + H].set(w_ih[g * H:(g + 1) * H, :].T)
        whh_p = whh_p.at[:H, g * HP:g * HP + H].set(w_hh[g * H:(g + 1) * H, :].T)
        b_p = b_p.at[0, g * HP:g * HP + H].set(
            b_ih[g * H:(g + 1) * H] + b_hh[g * H:(g + 1) * H])

    mlp = []
    kidx = 4
    for li, (d_in, d_out) in enumerate(zip(MLP_DIMS[:-1], MLP_DIMS[1:])):
        bound = 1.0 / jnp.sqrt(d_in)
        w = u(keys[kidx], (d_out, d_in), bound); kidx += 1
        b = u(keys[kidx], (d_out,), bound); kidx += 1
        out_pad = d_out if li == N_MLP - 1 else HP   # last layer keeps 2 lanes
        w_pad = jnp.zeros((HP, out_pad), jnp.float32).at[:d_in, :d_out].set(w.T)
        b_pad = jnp.zeros((1, out_pad), jnp.float32).at[0, :d_out].set(b)
        mlp.append((w_pad.astype(jnp.bfloat16), b_pad))

    return dict(wih=wih_p.astype(jnp.bfloat16),
                whh=whh_p.astype(jnp.bfloat16),
                b_lstm=b_p,
                mlp=mlp)


if __name__ == "__main__":
    key = jax.random.PRNGKey(0)
    k_param, k_x0, k_x1 = jax.random.split(key, 3)

    params = init_params(k_param)

    # Two variable-length sequences (what pack_sequence would receive).
    seq0 = jax.random.normal(k_x0, (12, IN), jnp.float32)
    seq1 = jax.random.normal(k_x1, (8, IN), jnp.float32)

    out = model_forward([seq0, seq1], params)    # (20, 2)
    out = jax.block_until_ready(out)
    assert out.shape == (20, 2)
    print("KERNEL_OK")
</pallas_src>

<mosaic_0001>
module attributes {stable_mosaic.version = 11 : i64} {
  func.func @kernel(%arg0: memref<128x48xbf16, #tpu.memory_space<vmem>>, %arg1: memref<24x128xbf16, #tpu.memory_space<vmem>>, %arg2: memref<48x512xbf16, #tpu.memory_space<vmem>>, %arg3: memref<128x512xbf16, #tpu.memory_space<vmem>>, %arg4: memref<1x512xf32, #tpu.memory_space<vmem>>, %arg5: memref<128x128xbf16, #tpu.memory_space<vmem>>, %arg6: memref<1x128xf32, #tpu.memory_space<vmem>>, %arg7: memref<128x128xbf16, #tpu.memory_space<vmem>>, %arg8: memref<1x128xf32, #tpu.memory_space<vmem>>, %arg9: memref<128x128xbf16, #tpu.memory_space<vmem>>, %arg10: memref<1x128xf32, #tpu.memory_space<vmem>>, %arg11: memref<128x128xbf16, #tpu.memory_space<vmem>>, %arg12: memref<1x128xf32, #tpu.memory_space<vmem>>, %arg13: memref<128x128xbf16, #tpu.memory_space<vmem>>, %arg14: memref<1x128xf32, #tpu.memory_space<vmem>>, %arg15: memref<128x128xbf16, #tpu.memory_space<vmem>>, %arg16: memref<1x128xf32, #tpu.memory_space<vmem>>, %arg17: memref<128x2xbf16, #tpu.memory_space<vmem>>, %arg18: memref<1x2xf32, #tpu.memory_space<vmem>>, %arg19: memref<20x2xf32, #tpu.memory_space<vmem>>, %arg20: memref<128x512xf32, #tpu.memory_space<vmem>>, %arg21: memref<128x128xf32, #tpu.memory_space<vmem>>) attributes {dimension_semantics = [], scalar_prefetch = 0 : i64, scratch_operands = 2 : i64, tpu.core_type = #tpu.core_type<tc>} {
    %c0 = arith.constant 0 : index
    %c0_0 = arith.constant 0 : index
    %0 = vector.load %arg0[%c0, %c0_0] : memref<128x48xbf16, #tpu.memory_space<vmem>>, vector<128x48xbf16>
    %c0_1 = arith.constant 0 : index
    %c0_2 = arith.constant 0 : index
    %1 = vector.load %arg2[%c0_1, %c0_2] : memref<48x512xbf16, #tpu.memory_space<vmem>>, vector<48x512xbf16>
    %cst = arith.constant dense<0.000000e+00> : vector<128x512xf32>
    %2 = tpu.matmul %0, %1, %cst {dimension_numbers = #tpu.dot_dimension_numbers<[1], [0], [0], [1], [0, 0, 1, 1], [], []>} : vector<128x48xbf16>, vector<48x512xbf16>, vector<128x512xf32> -> vector<128x512xf32>
    %c0_3 = arith.constant 0 : index
    %c0_4 = arith.constant 0 : index
    %3 = vector.load %arg4[%c0_3, %c0_4] : memref<1x512xf32, #tpu.memory_space<vmem>>, vector<1x512xf32>
    %4 = vector.broadcast %3 : vector<1x512xf32> to vector<128x512xf32>
    %5 = arith.addf %2, %4 : vector<128x512xf32>
    %c0_5 = arith.constant 0 : index
    %c0_6 = arith.constant 0 : index
    %6 = vector.load %arg20[%c0_5, %c0_6] : memref<128x512xf32, #tpu.memory_space<vmem>>, vector<128x512xf32>
    tpu.vector_store %arg20[%c0_5, %c0_6], %5 {strides = array<i32>} : memref<128x512xf32, #tpu.memory_space<vmem>>, vector<128x512xf32>,
    %cst_7 = arith.constant 0.000000e+00 : f32
    %7 = vector.broadcast %cst_7 : f32 to vector<8x128xf32>
    %cst_8 = arith.constant 0.000000e+00 : f32
    %8 = vector.broadcast %cst_8 : f32 to vector<8x128xf32>
    %c0_i32 = arith.constant 0 : i32
    %c8_i32 = arith.constant 8 : i32
    %9 = arith.muli %c0_i32, %c8_i32 : i32
    %10 = tpu.assume_multiple %9, 8 : i32
    %11 = arith.index_cast %10 : i32 to index
    %c0_9 = arith.constant 0 : index
    %12 = vector.load %arg20[%11, %c0_9] : memref<128x512xf32, #tpu.memory_space<vmem>>, vector<8x512xf32>
    %13 = arith.truncf %7 : vector<8x128xf32> to vector<8x128xbf16>
    %c0_10 = arith.constant 0 : index
    %c0_11 = arith.constant 0 : index
    %14 = vector.load %arg3[%c0_10, %c0_11] : memref<128x512xbf16, #tpu.memory_space<vmem>>, vector<128x512xbf16>
    %cst_12 = arith.constant dense<0.000000e+00> : vector<8x512xf32>
    %15 = tpu.matmul %13, %14, %cst_12 {dimension_numbers = #tpu.dot_dimension_numbers<[1], [0], [0], [1], [0, 0, 1, 1], [], []>} : vector<8x128xbf16>, vector<128x512xbf16>, vector<8x512xf32> -> vector<8x512xf32>
    %16 = arith.addf %12, %15 : vector<8x512xf32>
    %17 = vector.extract_strided_slice %16 {offsets = [0, 0], sizes = [8, 128], strides = [1, 1]} : vector<8x512xf32> to vector<8x128xf32>
    %18 = arith.negf %17 : vector<8x128xf32>
    %19 = math.exp %18 : vector<8x128xf32>
    %cst_13 = arith.constant 1.000000e+00 : f32
    %20 = vector.broadcast %cst_13 : f32 to vector<8x128xf32>
    %21 = arith.addf %20, %19 : vector<8x128xf32>
    %22 = arith.divf %20, %21 : vector<8x128xf32>
    %23 = vector.extract_strided_slice %16 {offsets = [0, 128], sizes = [8, 128], strides = [1, 1]} : vector<8x512xf32> to vector<8x128xf32>
    %24 = arith.negf %23 : vector<8x128xf32>
    %25 = math.exp %24 : vector<8x128xf32>
    %cst_14 = arith.constant 1.000000e+00 : f32
    %26 = vector.broadcast %cst_14 : f32 to vector<8x128xf32>
    %27 = arith.addf %26, %25 : vector<8x128xf32>
    %28 = arith.divf %26, %27 : vector<8x128xf32>
    %29 = vector.extract_strided_slice %16 {offsets = [0, 256], sizes = [8, 128], strides = [1, 1]} : vector<8x512xf32> to vector<8x128xf32>
    %30 = math.tanh %29 : vector<8x128xf32>
    %31 = vector.extract_strided_slice %16 {offsets = [0, 384], sizes = [8, 128], strides = [1, 1]} : vector<8x512xf32> to vector<8x128xf32>
    %32 = arith.negf %31 : vector<8x128xf32>
    %33 = math.exp %32 : vector<8x128xf32>
    %cst_15 = arith.constant 1.000000e+00 : f32
    %34 = vector.broadcast %cst_15 : f32 to vector<8x128xf32>
    %35 = arith.addf %34, %33 : vector<8x128xf32>
    %36 = arith.divf %34, %35 : vector<8x128xf32>
    %37 = arith.mulf %28, %8 : vector<8x128xf32>
    %38 = arith.mulf %22, %30 : vector<8x128xf32>
    %39 = arith.addf %37, %38 : vector<8x128xf32>
    %40 = math.tanh %39 : vector<8x128xf32>
    %41 = arith.mulf %36, %40 : vector<8x128xf32>
    %42 = arith.index_cast %10 : i32 to index
    %c0_16 = arith.constant 0 : index
    %43 = vector.load %arg21[%42, %c0_16] : memref<128x128xf32, #tpu.memory_space<vmem>>, vector<8x128xf32>
    tpu.vector_store %arg21[%42, %c0_16], %41 {strides = array<i32>} : memref<128x128xf32, #tpu.memory_space<vmem>>, vector<8x128xf32>,
    %c1_i32 = arith.constant 1 : i32
    %c8_i32_17 = arith.constant 8 : i32
    %44 = arith.muli %c1_i32, %c8_i32_17 : i32
    %45 = tpu.assume_multiple %44, 8 : i32
    %46 = arith.index_cast %45 : i32 to index
    %c0_18 = arith.constant 0 : index
    %47 = vector.load %arg20[%46, %c0_18] : memref<128x512xf32, #tpu.memory_space<vmem>>, vector<8x512xf32>
    %48 = arith.truncf %41 : vector<8x128xf32> to vector<8x128xbf16>
    %c0_19 = arith.constant 0 : index
    %c0_20 = arith.constant 0 : index
    %49 = vector.load %arg3[%c0_19, %c0_20] : memref<128x512xbf16, #tpu.memory_space<vmem>>, vector<128x512xbf16>
    %cst_21 = arith.constant dense<0.000000e+00> : vector<8x512xf32>
    %50 = tpu.matmul %48, %49, %cst_21 {dimension_numbers = #tpu.dot_dimension_numbers<[1], [0], [0], [1], [0, 0, 1, 1], [], []>} : vector<8x128xbf16>, vector<128x512xbf16>, vector<8x512xf32> -> vector<8x512xf32>
    %51 = arith.addf %47, %50 : vector<8x512xf32>
    %52 = vector.extract_strided_slice %51 {offsets = [0, 0], sizes = [8, 128], strides = [1, 1]} : vector<8x512xf32> to vector<8x128xf32>
    %53 = arith.negf %52 : vector<8x128xf32>
    %54 = math.exp %53 : vector<8x128xf32>
    %cst_22 = arith.constant 1.000000e+00 : f32
    %55 = vector.broadcast %cst_22 : f32 to vector<8x128xf32>
    %56 = arith.addf %55, %54 : vector<8x128xf32>
    %57 = arith.divf %55, %56 : vector<8x128xf32>
    %58 = vector.extract_strided_slice %51 {offsets = [0, 128], sizes = [8, 128], strides = [1, 1]} : vector<8x512xf32> to vector<8x128xf32>
    %59 = arith.negf %58 : vector<8x128xf32>
    %60 = math.exp %59 : vector<8x128xf32>
    %cst_23 = arith.constant 1.000000e+00 : f32
    %61 = vector.broadcast %cst_23 : f32 to vector<8x128xf32>
    %62 = arith.addf %61, %60 : vector<8x128xf32>
    %63 = arith.divf %61, %62 : vector<8x128xf32>
    %64 = vector.extract_strided_slice %51 {offsets = [0, 256], sizes = [8, 128], strides = [1, 1]} : vector<8x512xf32> to vector<8x128xf32>
    %65 = math.tanh %64 : vector<8x128xf32>
    %66 = vector.extract_strided_slice %51 {offsets = [0, 384], sizes = [8, 128], strides = [1, 1]} : vector<8x512xf32> to vector<8x128xf32>
    %67 = arith.negf %66 : vector<8x128xf32>
    %68 = math.exp %67 : vector<8x128xf32>
    %cst_24 = arith.constant 1.000000e+00 : f32
    %69 = vector.broadcast %cst_24 : f32 to vector<8x128xf32>
    %70 = arith.addf %69, %68 : vector<8x128xf32>
    %71 = arith.divf %69, %70 : vector<8x128xf32>
    %72 = arith.mulf %63, %39 : vector<8x128xf32>
    %73 = arith.mulf %57, %65 : vector<8x128xf32>
    %74 = arith.addf %72, %73 : vector<8x128xf32>
    %75 = math.tanh %74 : vector<8x128xf32>
    %76 = arith.mulf %71, %75 : vector<8x128xf32>
    %77 = arith.index_cast %45 : i32 to index
    %c0_25 = arith.constant 0 : index
    %78 = vector.load %arg21[%77, %c0_25] : memref<128x128xf32, #tpu.memory_space<vmem>>, vector<8x128xf32>
    tpu.vector_store %arg21[%77, %c0_25], %76 {strides = array<i32>} : memref<128x128xf32, #tpu.memory_space<vmem>>, vector<8x128xf32>,
    %c2_i32 = arith.constant 2 : i32
    %c8_i32_26 = arith.constant 8 : i32
    %79 = arith.muli %c2_i32, %c8_i32_26 : i32
    %80 = tpu.assume_multiple %79, 8 : i32
    %81 = arith.index_cast %80 : i32 to index
    %c0_27 = arith.constant 0 : index
    %82 = vector.load %arg20[%81, %c0_27] : memref<128x512xf32, #tpu.memory_space<vmem>>, vector<8x512xf32>
    %83 = arith.truncf %76 : vector<8x128xf32> to vector<8x128xbf16>
    %c0_28 = arith.constant 0 : index
    %c0_29 = arith.constant 0 : index
    %84 = vector.load %arg3[%c0_28, %c0_29] : memref<128x512xbf16, #tpu.memory_space<vmem>>, vector<128x512xbf16>
    %cst_30 = arith.constant dense<0.000000e+00> : vector<8x512xf32>
    %85 = tpu.matmul %83, %84, %cst_30 {dimension_numbers = #tpu.dot_dimension_numbers<[1], [0], [0], [1], [0, 0, 1, 1], [], []>} : vector<8x128xbf16>, vector<128x512xbf16>, vector<8x512xf32> -> vector<8x512xf32>
    %86 = arith.addf %82, %85 : vector<8x512xf32>
    %87 = vector.extract_strided_slice %86 {offsets = [0, 0], sizes = [8, 128], strides = [1, 1]} : vector<8x512xf32> to vector<8x128xf32>
    %88 = arith.negf %87 : vector<8x128xf32>
    %89 = math.exp %88 : vector<8x128xf32>
    %cst_31 = arith.constant 1.000000e+00 : f32
    %90 = vector.broadcast %cst_31 : f32 to vector<8x128xf32>
    %91 = arith.addf %90, %89 : vector<8x128xf32>
    %92 = arith.divf %90, %91 : vector<8x128xf32>
    %93 = vector.extract_strided_slice %86 {offsets = [0, 128], sizes = [8, 128], strides = [1, 1]} : vector<8x512xf32> to vector<8x128xf32>
    %94 = arith.negf %93 : vector<8x128xf32>
    %95 = math.exp %94 : vector<8x128xf32>
    %cst_32 = arith.constant 1.000000e+00 : f32
    %96 = vector.broadcast %cst_32 : f32 to vector<8x128xf32>
    %97 = arith.addf %96, %95 : vector<8x128xf32>
    %98 = arith.divf %96, %97 : vector<8x128xf32>
    %99 = vector.extract_strided_slice %86 {offsets = [0, 256], sizes = [8, 128], strides = [1, 1]} : vector<8x512xf32> to vector<8x128xf32>
    %100 = math.tanh %99 : vector<8x128xf32>
    %101 = vector.extract_strided_slice %86 {offsets = [0, 384], sizes = [8, 128], strides = [1, 1]} : vector<8x512xf32> to vector<8x128xf32>
    %102 = arith.negf %101 : vector<8x128xf32>
    %103 = math.exp %102 : vector<8x128xf32>
    %cst_33 = arith.constant 1.000000e+00 : f32
    %104 = vector.broadcast %cst_33 : f32 to vector<8x128xf32>
    %105 = arith.addf %104, %103 : vector<8x128xf32>
    %106 = arith.divf %104, %105 : vector<8x128xf32>
    %107 = arith.mulf %98, %74 : vector<8x128xf32>
    %108 = arith.mulf %92, %100 : vector<8x128xf32>
    %109 = arith.addf %107, %108 : vector<8x128xf32>
    %110 = math.tanh %109 : vector<8x128xf32>
    %111 = arith.mulf %106, %110 : vector<8x128xf32>
    %112 = arith.index_cast %80 : i32 to index
    %c0_34 = arith.constant 0 : index
    %113 = vector.load %arg21[%112, %c0_34] : memref<128x128xf32, #tpu.memory_space<vmem>>, vector<8x128xf32>
    tpu.vector_store %arg21[%112, %c0_34], %111 {strides = array<i32>} : memref<128x128xf32, #tpu.memory_space<vmem>>, vector<8x128xf32>,
    %c3_i32 = arith.constant 3 : i32
    %c8_i32_35 = arith.constant 8 : i32
    %114 = arith.muli %c3_i32, %c8_i32_35 : i32
    %115 = tpu.assume_multiple %114, 8 : i32
    %116 = arith.index_cast %115 : i32 to index
    %c0_36 = arith.constant 0 : index
    %117 = vector.load %arg20[%116, %c0_36] : memref<128x512xf32, #tpu.memory_space<vmem>>, vector<8x512xf32>
    %118 = arith.truncf %111 : vector<8x128xf32> to vector<8x128xbf16>
    %c0_37 = arith.constant 0 : index
    %c0_38 = arith.constant 0 : index
    %119 = vector.load %arg3[%c0_37, %c0_38] : memref<128x512xbf16, #tpu.memory_space<vmem>>, vector<128x512xbf16>
    %cst_39 = arith.constant dense<0.000000e+00> : vector<8x512xf32>
    %120 = tpu.matmul %118, %119, %cst_39 {dimension_numbers = #tpu.dot_dimension_numbers<[1], [0], [0], [1], [0, 0, 1, 1], [], []>} : vector<8x128xbf16>, vector<128x512xbf16>, vector<8x512xf32> -> vector<8x512xf32>
    %121 = arith.addf %117, %120 : vector<8x512xf32>
    %122 = vector.extract_strided_slice %121 {offsets = [0, 0], sizes = [8, 128], strides = [1, 1]} : vector<8x512xf32> to vector<8x128xf32>
    %123 = arith.negf %122 : vector<8x128xf32>
    %124 = math.exp %123 : vector<8x128xf32>
    %cst_40 = arith.constant 1.000000e+00 : f32
    %125 = vector.broadcast %cst_40 : f32 to vector<8x128xf32>
    %126 = arith.addf %125, %124 : vector<8x128xf32>
    %127 = arith.divf %125, %126 : vector<8x128xf32>
    %128 = vector.extract_strided_slice %121 {offsets = [0, 128], sizes = [8, 128], strides = [1, 1]} : vector<8x512xf32> to vector<8x128xf32>
    %129 = arith.negf %128 : vector<8x128xf32>
    %130 = math.exp %129 : vector<8x128xf32>
    %cst_41 = arith.constant 1.000000e+00 : f32
    %131 = vector.broadcast %cst_41 : f32 to vector<8x128xf32>
    %132 = arith.addf %131, %130 : vector<8x128xf32>
    %133 = arith.divf %131, %132 : vector<8x128xf32>
    %134 = vector.extract_strided_slice %121 {offsets = [0, 256], sizes = [8, 128], strides = [1, 1]} : vector<8x512xf32> to vector<8x128xf32>
    %135 = math.tanh %134 : vector<8x128xf32>
    %136 = vector.extract_strided_slice %121 {offsets = [0, 384], sizes = [8, 128], strides = [1, 1]} : vector<8x512xf32> to vector<8x128xf32>
    %137 = arith.negf %136 : vector<8x128xf32>
    %138 = math.exp %137 : vector<8x128xf32>
    %cst_42 = arith.constant 1.000000e+00 : f32
    %139 = vector.broadcast %cst_42 : f32 to vector<8x128xf32>
    %140 = arith.addf %139, %138 : vector<8x128xf32>
    %141 = arith.divf %139, %140 : vector<8x128xf32>
    %142 = arith.mulf %133, %109 : vector<8x128xf32>
    %143 = arith.mulf %127, %135 : vector<8x128xf32>
    %144 = arith.addf %142, %143 : vector<8x128xf32>
    %145 = math.tanh %144 : vector<8x128xf32>
    %146 = arith.mulf %141, %145 : vector<8x128xf32>
    %147 = arith.index_cast %115 : i32 to index
    %c0_43 = arith.constant 0 : index
    %148 = vector.load %arg21[%147, %c0_43] : memref<128x128xf32, #tpu.memory_space<vmem>>, vector<8x128xf32>
    tpu.vector_store %arg21[%147, %c0_43], %146 {strides = array<i32>} : memref<128x128xf32, #tpu.memory_space<vmem>>, vector<8x128xf32>,
    %c4_i32 = arith.constant 4 : i32
    %c8_i32_44 = arith.constant 8 : i32
    %149 = arith.muli %c4_i32, %c8_i32_44 : i32
    %150 = tpu.assume_multiple %149, 8 : i32
    %151 = arith.index_cast %150 : i32 to index
    %c0_45 = arith.constant 0 : index
    %152 = vector.load %arg20[%151, %c0_45] : memref<128x512xf32, #tpu.memory_space<vmem>>, vector<8x512xf32>
    %153 = arith.truncf %146 : vector<8x128xf32> to vector<8x128xbf16>
    %c0_46 = arith.constant 0 : index
    %c0_47 = arith.constant 0 : index
    %154 = vector.load %arg3[%c0_46, %c0_47] : memref<128x512xbf16, #tpu.memory_space<vmem>>, vector<128x512xbf16>
    %cst_48 = arith.constant dense<0.000000e+00> : vector<8x512xf32>
    %155 = tpu.matmul %153, %154, %cst_48 {dimension_numbers = #tpu.dot_dimension_numbers<[1], [0], [0], [1], [0, 0, 1, 1], [], []>} : vector<8x128xbf16>, vector<128x512xbf16>, vector<8x512xf32> -> vector<8x512xf32>
    %156 = arith.addf %152, %155 : vector<8x512xf32>
    %157 = vector.extract_strided_slice %156 {offsets = [0, 0], sizes = [8, 128], strides = [1, 1]} : vector<8x512xf32> to vector<8x128xf32>
    %158 = arith.negf %157 : vector<8x128xf32>
    %159 = math.exp %158 : vector<8x128xf32>
    %cst_49 = arith.constant 1.000000e+00 : f32
    %160 = vector.broadcast %cst_49 : f32 to vector<8x128xf32>
    %161 = arith.addf %160, %159 : vector<8x128xf32>
    %162 = arith.divf %160, %161 : vector<8x128xf32>
    %163 = vector.extract_strided_slice %156 {offsets = [0, 128], sizes = [8, 128], strides = [1, 1]} : vector<8x512xf32> to vector<8x128xf32>
    %164 = arith.negf %163 : vector<8x128xf32>
    %165 = math.exp %164 : vector<8x128xf32>
    %cst_50 = arith.constant 1.000000e+00 : f32
    %166 = vector.broadcast %cst_50 : f32 to vector<8x128xf32>
    %167 = arith.addf %166, %165 : vector<8x128xf32>
    %168 = arith.divf %166, %167 : vector<8x128xf32>
    %169 = vector.extract_strided_slice %156 {offsets = [0, 256], sizes = [8, 128], strides = [1, 1]} : vector<8x512xf32> to vector<8x128xf32>
    %170 = math.tanh %169 : vector<8x128xf32>
    %171 = vector.extract_strided_slice %156 {offsets = [0, 384], sizes = [8, 128], strides = [1, 1]} : vector<8x512xf32> to vector<8x128xf32>
    %172 = arith.negf %171 : vector<8x128xf32>
    %173 = math.exp %172 : vector<8x128xf32>
    %cst_51 = arith.constant 1.000000e+00 : f32
    %174 = vector.broadcast %cst_51 : f32 to vector<8x128xf32>
    %175 = arith.addf %174, %173 : vector<8x128xf32>
    %176 = arith.divf %174, %175 : vector<8x128xf32>
    %177 = arith.mulf %168, %144 : vector<8x128xf32>
    %178 = arith.mulf %162, %170 : vector<8x128xf32>
    %179 = arith.addf %177, %178 : vector<8x128xf32>
    %180 = math.tanh %179 : vector<8x128xf32>
    %181 = arith.mulf %176, %180 : vector<8x128xf32>
    %182 = arith.index_cast %150 : i32 to index
    %c0_52 = arith.constant 0 : index
    %183 = vector.load %arg21[%182, %c0_52] : memref<128x128xf32, #tpu.memory_space<vmem>>, vector<8x128xf32>
    tpu.vector_store %arg21[%182, %c0_52], %181 {strides = array<i32>} : memref<128x128xf32, #tpu.memory_space<vmem>>, vector<8x128xf32>,
    %c5_i32 = arith.constant 5 : i32
    %c8_i32_53 = arith.constant 8 : i32
    %184 = arith.muli %c5_i32, %c8_i32_53 : i32
    %185 = tpu.assume_multiple %184, 8 : i32
    %186 = arith.index_cast %185 : i32 to index
    %c0_54 = arith.constant 0 : index
    %187 = vector.load %arg20[%186, %c0_54] : memref<128x512xf32, #tpu.memory_space<vmem>>, vector<8x512xf32>
    %188 = arith.truncf %181 : vector<8x128xf32> to vector<8x128xbf16>
    %c0_55 = arith.constant 0 : index
    %c0_56 = arith.constant 0 : index
    %189 = vector.load %arg3[%c0_55, %c0_56] : memref<128x512xbf16, #tpu.memory_space<vmem>>, vector<128x512xbf16>
    %cst_57 = arith.constant dense<0.000000e+00> : vector<8x512xf32>
    %190 = tpu.matmul %188, %189, %cst_57 {dimension_numbers = #tpu.dot_dimension_numbers<[1], [0], [0], [1], [0, 0, 1, 1], [], []>} : vector<8x128xbf16>, vector<128x512xbf16>, vector<8x512xf32> -> vector<8x512xf32>
    %191 = arith.addf %187, %190 : vector<8x512xf32>
    %192 = vector.extract_strided_slice %191 {offsets = [0, 0], sizes = [8, 128], strides = [1, 1]} : vector<8x512xf32> to vector<8x128xf32>
    %193 = arith.negf %192 : vector<8x128xf32>
    %194 = math.exp %193 : vector<8x128xf32>
    %cst_58 = arith.constant 1.000000e+00 : f32
    %195 = vector.broadcast %cst_58 : f32 to vector<8x128xf32>
    %196 = arith.addf %195, %194 : vector<8x128xf32>
    %197 = arith.divf %195, %196 : vector<8x128xf32>
    %198 = vector.extract_strided_slice %191 {offsets = [0, 128], sizes = [8, 128], strides = [1, 1]} : vector<8x512xf32> to vector<8x128xf32>
    %199 = arith.negf %198 : vector<8x128xf32>
    %200 = math.exp %199 : vector<8x128xf32>
    %cst_59 = arith.constant 1.000000e+00 : f32
    %201 = vector.broadcast %cst_59 : f32 to vector<8x128xf32>
    %202 = arith.addf %201, %200 : vector<8x128xf32>
    %203 = arith.divf %201, %202 : vector<8x128xf32>
    %204 = vector.extract_strided_slice %191 {offsets = [0, 256], sizes = [8, 128], strides = [1, 1]} : vector<8x512xf32> to vector<8x128xf32>
    %205 = math.tanh %204 : vector<8x128xf32>
    %206 = vector.extract_strided_slice %191 {offsets = [0, 384], sizes = [8, 128], strides = [1, 1]} : vector<8x512xf32> to vector<8x128xf32>
    %207 = arith.negf %206 : vector<8x128xf32>
    %208 = math.exp %207 : vector<8x128xf32>
    %cst_60 = arith.constant 1.000000e+00 : f32
    %209 = vector.broadcast %cst_60 : f32 to vector<8x128xf32>
    %210 = arith.addf %209, %208 : vector<8x128xf32>
    %211 = arith.divf %209, %210 : vector<8x128xf32>
    %212 = arith.mulf %203, %179 : vector<8x128xf32>
    %213 = arith.mulf %197, %205 : vector<8x128xf32>
    %214 = arith.addf %212, %213 : vector<8x128xf32>
    %215 = math.tanh %214 : vector<8x128xf32>
    %216 = arith.mulf %211, %215 : vector<8x128xf32>
    %217 = arith.index_cast %185 : i32 to index
    %c0_61 = arith.constant 0 : index
    %218 = vector.load %arg21[%217, %c0_61] : memref<128x128xf32, #tpu.memory_space<vmem>>, vector<8x128xf32>
    tpu.vector_store %arg21[%217, %c0_61], %216 {strides = array<i32>} : memref<128x128xf32, #tpu.memory_space<vmem>>, vector<8x128xf32>,
    %c6_i32 = arith.constant 6 : i32
    %c8_i32_62 = arith.constant 8 : i32
    %219 = arith.muli %c6_i32, %c8_i32_62 : i32
    %220 = tpu.assume_multiple %219, 8 : i32
    %221 = arith.index_cast %220 : i32 to index
    %c0_63 = arith.constant 0 : index
    %222 = vector.load %arg20[%221, %c0_63] : memref<128x512xf32, #tpu.memory_space<vmem>>, vector<8x512xf32>
    %223 = arith.truncf %216 : vector<8x128xf32> to vector<8x128xbf16>
    %c0_64 = arith.constant 0 : index
    %c0_65 = arith.constant 0 : index
    %224 = vector.load %arg3[%c0_64, %c0_65] : memref<128x512xbf16, #tpu.memory_space<vmem>>, vector<128x512xbf16>
    %cst_66 = arith.constant dense<0.000000e+00> : vector<8x512xf32>
    %225 = tpu.matmul %223, %224, %cst_66 {dimension_numbers = #tpu.dot_dimension_numbers<[1], [0], [0], [1], [0, 0, 1, 1], [], []>} : vector<8x128xbf16>, vector<128x512xbf16>, vector<8x512xf32> -> vector<8x512xf32>
    %226 = arith.addf %222, %225 : vector<8x512xf32>
    %227 = vector.extract_strided_slice %226 {offsets = [0, 0], sizes = [8, 128], strides = [1, 1]} : vector<8x512xf32> to vector<8x128xf32>
    %228 = arith.negf %227 : vector<8x128xf32>
    %229 = math.exp %228 : vector<8x128xf32>
    %cst_67 = arith.constant 1.000000e+00 : f32
    %230 = vector.broadcast %cst_67 : f32 to vector<8x128xf32>
    %231 = arith.addf %230, %229 : vector<8x128xf32>
    %232 = arith.divf %230, %231 : vector<8x128xf32>
    %233 = vector.extract_strided_slice %226 {offsets = [0, 128], sizes = [8, 128], strides = [1, 1]} : vector<8x512xf32> to vector<8x128xf32>
    %234 = arith.negf %233 : vector<8x128xf32>
    %235 = math.exp %234 : vector<8x128xf32>
    %cst_68 = arith.constant 1.000000e+00 : f32
    %236 = vector.broadcast %cst_68 : f32 to vector<8x128xf32>
    %237 = arith.addf %236, %235 : vector<8x128xf32>
    %238 = arith.divf %236, %237 : vector<8x128xf32>
    %239 = vector.extract_strided_slice %226 {offsets = [0, 256], sizes = [8, 128], strides = [1, 1]} : vector<8x512xf32> to vector<8x128xf32>
    %240 = math.tanh %239 : vector<8x128xf32>
    %241 = vector.extract_strided_slice %226 {offsets = [0, 384], sizes = [8, 128], strides = [1, 1]} : vector<8x512xf32> to vector<8x128xf32>
    %242 = arith.negf %241 : vector<8x128xf32>
    %243 = math.exp %242 : vector<8x128xf32>
    %cst_69 = arith.constant 1.000000e+00 : f32
    %244 = vector.broadcast %cst_69 : f32 to vector<8x128xf32>
    %245 = arith.addf %244, %243 : vector<8x128xf32>
    %246 = arith.divf %244, %245 : vector<8x128xf32>
    %247 = arith.mulf %238, %214 : vector<8x128xf32>
    %248 = arith.mulf %232, %240 : vector<8x128xf32>
    %249 = arith.addf %247, %248 : vector<8x128xf32>
    %250 = math.tanh %249 : vector<8x128xf32>
    %251 = arith.mulf %246, %250 : vector<8x128xf32>
    %252 = arith.index_cast %220 : i32 to index
    %c0_70 = arith.constant 0 : index
    %253 = vector.load %arg21[%252, %c0_70] : memref<128x128xf32, #tpu.memory_space<vmem>>, vector<8x128xf32>
    tpu.vector_store %arg21[%252, %c0_70], %251 {strides = array<i32>} : memref<128x128xf32, #tpu.memory_space<vmem>>, vector<8x128xf32>,
    %c7_i32 = arith.constant 7 : i32
    %c8_i32_71 = arith.constant 8 : i32
    %254 = arith.muli %c7_i32, %c8_i32_71 : i32
    %255 = tpu.assume_multiple %254, 8 : i32
    %256 = arith.index_cast %255 : i32 to index
    %c0_72 = arith.constant 0 : index
    %257 = vector.load %arg20[%256, %c0_72] : memref<128x512xf32, #tpu.memory_space<vmem>>, vector<8x512xf32>
    %258 = arith.truncf %251 : vector<8x128xf32> to vector<8x128xbf16>
    %c0_73 = arith.constant 0 : index
    %c0_74 = arith.constant 0 : index
    %259 = vector.load %arg3[%c0_73, %c0_74] : memref<128x512xbf16, #tpu.memory_space<vmem>>, vector<128x512xbf16>
    %cst_75 = arith.constant dense<0.000000e+00> : vector<8x512xf32>
    %260 = tpu.matmul %258, %259, %cst_75 {dimension_numbers = #tpu.dot_dimension_numbers<[1], [0], [0], [1], [0, 0, 1, 1], [], []>} : vector<8x128xbf16>, vector<128x512xbf16>, vector<8x512xf32> -> vector<8x512xf32>
    %261 = arith.addf %257, %260 : vector<8x512xf32>
    %262 = vector.extract_strided_slice %261 {offsets = [0, 0], sizes = [8, 128], strides = [1, 1]} : vector<8x512xf32> to vector<8x128xf32>
    %263 = arith.negf %262 : vector<8x128xf32>
    %264 = math.exp %263 : vector<8x128xf32>
    %cst_76 = arith.constant 1.000000e+00 : f32
    %265 = vector.broadcast %cst_76 : f32 to vector<8x128xf32>
    %266 = arith.addf %265, %264 : vector<8x128xf32>
    %267 = arith.divf %265, %266 : vector<8x128xf32>
    %268 = vector.extract_strided_slice %261 {offsets = [0, 128], sizes = [8, 128], strides = [1, 1]} : vector<8x512xf32> to vector<8x128xf32>
    %269 = arith.negf %268 : vector<8x128xf32>
    %270 = math.exp %269 : vector<8x128xf32>
    %cst_77 = arith.constant 1.000000e+00 : f32
    %271 = vector.broadcast %cst_77 : f32 to vector<8x128xf32>
    %272 = arith.addf %271, %270 : vector<8x128xf32>
    %273 = arith.divf %271, %272 : vector<8x128xf32>
    %274 = vector.extract_strided_slice %261 {offsets = [0, 256], sizes = [8, 128], strides = [1, 1]} : vector<8x512xf32> to vector<8x128xf32>
    %275 = math.tanh %274 : vector<8x128xf32>
    %276 = vector.extract_strided_slice %261 {offsets = [0, 384], sizes = [8, 128], strides = [1, 1]} : vector<8x512xf32> to vector<8x128xf32>
    %277 = arith.negf %276 : vector<8x128xf32>
    %278 = math.exp %277 : vector<8x128xf32>
    %cst_78 = arith.constant 1.000000e+00 : f32
    %279 = vector.broadcast %cst_78 : f32 to vector<8x128xf32>
    %280 = arith.addf %279, %278 : vector<8x128xf32>
    %281 = arith.divf %279, %280 : vector<8x128xf32>
    %282 = arith.mulf %273, %249 : vector<8x128xf32>
    %283 = arith.mulf %267, %275 : vector<8x128xf32>
    %284 = arith.addf %282, %283 : vector<8x128xf32>
    %285 = math.tanh %284 : vector<8x128xf32>
    %286 = arith.mulf %281, %285 : vector<8x128xf32>
    %287 = arith.index_cast %255 : i32 to index
    %c0_79 = arith.constant 0 : index
    %288 = vector.load %arg21[%287, %c0_79] : memref<128x128xf32, #tpu.memory_space<vmem>>, vector<8x128xf32>
    tpu.vector_store %arg21[%287, %c0_79], %286 {strides = array<i32>} : memref<128x128xf32, #tpu.memory_space<vmem>>, vector<8x128xf32>,
    %c8_i32_80 = arith.constant 8 : i32
    %c8_i32_81 = arith.constant 8 : i32
    %289 = arith.muli %c8_i32_80, %c8_i32_81 : i32
    %290 = tpu.assume_multiple %289, 8 : i32
    %291 = arith.index_cast %290 : i32 to index
    %c0_82 = arith.constant 0 : index
    %292 = vector.load %arg20[%291, %c0_82] : memref<128x512xf32, #tpu.memory_space<vmem>>, vector<8x512xf32>
    %293 = arith.truncf %286 : vector<8x128xf32> to vector<8x128xbf16>
    %c0_83 = arith.constant 0 : index
    %c0_84 = arith.constant 0 : index
    %294 = vector.load %arg3[%c0_83, %c0_84] : memref<128x512xbf16, #tpu.memory_space<vmem>>, vector<128x512xbf16>
    %cst_85 = arith.constant dense<0.000000e+00> : vector<8x512xf32>
    %295 = tpu.matmul %293, %294, %cst_85 {dimension_numbers = #tpu.dot_dimension_numbers<[1], [0], [0], [1], [0, 0, 1, 1], [], []>} : vector<8x128xbf16>, vector<128x512xbf16>, vector<8x512xf32> -> vector<8x512xf32>
    %296 = arith.addf %292, %295 : vector<8x512xf32>
    %297 = vector.extract_strided_slice %296 {offsets = [0, 0], sizes = [8, 128], strides = [1, 1]} : vector<8x512xf32> to vector<8x128xf32>
    %298 = arith.negf %297 : vector<8x128xf32>
    %299 = math.exp %298 : vector<8x128xf32>
    %cst_86 = arith.constant 1.000000e+00 : f32
    %300 = vector.broadcast %cst_86 : f32 to vector<8x128xf32>
    %301 = arith.addf %300, %299 : vector<8x128xf32>
    %302 = arith.divf %300, %301 : vector<8x128xf32>
    %303 = vector.extract_strided_slice %296 {offsets = [0, 128], sizes = [8, 128], strides = [1, 1]} : vector<8x512xf32> to vector<8x128xf32>
    %304 = arith.negf %303 : vector<8x128xf32>
    %305 = math.exp %304 : vector<8x128xf32>
    %cst_87 = arith.constant 1.000000e+00 : f32
    %306 = vector.broadcast %cst_87 : f32 to vector<8x128xf32>
    %307 = arith.addf %306, %305 : vector<8x128xf32>
    %308 = arith.divf %306, %307 : vector<8x128xf32>
    %309 = vector.extract_strided_slice %296 {offsets = [0, 256], sizes = [8, 128], strides = [1, 1]} : vector<8x512xf32> to vector<8x128xf32>
    %310 = math.tanh %309 : vector<8x128xf32>
    %311 = vector.extract_strided_slice %296 {offsets = [0, 384], sizes = [8, 128], strides = [1, 1]} : vector<8x512xf32> to vector<8x128xf32>
    %312 = arith.negf %311 : vector<8x128xf32>
    %313 = math.exp %312 : vector<8x128xf32>
    %cst_88 = arith.constant 1.000000e+00 : f32
    %314 = vector.broadcast %cst_88 : f32 to vector<8x128xf32>
    %315 = arith.addf %314, %313 : vector<8x128xf32>
    %316 = arith.divf %314, %315 : vector<8x128xf32>
    %317 = arith.mulf %308, %284 : vector<8x128xf32>
    %318 = arith.mulf %302, %310 : vector<8x128xf32>
    %319 = arith.addf %317, %318 : vector<8x128xf32>
    %320 = math.tanh %319 : vector<8x128xf32>
    %321 = arith.mulf %316, %320 : vector<8x128xf32>
    %322 = arith.index_cast %290 : i32 to index
    %c0_89 = arith.constant 0 : index
    %323 = vector.load %arg21[%322, %c0_89] : memref<128x128xf32, #tpu.memory_space<vmem>>, vector<8x128xf32>
    tpu.vector_store %arg21[%322, %c0_89], %321 {strides = array<i32>} : memref<128x128xf32, #tpu.memory_space<vmem>>, vector<8x128xf32>,
    %c9_i32 = arith.constant 9 : i32
    %c8_i32_90 = arith.constant 8 : i32
    %324 = arith.muli %c9_i32, %c8_i32_90 : i32
    %325 = tpu.assume_multiple %324, 8 : i32
    %326 = arith.index_cast %325 : i32 to index
    %c0_91 = arith.constant 0 : index
    %327 = vector.load %arg20[%326, %c0_91] : memref<128x512xf32, #tpu.memory_space<vmem>>, vector<8x512xf32>
    %328 = arith.truncf %321 : vector<8x128xf32> to vector<8x128xbf16>
    %c0_92 = arith.constant 0 : index
    %c0_93 = arith.constant 0 : index
    %329 = vector.load %arg3[%c0_92, %c0_93] : memref<128x512xbf16, #tpu.memory_space<vmem>>, vector<128x512xbf16>
    %cst_94 = arith.constant dense<0.000000e+00> : vector<8x512xf32>
    %330 = tpu.matmul %328, %329, %cst_94 {dimension_numbers = #tpu.dot_dimension_numbers<[1], [0], [0], [1], [0, 0, 1, 1], [], []>} : vector<8x128xbf16>, vector<128x512xbf16>, vector<8x512xf32> -> vector<8x512xf32>
    %331 = arith.addf %327, %330 : vector<8x512xf32>
    %332 = vector.extract_strided_slice %331 {offsets = [0, 0], sizes = [8, 128], strides = [1, 1]} : vector<8x512xf32> to vector<8x128xf32>
    %333 = arith.negf %332 : vector<8x128xf32>
    %334 = math.exp %333 : vector<8x128xf32>
    %cst_95 = arith.constant 1.000000e+00 : f32
    %335 = vector.broadcast %cst_95 : f32 to vector<8x128xf32>
    %336 = arith.addf %335, %334 : vector<8x128xf32>
    %337 = arith.divf %335, %336 : vector<8x128xf32>
    %338 = vector.extract_strided_slice %331 {offsets = [0, 128], sizes = [8, 128], strides = [1, 1]} : vector<8x512xf32> to vector<8x128xf32>
    %339 = arith.negf %338 : vector<8x128xf32>
    %340 = math.exp %339 : vector<8x128xf32>
    %cst_96 = arith.constant 1.000000e+00 : f32
    %341 = vector.broadcast %cst_96 : f32 to vector<8x128xf32>
    %342 = arith.addf %341, %340 : vector<8x128xf32>
    %343 = arith.divf %341, %342 : vector<8x128xf32>
    %344 = vector.extract_strided_slice %331 {offsets = [0, 256], sizes = [8, 128], strides = [1, 1]} : vector<8x512xf32> to vector<8x128xf32>
    %345 = math.tanh %344 : vector<8x128xf32>
    %346 = vector.extract_strided_slice %331 {offsets = [0, 384], sizes = [8, 128], strides = [1, 1]} : vector<8x512xf32> to vector<8x128xf32>
    %347 = arith.negf %346 : vector<8x128xf32>
    %348 = math.exp %347 : vector<8x128xf32>
    %cst_97 = arith.constant 1.000000e+00 : f32
    %349 = vector.broadcast %cst_97 : f32 to vector<8x128xf32>
    %350 = arith.addf %349, %348 : vector<8x128xf32>
    %351 = arith.divf %349, %350 : vector<8x128xf32>
    %352 = arith.mulf %343, %319 : vector<8x128xf32>
    %353 = arith.mulf %337, %345 : vector<8x128xf32>
    %354 = arith.addf %352, %353 : vector<8x128xf32>
    %355 = math.tanh %354 : vector<8x128xf32>
    %356 = arith.mulf %351, %355 : vector<8x128xf32>
    %357 = arith.index_cast %325 : i32 to index
    %c0_98 = arith.constant 0 : index
    %358 = vector.load %arg21[%357, %c0_98] : memref<128x128xf32, #tpu.memory_space<vmem>>, vector<8x128xf32>
    tpu.vector_store %arg21[%357, %c0_98], %356 {strides = array<i32>} : memref<128x128xf32, #tpu.memory_space<vmem>>, vector<8x128xf32>,
    %c10_i32 = arith.constant 10 : i32
    %c8_i32_99 = arith.constant 8 : i32
    %359 = arith.muli %c10_i32, %c8_i32_99 : i32
    %360 = tpu.assume_multiple %359, 8 : i32
    %361 = arith.index_cast %360 : i32 to index
    %c0_100 = arith.constant 0 : index
    %362 = vector.load %arg20[%361, %c0_100] : memref<128x512xf32, #tpu.memory_space<vmem>>, vector<8x512xf32>
    %363 = arith.truncf %356 : vector<8x128xf32> to vector<8x128xbf16>
    %c0_101 = arith.constant 0 : index
    %c0_102 = arith.constant 0 : index
    %364 = vector.load %arg3[%c0_101, %c0_102] : memref<128x512xbf16, #tpu.memory_space<vmem>>, vector<128x512xbf16>
    %cst_103 = arith.constant dense<0.000000e+00> : vector<8x512xf32>
    %365 = tpu.matmul %363, %364, %cst_103 {dimension_numbers = #tpu.dot_dimension_numbers<[1], [0], [0], [1], [0, 0, 1, 1], [], []>} : vector<8x128xbf16>, vector<128x512xbf16>, vector<8x512xf32> -> vector<8x512xf32>
    %366 = arith.addf %362, %365 : vector<8x512xf32>
    %367 = vector.extract_strided_slice %366 {offsets = [0, 0], sizes = [8, 128], strides = [1, 1]} : vector<8x512xf32> to vector<8x128xf32>
    %368 = arith.negf %367 : vector<8x128xf32>
    %369 = math.exp %368 : vector<8x128xf32>
    %cst_104 = arith.constant 1.000000e+00 : f32
    %370 = vector.broadcast %cst_104 : f32 to vector<8x128xf32>
    %371 = arith.addf %370, %369 : vector<8x128xf32>
    %372 = arith.divf %370, %371 : vector<8x128xf32>
    %373 = vector.extract_strided_slice %366 {offsets = [0, 128], sizes = [8, 128], strides = [1, 1]} : vector<8x512xf32> to vector<8x128xf32>
    %374 = arith.negf %373 : vector<8x128xf32>
    %375 = math.exp %374 : vector<8x128xf32>
    %cst_105 = arith.constant 1.000000e+00 : f32
    %376 = vector.broadcast %cst_105 : f32 to vector<8x128xf32>
    %377 = arith.addf %376, %375 : vector<8x128xf32>
    %378 = arith.divf %376, %377 : vector<8x128xf32>
    %379 = vector.extract_strided_slice %366 {offsets = [0, 256], sizes = [8, 128], strides = [1, 1]} : vector<8x512xf32> to vector<8x128xf32>
    %380 = math.tanh %379 : vector<8x128xf32>
    %381 = vector.extract_strided_slice %366 {offsets = [0, 384], sizes = [8, 128], strides = [1, 1]} : vector<8x512xf32> to vector<8x128xf32>
    %382 = arith.negf %381 : vector<8x128xf32>
    %383 = math.exp %382 : vector<8x128xf32>
    %cst_106 = arith.constant 1.000000e+00 : f32
    %384 = vector.broadcast %cst_106 : f32 to vector<8x128xf32>
    %385 = arith.addf %384, %383 : vector<8x128xf32>
    %386 = arith.divf %384, %385 : vector<8x128xf32>
    %387 = arith.mulf %378, %354 : vector<8x128xf32>
    %388 = arith.mulf %372, %380 : vector<8x128xf32>
    %389 = arith.addf %387, %388 : vector<8x128xf32>
    %390 = math.tanh %389 : vector<8x128xf32>
    %391 = arith.mulf %386, %390 : vector<8x128xf32>
    %392 = arith.index_cast %360 : i32 to index
    %c0_107 = arith.constant 0 : index
    %393 = vector.load %arg21[%392, %c0_107] : memref<128x128xf32, #tpu.memory_space<vmem>>, vector<8x128xf32>
    tpu.vector_store %arg21[%392, %c0_107], %391 {strides = array<i32>} : memref<128x128xf32, #tpu.memory_space<vmem>>, vector<8x128xf32>,
    %c11_i32 = arith.constant 11 : i32
    %c8_i32_108 = arith.constant 8 : i32
    %394 = arith.muli %c11_i32, %c8_i32_108 : i32
    %395 = tpu.assume_multiple %394, 8 : i32
    %396 = arith.index_cast %395 : i32 to index
    %c0_109 = arith.constant 0 : index
    %397 = vector.load %arg20[%396, %c0_109] : memref<128x512xf32, #tpu.memory_space<vmem>>, vector<8x512xf32>
    %398 = arith.truncf %391 : vector<8x128xf32> to vector<8x128xbf16>
    %c0_110 = arith.constant 0 : index
    %c0_111 = arith.constant 0 : index
    %399 = vector.load %arg3[%c0_110, %c0_111] : memref<128x512xbf16, #tpu.memory_space<vmem>>, vector<128x512xbf16>
    %cst_112 = arith.constant dense<0.000000e+00> : vector<8x512xf32>
    %400 = tpu.matmul %398, %399, %cst_112 {dimension_numbers = #tpu.dot_dimension_numbers<[1], [0], [0], [1], [0, 0, 1, 1], [], []>} : vector<8x128xbf16>, vector<128x512xbf16>, vector<8x512xf32> -> vector<8x512xf32>
    %401 = arith.addf %397, %400 : vector<8x512xf32>
    %402 = vector.extract_strided_slice %401 {offsets = [0, 0], sizes = [8, 128], strides = [1, 1]} : vector<8x512xf32> to vector<8x128xf32>
    %403 = arith.negf %402 : vector<8x128xf32>
    %404 = math.exp %403 : vector<8x128xf32>
    %cst_113 = arith.constant 1.000000e+00 : f32
    %405 = vector.broadcast %cst_113 : f32 to vector<8x128xf32>
    %406 = arith.addf %405, %404 : vector<8x128xf32>
    %407 = arith.divf %405, %406 : vector<8x128xf32>
    %408 = vector.extract_strided_slice %401 {offsets = [0, 128], sizes = [8, 128], strides = [1, 1]} : vector<8x512xf32> to vector<8x128xf32>
    %409 = arith.negf %408 : vector<8x128xf32>
    %410 = math.exp %409 : vector<8x128xf32>
    %cst_114 = arith.constant 1.000000e+00 : f32
    %411 = vector.broadcast %cst_114 : f32 to vector<8x128xf32>
    %412 = arith.addf %411, %410 : vector<8x128xf32>
    %413 = arith.divf %411, %412 : vector<8x128xf32>
    %414 = vector.extract_strided_slice %401 {offsets = [0, 256], sizes = [8, 128], strides = [1, 1]} : vector<8x512xf32> to vector<8x128xf32>
    %415 = math.tanh %414 : vector<8x128xf32>
    %416 = vector.extract_strided_slice %401 {offsets = [0, 384], sizes = [8, 128], strides = [1, 1]} : vector<8x512xf32> to vector<8x128xf32>
    %417 = arith.negf %416 : vector<8x128xf32>
    %418 = math.exp %417 : vector<8x128xf32>
    %cst_115 = arith.constant 1.000000e+00 : f32
    %419 = vector.broadcast %cst_115 : f32 to vector<8x128xf32>
    %420 = arith.addf %419, %418 : vector<8x128xf32>
    %421 = arith.divf %419, %420 : vector<8x128xf32>
    %422 = arith.mulf %413, %389 : vector<8x128xf32>
    %423 = arith.mulf %407, %415 : vector<8x128xf32>
    %424 = arith.addf %422, %423 : vector<8x128xf32>
    %425 = math.tanh %424 : vector<8x128xf32>
    %426 = arith.mulf %421, %425 : vector<8x128xf32>
    %427 = arith.index_cast %395 : i32 to index
    %c0_116 = arith.constant 0 : index
    %428 = vector.load %arg21[%427, %c0_116] : memref<128x128xf32, #tpu.memory_space<vmem>>, vector<8x128xf32>
    tpu.vector_store %arg21[%427, %c0_116], %426 {strides = array<i32>} : memref<128x128xf32, #tpu.memory_space<vmem>>, vector<8x128xf32>,
    %c12_i32 = arith.constant 12 : i32
    %c8_i32_117 = arith.constant 8 : i32
    %429 = arith.muli %c12_i32, %c8_i32_117 : i32
    %430 = tpu.assume_multiple %429, 8 : i32
    %431 = arith.index_cast %430 : i32 to index
    %c0_118 = arith.constant 0 : index
    %432 = vector.load %arg20[%431, %c0_118] : memref<128x512xf32, #tpu.memory_space<vmem>>, vector<8x512xf32>
    %433 = arith.truncf %426 : vector<8x128xf32> to vector<8x128xbf16>
    %c0_119 = arith.constant 0 : index
    %c0_120 = arith.constant 0 : index
    %434 = vector.load %arg3[%c0_119, %c0_120] : memref<128x512xbf16, #tpu.memory_space<vmem>>, vector<128x512xbf16>
    %cst_121 = arith.constant dense<0.000000e+00> : vector<8x512xf32>
    %435 = tpu.matmul %433, %434, %cst_121 {dimension_numbers = #tpu.dot_dimension_numbers<[1], [0], [0], [1], [0, 0, 1, 1], [], []>} : vector<8x128xbf16>, vector<128x512xbf16>, vector<8x512xf32> -> vector<8x512xf32>
    %436 = arith.addf %432, %435 : vector<8x512xf32>
    %437 = vector.extract_strided_slice %436 {offsets = [0, 0], sizes = [8, 128], strides = [1, 1]} : vector<8x512xf32> to vector<8x128xf32>
    %438 = arith.negf %437 : vector<8x128xf32>
    %439 = math.exp %438 : vector<8x128xf32>
    %cst_122 = arith.constant 1.000000e+00 : f32
    %440 = vector.broadcast %cst_122 : f32 to vector<8x128xf32>
    %441 = arith.addf %440, %439 : vector<8x128xf32>
    %442 = arith.divf %440, %441 : vector<8x128xf32>
    %443 = vector.extract_strided_slice %436 {offsets = [0, 128], sizes = [8, 128], strides = [1, 1]} : vector<8x512xf32> to vector<8x128xf32>
    %444 = arith.negf %443 : vector<8x128xf32>
    %445 = math.exp %444 : vector<8x128xf32>
    %cst_123 = arith.constant 1.000000e+00 : f32
    %446 = vector.broadcast %cst_123 : f32 to vector<8x128xf32>
    %447 = arith.addf %446, %445 : vector<8x128xf32>
    %448 = arith.divf %446, %447 : vector<8x128xf32>
    %449 = vector.extract_strided_slice %436 {offsets = [0, 256], sizes = [8, 128], strides = [1, 1]} : vector<8x512xf32> to vector<8x128xf32>
    %450 = math.tanh %449 : vector<8x128xf32>
    %451 = vector.extract_strided_slice %436 {offsets = [0, 384], sizes = [8, 128], strides = [1, 1]} : vector<8x512xf32> to vector<8x128xf32>
    %452 = arith.negf %451 : vector<8x128xf32>
    %453 = math.exp %452 : vector<8x128xf32>
    %cst_124 = arith.constant 1.000000e+00 : f32
    %454 = vector.broadcast %cst_124 : f32 to vector<8x128xf32>
    %455 = arith.addf %454, %453 : vector<8x128xf32>
    %456 = arith.divf %454, %455 : vector<8x128xf32>
    %457 = arith.mulf %448, %424 : vector<8x128xf32>
    %458 = arith.mulf %442, %450 : vector<8x128xf32>
    %459 = arith.addf %457, %458 : vector<8x128xf32>
    %460 = math.tanh %459 : vector<8x128xf32>
    %461 = arith.mulf %456, %460 : vector<8x128xf32>
    %462 = arith.index_cast %430 : i32 to index
    %c0_125 = arith.constant 0 : index
    %463 = vector.load %arg21[%462, %c0_125] : memref<128x128xf32, #tpu.memory_space<vmem>>, vector<8x128xf32>
    tpu.vector_store %arg21[%462, %c0_125], %461 {strides = array<i32>} : memref<128x128xf32, #tpu.memory_space<vmem>>, vector<8x128xf32>,
    %c13_i32 = arith.constant 13 : i32
    %c8_i32_126 = arith.constant 8 : i32
    %464 = arith.muli %c13_i32, %c8_i32_126 : i32
    %465 = tpu.assume_multiple %464, 8 : i32
    %466 = arith.index_cast %465 : i32 to index
    %c0_127 = arith.constant 0 : index
    %467 = vector.load %arg20[%466, %c0_127] : memref<128x512xf32, #tpu.memory_space<vmem>>, vector<8x512xf32>
    %468 = arith.truncf %461 : vector<8x128xf32> to vector<8x128xbf16>
    %c0_128 = arith.constant 0 : index
    %c0_129 = arith.constant 0 : index
    %469 = vector.load %arg3[%c0_128, %c0_129] : memref<128x512xbf16, #tpu.memory_space<vmem>>, vector<128x512xbf16>
    %cst_130 = arith.constant dense<0.000000e+00> : vector<8x512xf32>
    %470 = tpu.matmul %468, %469, %cst_130 {dimension_numbers = #tpu.dot_dimension_numbers<[1], [0], [0], [1], [0, 0, 1, 1], [], []>} : vector<8x128xbf16>, vector<128x512xbf16>, vector<8x512xf32> -> vector<8x512xf32>
    %471 = arith.addf %467, %470 : vector<8x512xf32>
    %472 = vector.extract_strided_slice %471 {offsets = [0, 0], sizes = [8, 128], strides = [1, 1]} : vector<8x512xf32> to vector<8x128xf32>
    %473 = arith.negf %472 : vector<8x128xf32>
    %474 = math.exp %473 : vector<8x128xf32>
    %cst_131 = arith.constant 1.000000e+00 : f32
    %475 = vector.broadcast %cst_131 : f32 to vector<8x128xf32>
    %476 = arith.addf %475, %474 : vector<8x128xf32>
    %477 = arith.divf %475, %476 : vector<8x128xf32>
    %478 = vector.extract_strided_slice %471 {offsets = [0, 128], sizes = [8, 128], strides = [1, 1]} : vector<8x512xf32> to vector<8x128xf32>
    %479 = arith.negf %478 : vector<8x128xf32>
    %480 = math.exp %479 : vector<8x128xf32>
    %cst_132 = arith.constant 1.000000e+00 : f32
    %481 = vector.broadcast %cst_132 : f32 to vector<8x128xf32>
    %482 = arith.addf %481, %480 : vector<8x128xf32>
    %483 = arith.divf %481, %482 : vector<8x128xf32>
    %484 = vector.extract_strided_slice %471 {offsets = [0, 256], sizes = [8, 128], strides = [1, 1]} : vector<8x512xf32> to vector<8x128xf32>
    %485 = math.tanh %484 : vector<8x128xf32>
    %486 = vector.extract_strided_slice %471 {offsets = [0, 384], sizes = [8, 128], strides = [1, 1]} : vector<8x512xf32> to vector<8x128xf32>
    %487 = arith.negf %486 : vector<8x128xf32>
    %488 = math.exp %487 : vector<8x128xf32>
    %cst_133 = arith.constant 1.000000e+00 : f32
    %489 = vector.broadcast %cst_133 : f32 to vector<8x128xf32>
    %490 = arith.addf %489, %488 : vector<8x128xf32>
    %491 = arith.divf %489, %490 : vector<8x128xf32>
    %492 = arith.mulf %483, %459 : vector<8x128xf32>
    %493 = arith.mulf %477, %485 : vector<8x128xf32>
    %494 = arith.addf %492, %493 : vector<8x128xf32>
    %495 = math.tanh %494 : vector<8x128xf32>
    %496 = arith.mulf %491, %495 : vector<8x128xf32>
    %497 = arith.index_cast %465 : i32 to index
    %c0_134 = arith.constant 0 : index
    %498 = vector.load %arg21[%497, %c0_134] : memref<128x128xf32, #tpu.memory_space<vmem>>, vector<8x128xf32>
    tpu.vector_store %arg21[%497, %c0_134], %496 {strides = array<i32>} : memref<128x128xf32, #tpu.memory_space<vmem>>, vector<8x128xf32>,
    %c14_i32 = arith.constant 14 : i32
    %c8_i32_135 = arith.constant 8 : i32
    %499 = arith.muli %c14_i32, %c8_i32_135 : i32
    %500 = tpu.assume_multiple %499, 8 : i32
    %501 = arith.index_cast %500 : i32 to index
    %c0_136 = arith.constant 0 : index
    %502 = vector.load %arg20[%501, %c0_136] : memref<128x512xf32, #tpu.memory_space<vmem>>, vector<8x512xf32>
    %503 = arith.truncf %496 : vector<8x128xf32> to vector<8x128xbf16>
    %c0_137 = arith.constant 0 : index
    %c0_138 = arith.constant 0 : index
    %504 = vector.load %arg3[%c0_137, %c0_138] : memref<128x512xbf16, #tpu.memory_space<vmem>>, vector<128x512xbf16>
    %cst_139 = arith.constant dense<0.000000e+00> : vector<8x512xf32>
    %505 = tpu.matmul %503, %504, %cst_139 {dimension_numbers = #tpu.dot_dimension_numbers<[1], [0], [0], [1], [0, 0, 1, 1], [], []>} : vector<8x128xbf16>, vector<128x512xbf16>, vector<8x512xf32> -> vector<8x512xf32>
    %506 = arith.addf %502, %505 : vector<8x512xf32>
    %507 = vector.extract_strided_slice %506 {offsets = [0, 0], sizes = [8, 128], strides = [1, 1]} : vector<8x512xf32> to vector<8x128xf32>
    %508 = arith.negf %507 : vector<8x128xf32>
    %509 = math.exp %508 : vector<8x128xf32>
    %cst_140 = arith.constant 1.000000e+00 : f32
    %510 = vector.broadcast %cst_140 : f32 to vector<8x128xf32>
    %511 = arith.addf %510, %509 : vector<8x128xf32>
    %512 = arith.divf %510, %511 : vector<8x128xf32>
    %513 = vector.extract_strided_slice %506 {offsets = [0, 128], sizes = [8, 128], strides = [1, 1]} : vector<8x512xf32> to vector<8x128xf32>
    %514 = arith.negf %513 : vector<8x128xf32>
    %515 = math.exp %514 : vector<8x128xf32>
    %cst_141 = arith.constant 1.000000e+00 : f32
    %516 = vector.broadcast %cst_141 : f32 to vector<8x128xf32>
    %517 = arith.addf %516, %515 : vector<8x128xf32>
    %518 = arith.divf %516, %517 : vector<8x128xf32>
    %519 = vector.extract_strided_slice %506 {offsets = [0, 256], sizes = [8, 128], strides = [1, 1]} : vector<8x512xf32> to vector<8x128xf32>
    %520 = math.tanh %519 : vector<8x128xf32>
    %521 = vector.extract_strided_slice %506 {offsets = [0, 384], sizes = [8, 128], strides = [1, 1]} : vector<8x512xf32> to vector<8x128xf32>
    %522 = arith.negf %521 : vector<8x128xf32>
    %523 = math.exp %522 : vector<8x128xf32>
    %cst_142 = arith.constant 1.000000e+00 : f32
    %524 = vector.broadcast %cst_142 : f32 to vector<8x128xf32>
    %525 = arith.addf %524, %523 : vector<8x128xf32>
    %526 = arith.divf %524, %525 : vector<8x128xf32>
    %527 = arith.mulf %518, %494 : vector<8x128xf32>
    %528 = arith.mulf %512, %520 : vector<8x128xf32>
    %529 = arith.addf %527, %528 : vector<8x128xf32>
    %530 = math.tanh %529 : vector<8x128xf32>
    %531 = arith.mulf %526, %530 : vector<8x128xf32>
    %532 = arith.index_cast %500 : i32 to index
    %c0_143 = arith.constant 0 : index
    %533 = vector.load %arg21[%532, %c0_143] : memref<128x128xf32, #tpu.memory_space<vmem>>, vector<8x128xf32>
    tpu.vector_store %arg21[%532, %c0_143], %531 {strides = array<i32>} : memref<128x128xf32, #tpu.memory_space<vmem>>, vector<8x128xf32>,
    %c15_i32 = arith.constant 15 : i32
    %c8_i32_144 = arith.constant 8 : i32
    %534 = arith.muli %c15_i32, %c8_i32_144 : i32
    %535 = tpu.assume_multiple %534, 8 : i32
    %536 = arith.index_cast %535 : i32 to index
    %c0_145 = arith.constant 0 : index
    %537 = vector.load %arg20[%536, %c0_145] : memref<128x512xf32, #tpu.memory_space<vmem>>, vector<8x512xf32>
    %538 = arith.truncf %531 : vector<8x128xf32> to vector<8x128xbf16>
    %c0_146 = arith.constant 0 : index
    %c0_147 = arith.constant 0 : index
    %539 = vector.load %arg3[%c0_146, %c0_147] : memref<128x512xbf16, #tpu.memory_space<vmem>>, vector<128x512xbf16>
    %cst_148 = arith.constant dense<0.000000e+00> : vector<8x512xf32>
    %540 = tpu.matmul %538, %539, %cst_148 {dimension_numbers = #tpu.dot_dimension_numbers<[1], [0], [0], [1], [0, 0, 1, 1], [], []>} : vector<8x128xbf16>, vector<128x512xbf16>, vector<8x512xf32> -> vector<8x512xf32>
    %541 = arith.addf %537, %540 : vector<8x512xf32>
    %542 = vector.extract_strided_slice %541 {offsets = [0, 0], sizes = [8, 128], strides = [1, 1]} : vector<8x512xf32> to vector<8x128xf32>
    %543 = arith.negf %542 : vector<8x128xf32>
    %544 = math.exp %543 : vector<8x128xf32>
    %cst_149 = arith.constant 1.000000e+00 : f32
    %545 = vector.broadcast %cst_149 : f32 to vector<8x128xf32>
    %546 = arith.addf %545, %544 : vector<8x128xf32>
    %547 = arith.divf %545, %546 : vector<8x128xf32>
    %548 = vector.extract_strided_slice %541 {offsets = [0, 128], sizes = [8, 128], strides = [1, 1]} : vector<8x512xf32> to vector<8x128xf32>
    %549 = arith.negf %548 : vector<8x128xf32>
    %550 = math.exp %549 : vector<8x128xf32>
    %cst_150 = arith.constant 1.000000e+00 : f32
    %551 = vector.broadcast %cst_150 : f32 to vector<8x128xf32>
    %552 = arith.addf %551, %550 : vector<8x128xf32>
    %553 = arith.divf %551, %552 : vector<8x128xf32>
    %554 = vector.extract_strided_slice %541 {offsets = [0, 256], sizes = [8, 128], strides = [1, 1]} : vector<8x512xf32> to vector<8x128xf32>
    %555 = math.tanh %554 : vector<8x128xf32>
    %556 = vector.extract_strided_slice %541 {offsets = [0, 384], sizes = [8, 128], strides = [1, 1]} : vector<8x512xf32> to vector<8x128xf32>
    %557 = arith.negf %556 : vector<8x128xf32>
    %558 = math.exp %557 : vector<8x128xf32>
    %cst_151 = arith.constant 1.000000e+00 : f32
    %559 = vector.broadcast %cst_151 : f32 to vector<8x128xf32>
    %560 = arith.addf %559, %558 : vector<8x128xf32>
    %561 = arith.divf %559, %560 : vector<8x128xf32>
    %562 = arith.mulf %553, %529 : vector<8x128xf32>
    %563 = arith.mulf %547, %555 : vector<8x128xf32>
    %564 = arith.addf %562, %563 : vector<8x128xf32>
    %565 = math.tanh %564 : vector<8x128xf32>
    %566 = arith.mulf %561, %565 : vector<8x128xf32>
    %567 = arith.index_cast %535 : i32 to index
    %c0_152 = arith.constant 0 : index
    %568 = vector.load %arg21[%567, %c0_152] : memref<128x128xf32, #tpu.memory_space<vmem>>, vector<8x128xf32>
    tpu.vector_store %arg21[%567, %c0_152], %566 {strides = array<i32>} : memref<128x128xf32, #tpu.memory_space<vmem>>, vector<8x128xf32>,
    %c16_i32 = arith.constant 16 : i32
    %c0_153 = arith.constant 0 : index
    %c0_154 = arith.constant 0 : index
    %569 = vector.load %arg1[%c0_153, %c0_154] : memref<24x128xbf16, #tpu.memory_space<vmem>>, vector<24x128xbf16>
    %c0_155 = arith.constant 0 : index
    %c0_156 = arith.constant 0 : index
    %570 = vector.load %arg21[%c0_155, %c0_156] : memref<128x128xf32, #tpu.memory_space<vmem>>, vector<128x128xf32>
    %571 = arith.truncf %570 : vector<128x128xf32> to vector<128x128xbf16>
    %cst_157 = arith.constant dense<0.000000e+00> : vector<24x128xf32>
    %572 = tpu.matmul %569, %571, %cst_157 {dimension_numbers = #tpu.dot_dimension_numbers<[1], [0], [0], [1], [0, 0, 1, 1], [], []>} : vector<24x128xbf16>, vector<128x128xbf16>, vector<24x128xf32> -> vector<24x128xf32>
    %573 = arith.truncf %572 : vector<24x128xf32> to vector<24x128xbf16>
    %c0_158 = arith.constant 0 : index
    %c0_159 = arith.constant 0 : index
    %574 = vector.load %arg5[%c0_158, %c0_159] : memref<128x128xbf16, #tpu.memory_space<vmem>>, vector<128x128xbf16>
    %cst_160 = arith.constant dense<0.000000e+00> : vector<24x128xf32>
    %575 = tpu.matmul %573, %574, %cst_160 {dimension_numbers = #tpu.dot_dimension_numbers<[1], [0], [0], [1], [0, 0, 1, 1], [], []>} : vector<24x128xbf16>, vector<128x128xbf16>, vector<24x128xf32> -> vector<24x128xf32>
    %c0_161 = arith.constant 0 : index
    %c0_162 = arith.constant 0 : index
    %576 = vector.load %arg6[%c0_161, %c0_162] : memref<1x128xf32, #tpu.memory_space<vmem>>, vector<1x128xf32>
    %577 = vector.broadcast %576 : vector<1x128xf32> to vector<24x128xf32>
    %578 = arith.addf %575, %577 : vector<24x128xf32>
    %cst_163 = arith.constant 0.000000e+00 : f32
    %579 = vector.broadcast %cst_163 : f32 to vector<24x128xf32>
    %580 = arith.maximumf %578, %579 : vector<24x128xf32>
    %581 = arith.truncf %580 : vector<24x128xf32> to vector<24x128xbf16>
    %c0_164 = arith.constant 0 : index
    %c0_165 = arith.constant 0 : index
    %582 = vector.load %arg7[%c0_164, %c0_165] : memref<128x128xbf16, #tpu.memory_space<vmem>>, vector<128x128xbf16>
    %cst_166 = arith.constant dense<0.000000e+00> : vector<24x128xf32>
    %583 = tpu.matmul %581, %582, %cst_166 {dimension_numbers = #tpu.dot_dimension_numbers<[1], [0], [0], [1], [0, 0, 1, 1], [], []>} : vector<24x128xbf16>, vector<128x128xbf16>, vector<24x128xf32> -> vector<24x128xf32>
    %c0_167 = arith.constant 0 : index
    %c0_168 = arith.constant 0 : index
    %584 = vector.load %arg8[%c0_167, %c0_168] : memref<1x128xf32, #tpu.memory_space<vmem>>, vector<1x128xf32>
    %585 = vector.broadcast %584 : vector<1x128xf32> to vector<24x128xf32>
    %586 = arith.addf %583, %585 : vector<24x128xf32>
    %cst_169 = arith.constant 0.000000e+00 : f32
    %587 = vector.broadcast %cst_169 : f32 to vector<24x128xf32>
    %588 = arith.maximumf %586, %587 : vector<24x128xf32>
    %589 = arith.truncf %588 : vector<24x128xf32> to vector<24x128xbf16>
    %c0_170 = arith.constant 0 : index
    %c0_171 = arith.constant 0 : index
    %590 = vector.load %arg9[%c0_170, %c0_171] : memref<128x128xbf16, #tpu.memory_space<vmem>>, vector<128x128xbf16>
    %cst_172 = arith.constant dense<0.000000e+00> : vector<24x128xf32>
    %591 = tpu.matmul %589, %590, %cst_172 {dimension_numbers = #tpu.dot_dimension_numbers<[1], [0], [0], [1], [0, 0, 1, 1], [], []>} : vector<24x128xbf16>, vector<128x128xbf16>, vector<24x128xf32> -> vector<24x128xf32>
    %c0_173 = arith.constant 0 : index
    %c0_174 = arith.constant 0 : index
    %592 = vector.load %arg10[%c0_173, %c0_174] : memref<1x128xf32, #tpu.memory_space<vmem>>, vector<1x128xf32>
    %593 = vector.broadcast %592 : vector<1x128xf32> to vector<24x128xf32>
    %594 = arith.addf %591, %593 : vector<24x128xf32>
    %cst_175 = arith.constant 0.000000e+00 : f32
    %595 = vector.broadcast %cst_175 : f32 to vector<24x128xf32>
    %596 = arith.maximumf %594, %595 : vector<24x128xf32>
    %597 = arith.truncf %596 : vector<24x128xf32> to vector<24x128xbf16>
    %c0_176 = arith.constant 0 : index
    %c0_177 = arith.constant 0 : index
    %598 = vector.load %arg11[%c0_176, %c0_177] : memref<128x128xbf16, #tpu.memory_space<vmem>>, vector<128x128xbf16>
    %cst_178 = arith.constant dense<0.000000e+00> : vector<24x128xf32>
    %599 = tpu.matmul %597, %598, %cst_178 {dimension_numbers = #tpu.dot_dimension_numbers<[1], [0], [0], [1], [0, 0, 1, 1], [], []>} : vector<24x128xbf16>, vector<128x128xbf16>, vector<24x128xf32> -> vector<24x128xf32>
    %c0_179 = arith.constant 0 : index
    %c0_180 = arith.constant 0 : index
    %600 = vector.load %arg12[%c0_179, %c0_180] : memref<1x128xf32, #tpu.memory_space<vmem>>, vector<1x128xf32>
    %601 = vector.broadcast %600 : vector<1x128xf32> to vector<24x128xf32>
    %602 = arith.addf %599, %601 : vector<24x128xf32>
    %cst_181 = arith.constant 0.000000e+00 : f32
    %603 = vector.broadcast %cst_181 : f32 to vector<24x128xf32>
    %604 = arith.maximumf %602, %603 : vector<24x128xf32>
    %605 = arith.truncf %604 : vector<24x128xf32> to vector<24x128xbf16>
    %c0_182 = arith.constant 0 : index
    %c0_183 = arith.constant 0 : index
    %606 = vector.load %arg13[%c0_182, %c0_183] : memref<128x128xbf16, #tpu.memory_space<vmem>>, vector<128x128xbf16>
    %cst_184 = arith.constant dense<0.000000e+00> : vector<24x128xf32>
    %607 = tpu.matmul %605, %606, %cst_184 {dimension_numbers = #tpu.dot_dimension_numbers<[1], [0], [0], [1], [0, 0, 1, 1], [], []>} : vector<24x128xbf16>, vector<128x128xbf16>, vector<24x128xf32> -> vector<24x128xf32>
    %c0_185 = arith.constant 0 : index
    %c0_186 = arith.constant 0 : index
    %608 = vector.load %arg14[%c0_185, %c0_186] : memref<1x128xf32, #tpu.memory_space<vmem>>, vector<1x128xf32>
    %609 = vector.broadcast %608 : vector<1x128xf32> to vector<24x128xf32>
    %610 = arith.addf %607, %609 : vector<24x128xf32>
    %cst_187 = arith.constant 0.000000e+00 : f32
    %611 = vector.broadcast %cst_187 : f32 to vector<24x128xf32>
    %612 = arith.maximumf %610, %611 : vector<24x128xf32>
    %613 = arith.truncf %612 : vector<24x128xf32> to vector<24x128xbf16>
    %c0_188 = arith.constant 0 : index
    %c0_189 = arith.constant 0 : index
    %614 = vector.load %arg15[%c0_188, %c0_189] : memref<128x128xbf16, #tpu.memory_space<vmem>>, vector<128x128xbf16>
    %cst_190 = arith.constant dense<0.000000e+00> : vector<24x128xf32>
    %615 = tpu.matmul %613, %614, %cst_190 {dimension_numbers = #tpu.dot_dimension_numbers<[1], [0], [0], [1], [0, 0, 1, 1], [], []>} : vector<24x128xbf16>, vector<128x128xbf16>, vector<24x128xf32> -> vector<24x128xf32>
    %c0_191 = arith.constant 0 : index
    %c0_192 = arith.constant 0 : index
    %616 = vector.load %arg16[%c0_191, %c0_192] : memref<1x128xf32, #tpu.memory_space<vmem>>, vector<1x128xf32>
    %617 = vector.broadcast %616 : vector<1x128xf32> to vector<24x128xf32>
    %618 = arith.addf %615, %617 : vector<24x128xf32>
    %cst_193 = arith.constant 0.000000e+00 : f32
    %619 = vector.broadcast %cst_193 : f32 to vector<24x128xf32>
    %620 = arith.maximumf %618, %619 : vector<24x128xf32>
    %621 = arith.truncf %620 : vector<24x128xf32> to vector<24x128xbf16>
    %c0_194 = arith.constant 0 : index
    %c0_195 = arith.constant 0 : index
    %622 = vector.load %arg17[%c0_194, %c0_195] : memref<128x2xbf16, #tpu.memory_space<vmem>>, vector<128x2xbf16>
    %cst_196 = arith.constant dense<0.000000e+00> : vector<24x2xf32>
    %623 = tpu.matmul %621, %622, %cst_196 {dimension_numbers = #tpu.dot_dimension_numbers<[1], [0], [0], [1], [0, 0, 1, 1], [], []>} : vector<24x128xbf16>, vector<128x2xbf16>, vector<24x2xf32> -> vector<24x2xf32>
    %c0_197 = arith.constant 0 : index
    %c0_198 = arith.constant 0 : index
    %624 = vector.load %arg18[%c0_197, %c0_198] : memref<1x2xf32, #tpu.memory_space<vmem>>, vector<1x2xf32>
    %625 = vector.broadcast %624 : vector<1x2xf32> to vector<24x2xf32>
    %626 = arith.addf %623, %625 : vector<24x2xf32>
    %cst_199 = arith.constant dense<0xFF800000> : vector<24xf32>
    %627 = vector.multi_reduction <maximumf>, %626, %cst_199 [1] : vector<24x2xf32> to vector<24xf32>
    %628 = vector.shape_cast %627 : vector<24xf32> to vector<24x1xf32>
    %629 = vector.broadcast %628 : vector<24x1xf32> to vector<24x2xf32>
    %630 = arith.subf %626, %629 : vector<24x2xf32>
    %631 = math.exp %630 : vector<24x2xf32>
    %cst_200 = arith.constant dense<0.000000e+00> : vector<24xf32>
    %632 = vector.multi_reduction <add>, %631, %cst_200 [1] : vector<24x2xf32> to vector<24xf32>
    %633 = vector.shape_cast %632 : vector<24xf32> to vector<24x1xf32>
    %634 = vector.broadcast %633 : vector<24x1xf32> to vector<24x2xf32>
    %635 = arith.divf %631, %634 : vector<24x2xf32>
    %cst_201 = arith.constant 0.000000e+00 : f32
    %636 = vector.broadcast %cst_201 : f32 to vector<2x2xf32>
    %637 = tpu.concatenate %636, %635, %636 in 0 : vector<2x2xf32>, vector<24x2xf32>, vector<2x2xf32> -> vector<28x2xf32>
    %638 = vector.extract_strided_slice %637 {offsets = [0, 0], sizes = [24, 2], strides = [1, 1]} : vector<28x2xf32> to vector<24x2xf32>
    %639 = vector.extract_strided_slice %637 {offsets = [1, 0], sizes = [24, 2], strides = [1, 1]} : vector<28x2xf32> to vector<24x2xf32>
    %640 = arith.addf %638, %639 : vector<24x2xf32>
    %641 = vector.extract_strided_slice %637 {offsets = [2, 0], sizes = [24, 2], strides = [1, 1]} : vector<28x2xf32> to vector<24x2xf32>
    %642 = arith.addf %640, %641 : vector<24x2xf32>
    %643 = vector.extract_strided_slice %637 {offsets = [3, 0], sizes = [24, 2], strides = [1, 1]} : vector<28x2xf32> to vector<24x2xf32>
    %644 = arith.addf %642, %643 : vector<24x2xf32>
    %645 = vector.extract_strided_slice %637 {offsets = [4, 0], sizes = [24, 2], strides = [1, 1]} : vector<28x2xf32> to vector<24x2xf32>
    %646 = arith.addf %644, %645 : vector<24x2xf32>
    %cst_202 = arith.constant 2.000000e-01 : f32
    %647 = vector.broadcast %cst_202 : f32 to vector<24x2xf32>
    %648 = arith.mulf %647, %646 : vector<24x2xf32>
    %649 = tpu.iota {dimensions = array<i32: 0>} : vector<24x2xi32>
    %c2_i32_203 = arith.constant 2 : i32
    %650 = vector.broadcast %c2_i32_203 : i32 to vector<24x2xi32>
    %651 = arith.cmpi slt, %649, %650 : vector<24x2xi32>
    %c18_i32 = arith.constant 18 : i32
    %652 = vector.broadcast %c18_i32 : i32 to vector<24x2xi32>
    %653 = arith.cmpi sge, %649, %652 : vector<24x2xi32>
    %654 = arith.ori %651, %653 : vector<24x2xi1>
    %655 = arith.select %654, %635, %648 : vector<24x2xi1>, vector<24x2xf32>
    %656 = vector.extract_strided_slice %655 {offsets = [0, 0], sizes = [20, 2], strides = [1, 1]} : vector<24x2xf32> to vector<20x2xf32>
    %c0_204 = arith.constant 0 : index
    %c0_205 = arith.constant 0 : index
    %657 = vector.load %arg19[%c0_204, %c0_205] : memref<20x2xf32, #tpu.memory_space<vmem>>, vector<20x2xf32>
    tpu.vector_store %arg19[%c0_204, %c0_205], %656 {strides = array<i32>} : memref<20x2xf32, #tpu.memory_space<vmem>>, vector<20x2xf32>,
    return
  }
}

</mosaic_0001>

<llo_original>
// kernel: tpu_custom_call.1
$region0: #{tpu_custom_call.1}
  #allocation0 [shape = 'u32[]', space=smem, size = 0x4, offset = 0x4, fixed_abs, tag = 'smem constant byte address 0x4 - core index']
  #allocation1 [shape = 'u32[144,128]{1,0:T(1,128)}', space=vmem, size = 0x12000, scoped, tag = 'internal scratch']
  #allocation2 [shape = 'f32[128,512]{1,0:T(8,128)}', space=vmem, size = 0x40000, scoped, tag = 'scratch operand']
  #allocation3 [shape = 'f32[128,128]{1,0:T(8,128)}', space=vmem, size = 0x10000, scoped, tag = 'scratch operand']
  %s0 = inlined_call_operand.vmem [shape: bf16[128,48], index: 0, kind: input, shape index: {}]
  %s1 = inlined_call_operand.hbm [shape: bf16[24,128], index: 1, kind: input, shape index: {}]
  %s2 = inlined_call_operand.vmem [shape: bf16[48,512], index: 2, kind: input, shape index: {}]
  %s3 = inlined_call_operand.hbm [shape: bf16[128,512], index: 3, kind: input, shape index: {}]
  %s4 = inlined_call_operand.vmem [shape: f32[1,512], index: 4, kind: input, shape index: {}]
  %s5 = inlined_call_operand.vmem [shape: bf16[128,128], index: 5, kind: input, shape index: {}]
  %s6 = inlined_call_operand.vmem [shape: f32[1,128], index: 6, kind: input, shape index: {}]
  %s7 = inlined_call_operand.hbm [shape: bf16[128,128], index: 7, kind: input, shape index: {}]
  %s8 = inlined_call_operand.vmem [shape: f32[1,128], index: 8, kind: input, shape index: {}]
  %s9 = inlined_call_operand.hbm [shape: bf16[128,128], index: 9, kind: input, shape index: {}]
  %s10 = inlined_call_operand.vmem [shape: f32[1,128], index: 10, kind: input, shape index: {}]
  %s11 = inlined_call_operand.hbm [shape: bf16[128,128], index: 11, kind: input, shape index: {}]
  %s12 = inlined_call_operand.vmem [shape: f32[1,128], index: 12, kind: input, shape index: {}]
  %s13 = inlined_call_operand.hbm [shape: bf16[128,128], index: 13, kind: input, shape index: {}]
  %s14 = inlined_call_operand.vmem [shape: f32[1,128], index: 14, kind: input, shape index: {}]
  %s15 = inlined_call_operand.hbm [shape: bf16[128,128], index: 15, kind: input, shape index: {}]
  %s16 = inlined_call_operand.vmem [shape: f32[1,128], index: 16, kind: input, shape index: {}]
  %s17 = inlined_call_operand.vmem [shape: bf16[128,2], index: 17, kind: input, shape index: {}]
  %s18 = inlined_call_operand.vmem [shape: f32[1,2], index: 18, kind: input, shape index: {}]
  %s19 = inlined_call_operand.vmem [shape: f32[20,2], index: 19, kind: output, shape index: {}]
  %s20 = sld [smem:[#allocation0]]
  $region114: #{tpu_custom_call.1} parent=0
    _
  %s22 = ssub.s32 1, %s20
  %s23 = scalar_select 0, %s22, %s20
  $region1: #{tpu_custom_call.1} parent=0
    #allocation4 [shape = 'u8[6144]{0}', space=vmem, size = 0x1800, scoped, tag = 'input window, operand 1, single buffered']
    #allocation5 [shape = 's32[1]{0}', space=sflag, size = 0x4, scoped, tag = 'scoped memory for tpu_custom_call.1']
    #allocation6 [shape = 'u8[131072]{0}', space=vmem, size = 0x20000, scoped, tag = 'input window, operand 3, single buffered']
    #allocation7 [shape = 's32[1]{0}', space=sflag, size = 0x4, scoped, tag = 'scoped memory for tpu_custom_call.1']
    #allocation8 [shape = 'u8[32768]{0}', space=vmem, size = 0x8000, scoped, tag = 'input window, operand 7, single buffered']
    #allocation9 [shape = 'u8[32768]{0}', space=vmem, size = 0x8000, scoped, tag = 'input window, operand 9, single buffered']
    #allocation10 [shape = 's32[1]{0}', space=sflag, size = 0x4, scoped, tag = 'scoped memory for tpu_custom_call.1']
    #allocation11 [shape = 'u8[32768]{0}', space=vmem, size = 0x8000, scoped, tag = 'input window, operand 11, single buffered']
    #allocation12 [shape = 'u8[32768]{0}', space=vmem, size = 0x8000, scoped, tag = 'input window, operand 13, single buffered']
    #allocation13 [shape = 's32[1]{0}', space=sflag, size = 0x4, scoped, tag = 'scoped memory for tpu_custom_call.1']
    #allocation14 [shape = 'u8[32768]{0}', space=vmem, size = 0x8000, scoped, tag = 'input window, operand 15, single buffered']
    %24 = vsyncpa [#allocation5], 0
    %25 = vsyncpa [#allocation7], 0
    %26 = vsyncpa [#allocation10], 0
    %27 = vsyncpa [#allocation13], 0
    // Predicated region
    $region2: #{tpu_custom_call.1} parent=1 // pred_check
      _
    $region3: #{tpu_custom_call.1} parent=1 // pred_check_branch
      %29 = sbr.rel (0) target = $region5
    $region4: #{tpu_custom_call.1} parent=1 // pred_region
      _
    $region5: #{tpu_custom_call.1} parent=1 // pred_fallthru
      _
    // Predicated region
    $region6: #{tpu_custom_call.1} parent=1 // pred_check
      _
    $region7: #{tpu_custom_call.1} parent=1 // pred_check_branch
      %31 = sbr.rel (0) target = $region9
    $region8: #{tpu_custom_call.1} parent=1 // pred_region
      %s33 = ssub.s32 192, 192
      %34 = vsyncadd [#allocation5], %s33
      %s35 = sshll.u32 [#allocation4], 4
      %s36 = int_to_ptr.vmem [resolvable:$true] %s35
      %41 = dma.hbm_to_vmem [thread:$0]  %s1, 192, %s36, [#allocation5], 64, 64, 4
    $region9: #{tpu_custom_call.1} parent=1 // pred_fallthru
      _
    // Predicated region
    $region10: #{tpu_custom_call.1} parent=1 // pred_check
      _
    $region11: #{tpu_custom_call.1} parent=1 // pred_check_branch
      %43 = sbr.rel (0) target = $region13
    $region12: #{tpu_custom_call.1} parent=1 // pred_region
      _
    $region13: #{tpu_custom_call.1} parent=1 // pred_fallthru
      _
    // Predicated region
    $region14: #{tpu_custom_call.1} parent=1 // pred_check
      _
    $region15: #{tpu_custom_call.1} parent=1 // pred_check_branch
      %45 = sbr.rel (0) target = $region17
    $region16: #{tpu_custom_call.1} parent=1 // pred_region
      %s47 = ssub.s32 4096, 4096
      %48 = vsyncadd [#allocation7], %s47
      %s49 = sshll.u32 [#allocation6], 4
      %s50 = int_to_ptr.vmem [resolvable:$true] %s49
      %55 = dma.hbm_to_vmem [thread:$0]  %s3, 4096, %s50, [#allocation7], 256, 256, 16
    $region17: #{tpu_custom_call.1} parent=1 // pred_fallthru
      _
    // Predicated region
    $region18: #{tpu_custom_call.1} parent=1 // pred_check
      _
    $region19: #{tpu_custom_call.1} parent=1 // pred_check_branch
      %57 = sbr.rel (0) target = $region21
    $region20: #{tpu_custom_call.1} parent=1 // pred_region
      _
    $region21: #{tpu_custom_call.1} parent=1 // pred_fallthru
      _
    // Predicated region
    $region22: #{tpu_custom_call.1} parent=1 // pred_check
      _
    $region23: #{tpu_custom_call.1} parent=1 // pred_check_branch
      %59 = sbr.rel (0) target = $region25
    $region24: #{tpu_custom_call.1} parent=1 // pred_region
      _
    $region25: #{tpu_custom_call.1} parent=1 // pred_fallthru
      _
    // Predicated region
    $region26: #{tpu_custom_call.1} parent=1 // pred_check
      _
    $region27: #{tpu_custom_call.1} parent=1 // pred_check_branch
      %61 = sbr.rel (0) target = $region29
    $region28: #{tpu_custom_call.1} parent=1 // pred_region
      _
    $region29: #{tpu_custom_call.1} parent=1 // pred_fallthru
      _
    // Predicated region
    $region30: #{tpu_custom_call.1} parent=1 // pred_check
      _
    $region31: #{tpu_custom_call.1} parent=1 // pred_check_branch
      %63 = sbr.rel (0) target = $region33
    $region32: #{tpu_custom_call.1} parent=1 // pred_region
      %s65 = ssub.s32 1024, 1024
      %66 = vsyncadd [#allocation7], %s65
      %s67 = sshll.u32 [#allocation8], 4
      %s68 = int_to_ptr.vmem [resolvable:$true] %s67
      %73 = dma.hbm_to_vmem [thread:$0]  %s7, 1024, %s68, [#allocation7], 64, 64, 4
    $region33: #{tpu_custom_call.1} parent=1 // pred_fallthru
      _
    // Predicated region
    $region34: #{tpu_custom_call.1} parent=1 // pred_check
      _
    $region35: #{tpu_custom_call.1} parent=1 // pred_check_branch
      %75 = sbr.rel (0) target = $region37
    $region36: #{tpu_custom_call.1} parent=1 // pred_region
      _
    $region37: #{tpu_custom_call.1} parent=1 // pred_fallthru
      _
    // Predicated region
    $region38: #{tpu_custom_call.1} parent=1 // pred_check
      _
    $region39: #{tpu_custom_call.1} parent=1 // pred_check_branch
      %77 = sbr.rel (0) target = $region41
    $region40: #{tpu_custom_call.1} parent=1 // pred_region
      %s79 = ssub.s32 1024, 1024
      %80 = vsyncadd [#allocation10], %s79
      %s81 = sshll.u32 [#allocation9], 4
      %s82 = int_to_ptr.vmem [resolvable:$true] %s81
      %87 = dma.hbm_to_vmem [thread:$0]  %s9, 1024, %s82, [#allocation10], 64, 64, 4
    $region41: #{tpu_custom_call.1} parent=1 // pred_fallthru
      _
    // Predicated region
    $region42: #{tpu_custom_call.1} parent=1 // pred_check
      _
    $region43: #{tpu_custom_call.1} parent=1 // pred_check_branch
      %89 = sbr.rel (0) target = $region45
    $region44: #{tpu_custom_call.1} parent=1 // pred_region
      _
    $region45: #{tpu_custom_call.1} parent=1 // pred_fallthru
      _
    // Predicated region
    $region46: #{tpu_custom_call.1} parent=1 // pred_check
      _
    $region47: #{tpu_custom_call.1} parent=1 // pred_check_branch
      %91 = sbr.rel (0) target = $region49
    $region48: #{tpu_custom_call.1} parent=1 // pred_region
      %s93 = ssub.s32 1024, 1024
      %94 = vsyncadd [#allocation10], %s93
      %s95 = sshll.u32 [#allocation11], 4
      %s96 = int_to_ptr.vmem [resolvable:$true] %s95
      %101 = dma.hbm_to_vmem [thread:$0]  %s11, 1024, %s96, [#allocation10], 64, 64, 4
    $region49: #{tpu_custom_call.1} parent=1 // pred_fallthru
      _
    // Predicated region
    $region50: #{tpu_custom_call.1} parent=1 // pred_check
      _
    $region51: #{tpu_custom_call.1} parent=1 // pred_check_branch
      %103 = sbr.rel (0) target = $region53
    $region52: #{tpu_custom_call.1} parent=1 // pred_region
      _
    $region53: #{tpu_custom_call.1} parent=1 // pred_fallthru
      _
    // Predicated region
    $region54: #{tpu_custom_call.1} parent=1 // pred_check
      _
    $region55: #{tpu_custom_call.1} parent=1 // pred_check_branch
      %105 = sbr.rel (0) target = $region57
    $region56: #{tpu_custom_call.1} parent=1 // pred_region
      %s107 = ssub.s32 1024, 1024
      %108 = vsyncadd [#allocation13], %s107
      %s109 = sshll.u32 [#allocation12], 4
      %s110 = int_to_ptr.vmem [resolvable:$true] %s109
      %115 = dma.hbm_to_vmem [thread:$0]  %s13, 1024, %s110, [#allocation13], 64, 64, 4
    $region57: #{tpu_custom_call.1} parent=1 // pred_fallthru
      _
    // Predicated region
    $region58: #{tpu_custom_call.1} parent=1 // pred_check
      _
    $region59: #{tpu_custom_call.1} parent=1 // pred_check_branch
      %117 = sbr.rel (0) target = $region61
    $region60: #{tpu_custom_call.1} parent=1 // pred_region
      _
    $region61: #{tpu_custom_call.1} parent=1 // pred_fallthru
      _
    // Predicated region
    $region62: #{tpu_custom_call.1} parent=1 // pred_check
      _
    $region63: #{tpu_custom_call.1} parent=1 // pred_check_branch
      %119 = sbr.rel (0) target = $region65
    $region64: #{tpu_custom_call.1} parent=1 // pred_region
      %s121 = ssub.s32 1024, 1024
      %122 = vsyncadd [#allocation13], %s121
      %s123 = sshll.u32 [#allocation14], 4
      %s124 = int_to_ptr.vmem [resolvable:$true] %s123
      %129 = dma.hbm_to_vmem [thread:$0]  %s15, 1024, %s124, [#allocation13], 64, 64, 4
    $region65: #{tpu_custom_call.1} parent=1 // pred_fallthru
      _
    // Predicated region
    $region66: #{tpu_custom_call.1} parent=1 // pred_check
      _
    $region67: #{tpu_custom_call.1} parent=1 // pred_check_branch
      %131 = sbr.rel (0) target = $region69
    $region68: #{tpu_custom_call.1} parent=1 // pred_region
      _
    $region69: #{tpu_custom_call.1} parent=1 // pred_fallthru
      _
    // Predicated region
    $region70: #{tpu_custom_call.1} parent=1 // pred_check
      _
    $region71: #{tpu_custom_call.1} parent=1 // pred_check_branch
      %133 = sbr.rel (0) target = $region73
    $region72: #{tpu_custom_call.1} parent=1 // pred_region
      _
    $region73: #{tpu_custom_call.1} parent=1 // pred_fallthru
      _
    // Predicated region
    $region74: #{tpu_custom_call.1} parent=1 // pred_check
      _
    $region75: #{tpu_custom_call.1} parent=1 // pred_check_branch
      %135 = sbr.rel (0) target = $region77
    $region76: #{tpu_custom_call.1} parent=1 // pred_region
      _
    $region77: #{tpu_custom_call.1} parent=1 // pred_fallthru
      _
    // Predicated region
    $region78: #{tpu_custom_call.1} parent=1 // pred_check
      _
    $region79: #{tpu_custom_call.1} parent=1 // pred_check_branch
      %137 = sbr.rel (0) target = $region81
    $region80: #{tpu_custom_call.1} parent=1 // pred_region
      %138 = dma.done [#allocation5], 192
    $region81: #{tpu_custom_call.1} parent=1 // pred_fallthru
      _
    // Predicated region
    $region82: #{tpu_custom_call.1} parent=1 // pred_check
      _
    $region83: #{tpu_custom_call.1} parent=1 // pred_check_branch
      %140 = sbr.rel (0) target = $region85
    $region84: #{tpu_custom_call.1} parent=1 // pred_region
      %141 = dma.done [#allocation7], 4096
    $region85: #{tpu_custom_call.1} parent=1 // pred_fallthru
      _
    // Predicated region
    $region86: #{tpu_custom_call.1} parent=1 // pred_check
      _
    $region87: #{tpu_custom_call.1} parent=1 // pred_check_branch
      %143 = sbr.rel (0) target = $region89
    $region88: #{tpu_custom_call.1} parent=1 // pred_region
      %144 = dma.done [#allocation7], 1024
    $region89: #{tpu_custom_call.1} parent=1 // pred_fallthru
      _
    // Predicated region
    $region90: #{tpu_custom_call.1} parent=1 // pred_check
      _
    $region91: #{tpu_custom_call.1} parent=1 // pred_check_branch
      %146 = sbr.rel (0) target = $region93
    $region92: #{tpu_custom_call.1} parent=1 // pred_region
      %147 = dma.done [#allocation10], 1024
    $region93: #{tpu_custom_call.1} parent=1 // pred_fallthru
      _
    // Predicated region
    $region94: #{tpu_custom_call.1} parent=1 // pred_check
      _
    $region95: #{tpu_custom_call.1} parent=1 // pred_check_branch
      %149 = sbr.rel (0) target = $region97
    $region96: #{tpu_custom_call.1} parent=1 // pred_region
      %150 = dma.done [#allocation10], 1024
    $region97: #{tpu_custom_call.1} parent=1 // pred_fallthru
      _
    // Predicated region
    $region98: #{tpu_custom_call.1} parent=1 // pred_check
      _
    $region99: #{tpu_custom_call.1} parent=1 // pred_check_branch
      %152 = sbr.rel (0) target = $region101
    $region100: #{tpu_custom_call.1} parent=1 // pred_region
      %153 = dma.done [#allocation13], 1024
    $region101: #{tpu_custom_call.1} parent=1 // pred_fallthru
      _
    // Predicated region
    $region102: #{tpu_custom_call.1} parent=1 // pred_check
      _
    $region103: #{tpu_custom_call.1} parent=1 // pred_check_branch
      %155 = sbr.rel (0) target = $region105
    $region104: #{tpu_custom_call.1} parent=1 // pred_region
      %156 = dma.done [#allocation13], 1024
    $region105: #{tpu_custom_call.1} parent=1 // pred_fallthru
      _
    %v158 = vld [vmem:[%s0] sm:$0xf]
    %v159 = vld [vmem:[%s0 + $0x4] sm:$0xf]
    %v160 = vld [vmem:[%s0 + $0x8] sm:$0xf]
    %v161 = vld [vmem:[%s0 + $0xc] sm:$0xf]
    %v162 = vld [vmem:[%s0 + $0x10] sm:$0xf]
    %v163 = vld [vmem:[%s0 + $0x14] sm:$0xf]
    %v164 = vld [vmem:[%s0 + $0x18] sm:$0xf]
    %v165 = vld [vmem:[%s0 + $0x1c] sm:$0xf]
    %v166 = vld [vmem:[%s0 + $0x20] sm:$0xf]
    %v167 = vld [vmem:[%s0 + $0x24] sm:$0xf]
    %v168 = vld [vmem:[%s0 + $0x28] sm:$0xf]
    %v169 = vld [vmem:[%s0 + $0x2c] sm:$0xf]
    %v170 = vld [vmem:[%s0 + $0x30] sm:$0xf]
    %v171 = vld [vmem:[%s0 + $0x34] sm:$0xf]
    %v172 = vld [vmem:[%s0 + $0x38] sm:$0xf]
    %v173 = vld [vmem:[%s0 + $0x3c] sm:$0xf]
    %v174 = vld [vmem:[%s2] sm:$0xff]
    %v175 = vld [vmem:[%s2 + $0x8] sm:$0xff]
    %v176 = vld [vmem:[%s2 + $0x10] sm:$0xff]
    %v177 = vld [vmem:[%s2 + $0x18] sm:$0xff]
    %v178 = vld [vmem:[%s2 + $0x20] sm:$0xff]
    %v179 = vld [vmem:[%s2 + $0x28] sm:$0xff]
    %v180 = vld [vmem:[%s2 + $0x30] sm:$0xff]
    %v181 = vld [vmem:[%s2 + $0x38] sm:$0xff]
    %v182 = vld [vmem:[%s2 + $0x40] sm:$0xff]
    %v183 = vld [vmem:[%s2 + $0x48] sm:$0xff]
    %v184 = vld [vmem:[%s2 + $0x50] sm:$0xff]
    %v185 = vld [vmem:[%s2 + $0x58] sm:$0xff]
    %v186 = vld [vmem:[%s4] sm:$0xf]
    %v188 = vlaneseq
    %v189 = vshrl.u32 %v188, 7
    %v190 = vsub.s32 0, %v189
    %v191 = vrot.slane %v186, %v190
    %v192 = vlaneseq
    %v193 = vshrl.u32 %v192, 7
    %v194 = vsub.s32 1, %v193
    %v195 = vrot.slane %v186, %v194
    %v196 = vlaneseq
    %v197 = vshrl.u32 %v196, 7
    %v198 = vsub.s32 2, %v197
    %v199 = vrot.slane %v186, %v198
    %v200 = vlaneseq
    %v201 = vshrl.u32 %v200, 7
    %v202 = vsub.s32 3, %v201
    %v203 = vrot.slane %v186, %v202
    %v224 = vunpack.c.l.b16 %v158
    %v225 = vunpack.c.l.b16 %v159
    %v226 = vunpack.c.l.b16 %v160
    %v227 = vunpack.c.l.b16 %v161
    %v228 = vunpack.c.l.b16 %v162
    %v229 = vunpack.c.l.b16 %v163
    %v230 = vunpack.c.l.b16 %v164
    %v231 = vunpack.c.l.b16 %v165
    %v232 = vunpack.c.l.b16 %v166
    %v233 = vunpack.c.l.b16 %v167
    %v234 = vunpack.c.l.b16 %v168
    %v235 = vunpack.c.l.b16 %v169
    %v236 = vunpack.c.l.b16 %v170
    %v237 = vunpack.c.l.b16 %v171
    %v238 = vunpack.c.l.b16 %v172
    %v239 = vunpack.c.l.b16 %v173
    %v240 = vpack.c.b16 %v225, %v224
    %v241 = vpack.c.b16 %v227, %v226
    %v242 = vpack.c.b16 %v229, %v228
    %v243 = vpack.c.b16 %v231, %v230
    %v244 = vpack.c.b16 %v233, %v232
    %v245 = vpack.c.b16 %v235, %v234
    %v246 = vpack.c.b16 %v237, %v236
    %v247 = vpack.c.b16 %v239, %v238
    %v260 = vunpack.c.l.b16 %v174
    %v261 = vunpack.c.h.b16 %v174
    %v262 = vunpack.c.l.b16 %v175
    %v263 = vunpack.c.h.b16 %v175
    %v264 = vunpack.c.l.b16 %v176
    %v265 = vunpack.c.h.b16 %v176
    %v266 = vunpack.c.l.b16 %v177
    %v267 = vunpack.c.h.b16 %v177
    %v268 = vunpack.c.l.b16 %v178
    %v269 = vunpack.c.h.b16 %v178
    %v270 = vunpack.c.l.b16 %v179
    %v271 = vunpack.c.h.b16 %v179
    %v272 = vunpack.c.l.b16 %v180
    %v273 = vunpack.c.h.b16 %v180
    %v274 = vunpack.c.l.b16 %v181
    %v275 = vunpack.c.h.b16 %v181
    %v276 = vunpack.c.l.b16 %v182
    %v277 = vunpack.c.h.b16 %v182
    %v278 = vunpack.c.l.b16 %v183
    %v279 = vunpack.c.h.b16 %v183
    %v280 = vunpack.c.l.b16 %v184
    %v281 = vunpack.c.h.b16 %v184
    %v282 = vunpack.c.l.b16 %v185
    %v283 = vunpack.c.h.b16 %v185
    %v284 = vpack.c.b16 %v264, %v260
    %v285 = vpack.c.b16 %v265, %v261
    %v286 = vpack.c.b16 %v266, %v262
    %v287 = vpack.c.b16 %v267, %v263
    %v288 = vpack.c.b16 %v272, %v268
    %v289 = vpack.c.b16 %v273, %v269
    %v290 = vpack.c.b16 %v274, %v270
    %v291 = vpack.c.b16 %v275, %v271
    %v292 = vpack.c.b16 %v280, %v276
    %v293 = vpack.c.b16 %v281, %v277
    %v294 = vpack.c.b16 %v282, %v278
    %v295 = vpack.c.b16 %v283, %v279
    %vm308 = vcmask 392192
    %v310 = vsel %vm308, %v240, 0
    %v313 = vsel %vm308, %v241, 0
    %v316 = vsel %vm308, %v242, 0
    %v319 = vsel %vm308, %v243, 0
    %v322 = vsel %vm308, %v244, 0
    %v325 = vsel %vm308, %v245, 0
    %v328 = vsel %vm308, %v246, 0
    %v331 = vsel %vm308, %v247, 0
    %333 = vmatprep.subr.bf16.mxu0 %v285
    %334 = vmatpush1.bf16.msra.mxu0 %v284
    %335 = vmatprep.subr.bf16.mxu0 %v289
    %336 = vmatpush1.bf16.msra.mxu0 %v288
    %337 = vmatprep.subr.bf16.mxu0 %v293
    %338 = vmatpush1.bf16.msra.mxu0 %v292
    %339 = vmatprep.subr.bf16.mxu0 0
    %340 = vmatpush1.bf16.msra.mxu0 0
    %341 = vmatprep.subr.bf16.mxu0 0
    %342 = vmatpush1.bf16.msra.mxu0 0
    %343 = vmatprep.subr.bf16.mxu0 0
    %344 = vmatpush1.bf16.msra.mxu0 0
    %345 = vmatprep.subr.bf16.mxu0 0
    %346 = vmatpush1.bf16.msra.mxu0 0
    %347 = vmatprep.subr.bf16.mxu0 0
    %348 = vmatpush1.bf16.msra.mxu0 0
    %349 = vmatprep.subr.bf16.mxu0 0
    %350 = vmatpush1.bf16.msra.mxu0 0
    %351 = vmatprep.subr.bf16.mxu0 0
    %352 = vmatpush1.bf16.msra.mxu0 0
    %353 = vmatprep.subr.bf16.mxu0 0
    %354 = vmatpush1.bf16.msra.mxu0 0
    %355 = vmatprep.subr.bf16.mxu0 0
    %356 = vmatpush1.bf16.msra.mxu0 0
    %357 = vmatprep.subr.bf16.mxu0 0
    %358 = vmatpush1.bf16.msra.mxu0 0
    %359 = vmatprep.subr.bf16.mxu0 0
    %360 = vmatpush1.bf16.msra.mxu0 0
    %361 = vmatprep.subr.bf16.mxu0 0
    %362 = vmatpush1.bf16.msra.mxu0 0
    %363 = vmatprep.subr.bf16.mxu0 0
    %364 = vmatpush1.bf16.msra.mxu0 0
    %365 = vmatprep.mubr.bf16.mxu0 0
    %366 = vmatmul.mubr.bf16.gmra.mrb[0].mxu0 %v310
    %v367 = vpop.f32.mrb[0].mxu0
    %v368 = vadd.f32 %v191, %v367
    %v369 = vpop.f32.mrb[0].mxu0
    %v370 = vadd.f32 %v195, %v369
    %v371 = vpop.f32.mrb[0].mxu0
    %v372 = vadd.f32 %v191, %v371
    %v373 = vpop.f32.mrb[0].mxu0
    %v374 = vadd.f32 %v195, %v373
    %375 = vmatprep.mubr.bf16.mxu0 0
    %376 = vmatmul.mubr.bf16.gmra.mrb[0].mxu0 %v313
    %v377 = vpop.f32.mrb[0].mxu0
    %v378 = vadd.f32 %v191, %v377
    %v379 = vpop.f32.mrb[0].mxu0
    %v380 = vadd.f32 %v195, %v379
    %v381 = vpop.f32.mrb[0].mxu0
    %v382 = vadd.f32 %v191, %v381
    %v383 = vpop.f32.mrb[0].mxu0
    %v384 = vadd.f32 %v195, %v383
    %385 = vmatprep.mubr.bf16.mxu0 0
    %386 = vmatmul.mubr.bf16.gmra.mrb[0].mxu0 %v316
    %v387 = vpop.f32.mrb[0].mxu0
    %v388 = vadd.f32 %v191, %v387
    %v389 = vpop.f32.mrb[0].mxu0
    %v390 = vadd.f32 %v195, %v389
    %v391 = vpop.f32.mrb[0].mxu0
    %v392 = vadd.f32 %v191, %v391
    %v393 = vpop.f32.mrb[0].mxu0
    %v394 = vadd.f32 %v195, %v393
    %395 = vmatprep.mubr.bf16.mxu0 0
    %396 = vmatmul.mubr.bf16.gmra.mrb[0].mxu0 %v319
    %v397 = vpop.f32.mrb[0].mxu0
    %v398 = vadd.f32 %v191, %v397
    %v399 = vpop.f32.mrb[0].mxu0
    %v400 = vadd.f32 %v195, %v399
    %v401 = vpop.f32.mrb[0].mxu0
    %v402 = vadd.f32 %v191, %v401
    %v403 = vpop.f32.mrb[0].mxu0
    %v404 = vadd.f32 %v195, %v403
    %405 = vmatprep.mubr.bf16.mxu0 0
    %406 = vmatmul.mubr.bf16.gmra.mrb[0].mxu0 %v322
    %v407 = vpop.f32.mrb[0].mxu0
    %v408 = vadd.f32 %v191, %v407
    %v409 = vpop.f32.mrb[0].mxu0
    %v410 = vadd.f32 %v195, %v409
    %v411 = vpop.f32.mrb[0].mxu0
    %v412 = vadd.f32 %v191, %v411
    %v413 = vpop.f32.mrb[0].mxu0
    %v414 = vadd.f32 %v195, %v413
    %415 = vmatprep.mubr.bf16.mxu0 0
    %416 = vmatmul.mubr.bf16.gmra.mrb[0].mxu0 %v325
    %v417 = vpop.f32.mrb[0].mxu0
    %v418 = vadd.f32 %v191, %v417
    %v419 = vpop.f32.mrb[0].mxu0
    %v420 = vadd.f32 %v195, %v419
    %v421 = vpop.f32.mrb[0].mxu0
    %v422 = vadd.f32 %v191, %v421
    %v423 = vpop.f32.mrb[0].mxu0
    %v424 = vadd.f32 %v195, %v423
    %425 = vmatprep.mubr.bf16.mxu0 0
    %426 = vmatmul.mubr.bf16.gmra.mrb[0].mxu0 %v328
    %v427 = vpop.f32.mrb[0].mxu0
    %v428 = vadd.f32 %v191, %v427
    %v429 = vpop.f32.mrb[0].mxu0
    %v430 = vadd.f32 %v195, %v429
    %v431 = vpop.f32.mrb[0].mxu0
    %v432 = vadd.f32 %v191, %v431
    %v433 = vpop.f32.mrb[0].mxu0
    %v434 = vadd.f32 %v195, %v433
    %435 = vmatprep.mubr.bf16.mxu0 0
    %436 = vmatmul.mubr.bf16.gmra.mrb[0].mxu0 %v331
    %v437 = vpop.f32.mrb[0].mxu0
    %v438 = vadd.f32 %v191, %v437
    %v439 = vpop.f32.mrb[0].mxu0
    %v440 = vadd.f32 %v195, %v439
    %v441 = vpop.f32.mrb[0].mxu0
    %v442 = vadd.f32 %v191, %v441
    %v443 = vpop.f32.mrb[0].mxu0
    %v444 = vadd.f32 %v195, %v443
    %445 = vdwg.mxu0
    %446 = vmatprep.subr.bf16.mxu0 %v287
    %447 = vmatpush1.bf16.msra.mxu0 %v286
    %448 = vmatprep.subr.bf16.mxu0 %v291
    %449 = vmatpush1.bf16.msra.mxu0 %v290
    %450 = vmatprep.subr.bf16.mxu0 %v295
    %451 = vmatpush1.bf16.msra.mxu0 %v294
    %452 = vmatprep.subr.bf16.mxu0 0
    %453 = vmatpush1.bf16.msra.mxu0 0
    %454 = vmatprep.subr.bf16.mxu0 0
    %455 = vmatpush1.bf16.msra.mxu0 0
    %456 = vmatprep.subr.bf16.mxu0 0
    %457 = vmatpush1.bf16.msra.mxu0 0
    %458 = vmatprep.subr.bf16.mxu0 0
    %459 = vmatpush1.bf16.msra.mxu0 0
    %460 = vmatprep.subr.bf16.mxu0 0
    %461 = vmatpush1.bf16.msra.mxu0 0
    %462 = vmatprep.subr.bf16.mxu0 0
    %463 = vmatpush1.bf16.msra.mxu0 0
    %464 = vmatprep.subr.bf16.mxu0 0
    %465 = vmatpush1.bf16.msra.mxu0 0
    %466 = vmatprep.subr.bf16.mxu0 0
    %467 = vmatpush1.bf16.msra.mxu0 0
    %468 = vmatprep.subr.bf16.mxu0 0
    %469 = vmatpush1.bf16.msra.mxu0 0
    %470 = vmatprep.subr.bf16.mxu0 0
    %471 = vmatpush1.bf16.msra.mxu0 0
    %472 = vmatprep.subr.bf16.mxu0 0
    %473 = vmatpush1.bf16.msra.mxu0 0
    %474 = vmatprep.subr.bf16.mxu0 0
    %475 = vmatpush1.bf16.msra.mxu0 0
    %476 = vmatprep.subr.bf16.mxu0 0
    %477 = vmatpush1.bf16.msra.mxu0 0
    %478 = vmatprep.mubr.bf16.mxu0 0
    %479 = vmatmul.mubr.bf16.gmra.mrb[0].mxu0 %v310
    %v480 = vpop.f32.mrb[0].mxu0
    %v481 = vadd.f32 %v199, %v480
    %v482 = vpop.f32.mrb[0].mxu0
    %v483 = vadd.f32 %v203, %v482
    %v484 = vpop.f32.mrb[0].mxu0
    %v485 = vadd.f32 %v199, %v484
    %v486 = vpop.f32.mrb[0].mxu0
    %v487 = vadd.f32 %v203, %v486
    %488 = vmatprep.mubr.bf16.mxu0 0
    %489 = vmatmul.mubr.bf16.gmra.mrb[0].mxu0 %v313
    %v490 = vpop.f32.mrb[0].mxu0
    %v491 = vadd.f32 %v199, %v490
    %v492 = vpop.f32.mrb[0].mxu0
    %v493 = vadd.f32 %v203, %v492
    %v494 = vpop.f32.mrb[0].mxu0
    %v495 = vadd.f32 %v199, %v494
    %v496 = vpop.f32.mrb[0].mxu0
    %v497 = vadd.f32 %v203, %v496
    %498 = vmatprep.mubr.bf16.mxu0 0
    %499 = vmatmul.mubr.bf16.gmra.mrb[0].mxu0 %v316
    %v500 = vpop.f32.mrb[0].mxu0
    %v501 = vadd.f32 %v199, %v500
    %v502 = vpop.f32.mrb[0].mxu0
    %v503 = vadd.f32 %v203, %v502
    %v504 = vpop.f32.mrb[0].mxu0
    %v505 = vadd.f32 %v199, %v504
    %v506 = vpop.f32.mrb[0].mxu0
    %v507 = vadd.f32 %v203, %v506
    %508 = vmatprep.mubr.bf16.mxu0 0
    %509 = vmatmul.mubr.bf16.gmra.mrb[0].mxu0 %v319
    %v510 = vpop.f32.mrb[0].mxu0
    %v511 = vadd.f32 %v199, %v510
    %v512 = vpop.f32.mrb[0].mxu0
    %v513 = vadd.f32 %v203, %v512
    %v514 = vpop.f32.mrb[0].mxu0
    %v515 = vadd.f32 %v199, %v514
    %v516 = vpop.f32.mrb[0].mxu0
    %v517 = vadd.f32 %v203, %v516
    %518 = vmatprep.mubr.bf16.mxu0 0
    %519 = vmatmul.mubr.bf16.gmra.mrb[0].mxu0 %v322
    %v520 = vpop.f32.mrb[0].mxu0
    %v521 = vadd.f32 %v199, %v520
    %v522 = vpop.f32.mrb[0].mxu0
    %v523 = vadd.f32 %v203, %v522
    %v524 = vpop.f32.mrb[0].mxu0
    %v525 = vadd.f32 %v199, %v524
    %v526 = vpop.f32.mrb[0].mxu0
    %v527 = vadd.f32 %v203, %v526
    %528 = vmatprep.mubr.bf16.mxu0 0
    %529 = vmatmul.mubr.bf16.gmra.mrb[0].mxu0 %v325
    %v530 = vpop.f32.mrb[0].mxu0
    %v531 = vadd.f32 %v199, %v530
    %v532 = vpop.f32.mrb[0].mxu0
    %v533 = vadd.f32 %v203, %v532
    %v534 = vpop.f32.mrb[0].mxu0
    %v535 = vadd.f32 %v199, %v534
    %v536 = vpop.f32.mrb[0].mxu0
    %v537 = vadd.f32 %v203, %v536
    %538 = vmatprep.mubr.bf16.mxu0 0
    %539 = vmatmul.mubr.bf16.gmra.mrb[0].mxu0 %v328
    %v540 = vpop.f32.mrb[0].mxu0
    %v541 = vadd.f32 %v199, %v540
    %v542 = vpop.f32.mrb[0].mxu0
    %v543 = vadd.f32 %v203, %v542
    %v544 = vpop.f32.mrb[0].mxu0
    %v545 = vadd.f32 %v199, %v544
    %v546 = vpop.f32.mrb[0].mxu0
    %v547 = vadd.f32 %v203, %v546
    %548 = vmatprep.mubr.bf16.mxu0 0
    %549 = vmatmul.mubr.bf16.gmra.mrb[0].mxu0 %v331
    %v550 = vpop.f32.mrb[0].mxu0
    %v551 = vadd.f32 %v199, %v550
    %v552 = vpop.f32.mrb[0].mxu0
    %v553 = vadd.f32 %v203, %v552
    %v554 = vpop.f32.mrb[0].mxu0
    %v555 = vadd.f32 %v199, %v554
    %v556 = vpop.f32.mrb[0].mxu0
    %v557 = vadd.f32 %v203, %v556
    %558 = vdwg.mxu0
    %559 = vst [vmem:[#allocation2] sm:$0xff] %v368
    %560 = vst [vmem:[#allocation2 + $0x8] sm:$0xff] %v370
    %561 = vst [vmem:[#allocation2 + $0x10] sm:$0xff] %v481
    %562 = vst [vmem:[#allocation2 + $0x18] sm:$0xff] %v483
    %563 = vst [vmem:[#allocation2 + $0x20] sm:$0xff] %v372
    %564 = vst [vmem:[#allocation2 + $0x28] sm:$0xff] %v374
    %565 = vst [vmem:[#allocation2 + $0x30] sm:$0xff] %v485
    %566 = vst [vmem:[#allocation2 + $0x38] sm:$0xff] %v487
    %567 = vst [vmem:[#allocation2 + $0x40] sm:$0xff] %v378
    %568 = vst [vmem:[#allocation2 + $0x48] sm:$0xff] %v380
    %569 = vst [vmem:[#allocation2 + $0x50] sm:$0xff] %v491
    %570 = vst [vmem:[#allocation2 + $0x58] sm:$0xff] %v493
    %571 = vst [vmem:[#allocation2 + $0x60] sm:$0xff] %v382
    %572 = vst [vmem:[#allocation2 + $0x68] sm:$0xff] %v384
    %573 = vst [vmem:[#allocation2 + $0x70] sm:$0xff] %v495
    %574 = vst [vmem:[#allocation2 + $0x78] sm:$0xff] %v497
    %575 = vst [vmem:[#allocation2 + $0x80] sm:$0xff] %v388
    %576 = vst [vmem:[#allocation2 + $0x88] sm:$0xff] %v390
    %577 = vst [vmem:[#allocation2 + $0x90] sm:$0xff] %v501
    %578 = vst [vmem:[#allocation2 + $0x98] sm:$0xff] %v503
    %579 = vst [vmem:[#allocation2 + $0xa0] sm:$0xff] %v392
    %580 = vst [vmem:[#allocation2 + $0xa8] sm:$0xff] %v394
    %581 = vst [vmem:[#allocation2 + $0xb0] sm:$0xff] %v505
    %582 = vst [vmem:[#allocation2 + $0xb8] sm:$0xff] %v507
    %583 = vst [vmem:[#allocation2 + $0xc0] sm:$0xff] %v398
    %584 = vst [vmem:[#allocation2 + $0xc8] sm:$0xff] %v400
    %585 = vst [vmem:[#allocation2 + $0xd0] sm:$0xff] %v511
    %586 = vst [vmem:[#allocation2 + $0xd8] sm:$0xff] %v513
    %587 = vst [vmem:[#allocation2 + $0xe0] sm:$0xff] %v402
    %588 = vst [vmem:[#allocation2 + $0xe8] sm:$0xff] %v404
    %589 = vst [vmem:[#allocation2 + $0xf0] sm:$0xff] %v515
    %590 = vst [vmem:[#allocation2 + $0xf8] sm:$0xff] %v517
    %591 = vst [vmem:[#allocation2 + $0x100] sm:$0xff] %v408
    %592 = vst [vmem:[#allocation2 + $0x108] sm:$0xff] %v410
    %593 = vst [vmem:[#allocation2 + $0x110] sm:$0xff] %v521
    %594 = vst [vmem:[#allocation2 + $0x118] sm:$0xff] %v523
    %595 = vst [vmem:[#allocation2 + $0x120] sm:$0xff] %v412
    %596 = vst [vmem:[#allocation2 + $0x128] sm:$0xff] %v414
    %597 = vst [vmem:[#allocation2 + $0x130] sm:$0xff] %v525
    %598 = vst [vmem:[#allocation2 + $0x138] sm:$0xff] %v527
    %599 = vst [vmem:[#allocation2 + $0x140] sm:$0xff] %v418
    %600 = vst [vmem:[#allocation2 + $0x148] sm:$0xff] %v420
    %601 = vst [vmem:[#allocation2 + $0x150] sm:$0xff] %v531
    %602 = vst [vmem:[#allocation2 + $0x158] sm:$0xff] %v533
    %603 = vst [vmem:[#allocation2 + $0x160] sm:$0xff] %v422
    %604 = vst [vmem:[#allocation2 + $0x168] sm:$0xff] %v424
    %605 = vst [vmem:[#allocation2 + $0x170] sm:$0xff] %v535
    %606 = vst [vmem:[#allocation2 + $0x178] sm:$0xff] %v537
    %607 = vst [vmem:[#allocation2 + $0x180] sm:$0xff] %v428
    %608 = vst [vmem:[#allocation2 + $0x188] sm:$0xff] %v430
    %609 = vst [vmem:[#allocation2 + $0x190] sm:$0xff] %v541
    %610 = vst [vmem:[#allocation2 + $0x198] sm:$0xff] %v543
    %611 = vst [vmem:[#allocation2 + $0x1a0] sm:$0xff] %v432
    %612 = vst [vmem:[#allocation2 + $0x1a8] sm:$0xff] %v434
    %613 = vst [vmem:[#allocation2 + $0x1b0] sm:$0xff] %v545
    %614 = vst [vmem:[#allocation2 + $0x1b8] sm:$0xff] %v547
    %615 = vst [vmem:[#allocation2 + $0x1c0] sm:$0xff] %v438
    %616 = vst [vmem:[#allocation2 + $0x1c8] sm:$0xff] %v440
    %617 = vst [vmem:[#allocation2 + $0x1d0] sm:$0xff] %v551
    %618 = vst [vmem:[#allocation2 + $0x1d8] sm:$0xff] %v553
    %619 = vst [vmem:[#allocation2 + $0x1e0] sm:$0xff] %v442
    %620 = vst [vmem:[#allocation2 + $0x1e8] sm:$0xff] %v444
    %621 = vst [vmem:[#allocation2 + $0x1f0] sm:$0xff] %v555
    %622 = vst [vmem:[#allocation2 + $0x1f8] sm:$0xff] %v557
    %s623 = smul.u32 0, 4
    %s624 = smul.addr %s623, 8
    %s625 = scalar_lea.vmem [#allocation2], %s624
    %v626 = vld [vmem:[%s625] sm:$0xff]
    %v627 = vld [vmem:[%s625 + $0x8] sm:$0xff]
    %v628 = vld [vmem:[%s625 + $0x10] sm:$0xff]
    %v629 = vld [vmem:[%s625 + $0x18] sm:$0xff]
    %v630 = vld [vmem:[#allocation6] sm:$0xff]
    %v631 = vld [vmem:[#allocation6 + $0x8] sm:$0xff]
    %v632 = vld [vmem:[#allocation6 + $0x10] sm:$0xff]
    %v633 = vld [vmem:[#allocation6 + $0x18] sm:$0xff]
    %v634 = vld [vmem:[#allocation6 + $0x20] sm:$0xff]
    %v635 = vld [vmem:[#allocation6 + $0x28] sm:$0xff]
    %v636 = vld [vmem:[#allocation6 + $0x30] sm:$0xff]
    %v637 = vld [vmem:[#allocation6 + $0x38] sm:$0xff]
    %v638 = vld [vmem:[#allocation6 + $0x40] sm:$0xff]
    %v639 = vld [vmem:[#allocation6 + $0x48] sm:$0xff]
    %v640 = vld [vmem:[#allocation6 + $0x50] sm:$0xff]
    %v641 = vld [vmem:[#allocation6 + $0x58] sm:$0xff]
    %v642 = vld [vmem:[#allocation6 + $0x60] sm:$0xff]
    %v643 = vld [vmem:[#allocation6 + $0x68] sm:$0xff]
    %v644 = vld [vmem:[#allocation6 + $0x70] sm:$0xff]
    %v645 = vld [vmem:[#allocation6 + $0x78] sm:$0xff]
    %v646 = vld [vmem:[#allocation6 + $0x80] sm:$0xff]
    %v647 = vld [vmem:[#allocation6 + $0x88] sm:$0xff]
    %v648 = vld [vmem:[#allocation6 + $0x90] sm:$0xff]
    %v649 = vld [vmem:[#allocation6 + $0x98] sm:$0xff]
    %v650 = vld [vmem:[#allocation6 + $0xa0] sm:$0xff]
    %v651 = vld [vmem:[#allocation6 + $0xa8] sm:$0xff]
    %v652 = vld [vmem:[#allocation6 + $0xb0] sm:$0xff]
    %v653 = vld [vmem:[#allocation6 + $0xb8] sm:$0xff]
    %v654 = vld [vmem:[#allocation6 + $0xc0] sm:$0xff]
    %v655 = vld [vmem:[#allocation6 + $0xc8] sm:$0xff]
    %v656 = vld [vmem:[#allocation6 + $0xd0] sm:$0xff]
    %v657 = vld [vmem:[#allocation6 + $0xd8] sm:$0xff]
    %v658 = vld [vmem:[#allocation6 + $0xe0] sm:$0xff]
    %v659 = vld [vmem:[#allocation6 + $0xe8] sm:$0xff]
    %v660 = vld [vmem:[#allocation6 + $0xf0] sm:$0xff]
    %v661 = vld [vmem:[#allocation6 + $0xf8] sm:$0xff]
    %v694 = vunpack.c.l.b16 %v630
    %v695 = vunpack.c.h.b16 %v630
    %v696 = vunpack.c.l.b16 %v631
    %v697 = vunpack.c.h.b16 %v631
    %v698 = vunpack.c.l.b16 %v632
    %v699 = vunpack.c.h.b16 %v632
    %v700 = vunpack.c.l.b16 %v633
    %v701 = vunpack.c.h.b16 %v633
    %v702 = vunpack.c.l.b16 %v634
    %v703 = vunpack.c.h.b16 %v634
    %v704 = vunpack.c.l.b16 %v635
    %v705 = vunpack.c.h.b16 %v635
    %v706 = vunpack.c.l.b16 %v636
    %v707 = vunpack.c.h.b16 %v636
    %v708 = vunpack.c.l.b16 %v637
    %v709 = vunpack.c.h.b16 %v637
    %v710 = vunpack.c.l.b16 %v638
    %v711 = vunpack.c.h.b16 %v638
    %v712 = vunpack.c.l.b16 %v639
    %v713 = vunpack.c.h.b16 %v639
    %v714 = vunpack.c.l.b16 %v640
    %v715 = vunpack.c.h.b16 %v640
    %v716 = vunpack.c.l.b16 %v641
    %v717 = vunpack.c.h.b16 %v641
    %v718 = vunpack.c.l.b16 %v642
    %v719 = vunpack.c.h.b16 %v642
    %v720 = vunpack.c.l.b16 %v643
    %v721 = vunpack.c.h.b16 %v643
    %v722 = vunpack.c.l.b16 %v644
    %v723 = vunpack.c.h.b16 %v644
    %v724 = vunpack.c.l.b16 %v645
    %v725 = vunpack.c.h.b16 %v645
    %v726 = vunpack.c.l.b16 %v646
    %v727 = vunpack.c.h.b16 %v646
    %v728 = vunpack.c.l.b16 %v647
    %v729 = vunpack.c.h.b16 %v647
    %v730 = vunpack.c.l.b16 %v648
    %v731 = vunpack.c.h.b16 %v648
    %v732 = vunpack.c.l.b16 %v649
    %v733 = vunpack.c.h.b16 %v649
    %v734 = vunpack.c.l.b16 %v650
    %v735 = vunpack.c.h.b16 %v650
    %v736 = vunpack.c.l.b16 %v651
    %v737 = vunpack.c.h.b16 %v651
    %v738 = vunpack.c.l.b16 %v652
    %v739 = vunpack.c.h.b16 %v652
    %v740 = vunpack.c.l.b16 %v653
    %v741 = vunpack.c.h.b16 %v653
    %v742 = vunpack.c.l.b16 %v654
    %v743 = vunpack.c.h.b16 %v654
    %v744 = vunpack.c.l.b16 %v655
    %v745 = vunpack.c.h.b16 %v655
    %v746 = vunpack.c.l.b16 %v656
    %v747 = vunpack.c.h.b16 %v656
    %v748 = vunpack.c.l.b16 %v657
    %v749 = vunpack.c.h.b16 %v657
    %v750 = vunpack.c.l.b16 %v658
    %v751 = vunpack.c.h.b16 %v658
    %v752 = vunpack.c.l.b16 %v659
    %v753 = vunpack.c.h.b16 %v659
    %v754 = vunpack.c.l.b16 %v660
    %v755 = vunpack.c.h.b16 %v660
    %v756 = vunpack.c.l.b16 %v661
    %v757 = vunpack.c.h.b16 %v661
    %v758 = vpack.c.b16 %v698, %v694
    %v759 = vpack.c.b16 %v699, %v695
    %v760 = vpack.c.b16 %v700, %v696
    %v761 = vpack.c.b16 %v701, %v697
    %v762 = vpack.c.b16 %v706, %v702
    %v763 = vpack.c.b16 %v707, %v703
    %v764 = vpack.c.b16 %v708, %v704
    %v765 = vpack.c.b16 %v709, %v705
    %v766 = vpack.c.b16 %v714, %v710
    %v767 = vpack.c.b16 %v715, %v711
    %v768 = vpack.c.b16 %v716, %v712
    %v769 = vpack.c.b16 %v717, %v713
    %v770 = vpack.c.b16 %v722, %v718
    %v771 = vpack.c.b16 %v723, %v719
    %v772 = vpack.c.b16 %v724, %v720
    %v773 = vpack.c.b16 %v725, %v721
    %v774 = vpack.c.b16 %v730, %v726
    %v775 = vpack.c.b16 %v731, %v727
    %v776 = vpack.c.b16 %v732, %v728
    %v777 = vpack.c.b16 %v733, %v729
    %v778 = vpack.c.b16 %v738, %v734
    %v779 = vpack.c.b16 %v739, %v735
    %v780 = vpack.c.b16 %v740, %v736
    %v781 = vpack.c.b16 %v741, %v737
    %v782 = vpack.c.b16 %v746, %v742
    %v783 = vpack.c.b16 %v747, %v743
    %v784 = vpack.c.b16 %v748, %v744
    %v785 = vpack.c.b16 %v749, %v745
    %v786 = vpack.c.b16 %v754, %v750
    %v787 = vpack.c.b16 %v755, %v751
    %v788 = vpack.c.b16 %v756, %v752
    %v789 = vpack.c.b16 %v757, %v753
    %822 = vmatprep.subr.bf16.mxu0 %v759
    %823 = vmatpush1.bf16.msra.mxu0 %v758
    %824 = vmatprep.subr.bf16.mxu0 %v763
    %825 = vmatpush1.bf16.msra.mxu0 %v762
    %826 = vmatprep.subr.bf16.mxu0 %v767
    %827 = vmatpush1.bf16.msra.mxu0 %v766
    %828 = vmatprep.subr.bf16.mxu0 %v771
    %829 = vmatpush1.bf16.msra.mxu0 %v770
    %830 = vmatprep.subr.bf16.mxu0 %v775
    %831 = vmatpush1.bf16.msra.mxu0 %v774
    %832 = vmatprep.subr.bf16.mxu0 %v779
    %833 = vmatpush1.bf16.msra.mxu0 %v778
    %834 = vmatprep.subr.bf16.mxu0 %v783
    %835 = vmatpush1.bf16.msra.mxu0 %v782
    %836 = vmatprep.subr.bf16.mxu0 %v787
    %837 = vmatpush1.bf16.msra.mxu0 %v786
    %838 = vmatprep.subr.bf16.mxu0 0
    %839 = vmatpush1.bf16.msra.mxu0 0
    %840 = vmatprep.subr.bf16.mxu0 0
    %841 = vmatpush1.bf16.msra.mxu0 0
    %842 = vmatprep.subr.bf16.mxu0 0
    %843 = vmatpush1.bf16.msra.mxu0 0
    %844 = vmatprep.subr.bf16.mxu0 0
    %845 = vmatpush1.bf16.msra.mxu0 0
    %846 = vmatprep.subr.bf16.mxu0 0
    %847 = vmatpush1.bf16.msra.mxu0 0
    %848 = vmatprep.subr.bf16.mxu0 0
    %849 = vmatpush1.bf16.msra.mxu0 0
    %850 = vmatprep.subr.bf16.mxu0 0
    %851 = vmatpush1.bf16.msra.mxu0 0
    %852 = vmatprep.subr.bf16.mxu0 0
    %853 = vmatpush1.bf16.msra.mxu0 0
    %854 = vmatprep.mubr.bf16.mxu0 0
    %855 = vmatmul.mubr.bf16.gmra.mrb[0].mxu0 0
    %v856 = vpop.f32.mrb[0].mxu0
    %v857 = vadd.f32 0.0, %v856
    %v858 = vpop.f32.mrb[0].mxu0
    %v859 = vadd.f32 0.0, %v858
    %v860 = vpop.f32.mrb[0].mxu0
    %v861 = vpop.f32.mrb[0].mxu0
    %862 = vdwg.mxu0
    %863 = vmatprep.subr.bf16.mxu0 %v761
    %864 = vmatpush1.bf16.msra.mxu0 %v760
    %865 = vmatprep.subr.bf16.mxu0 %v765
    %866 = vmatpush1.bf16.msra.mxu0 %v764
    %867 = vmatprep.subr.bf16.mxu0 %v769
    %868 = vmatpush1.bf16.msra.mxu0 %v768
    %869 = vmatprep.subr.bf16.mxu0 %v773
    %870 = vmatpush1.bf16.msra.mxu0 %v772
    %871 = vmatprep.subr.bf16.mxu0 %v777
    %872 = vmatpush1.bf16.msra.mxu0 %v776
    %873 = vmatprep.subr.bf16.mxu0 %v781
    %874 = vmatpush1.bf16.msra.mxu0 %v780
    %875 = vmatprep.subr.bf16.mxu0 %v785
    %876 = vmatpush1.bf16.msra.mxu0 %v784
    %877 = vmatprep.subr.bf16.mxu0 %v789
    %878 = vmatpush1.bf16.msra.mxu0 %v788
    %879 = vmatprep.subr.bf16.mxu0 0
    %880 = vmatpush1.bf16.msra.mxu0 0
    %881 = vmatprep.subr.bf16.mxu0 0
    %882 = vmatpush1.bf16.msra.mxu0 0
    %883 = vmatprep.subr.bf16.mxu0 0
    %884 = vmatpush1.bf16.msra.mxu0 0
    %885 = vmatprep.subr.bf16.mxu0 0
    %886 = vmatpush1.bf16.msra.mxu0 0
    %887 = vmatprep.subr.bf16.mxu0 0
    %888 = vmatpush1.bf16.msra.mxu0 0
    %889 = vmatprep.subr.bf16.mxu0 0
    %890 = vmatpush1.bf16.msra.mxu0 0
    %891 = vmatprep.subr.bf16.mxu0 0
    %892 = vmatpush1.bf16.msra.mxu0 0
    %893 = vmatprep.subr.bf16.mxu0 0
    %894 = vmatpush1.bf16.msra.mxu0 0
    %895 = vmatprep.mubr.bf16.mxu0 0
    %896 = vmatmul.mubr.bf16.gmra.mrb[0].mxu0 0
    %v897 = vpop.f32.mrb[0].mxu0
    %v898 = vadd.f32 0.0, %v897
    %v899 = vpop.f32.mrb[0].mxu0
    %v900 = vadd.f32 0.0, %v899
    %v901 = vpop.f32.mrb[0].mxu0
    %v902 = vpop.f32.mrb[0].mxu0
    %903 = vdwg.mxu0
    %v904 = vadd.f32 %v626, %v857
    %v905 = vadd.f32 %v627, %v859
    %v906 = vadd.f32 %v628, %v898
    %v907 = vadd.f32 %v629, %v900
    %v908 = vxor.u32 %v904, 2147483648
    %v909 = vmul.f32 %v908, 1.442695
    %v910 = vpow.pop %v909
    %v911 = vadd.f32 %v910, 1.0
    %v912 = vrcp.pop %v911
    %v913 = vmul.f32 1.0, %v912
    %v914 = vxor.u32 %v905, 2147483648
    %v915 = vmul.f32 %v914, 1.442695
    %v916 = vpow.pop %v915
    %v917 = vadd.f32 %v916, 1.0
    %v918 = vrcp.pop %v917
    %v919 = vmul.f32 1.0, %v918
    %v920 = vtanh.pop %v906
    %v921 = vxor.u32 %v907, 2147483648
    %v922 = vmul.f32 %v921, 1.442695
    %v923 = vpow.pop %v922
    %v924 = vadd.f32 %v923, 1.0
    %v925 = vrcp.pop %v924
    %v926 = vmul.f32 1.0, %v925
    %v927 = vmul.f32 %v919, 0.0
    %v928 = vmul.f32 %v913, %v920
    %v929 = vadd.f32 %v927, %v928
    %v930 = vtanh.pop %v929
    %v931 = vmul.f32 %v926, %v930
    %932 = vst [vmem:[#allocation3] sm:$0xff] %v931
    %s933 = smul.u32 1, 4
    %s934 = smul.addr %s933, 8
    %s935 = scalar_lea.vmem [#allocation2], %s934
    %v936 = vld [vmem:[%s935] sm:$0xff]
    %v937 = vld [vmem:[%s935 + $0x8] sm:$0xff]
    %v938 = vld [vmem:[%s935 + $0x10] sm:$0xff]
    %v939 = vld [vmem:[%s935 + $0x18] sm:$0xff]
    %v940 = vpack.c.bf16 %v931, %v931
    %v941 = vld [vmem:[#allocation6] sm:$0xff]
    %v942 = vld [vmem:[#allocation6 + $0x8] sm:$0xff]
    %v943 = vld [vmem:[#allocation6 + $0x10] sm:$0xff]
    %v944 = vld [vmem:[#allocation6 + $0x18] sm:$0xff]
    %v945 = vld [vmem:[#allocation6 + $0x20] sm:$0xff]
    %v946 = vld [vmem:[#allocation6 + $0x28] sm:$0xff]
    %v947 = vld [vmem:[#allocation6 + $0x30] sm:$0xff]
    %v948 = vld [vmem:[#allocation6 + $0x38] sm:$0xff]
    %v949 = vld [vmem:[#allocation6 + $0x40] sm:$0xff]
    %v950 = vld [vmem:[#allocation6 + $0x48] sm:$0xff]
    %v951 = vld [vmem:[#allocation6 + $0x50] sm:$0xff]
    %v952 = vld [vmem:[#allocation6 + $0x58] sm:$0xff]
    %v953 = vld [vmem:[#allocation6 + $0x60] sm:$0xff]
    %v954 = vld [vmem:[#allocation6 + $0x68] sm:$0xff]
    %v955 = vld [vmem:[#allocation6 + $0x70] sm:$0xff]
    %v956 = vld [vmem:[#allocation6 + $0x78] sm:$0xff]
    %v957 = vld [vmem:[#allocation6 + $0x80] sm:$0xff]
    %v958 = vld [vmem:[#allocation6 + $0x88] sm:$0xff]
    %v959 = vld [vmem:[#allocation6 + $0x90] sm:$0xff]
    %v960 = vld [vmem:[#allocation6 + $0x98] sm:$0xff]
    %v961 = vld [vmem:[#allocation6 + $0xa0] sm:$0xff]
    %v962 = vld [vmem:[#allocation6 + $0xa8] sm:$0xff]
    %v963 = vld [vmem:[#allocation6 + $0xb0] sm:$0xff]
    %v964 = vld [vmem:[#allocation6 + $0xb8] sm:$0xff]
    %v965 = vld [vmem:[#allocation6 + $0xc0] sm:$0xff]
    %v966 = vld [vmem:[#allocation6 + $0xc8] sm:$0xff]
    %v967 = vld [vmem:[#allocation6 + $0xd0] sm:$0xff]
    %v968 = vld [vmem:[#allocation6 + $0xd8] sm:$0xff]
    %v969 = vld [vmem:[#allocation6 + $0xe0] sm:$0xff]
    %v970 = vld [vmem:[#allocation6 + $0xe8] sm:$0xff]
    %v971 = vld [vmem:[#allocation6 + $0xf0] sm:$0xff]
    %v972 = vld [vmem:[#allocation6 + $0xf8] sm:$0xff]
    %v1005 = vunpack.c.l.b16 %v941
    %v1006 = vunpack.c.h.b16 %v941
    %v1007 = vunpack.c.l.b16 %v942
    %v1008 = vunpack.c.h.b16 %v942
    %v1009 = vunpack.c.l.b16 %v943
    %v1010 = vunpack.c.h.b16 %v943
    %v1011 = vunpack.c.l.b16 %v944
    %v1012 = vunpack.c.h.b16 %v944
    %v1013 = vunpack.c.l.b16 %v945
    %v1014 = vunpack.c.h.b16 %v945
    %v1015 = vunpack.c.l.b16 %v946
    %v1016 = vunpack.c.h.b16 %v946
    %v1017 = vunpack.c.l.b16 %v947
    %v1018 = vunpack.c.h.b16 %v947
    %v1019 = vunpack.c.l.b16 %v948
    %v1020 = vunpack.c.h.b16 %v948
    %v1021 = vunpack.c.l.b16 %v949
    %v1022 = vunpack.c.h.b16 %v949
    %v1023 = vunpack.c.l.b16 %v950
    %v1024 = vunpack.c.h.b16 %v950
    %v1025 = vunpack.c.l.b16 %v951
    %v1026 = vunpack.c.h.b16 %v951
    %v1027 = vunpack.c.l.b16 %v952
    %v1028 = vunpack.c.h.b16 %v952
    %v1029 = vunpack.c.l.b16 %v953
    %v1030 = vunpack.c.h.b16 %v953
    %v1031 = vunpack.c.l.b16 %v954
    %v1032 = vunpack.c.h.b16 %v954
    %v1033 = vunpack.c.l.b16 %v955
    %v1034 = vunpack.c.h.b16 %v955
    %v1035 = vunpack.c.l.b16 %v956
    %v1036 = vunpack.c.h.b16 %v956
    %v1037 = vunpack.c.l.b16 %v957
    %v1038 = vunpack.c.h.b16 %v957
    %v1039 = vunpack.c.l.b16 %v958
    %v1040 = vunpack.c.h.b16 %v958
    %v1041 = vunpack.c.l.b16 %v959
    %v1042 = vunpack.c.h.b16 %v959
    %v1043 = vunpack.c.l.b16 %v960
    %v1044 = vunpack.c.h.b16 %v960
    %v1045 = vunpack.c.l.b16 %v961
    %v1046 = vunpack.c.h.b16 %v961
    %v1047 = vunpack.c.l.b16 %v962
    %v1048 = vunpack.c.h.b16 %v962
    %v1049 = vunpack.c.l.b16 %v963
    %v1050 = vunpack.c.h.b16 %v963
    %v1051 = vunpack.c.l.b16 %v964
    %v1052 = vunpack.c.h.b16 %v964
    %v1053 = vunpack.c.l.b16 %v965
    %v1054 = vunpack.c.h.b16 %v965
    %v1055 = vunpack.c.l.b16 %v966
    %v1056 = vunpack.c.h.b16 %v966
    %v1057 = vunpack.c.l.b16 %v967
    %v1058 = vunpack.c.h.b16 %v967
    %v1059 = vunpack.c.l.b16 %v968
    %v1060 = vunpack.c.h.b16 %v968
    %v1061 = vunpack.c.l.b16 %v969
    %v1062 = vunpack.c.h.b16 %v969
    %v1063 = vunpack.c.l.b16 %v970
    %v1064 = vunpack.c.h.b16 %v970
    %v1065 = vunpack.c.l.b16 %v971
    %v1066 = vunpack.c.h.b16 %v971
    %v1067 = vunpack.c.l.b16 %v972
    %v1068 = vunpack.c.h.b16 %v972
    %v1069 = vpack.c.b16 %v1009, %v1005
    %v1070 = vpack.c.b16 %v1010, %v1006
    %v1071 = vpack.c.b16 %v1011, %v1007
    %v1072 = vpack.c.b16 %v1012, %v1008
    %v1073 = vpack.c.b16 %v1017, %v1013
    %v1074 = vpack.c.b16 %v1018, %v1014
    %v1075 = vpack.c.b16 %v1019, %v1015
    %v1076 = vpack.c.b16 %v1020, %v1016
    %v1077 = vpack.c.b16 %v1025, %v1021
    %v1078 = vpack.c.b16 %v1026, %v1022
    %v1079 = vpack.c.b16 %v1027, %v1023
    %v1080 = vpack.c.b16 %v1028, %v1024
    %v1081 = vpack.c.b16 %v1033, %v1029
    %v1082 = vpack.c.b16 %v1034, %v1030
    %v1083 = vpack.c.b16 %v1035, %v1031
    %v1084 = vpack.c.b16 %v1036, %v1032
    %v1085 = vpack.c.b16 %v1041, %v1037
    %v1086 = vpack.c.b16 %v1042, %v1038
    %v1087 = vpack.c.b16 %v1043, %v1039
    %v1088 = vpack.c.b16 %v1044, %v1040
    %v1089 = vpack.c.b16 %v1049, %v1045
    %v1090 = vpack.c.b16 %v1050, %v1046
    %v1091 = vpack.c.b16 %v1051, %v1047
    %v1092 = vpack.c.b16 %v1052, %v1048
    %v1093 = vpack.c.b16 %v1057, %v1053
    %v1094 = vpack.c.b16 %v1058, %v1054
    %v1095 = vpack.c.b16 %v1059, %v1055
    %v1096 = vpack.c.b16 %v1060, %v1056
    %v1097 = vpack.c.b16 %v1065, %v1061
    %v1098 = vpack.c.b16 %v1066, %v1062
    %v1099 = vpack.c.b16 %v1067, %v1063
    %v1100 = vpack.c.b16 %v1068, %v1064
    %1133 = vmatprep.subr.bf16.mxu0 %v1070
    %1134 = vmatpush1.bf16.msra.mxu0 %v1069
    %1135 = vmatprep.subr.bf16.mxu0 %v1074
    %1136 = vmatpush1.bf16.msra.mxu0 %v1073
    %1137 = vmatprep.subr.bf16.mxu0 %v1078
    %1138 = vmatpush1.bf16.msra.mxu0 %v1077
    %1139 = vmatprep.subr.bf16.mxu0 %v1082
    %1140 = vmatpush1.bf16.msra.mxu0 %v1081
    %1141 = vmatprep.subr.bf16.mxu0 %v1086
    %1142 = vmatpush1.bf16.msra.mxu0 %v1085
    %1143 = vmatprep.subr.bf16.mxu0 %v1090
    %1144 = vmatpush1.bf16.msra.mxu0 %v1089
    %1145 = vmatprep.subr.bf16.mxu0 %v1094
    %1146 = vmatpush1.bf16.msra.mxu0 %v1093
    %1147 = vmatprep.subr.bf16.mxu0 %v1098
    %1148 = vmatpush1.bf16.msra.mxu0 %v1097
    %1149 = vmatprep.subr.bf16.mxu0 0
    %1150 = vmatpush1.bf16.msra.mxu0 0
    %1151 = vmatprep.subr.bf16.mxu0 0
    %1152 = vmatpush1.bf16.msra.mxu0 0
    %1153 = vmatprep.subr.bf16.mxu0 0
    %1154 = vmatpush1.bf16.msra.mxu0 0
    %1155 = vmatprep.subr.bf16.mxu0 0
    %1156 = vmatpush1.bf16.msra.mxu0 0
    %1157 = vmatprep.subr.bf16.mxu0 0
    %1158 = vmatpush1.bf16.msra.mxu0 0
    %1159 = vmatprep.subr.bf16.mxu0 0
    %1160 = vmatpush1.bf16.msra.mxu0 0
    %1161 = vmatprep.subr.bf16.mxu0 0
    %1162 = vmatpush1.bf16.msra.mxu0 0
    %1163 = vmatprep.subr.bf16.mxu0 0
    %1164 = vmatpush1.bf16.msra.mxu0 0
    %1165 = vmatprep.mubr.bf16.mxu0 0
    %1166 = vmatmul.mubr.bf16.gmra.mrb[0].mxu0 %v940
    %v1167 = vpop.f32.mrb[0].mxu0
    %v1168 = vadd.f32 0.0, %v1167
    %v1169 = vpop.f32.mrb[0].mxu0
    %v1170 = vadd.f32 0.0, %v1169
    %v1171 = vpop.f32.mrb[0].mxu0
    %v1172 = vpop.f32.mrb[0].mxu0
    %1173 = vdwg.mxu0
    %1174 = vmatprep.subr.bf16.mxu0 %v1072
    %1175 = vmatpush1.bf16.msra.mxu0 %v1071
    %1176 = vmatprep.subr.bf16.mxu0 %v1076
    %1177 = vmatpush1.bf16.msra.mxu0 %v1075
    %1178 = vmatprep.subr.bf16.mxu0 %v1080
    %1179 = vmatpush1.bf16.msra.mxu0 %v1079
    %1180 = vmatprep.subr.bf16.mxu0 %v1084
    %1181 = vmatpush1.bf16.msra.mxu0 %v1083
    %1182 = vmatprep.subr.bf16.mxu0 %v1088
    %1183 = vmatpush1.bf16.msra.mxu0 %v1087
    %1184 = vmatprep.subr.bf16.mxu0 %v1092
    %1185 = vmatpush1.bf16.msra.mxu0 %v1091
    %1186 = vmatprep.subr.bf16.mxu0 %v1096
    %1187 = vmatpush1.bf16.msra.mxu0 %v1095
    %1188 = vmatprep.subr.bf16.mxu0 %v1100
    %1189 = vmatpush1.bf16.msra.mxu0 %v1099
    %1190 = vmatprep.subr.bf16.mxu0 0
    %1191 = vmatpush1.bf16.msra.mxu0 0
    %1192 = vmatprep.subr.bf16.mxu0 0
    %1193 = vmatpush1.bf16.msra.mxu0 0
    %1194 = vmatprep.subr.bf16.mxu0 0
    %1195 = vmatpush1.bf16.msra.mxu0 0
    %1196 = vmatprep.subr.bf16.mxu0 0
    %1197 = vmatpush1.bf16.msra.mxu0 0
    %1198 = vmatprep.subr.bf16.mxu0 0
    %1199 = vmatpush1.bf16.msra.mxu0 0
    %1200 = vmatprep.subr.bf16.mxu0 0
    %1201 = vmatpush1.bf16.msra.mxu0 0
    %1202 = vmatprep.subr.bf16.mxu0 0
    %1203 = vmatpush1.bf16.msra.mxu0 0
    %1204 = vmatprep.subr.bf16.mxu0 0
    %1205 = vmatpush1.bf16.msra.mxu0 0
    %1206 = vmatprep.mubr.bf16.mxu0 0
    %1207 = vmatmul.mubr.bf16.gmra.mrb[0].mxu0 %v940
    %v1208 = vpop.f32.mrb[0].mxu0
    %v1209 = vadd.f32 0.0, %v1208
    %v1210 = vpop.f32.mrb[0].mxu0
    %v1211 = vadd.f32 0.0, %v1210
    %v1212 = vpop.f32.mrb[0].mxu0
    %v1213 = vpop.f32.mrb[0].mxu0
    %1214 = vdwg.mxu0
    %v1215 = vadd.f32 %v936, %v1168
    %v1216 = vadd.f32 %v937, %v1170
    %v1217 = vadd.f32 %v938, %v1209
    %v1218 = vadd.f32 %v939, %v1211
    %v1219 = vxor.u32 %v1215, 2147483648
    %v1220 = vmul.f32 %v1219, 1.442695
    %v1221 = vpow.pop %v1220
    %v1222 = vadd.f32 %v1221, 1.0
    %v1223 = vrcp.pop %v1222
    %v1224 = vmul.f32 1.0, %v1223
    %v1225 = vxor.u32 %v1216, 2147483648
    %v1226 = vmul.f32 %v1225, 1.442695
    %v1227 = vpow.pop %v1226
    %v1228 = vadd.f32 %v1227, 1.0
    %v1229 = vrcp.pop %v1228
    %v1230 = vmul.f32 1.0, %v1229
    %v1231 = vtanh.pop %v1217
    %v1232 = vxor.u32 %v1218, 2147483648
    %v1233 = vmul.f32 %v1232, 1.442695
    %v1234 = vpow.pop %v1233
    %v1235 = vadd.f32 %v1234, 1.0
    %v1236 = vrcp.pop %v1235
    %v1237 = vmul.f32 1.0, %v1236
    %v1238 = vmul.f32 %v1230, %v929
    %v1239 = vmul.f32 %v1224, %v1231
    %v1240 = vadd.f32 %v1238, %v1239
    %v1241 = vtanh.pop %v1240
    %v1242 = vmul.f32 %v1237, %v1241
    %s1243 = scalar_lea.vmem [#allocation3], 8
    %1244 = vst [vmem:[%s1243] sm:$0xff] %v1242
    %s1245 = smul.u32 2, 4
    %s1246 = smul.addr %s1245, 8
    %s1247 = scalar_lea.vmem [#allocation2], %s1246
    %v1248 = vld [vmem:[%s1247] sm:$0xff]
    %v1249 = vld [vmem:[%s1247 + $0x8] sm:$0xff]
    %v1250 = vld [vmem:[%s1247 + $0x10] sm:$0xff]
    %v1251 = vld [vmem:[%s1247 + $0x18] sm:$0xff]
    %v1252 = vpack.c.bf16 %v1242, %v1242
    %v1253 = vld [vmem:[#allocation6] sm:$0xff]
    %v1254 = vld [vmem:[#allocation6 + $0x8] sm:$0xff]
    %v1255 = vld [vmem:[#allocation6 + $0x10] sm:$0xff]
    %v1256 = vld [vmem:[#allocation6 + $0x18] sm:$0xff]
    %v1257 = vld [vmem:[#allocation6 + $0x20] sm:$0xff]
    %v1258 = vld [vmem:[#allocation6 + $0x28] sm:$0xff]
    %v1259 = vld [vmem:[#allocation6 + $0x30] sm:$0xff]
    %v1260 = vld [vmem:[#allocation6 + $0x38] sm:$0xff]
    %v1261 = vld [vmem:[#allocation6 + $0x40] sm:$0xff]
    %v1262 = vld [vmem:[#allocation6 + $0x48] sm:$0xff]
    %v1263 = vld [vmem:[#allocation6 + $0x50] sm:$0xff]
    %v1264 = vld [vmem:[#allocation6 + $0x58] sm:$0xff]
    %v1265 = vld [vmem:[#allocation6 + $0x60] sm:$0xff]
    %v1266 = vld [vmem:[#allocation6 + $0x68] sm:$0xff]
    %v1267 = vld [vmem:[#allocation6 + $0x70] sm:$0xff]
    %v1268 = vld [vmem:[#allocation6 + $0x78] sm:$0xff]
    %v1269 = vld [vmem:[#allocation6 + $0x80] sm:$0xff]
    %v1270 = vld [vmem:[#allocation6 + $0x88] sm:$0xff]
    %v1271 = vld [vmem:[#allocation6 + $0x90] sm:$0xff]
    %v1272 = vld [vmem:[#allocation6 + $0x98] sm:$0xff]
    %v1273 = vld [vmem:[#allocation6 + $0xa0] sm:$0xff]
    %v1274 = vld [vmem:[#allocation6 + $0xa8] sm:$0xff]
    %v1275 = vld [vmem:[#allocation6 + $0xb0] sm:$0xff]
    %v1276 = vld [vmem:[#allocation6 + $0xb8] sm:$0xff]
    %v1277 = vld [vmem:[#allocation6 + $0xc0] sm:$0xff]
    %v1278 = vld [vmem:[#allocation6 + $0xc8] sm:$0xff]
    %v1279 = vld [vmem:[#allocation6 + $0xd0] sm:$0xff]
    %v1280 = vld [vmem:[#allocation6 + $0xd8] sm:$0xff]
    %v1281 = vld [vmem:[#allocation6 + $0xe0] sm:$0xff]
    %v1282 = vld [vmem:[#allocation6 + $0xe8] sm:$0xff]
    %v1283 = vld [vmem:[#allocation6 + $0xf0] sm:$0xff]
    %v1284 = vld [vmem:[#allocation6 + $0xf8] sm:$0xff]
    %v1317 = vunpack.c.l.b16 %v1253
    %v1318 = vunpack.c.h.b16 %v1253
    %v1319 = vunpack.c.l.b16 %v1254
    %v1320 = vunpack.c.h.b16 %v1254
    %v1321 = vunpack.c.l.b16 %v1255
    %v1322 = vunpack.c.h.b16 %v1255
    %v1323 = vunpack.c.l.b16 %v1256
    %v1324 = vunpack.c.h.b16 %v1256
    %v1325 = vunpack.c.l.b16 %v1257
    %v1326 = vunpack.c.h.b16 %v1257
    %v1327 = vunpack.c.l.b16 %v1258
    %v1328 = vunpack.c.h.b16 %v1258
    %v1329 = vunpack.c.l.b16 %v1259
    %v1330 = vunpack.c.h.b16 %v1259
    %v1331 = vunpack.c.l.b16 %v1260
    %v1332 = vunpack.c.h.b16 %v1260
    %v1333 = vunpack.c.l.b16 %v1261
    %v1334 = vunpack.c.h.b16 %v1261
    %v1335 = vunpack.c.l.b16 %v1262
    %v1336 = vunpack.c.h.b16 %v1262
    %v1337 = vunpack.c.l.b16 %v1263
    %v1338 = vunpack.c.h.b16 %v1263
    %v1339 = vunpack.c.l.b16 %v1264
    %v1340 = vunpack.c.h.b16 %v1264
    %v1341 = vunpack.c.l.b16 %v1265
    %v1342 = vunpack.c.h.b16 %v1265
    %v1343 = vunpack.c.l.b16 %v1266
    %v1344 = vunpack.c.h.b16 %v1266
    %v1345 = vunpack.c.l.b16 %v1267
    %v1346 = vunpack.c.h.b16 %v1267
    %v1347 = vunpack.c.l.b16 %v1268
    %v1348 = vunpack.c.h.b16 %v1268
    %v1349 = vunpack.c.l.b16 %v1269
    %v1350 = vunpack.c.h.b16 %v1269
    %v1351 = vunpack.c.l.b16 %v1270
    %v1352 = vunpack.c.h.b16 %v1270
    %v1353 = vunpack.c.l.b16 %v1271
    %v1354 = vunpack.c.h.b16 %v1271
    %v1355 = vunpack.c.l.b16 %v1272
    %v1356 = vunpack.c.h.b16 %v1272
    %v1357 = vunpack.c.l.b16 %v1273
    %v1358 = vunpack.c.h.b16 %v1273
    %v1359 = vunpack.c.l.b16 %v1274
    %v1360 = vunpack.c.h.b16 %v1274
    %v1361 = vunpack.c.l.b16 %v1275
    %v1362 = vunpack.c.h.b16 %v1275
    %v1363 = vunpack.c.l.b16 %v1276
    %v1364 = vunpack.c.h.b16 %v1276
    %v1365 = vunpack.c.l.b16 %v1277
    %v1366 = vunpack.c.h.b16 %v1277
    %v1367 = vunpack.c.l.b16 %v1278
    %v1368 = vunpack.c.h.b16 %v1278
    %v1369 = vunpack.c.l.b16 %v1279
    %v1370 = vunpack.c.h.b16 %v1279
    %v1371 = vunpack.c.l.b16 %v1280
    %v1372 = vunpack.c.h.b16 %v1280
    %v1373 = vunpack.c.l.b16 %v1281
    %v1374 = vunpack.c.h.b16 %v1281
    %v1375 = vunpack.c.l.b16 %v1282
    %v1376 = vunpack.c.h.b16 %v1282
    %v1377 = vunpack.c.l.b16 %v1283
    %v1378 = vunpack.c.h.b16 %v1283
    %v1379 = vunpack.c.l.b16 %v1284
    %v1380 = vunpack.c.h.b16 %v1284
    %v1381 = vpack.c.b16 %v1321, %v1317
    %v1382 = vpack.c.b16 %v1322, %v1318
    %v1383 = vpack.c.b16 %v1323, %v1319
    %v1384 = vpack.c.b16 %v1324, %v1320
    %v1385 = vpack.c.b16 %v1329, %v1325
    %v1386 = vpack.c.b16 %v1330, %v1326
    %v1387 = vpack.c.b16 %v1331, %v1327
    %v1388 = vpack.c.b16 %v1332, %v1328
    %v1389 = vpack.c.b16 %v1337, %v1333
    %v1390 = vpack.c.b16 %v1338, %v1334
    %v1391 = vpack.c.b16 %v1339, %v1335
    %v1392 = vpack.c.b16 %v1340, %v1336
    %v1393 = vpack.c.b16 %v1345, %v1341
    %v1394 = vpack.c.b16 %v1346, %v1342
    %v1395 = vpack.c.b16 %v1347, %v1343
    %v1396 = vpack.c.b16 %v1348, %v1344
    %v1397 = vpack.c.b16 %v1353, %v1349
    %v1398 = vpack.c.b16 %v1354, %v1350
    %v1399 = vpack.c.b16 %v1355, %v1351
    %v1400 = vpack.c.b16 %v1356, %v1352
    %v1401 = vpack.c.b16 %v1361, %v1357
    %v1402 = vpack.c.b16 %v1362, %v1358
    %v1403 = vpack.c.b16 %v1363, %v1359
    %v1404 = vpack.c.b16 %v1364, %v1360
    %v1405 = vpack.c.b16 %v1369, %v1365
    %v1406 = vpack.c.b16 %v1370, %v1366
    %v1407 = vpack.c.b16 %v1371, %v1367
    %v1408 = vpack.c.b16 %v1372, %v1368
    %v1409 = vpack.c.b16 %v1377, %v1373
    %v1410 = vpack.c.b16 %v1378, %v1374
    %v1411 = vpack.c.b16 %v1379, %v1375
    %v1412 = vpack.c.b16 %v1380, %v1376
    %1445 = vmatprep.subr.bf16.mxu0 %v1382
    %1446 = vmatpush1.bf16.msra.mxu0 %v1381
    %1447 = vmatprep.subr.bf16.mxu0 %v1386
    %1448 = vmatpush1.bf16.msra.mxu0 %v1385
    %1449 = vmatprep.subr.bf16.mxu0 %v1390
    %1450 = vmatpush1.bf16.msra.mxu0 %v1389
    %1451 = vmatprep.subr.bf16.mxu0 %v1394
    %1452 = vmatpush1.bf16.msra.mxu0 %v1393
    %1453 = vmatprep.subr.bf16.mxu0 %v1398
    %1454 = vmatpush1.bf16.msra.mxu0 %v1397
    %1455 = vmatprep.subr.bf16.mxu0 %v1402
    %1456 = vmatpush1.bf16.msra.mxu0 %v1401
    %1457 = vmatprep.subr.bf16.mxu0 %v1406
    %1458 = vmatpush1.bf16.msra.mxu0 %v1405
    %1459 = vmatprep.subr.bf16.mxu0 %v1410
    %1460 = vmatpush1.bf16.msra.mxu0 %v1409
    %1461 = vmatprep.subr.bf16.mxu0 0
    %1462 = vmatpush1.bf16.msra.mxu0 0
    %1463 = vmatprep.subr.bf16.mxu0 0
    %1464 = vmatpush1.bf16.msra.mxu0 0
    %1465 = vmatprep.subr.bf16.mxu0 0
    %1466 = vmatpush1.bf16.msra.mxu0 0
    %1467 = vmatprep.subr.bf16.mxu0 0
    %1468 = vmatpush1.bf16.msra.mxu0 0
    %1469 = vmatprep.subr.bf16.mxu0 0
    %1470 = vmatpush1.bf16.msra.mxu0 0
    %1471 = vmatprep.subr.bf16.mxu0 0
    %1472 = vmatpush1.bf16.msra.mxu0 0
    %1473 = vmatprep.subr.bf16.mxu0 0
    %1474 = vmatpush1.bf16.msra.mxu0 0
    %1475 = vmatprep.subr.bf16.mxu0 0
    %1476 = vmatpush1.bf16.msra.mxu0 0
    %1477 = vmatprep.mubr.bf16.mxu0 0
    %1478 = vmatmul.mubr.bf16.gmra.mrb[0].mxu0 %v1252
    %v1479 = vpop.f32.mrb[0].mxu0
    %v1480 = vadd.f32 0.0, %v1479
    %v1481 = vpop.f32.mrb[0].mxu0
    %v1482 = vadd.f32 0.0, %v1481
    %v1483 = vpop.f32.mrb[0].mxu0
    %v1484 = vpop.f32.mrb[0].mxu0
    %1485 = vdwg.mxu0
    %1486 = vmatprep.subr.bf16.mxu0 %v1384
    %1487 = vmatpush1.bf16.msra.mxu0 %v1383
    %1488 = vmatprep.subr.bf16.mxu0 %v1388
    %1489 = vmatpush1.bf16.msra.mxu0 %v1387
    %1490 = vmatprep.subr.bf16.mxu0 %v1392
    %1491 = vmatpush1.bf16.msra.mxu0 %v1391
    %1492 = vmatprep.subr.bf16.mxu0 %v1396
    %1493 = vmatpush1.bf16.msra.mxu0 %v1395
    %1494 = vmatprep.subr.bf16.mxu0 %v1400
    %1495 = vmatpush1.bf16.msra.mxu0 %v1399
    %1496 = vmatprep.subr.bf16.mxu0 %v1404
    %1497 = vmatpush1.bf16.msra.mxu0 %v1403
    %1498 = vmatprep.subr.bf16.mxu0 %v1408
    %1499 = vmatpush1.bf16.msra.mxu0 %v1407
    %1500 = vmatprep.subr.bf16.mxu0 %v1412
    %1501 = vmatpush1.bf16.msra.mxu0 %v1411
    %1502 = vmatprep.subr.bf16.mxu0 0
    %1503 = vmatpush1.bf16.msra.mxu0 0
    %1504 = vmatprep.subr.bf16.mxu0 0
    %1505 = vmatpush1.bf16.msra.mxu0 0
    %1506 = vmatprep.subr.bf16.mxu0 0
    %1507 = vmatpush1.bf16.msra.mxu0 0
    %1508 = vmatprep.subr.bf16.mxu0 0
    %1509 = vmatpush1.bf16.msra.mxu0 0
    %1510 = vmatprep.subr.bf16.mxu0 0
    %1511 = vmatpush1.bf16.msra.mxu0 0
    %1512 = vmatprep.subr.bf16.mxu0 0
    %1513 = vmatpush1.bf16.msra.mxu0 0
    %1514 = vmatprep.subr.bf16.mxu0 0
    %1515 = vmatpush1.bf16.msra.mxu0 0
    %1516 = vmatprep.subr.bf16.mxu0 0
    %1517 = vmatpush1.bf16.msra.mxu0 0
    %1518 = vmatprep.mubr.bf16.mxu0 0
    %1519 = vmatmul.mubr.bf16.gmra.mrb[0].mxu0 %v1252
    %v1520 = vpop.f32.mrb[0].mxu0
    %v1521 = vadd.f32 0.0, %v1520
    %v1522 = vpop.f32.mrb[0].mxu0
    %v1523 = vadd.f32 0.0, %v1522
    %v1524 = vpop.f32.mrb[0].mxu0
    %v1525 = vpop.f32.mrb[0].mxu0
    %1526 = vdwg.mxu0
    %v1527 = vadd.f32 %v1248, %v1480
    %v1528 = vadd.f32 %v1249, %v1482
    %v1529 = vadd.f32 %v1250, %v1521
    %v1530 = vadd.f32 %v1251, %v1523
    %v1531 = vxor.u32 %v1527, 2147483648
    %v1532 = vmul.f32 %v1531, 1.442695
    %v1533 = vpow.pop %v1532
    %v1534 = vadd.f32 %v1533, 1.0
    %v1535 = vrcp.pop %v1534
    %v1536 = vmul.f32 1.0, %v1535
    %v1537 = vxor.u32 %v1528, 2147483648
    %v1538 = vmul.f32 %v1537, 1.442695
    %v1539 = vpow.pop %v1538
    %v1540 = vadd.f32 %v1539, 1.0
    %v1541 = vrcp.pop %v1540
    %v1542 = vmul.f32 1.0, %v1541
    %v1543 = vtanh.pop %v1529
    %v1544 = vxor.u32 %v1530, 2147483648
    %v1545 = vmul.f32 %v1544, 1.442695
    %v1546 = vpow.pop %v1545
    %v1547 = vadd.f32 %v1546, 1.0
    %v1548 = vrcp.pop %v1547
    %v1549 = vmul.f32 1.0, %v1548
    %v1550 = vmul.f32 %v1542, %v1240
    %v1551 = vmul.f32 %v1536, %v1543
    %v1552 = vadd.f32 %v1550, %v1551
    %v1553 = vtanh.pop %v1552
    %v1554 = vmul.f32 %v1549, %v1553
    %s1555 = scalar_lea.vmem [#allocation3], 16
    %1556 = vst [vmem:[%s1555] sm:$0xff] %v1554
    %s1557 = smul.u32 3, 4
    %s1558 = smul.addr %s1557, 8
    %s1559 = scalar_lea.vmem [#allocation2], %s1558
    %v1560 = vld [vmem:[%s1559] sm:$0xff]
    %v1561 = vld [vmem:[%s1559 + $0x8] sm:$0xff]
    %v1562 = vld [vmem:[%s1559 + $0x10] sm:$0xff]
    %v1563 = vld [vmem:[%s1559 + $0x18] sm:$0xff]
    %v1564 = vpack.c.bf16 %v1554, %v1554
    %v1565 = vld [vmem:[#allocation6] sm:$0xff]
    %v1566 = vld [vmem:[#allocation6 + $0x8] sm:$0xff]
    %v1567 = vld [vmem:[#allocation6 + $0x10] sm:$0xff]
    %v1568 = vld [vmem:[#allocation6 + $0x18] sm:$0xff]
    %v1569 = vld [vmem:[#allocation6 + $0x20] sm:$0xff]
    %v1570 = vld [vmem:[#allocation6 + $0x28] sm:$0xff]
    %v1571 = vld [vmem:[#allocation6 + $0x30] sm:$0xff]
    %v1572 = vld [vmem:[#allocation6 + $0x38] sm:$0xff]
    %v1573 = vld [vmem:[#allocation6 + $0x40] sm:$0xff]
    %v1574 = vld [vmem:[#allocation6 + $0x48] sm:$0xff]
    %v1575 = vld [vmem:[#allocation6 + $0x50] sm:$0xff]
    %v1576 = vld [vmem:[#allocation6 + $0x58] sm:$0xff]
    %v1577 = vld [vmem:[#allocation6 + $0x60] sm:$0xff]
    %v1578 = vld [vmem:[#allocation6 + $0x68] sm:$0xff]
    %v1579 = vld [vmem:[#allocation6 + $0x70] sm:$0xff]
    %v1580 = vld [vmem:[#allocation6 + $0x78] sm:$0xff]
    %v1581 = vld [vmem:[#allocation6 + $0x80] sm:$0xff]
    %v1582 = vld [vmem:[#allocation6 + $0x88] sm:$0xff]
    %v1583 = vld [vmem:[#allocation6 + $0x90] sm:$0xff]
    %v1584 = vld [vmem:[#allocation6 + $0x98] sm:$0xff]
    %v1585 = vld [vmem:[#allocation6 + $0xa0] sm:$0xff]
    %v1586 = vld [vmem:[#allocation6 + $0xa8] sm:$0xff]
    %v1587 = vld [vmem:[#allocation6 + $0xb0] sm:$0xff]
    %v1588 = vld [vmem:[#allocation6 + $0xb8] sm:$0xff]
    %v1589 = vld [vmem:[#allocation6 + $0xc0] sm:$0xff]
    %v1590 = vld [vmem:[#allocation6 + $0xc8] sm:$0xff]
    %v1591 = vld [vmem:[#allocation6 + $0xd0] sm:$0xff]
    %v1592 = vld [vmem:[#allocation6 + $0xd8] sm:$0xff]
    %v1593 = vld [vmem:[#allocation6 + $0xe0] sm:$0xff]
    %v1594 = vld [vmem:[#allocation6 + $0xe8] sm:$0xff]
    %v1595 = vld [vmem:[#allocation6 + $0xf0] sm:$0xff]
    %v1596 = vld [vmem:[#allocation6 + $0xf8] sm:$0xff]
    %v1629 = vunpack.c.l.b16 %v1565
    %v1630 = vunpack.c.h.b16 %v1565
    %v1631 = vunpack.c.l.b16 %v1566
    %v1632 = vunpack.c.h.b16 %v1566
    %v1633 = vunpack.c.l.b16 %v1567
    %v1634 = vunpack.c.h.b16 %v1567
    %v1635 = vunpack.c.l.b16 %v1568
    %v1636 = vunpack.c.h.b16 %v1568
    %v1637 = vunpack.c.l.b16 %v1569
    %v1638 = vunpack.c.h.b16 %v1569
    %v1639 = vunpack.c.l.b16 %v1570
    %v1640 = vunpack.c.h.b16 %v1570
    %v1641 = vunpack.c.l.b16 %v1571
    %v1642 = vunpack.c.h.b16 %v1571
    %v1643 = vunpack.c.l.b16 %v1572
    %v1644 = vunpack.c.h.b16 %v1572
    %v1645 = vunpack.c.l.b16 %v1573
    %v1646 = vunpack.c.h.b16 %v1573
    %v1647 = vunpack.c.l.b16 %v1574
    %v1648 = vunpack.c.h.b16 %v1574
    %v1649 = vunpack.c.l.b16 %v1575
    %v1650 = vunpack.c.h.b16 %v1575
    %v1651 = vunpack.c.l.b16 %v1576
    %v1652 = vunpack.c.h.b16 %v1576
    %v1653 = vunpack.c.l.b16 %v1577
    %v1654 = vunpack.c.h.b16 %v1577
    %v1655 = vunpack.c.l.b16 %v1578
    %v1656 = vunpack.c.h.b16 %v1578
    %v1657 = vunpack.c.l.b16 %v1579
    %v1658 = vunpack.c.h.b16 %v1579
    %v1659 = vunpack.c.l.b16 %v1580
    %v1660 = vunpack.c.h.b16 %v1580
    %v1661 = vunpack.c.l.b16 %v1581
    %v1662 = vunpack.c.h.b16 %v1581
    %v1663 = vunpack.c.l.b16 %v1582
    %v1664 = vunpack.c.h.b16 %v1582
    %v1665 = vunpack.c.l.b16 %v1583
    %v1666 = vunpack.c.h.b16 %v1583
    %v1667 = vunpack.c.l.b16 %v1584
    %v1668 = vunpack.c.h.b16 %v1584
    %v1669 = vunpack.c.l.b16 %v1585
    %v1670 = vunpack.c.h.b16 %v1585
    %v1671 = vunpack.c.l.b16 %v1586
    %v1672 = vunpack.c.h.b16 %v1586
    %v1673 = vunpack.c.l.b16 %v1587
    %v1674 = vunpack.c.h.b16 %v1587
    %v1675 = vunpack.c.l.b16 %v1588
    %v1676 = vunpack.c.h.b16 %v1588
    %v1677 = vunpack.c.l.b16 %v1589
    %v1678 = vunpack.c.h.b16 %v1589
    %v1679 = vunpack.c.l.b16 %v1590
    %v1680 = vunpack.c.h.b16 %v1590
    %v1681 = vunpack.c.l.b16 %v1591
    %v1682 = vunpack.c.h.b16 %v1591
    %v1683 = vunpack.c.l.b16 %v1592
    %v1684 = vunpack.c.h.b16 %v1592
    %v1685 = vunpack.c.l.b16 %v1593
    %v1686 = vunpack.c.h.b16 %v1593
    %v1687 = vunpack.c.l.b16 %v1594
    %v1688 = vunpack.c.h.b16 %v1594
    %v1689 = vunpack.c.l.b16 %v1595
    %v1690 = vunpack.c.h.b16 %v1595
    %v1691 = vunpack.c.l.b16 %v1596
    %v1692 = vunpack.c.h.b16 %v1596
    %v1693 = vpack.c.b16 %v1633, %v1629
    %v1694 = vpack.c.b16 %v1634, %v1630
    %v1695 = vpack.c.b16 %v1635, %v1631
    %v1696 = vpack.c.b16 %v1636, %v1632
    %v1697 = vpack.c.b16 %v1641, %v1637
    %v1698 = vpack.c.b16 %v1642, %v1638
    %v1699 = vpack.c.b16 %v1643, %v1639
    %v1700 = vpack.c.b16 %v1644, %v1640
    %v1701 = vpack.c.b16 %v1649, %v1645
    %v1702 = vpack.c.b16 %v1650, %v1646
    %v1703 = vpack.c.b16 %v1651, %v1647
    %v1704 = vpack.c.b16 %v1652, %v1648
    %v1705 = vpack.c.b16 %v1657, %v1653
    %v1706 = vpack.c.b16 %v1658, %v1654
    %v1707 = vpack.c.b16 %v1659, %v1655
    %v1708 = vpack.c.b16 %v1660, %v1656
    %v1709 = vpack.c.b16 %v1665, %v1661
    %v1710 = vpack.c.b16 %v1666, %v1662
    %v1711 = vpack.c.b16 %v1667, %v1663
    %v1712 = vpack.c.b16 %v1668, %v1664
    %v1713 = vpack.c.b16 %v1673, %v1669
    %v1714 = vpack.c.b16 %v1674, %v1670
    %v1715 = vpack.c.b16 %v1675, %v1671
    %v1716 = vpack.c.b16 %v1676, %v1672
    %v1717 = vpack.c.b16 %v1681, %v1677
    %v1718 = vpack.c.b16 %v1682, %v1678
    %v1719 = vpack.c.b16 %v1683, %v1679
    %v1720 = vpack.c.b16 %v1684, %v1680
    %v1721 = vpack.c.b16 %v1689, %v1685
    %v1722 = vpack.c.b16 %v1690, %v1686
    %v1723 = vpack.c.b16 %v1691, %v1687
    %v1724 = vpack.c.b16 %v1692, %v1688
    %1757 = vmatprep.subr.bf16.mxu0 %v1694
    %1758 = vmatpush1.bf16.msra.mxu0 %v1693
    %1759 = vmatprep.subr.bf16.mxu0 %v1698
    %1760 = vmatpush1.bf16.msra.mxu0 %v1697
    %1761 = vmatprep.subr.bf16.mxu0 %v1702
    %1762 = vmatpush1.bf16.msra.mxu0 %v1701
    %1763 = vmatprep.subr.bf16.mxu0 %v1706
    %1764 = vmatpush1.bf16.msra.mxu0 %v1705
    %1765 = vmatprep.subr.bf16.mxu0 %v1710
    %1766 = vmatpush1.bf16.msra.mxu0 %v1709
    %1767 = vmatprep.subr.bf16.mxu0 %v1714
    %1768 = vmatpush1.bf16.msra.mxu0 %v1713
    %1769 = vmatprep.subr.bf16.mxu0 %v1718
    %1770 = vmatpush1.bf16.msra.mxu0 %v1717
    %1771 = vmatprep.subr.bf16.mxu0 %v1722
    %1772 = vmatpush1.bf16.msra.mxu0 %v1721
    %1773 = vmatprep.subr.bf16.mxu0 0
    %1774 = vmatpush1.bf16.msra.mxu0 0
    %1775 = vmatprep.subr.bf16.mxu0 0
    %1776 = vmatpush1.bf16.msra.mxu0 0
    %1777 = vmatprep.subr.bf16.mxu0 0
    %1778 = vmatpush1.bf16.msra.mxu0 0
    %1779 = vmatprep.subr.bf16.mxu0 0
    %1780 = vmatpush1.bf16.msra.mxu0 0
    %1781 = vmatprep.subr.bf16.mxu0 0
    %1782 = vmatpush1.bf16.msra.mxu0 0
    %1783 = vmatprep.subr.bf16.mxu0 0
    %1784 = vmatpush1.bf16.msra.mxu0 0
    %1785 = vmatprep.subr.bf16.mxu0 0
    %1786 = vmatpush1.bf16.msra.mxu0 0
    %1787 = vmatprep.subr.bf16.mxu0 0
    %1788 = vmatpush1.bf16.msra.mxu0 0
    %1789 = vmatprep.mubr.bf16.mxu0 0
    %1790 = vmatmul.mubr.bf16.gmra.mrb[0].mxu0 %v1564
    %v1791 = vpop.f32.mrb[0].mxu0
    %v1792 = vadd.f32 0.0, %v1791
    %v1793 = vpop.f32.mrb[0].mxu0
    %v1794 = vadd.f32 0.0, %v1793
    %v1795 = vpop.f32.mrb[0].mxu0
    %v1796 = vpop.f32.mrb[0].mxu0
    %1797 = vdwg.mxu0
    %1798 = vmatprep.subr.bf16.mxu0 %v1696
    %1799 = vmatpush1.bf16.msra.mxu0 %v1695
    %1800 = vmatprep.subr.bf16.mxu0 %v1700
    %1801 = vmatpush1.bf16.msra.mxu0 %v1699
    %1802 = vmatprep.subr.bf16.mxu0 %v1704
    %1803 = vmatpush1.bf16.msra.mxu0 %v1703
    %1804 = vmatprep.subr.bf16.mxu0 %v1708
    %1805 = vmatpush1.bf16.msra.mxu0 %v1707
    %1806 = vmatprep.subr.bf16.mxu0 %v1712
    %1807 = vmatpush1.bf16.msra.mxu0 %v1711
    %1808 = vmatprep.subr.bf16.mxu0 %v1716
    %1809 = vmatpush1.bf16.msra.mxu0 %v1715
    %1810 = vmatprep.subr.bf16.mxu0 %v1720
    %1811 = vmatpush1.bf16.msra.mxu0 %v1719
    %1812 = vmatprep.subr.bf16.mxu0 %v1724
    %1813 = vmatpush1.bf16.msra.mxu0 %v1723
    %1814 = vmatprep.subr.bf16.mxu0 0
    %1815 = vmatpush1.bf16.msra.mxu0 0
    %1816 = vmatprep.subr.bf16.mxu0 0
    %1817 = vmatpush1.bf16.msra.mxu0 0
    %1818 = vmatprep.subr.bf16.mxu0 0
    %1819 = vmatpush1.bf16.msra.mxu0 0
    %1820 = vmatprep.subr.bf16.mxu0 0
    %1821 = vmatpush1.bf16.msra.mxu0 0
    %1822 = vmatprep.subr.bf16.mxu0 0
    %1823 = vmatpush1.bf16.msra.mxu0 0
    %1824 = vmatprep.subr.bf16.mxu0 0
    %1825 = vmatpush1.bf16.msra.mxu0 0
    %1826 = vmatprep.subr.bf16.mxu0 0
    %1827 = vmatpush1.bf16.msra.mxu0 0
    %1828 = vmatprep.subr.bf16.mxu0 0
    %1829 = vmatpush1.bf16.msra.mxu0 0
    %1830 = vmatprep.mubr.bf16.mxu0 0
    %1831 = vmatmul.mubr.bf16.gmra.mrb[0].mxu0 %v1564
    %v1832 = vpop.f32.mrb[0].mxu0
    %v1833 = vadd.f32 0.0, %v1832
    %v1834 = vpop.f32.mrb[0].mxu0
    %v1835 = vadd.f32 0.0, %v1834
    %v1836 = vpop.f32.mrb[0].mxu0
    %v1837 = vpop.f32.mrb[0].mxu0
    %1838 = vdwg.mxu0
    %v1839 = vadd.f32 %v1560, %v1792
    %v1840 = vadd.f32 %v1561, %v1794
    %v1841 = vadd.f32 %v1562, %v1833
    %v1842 = vadd.f32 %v1563, %v1835
    %v1843 = vxor.u32 %v1839, 2147483648
    %v1844 = vmul.f32 %v1843, 1.442695
    %v1845 = vpow.pop %v1844
    %v1846 = vadd.f32 %v1845, 1.0
    %v1847 = vrcp.pop %v1846
    %v1848 = vmul.f32 1.0, %v1847
    %v1849 = vxor.u32 %v1840, 2147483648
    %v1850 = vmul.f32 %v1849, 1.442695
    %v1851 = vpow.pop %v1850
    %v1852 = vadd.f32 %v1851, 1.0
    %v1853 = vrcp.pop %v1852
    %v1854 = vmul.f32 1.0, %v1853
    %v1855 = vtanh.pop %v1841
    %v1856 = vxor.u32 %v1842, 2147483648
    %v1857 = vmul.f32 %v1856, 1.442695
    %v1858 = vpow.pop %v1857
    %v1859 = vadd.f32 %v1858, 1.0
    %v1860 = vrcp.pop %v1859
    %v1861 = vmul.f32 1.0, %v1860
    %v1862 = vmul.f32 %v1854, %v1552
    %v1863 = vmul.f32 %v1848, %v1855
    %v1864 = vadd.f32 %v1862, %v1863
    %v1865 = vtanh.pop %v1864
    %v1866 = vmul.f32 %v1861, %v1865
    %s1867 = scalar_lea.vmem [#allocation3], 24
    %1868 = vst [vmem:[%s1867] sm:$0xff] %v1866
    %s1869 = smul.u32 4, 4
    %s1870 = smul.addr %s1869, 8
    %s1871 = scalar_lea.vmem [#allocation2], %s1870
    %v1872 = vld [vmem:[%s1871] sm:$0xff]
    %v1873 = vld [vmem:[%s1871 + $0x8] sm:$0xff]
    %v1874 = vld [vmem:[%s1871 + $0x10] sm:$0xff]
    %v1875 = vld [vmem:[%s1871 + $0x18] sm:$0xff]
    %v1876 = vpack.c.bf16 %v1866, %v1866
    %v1877 = vld [vmem:[#allocation6] sm:$0xff]
    %v1878 = vld [vmem:[#allocation6 + $0x8] sm:$0xff]
    %v1879 = vld [vmem:[#allocation6 + $0x10] sm:$0xff]
    %v1880 = vld [vmem:[#allocation6 + $0x18] sm:$0xff]
    %v1881 = vld [vmem:[#allocation6 + $0x20] sm:$0xff]
    %v1882 = vld [vmem:[#allocation6 + $0x28] sm:$0xff]
    %v1883 = vld [vmem:[#allocation6 + $0x30] sm:$0xff]
    %v1884 = vld [vmem:[#allocation6 + $0x38] sm:$0xff]
    %v1885 = vld [vmem:[#allocation6 + $0x40] sm:$0xff]
    %v1886 = vld [vmem:[#allocation6 + $0x48] sm:$0xff]
    %v1887 = vld [vmem:[#allocation6 + $0x50] sm:$0xff]
    %v1888 = vld [vmem:[#allocation6 + $0x58] sm:$0xff]
    %v1889 = vld [vmem:[#allocation6 + $0x60] sm:$0xff]
    %v1890 = vld [vmem:[#allocation6 + $0x68] sm:$0xff]
    %v1891 = vld [vmem:[#allocation6 + $0x70] sm:$0xff]
    %v1892 = vld [vmem:[#allocation6 + $0x78] sm:$0xff]
    %v1893 = vld [vmem:[#allocation6 + $0x80] sm:$0xff]
    %v1894 = vld [vmem:[#allocation6 + $0x88] sm:$0xff]
    %v1895 = vld [vmem:[#allocation6 + $0x90] sm:$0xff]
    %v1896 = vld [vmem:[#allocation6 + $0x98] sm:$0xff]
    %v1897 = vld [vmem:[#allocation6 + $0xa0] sm:$0xff]
    %v1898 = vld [vmem:[#allocation6 + $0xa8] sm:$0xff]
    %v1899 = vld [vmem:[#allocation6 + $0xb0] sm:$0xff]
    %v1900 = vld [vmem:[#allocation6 + $0xb8] sm:$0xff]
    %v1901 = vld [vmem:[#allocation6 + $0xc0] sm:$0xff]
    %v1902 = vld [vmem:[#allocation6 + $0xc8] sm:$0xff]
    %v1903 = vld [vmem:[#allocation6 + $0xd0] sm:$0xff]
    %v1904 = vld [vmem:[#allocation6 + $0xd8] sm:$0xff]
    %v1905 = vld [vmem:[#allocation6 + $0xe0] sm:$0xff]
    %v1906 = vld [vmem:[#allocation6 + $0xe8] sm:$0xff]
    %v1907 = vld [vmem:[#allocation6 + $0xf0] sm:$0xff]
    %v1908 = vld [vmem:[#allocation6 + $0xf8] sm:$0xff]
    %v1941 = vunpack.c.l.b16 %v1877
    %v1942 = vunpack.c.h.b16 %v1877
    %v1943 = vunpack.c.l.b16 %v1878
    %v1944 = vunpack.c.h.b16 %v1878
    %v1945 = vunpack.c.l.b16 %v1879
    %v1946 = vunpack.c.h.b16 %v1879
    %v1947 = vunpack.c.l.b16 %v1880
    %v1948 = vunpack.c.h.b16 %v1880
    %v1949 = vunpack.c.l.b16 %v1881
    %v1950 = vunpack.c.h.b16 %v1881
    %v1951 = vunpack.c.l.b16 %v1882
    %v1952 = vunpack.c.h.b16 %v1882
    %v1953 = vunpack.c.l.b16 %v1883
    %v1954 = vunpack.c.h.b16 %v1883
    %v1955 = vunpack.c.l.b16 %v1884
    %v1956 = vunpack.c.h.b16 %v1884
    %v1957 = vunpack.c.l.b16 %v1885
    %v1958 = vunpack.c.h.b16 %v1885
    %v1959 = vunpack.c.l.b16 %v1886
    %v1960 = vunpack.c.h.b16 %v1886
    %v1961 = vunpack.c.l.b16 %v1887
    %v1962 = vunpack.c.h.b16 %v1887
    %v1963 = vunpack.c.l.b16 %v1888
    %v1964 = vunpack.c.h.b16 %v1888
    %v1965 = vunpack.c.l.b16 %v1889
    %v1966 = vunpack.c.h.b16 %v1889
    %v1967 = vunpack.c.l.b16 %v1890
    %v1968 = vunpack.c.h.b16 %v1890
    %v1969 = vunpack.c.l.b16 %v1891
    %v1970 = vunpack.c.h.b16 %v1891
    %v1971 = vunpack.c.l.b16 %v1892
    %v1972 = vunpack.c.h.b16 %v1892
    %v1973 = vunpack.c.l.b16 %v1893
    %v1974 = vunpack.c.h.b16 %v1893
    %v1975 = vunpack.c.l.b16 %v1894
    %v1976 = vunpack.c.h.b16 %v1894
    %v1977 = vunpack.c.l.b16 %v1895
    %v1978 = vunpack.c.h.b16 %v1895
    %v1979 = vunpack.c.l.b16 %v1896
    %v1980 = vunpack.c.h.b16 %v1896
    %v1981 = vunpack.c.l.b16 %v1897
    %v1982 = vunpack.c.h.b16 %v1897
    %v1983 = vunpack.c.l.b16 %v1898
    %v1984 = vunpack.c.h.b16 %v1898
    %v1985 = vunpack.c.l.b16 %v1899
    %v1986 = vunpack.c.h.b16 %v1899
    %v1987 = vunpack.c.l.b16 %v1900
    %v1988 = vunpack.c.h.b16 %v1900
    %v1989 = vunpack.c.l.b16 %v1901
    %v1990 = vunpack.c.h.b16 %v1901
    %v1991 = vunpack.c.l.b16 %v1902
    %v1992 = vunpack.c.h.b16 %v1902
    %v1993 = vunpack.c.l.b16 %v1903
    %v1994 = vunpack.c.h.b16 %v1903
    %v1995 = vunpack.c.l.b16 %v1904
    %v1996 = vunpack.c.h.b16 %v1904
    %v1997 = vunpack.c.l.b16 %v1905
    %v1998 = vunpack.c.h.b16 %v1905
    %v1999 = vunpack.c.l.b16 %v1906
    %v2000 = vunpack.c.h.b16 %v1906
    %v2001 = vunpack.c.l.b16 %v1907
    %v2002 = vunpack.c.h.b16 %v1907
    %v2003 = vunpack.c.l.b16 %v1908
    %v2004 = vunpack.c.h.b16 %v1908
    %v2005 = vpack.c.b16 %v1945, %v1941
    %v2006 = vpack.c.b16 %v1946, %v1942
    %v2007 = vpack.c.b16 %v1947, %v1943
    %v2008 = vpack.c.b16 %v1948, %v1944
    %v2009 = vpack.c.b16 %v1953, %v1949
    %v2010 = vpack.c.b16 %v1954, %v1950
    %v2011 = vpack.c.b16 %v1955, %v1951
    %v2012 = vpack.c.b16 %v1956, %v1952
    %v2013 = vpack.c.b16 %v1961, %v1957
    %v2014 = vpack.c.b16 %v1962, %v1958
    %v2015 = vpack.c.b16 %v1963, %v1959
    %v2016 = vpack.c.b16 %v1964, %v1960
    %v2017 = vpack.c.b16 %v1969, %v1965
    %v2018 = vpack.c.b16 %v1970, %v1966
    %v2019 = vpack.c.b16 %v1971, %v1967
    %v2020 = vpack.c.b16 %v1972, %v1968
    %v2021 = vpack.c.b16 %v1977, %v1973
    %v2022 = vpack.c.b16 %v1978, %v1974
    %v2023 = vpack.c.b16 %v1979, %v1975
    %v2024 = vpack.c.b16 %v1980, %v1976
    %v2025 = vpack.c.b16 %v1985, %v1981
    %v2026 = vpack.c.b16 %v1986, %v1982
    %v2027 = vpack.c.b16 %v1987, %v1983
    %v2028 = vpack.c.b16 %v1988, %v1984
    %v2029 = vpack.c.b16 %v1993, %v1989
    %v2030 = vpack.c.b16 %v1994, %v1990
    %v2031 = vpack.c.b16 %v1995, %v1991
    %v2032 = vpack.c.b16 %v1996, %v1992
    %v2033 = vpack.c.b16 %v2001, %v1997
    %v2034 = vpack.c.b16 %v2002, %v1998
    %v2035 = vpack.c.b16 %v2003, %v1999
    %v2036 = vpack.c.b16 %v2004, %v2000
    %2069 = vmatprep.subr.bf16.mxu0 %v2006
    %2070 = vmatpush1.bf16.msra.mxu0 %v2005
    %2071 = vmatprep.subr.bf16.mxu0 %v2010
    %2072 = vmatpush1.bf16.msra.mxu0 %v2009
    %2073 = vmatprep.subr.bf16.mxu0 %v2014
    %2074 = vmatpush1.bf16.msra.mxu0 %v2013
    %2075 = vmatprep.subr.bf16.mxu0 %v2018
    %2076 = vmatpush1.bf16.msra.mxu0 %v2017
    %2077 = vmatprep.subr.bf16.mxu0 %v2022
    %2078 = vmatpush1.bf16.msra.mxu0 %v2021
    %2079 = vmatprep.subr.bf16.mxu0 %v2026
    %2080 = vmatpush1.bf16.msra.mxu0 %v2025
    %2081 = vmatprep.subr.bf16.mxu0 %v2030
    %2082 = vmatpush1.bf16.msra.mxu0 %v2029
    %2083 = vmatprep.subr.bf16.mxu0 %v2034
    %2084 = vmatpush1.bf16.msra.mxu0 %v2033
    %2085 = vmatprep.subr.bf16.mxu0 0
    %2086 = vmatpush1.bf16.msra.mxu0 0
    %2087 = vmatprep.subr.bf16.mxu0 0
    %2088 = vmatpush1.bf16.msra.mxu0 0
    %2089 = vmatprep.subr.bf16.mxu0 0
    %2090 = vmatpush1.bf16.msra.mxu0 0
    %2091 = vmatprep.subr.bf16.mxu0 0
    %2092 = vmatpush1.bf16.msra.mxu0 0
    %2093 = vmatprep.subr.bf16.mxu0 0
    %2094 = vmatpush1.bf16.msra.mxu0 0
    %2095 = vmatprep.subr.bf16.mxu0 0
    %2096 = vmatpush1.bf16.msra.mxu0 0
    %2097 = vmatprep.subr.bf16.mxu0 0
    %2098 = vmatpush1.bf16.msra.mxu0 0
    %2099 = vmatprep.subr.bf16.mxu0 0
    %2100 = vmatpush1.bf16.msra.mxu0 0
    %2101 = vmatprep.mubr.bf16.mxu0 0
    %2102 = vmatmul.mubr.bf16.gmra.mrb[0].mxu0 %v1876
    %v2103 = vpop.f32.mrb[0].mxu0
    %v2104 = vadd.f32 0.0, %v2103
    %v2105 = vpop.f32.mrb[0].mxu0
    %v2106 = vadd.f32 0.0, %v2105
    %v2107 = vpop.f32.mrb[0].mxu0
    %v2108 = vpop.f32.mrb[0].mxu0
    %2109 = vdwg.mxu0
    %2110 = vmatprep.subr.bf16.mxu0 %v2008
    %2111 = vmatpush1.bf16.msra.mxu0 %v2007
    %2112 = vmatprep.subr.bf16.mxu0 %v2012
    %2113 = vmatpush1.bf16.msra.mxu0 %v2011
    %2114 = vmatprep.subr.bf16.mxu0 %v2016
    %2115 = vmatpush1.bf16.msra.mxu0 %v2015
    %2116 = vmatprep.subr.bf16.mxu0 %v2020
    %2117 = vmatpush1.bf16.msra.mxu0 %v2019
    %2118 = vmatprep.subr.bf16.mxu0 %v2024
    %2119 = vmatpush1.bf16.msra.mxu0 %v2023
    %2120 = vmatprep.subr.bf16.mxu0 %v2028
    %2121 = vmatpush1.bf16.msra.mxu0 %v2027
    %2122 = vmatprep.subr.bf16.mxu0 %v2032
    %2123 = vmatpush1.bf16.msra.mxu0 %v2031
    %2124 = vmatprep.subr.bf16.mxu0 %v2036
    %2125 = vmatpush1.bf16.msra.mxu0 %v2035
    %2126 = vmatprep.subr.bf16.mxu0 0
    %2127 = vmatpush1.bf16.msra.mxu0 0
    %2128 = vmatprep.subr.bf16.mxu0 0
    %2129 = vmatpush1.bf16.msra.mxu0 0
    %2130 = vmatprep.subr.bf16.mxu0 0
    %2131 = vmatpush1.bf16.msra.mxu0 0
    %2132 = vmatprep.subr.bf16.mxu0 0
    %2133 = vmatpush1.bf16.msra.mxu0 0
    %2134 = vmatprep.subr.bf16.mxu0 0
    %2135 = vmatpush1.bf16.msra.mxu0 0
    %2136 = vmatprep.subr.bf16.mxu0 0
    %2137 = vmatpush1.bf16.msra.mxu0 0
    %2138 = vmatprep.subr.bf16.mxu0 0
    %2139 = vmatpush1.bf16.msra.mxu0 0
    %2140 = vmatprep.subr.bf16.mxu0 0
    %2141 = vmatpush1.bf16.msra.mxu0 0
    %2142 = vmatprep.mubr.bf16.mxu0 0
    %2143 = vmatmul.mubr.bf16.gmra.mrb[0].mxu0 %v1876
    %v2144 = vpop.f32.mrb[0].mxu0
    %v2145 = vadd.f32 0.0, %v2144
    %v2146 = vpop.f32.mrb[0].mxu0
    %v2147 = vadd.f32 0.0, %v2146
    %v2148 = vpop.f32.mrb[0].mxu0
    %v2149 = vpop.f32.mrb[0].mxu0
    %2150 = vdwg.mxu0
    %v2151 = vadd.f32 %v1872, %v2104
    %v2152 = vadd.f32 %v1873, %v2106
    %v2153 = vadd.f32 %v1874, %v2145
    %v2154 = vadd.f32 %v1875, %v2147
    %v2155 = vxor.u32 %v2151, 2147483648
    %v2156 = vmul.f32 %v2155, 1.442695
    %v2157 = vpow.pop %v2156
    %v2158 = vadd.f32 %v2157, 1.0
    %v2159 = vrcp.pop %v2158
    %v2160 = vmul.f32 1.0, %v2159
    %v2161 = vxor.u32 %v2152, 2147483648
    %v2162 = vmul.f32 %v2161, 1.442695
    %v2163 = vpow.pop %v2162
    %v2164 = vadd.f32 %v2163, 1.0
    %v2165 = vrcp.pop %v2164
    %v2166 = vmul.f32 1.0, %v2165
    %v2167 = vtanh.pop %v2153
    %v2168 = vxor.u32 %v2154, 2147483648
    %v2169 = vmul.f32 %v2168, 1.442695
    %v2170 = vpow.pop %v2169
    %v2171 = vadd.f32 %v2170, 1.0
    %v2172 = vrcp.pop %v2171
    %v2173 = vmul.f32 1.0, %v2172
    %v2174 = vmul.f32 %v2166, %v1864
    %v2175 = vmul.f32 %v2160, %v2167
    %v2176 = vadd.f32 %v2174, %v2175
    %v2177 = vtanh.pop %v2176
    %v2178 = vmul.f32 %v2173, %v2177
    %s2179 = scalar_lea.vmem [#allocation3], 32
    %2180 = vst [vmem:[%s2179] sm:$0xff] %v2178
    %s2181 = smul.u32 5, 4
    %s2182 = smul.addr %s2181, 8
    %s2183 = scalar_lea.vmem [#allocation2], %s2182
    %v2184 = vld [vmem:[%s2183] sm:$0xff]
    %v2185 = vld [vmem:[%s2183 + $0x8] sm:$0xff]
    %v2186 = vld [vmem:[%s2183 + $0x10] sm:$0xff]
    %v2187 = vld [vmem:[%s2183 + $0x18] sm:$0xff]
    %v2188 = vpack.c.bf16 %v2178, %v2178
    %v2189 = vld [vmem:[#allocation6] sm:$0xff]
    %v2190 = vld [vmem:[#allocation6 + $0x8] sm:$0xff]
    %v2191 = vld [vmem:[#allocation6 + $0x10] sm:$0xff]
    %v2192 = vld [vmem:[#allocation6 + $0x18] sm:$0xff]
    %v2193 = vld [vmem:[#allocation6 + $0x20] sm:$0xff]
    %v2194 = vld [vmem:[#allocation6 + $0x28] sm:$0xff]
    %v2195 = vld [vmem:[#allocation6 + $0x30] sm:$0xff]
    %v2196 = vld [vmem:[#allocation6 + $0x38] sm:$0xff]
    %v2197 = vld [vmem:[#allocation6 + $0x40] sm:$0xff]
    %v2198 = vld [vmem:[#allocation6 + $0x48] sm:$0xff]
    %v2199 = vld [vmem:[#allocation6 + $0x50] sm:$0xff]
    %v2200 = vld [vmem:[#allocation6 + $0x58] sm:$0xff]
    %v2201 = vld [vmem:[#allocation6 + $0x60] sm:$0xff]
    %v2202 = vld [vmem:[#allocation6 + $0x68] sm:$0xff]
    %v2203 = vld [vmem:[#allocation6 + $0x70] sm:$0xff]
    %v2204 = vld [vmem:[#allocation6 + $0x78] sm:$0xff]
    %v2205 = vld [vmem:[#allocation6 + $0x80] sm:$0xff]
    %v2206 = vld [vmem:[#allocation6 + $0x88] sm:$0xff]
    %v2207 = vld [vmem:[#allocation6 + $0x90] sm:$0xff]
    %v2208 = vld [vmem:[#allocation6 + $0x98] sm:$0xff]
    %v2209 = vld [vmem:[#allocation6 + $0xa0] sm:$0xff]
    %v2210 = vld [vmem:[#allocation6 + $0xa8] sm:$0xff]
    %v2211 = vld [vmem:[#allocation6 + $0xb0] sm:$0xff]
    %v2212 = vld [vmem:[#allocation6 + $0xb8] sm:$0xff]
    %v2213 = vld [vmem:[#allocation6 + $0xc0] sm:$0xff]
    %v2214 = vld [vmem:[#allocation6 + $0xc8] sm:$0xff]
    %v2215 = vld [vmem:[#allocation6 + $0xd0] sm:$0xff]
    %v2216 = vld [vmem:[#allocation6 + $0xd8] sm:$0xff]
    %v2217 = vld [vmem:[#allocation6 + $0xe0] sm:$0xff]
    %v2218 = vld [vmem:[#allocation6 + $0xe8] sm:$0xff]
    %v2219 = vld [vmem:[#allocation6 + $0xf0] sm:$0xff]
    %v2220 = vld [vmem:[#allocation6 + $0xf8] sm:$0xff]
    %v2253 = vunpack.c.l.b16 %v2189
    %v2254 = vunpack.c.h.b16 %v2189
    %v2255 = vunpack.c.l.b16 %v2190
    %v2256 = vunpack.c.h.b16 %v2190
    %v2257 = vunpack.c.l.b16 %v2191
    %v2258 = vunpack.c.h.b16 %v2191
    %v2259 = vunpack.c.l.b16 %v2192
    %v2260 = vunpack.c.h.b16 %v2192
    %v2261 = vunpack.c.l.b16 %v2193
    %v2262 = vunpack.c.h.b16 %v2193
    %v2263 = vunpack.c.l.b16 %v2194
    %v2264 = vunpack.c.h.b16 %v2194
    %v2265 = vunpack.c.l.b16 %v2195
    %v2266 = vunpack.c.h.b16 %v2195
    %v2267 = vunpack.c.l.b16 %v2196
    %v2268 = vunpack.c.h.b16 %v2196
    %v2269 = vunpack.c.l.b16 %v2197
    %v2270 = vunpack.c.h.b16 %v2197
    %v2271 = vunpack.c.l.b16 %v2198
    %v2272 = vunpack.c.h.b16 %v2198
    %v2273 = vunpack.c.l.b16 %v2199
    %v2274 = vunpack.c.h.b16 %v2199
    %v2275 = vunpack.c.l.b16 %v2200
    %v2276 = vunpack.c.h.b16 %v2200
    %v2277 = vunpack.c.l.b16 %v2201
    %v2278 = vunpack.c.h.b16 %v2201
    %v2279 = vunpack.c.l.b16 %v2202
    %v2280 = vunpack.c.h.b16 %v2202
    %v2281 = vunpack.c.l.b16 %v2203
    %v2282 = vunpack.c.h.b16 %v2203
    %v2283 = vunpack.c.l.b16 %v2204
    %v2284 = vunpack.c.h.b16 %v2204
    %v2285 = vunpack.c.l.b16 %v2205
    %v2286 = vunpack.c.h.b16 %v2205
    %v2287 = vunpack.c.l.b16 %v2206
    %v2288 = vunpack.c.h.b16 %v2206
    %v2289 = vunpack.c.l.b16 %v2207
    %v2290 = vunpack.c.h.b16 %v2207
    %v2291 = vunpack.c.l.b16 %v2208
    %v2292 = vunpack.c.h.b16 %v2208
    %v2293 = vunpack.c.l.b16 %v2209
    %v2294 = vunpack.c.h.b16 %v2209
    %v2295 = vunpack.c.l.b16 %v2210
    %v2296 = vunpack.c.h.b16 %v2210
    %v2297 = vunpack.c.l.b16 %v2211
    %v2298 = vunpack.c.h.b16 %v2211
    %v2299 = vunpack.c.l.b16 %v2212
    %v2300 = vunpack.c.h.b16 %v2212
    %v2301 = vunpack.c.l.b16 %v2213
    %v2302 = vunpack.c.h.b16 %v2213
    %v2303 = vunpack.c.l.b16 %v2214
    %v2304 = vunpack.c.h.b16 %v2214
    %v2305 = vunpack.c.l.b16 %v2215
    %v2306 = vunpack.c.h.b16 %v2215
    %v2307 = vunpack.c.l.b16 %v2216
    %v2308 = vunpack.c.h.b16 %v2216
    %v2309 = vunpack.c.l.b16 %v2217
    %v2310 = vunpack.c.h.b16 %v2217
    %v2311 = vunpack.c.l.b16 %v2218
    %v2312 = vunpack.c.h.b16 %v2218
    %v2313 = vunpack.c.l.b16 %v2219
    %v2314 = vunpack.c.h.b16 %v2219
    %v2315 = vunpack.c.l.b16 %v2220
    %v2316 = vunpack.c.h.b16 %v2220
    %v2317 = vpack.c.b16 %v2257, %v2253
    %v2318 = vpack.c.b16 %v2258, %v2254
    %v2319 = vpack.c.b16 %v2259, %v2255
    %v2320 = vpack.c.b16 %v2260, %v2256
    %v2321 = vpack.c.b16 %v2265, %v2261
    %v2322 = vpack.c.b16 %v2266, %v2262
    %v2323 = vpack.c.b16 %v2267, %v2263
    %v2324 = vpack.c.b16 %v2268, %v2264
    %v2325 = vpack.c.b16 %v2273, %v2269
    %v2326 = vpack.c.b16 %v2274, %v2270
    %v2327 = vpack.c.b16 %v2275, %v2271
    %v2328 = vpack.c.b16 %v2276, %v2272
    %v2329 = vpack.c.b16 %v2281, %v2277
    %v2330 = vpack.c.b16 %v2282, %v2278
    %v2331 = vpack.c.b16 %v2283, %v2279
    %v2332 = vpack.c.b16 %v2284, %v2280
    %v2333 = vpack.c.b16 %v2289, %v2285
    %v2334 = vpack.c.b16 %v2290, %v2286
    %v2335 = vpack.c.b16 %v2291, %v2287
    %v2336 = vpack.c.b16 %v2292, %v2288
    %v2337 = vpack.c.b16 %v2297, %v2293
    %v2338 = vpack.c.b16 %v2298, %v2294
    %v2339 = vpack.c.b16 %v2299, %v2295
    %v2340 = vpack.c.b16 %v2300, %v2296
    %v2341 = vpack.c.b16 %v2305, %v2301
    %v2342 = vpack.c.b16 %v2306, %v2302
    %v2343 = vpack.c.b16 %v2307, %v2303
    %v2344 = vpack.c.b16 %v2308, %v2304
    %v2345 = vpack.c.b16 %v2313, %v2309
    %v2346 = vpack.c.b16 %v2314, %v2310
    %v2347 = vpack.c.b16 %v2315, %v2311
    %v2348 = vpack.c.b16 %v2316, %v2312
    %2381 = vmatprep.subr.bf16.mxu0 %v2318
    %2382 = vmatpush1.bf16.msra.mxu0 %v2317
    %2383 = vmatprep.subr.bf16.mxu0 %v2322
    %2384 = vmatpush1.bf16.msra.mxu0 %v2321
    %2385 = vmatprep.subr.bf16.mxu0 %v2326
    %2386 = vmatpush1.bf16.msra.mxu0 %v2325
    %2387 = vmatprep.subr.bf16.mxu0 %v2330
    %2388 = vmatpush1.bf16.msra.mxu0 %v2329
    %2389 = vmatprep.subr.bf16.mxu0 %v2334
    %2390 = vmatpush1.bf16.msra.mxu0 %v2333
    %2391 = vmatprep.subr.bf16.mxu0 %v2338
    %2392 = vmatpush1.bf16.msra.mxu0 %v2337
    %2393 = vmatprep.subr.bf16.mxu0 %v2342
    %2394 = vmatpush1.bf16.msra.mxu0 %v2341
    %2395 = vmatprep.subr.bf16.mxu0 %v2346
    %2396 = vmatpush1.bf16.msra.mxu0 %v2345
    %2397 = vmatprep.subr.bf16.mxu0 0
    %2398 = vmatpush1.bf16.msra.mxu0 0
    %2399 = vmatprep.subr.bf16.mxu0 0
    %2400 = vmatpush1.bf16.msra.mxu0 0
    %2401 = vmatprep.subr.bf16.mxu0 0
    %2402 = vmatpush1.bf16.msra.mxu0 0
    %2403 = vmatprep.subr.bf16.mxu0 0
    %2404 = vmatpush1.bf16.msra.mxu0 0
    %2405 = vmatprep.subr.bf16.mxu0 0
    %2406 = vmatpush1.bf16.msra.mxu0 0
    %2407 = vmatprep.subr.bf16.mxu0 0
    %2408 = vmatpush1.bf16.msra.mxu0 0
    %2409 = vmatprep.subr.bf16.mxu0 0
    %2410 = vmatpush1.bf16.msra.mxu0 0
    %2411 = vmatprep.subr.bf16.mxu0 0
    %2412 = vmatpush1.bf16.msra.mxu0 0
    %2413 = vmatprep.mubr.bf16.mxu0 0
    %2414 = vmatmul.mubr.bf16.gmra.mrb[0].mxu0 %v2188
    %v2415 = vpop.f32.mrb[0].mxu0
    %v2416 = vadd.f32 0.0, %v2415
    %v2417 = vpop.f32.mrb[0].mxu0
    %v2418 = vadd.f32 0.0, %v2417
    %v2419 = vpop.f32.mrb[0].mxu0
    %v2420 = vpop.f32.mrb[0].mxu0
    %2421 = vdwg.mxu0
    %2422 = vmatprep.subr.bf16.mxu0 %v2320
    %2423 = vmatpush1.bf16.msra.mxu0 %v2319
    %2424 = vmatprep.subr.bf16.mxu0 %v2324
    %2425 = vmatpush1.bf16.msra.mxu0 %v2323
    %2426 = vmatprep.subr.bf16.mxu0 %v2328
    %2427 = vmatpush1.bf16.msra.mxu0 %v2327
    %2428 = vmatprep.subr.bf16.mxu0 %v2332
    %2429 = vmatpush1.bf16.msra.mxu0 %v2331
    %2430 = vmatprep.subr.bf16.mxu0 %v2336
    %2431 = vmatpush1.bf16.msra.mxu0 %v2335
    %2432 = vmatprep.subr.bf16.mxu0 %v2340
    %2433 = vmatpush1.bf16.msra.mxu0 %v2339
    %2434 = vmatprep.subr.bf16.mxu0 %v2344
    %2435 = vmatpush1.bf16.msra.mxu0 %v2343
    %2436 = vmatprep.subr.bf16.mxu0 %v2348
    %2437 = vmatpush1.bf16.msra.mxu0 %v2347
    %2438 = vmatprep.subr.bf16.mxu0 0
    %2439 = vmatpush1.bf16.msra.mxu0 0
    %2440 = vmatprep.subr.bf16.mxu0 0
    %2441 = vmatpush1.bf16.msra.mxu0 0
    %2442 = vmatprep.subr.bf16.mxu0 0
    %2443 = vmatpush1.bf16.msra.mxu0 0
    %2444 = vmatprep.subr.bf16.mxu0 0
    %2445 = vmatpush1.bf16.msra.mxu0 0
    %2446 = vmatprep.subr.bf16.mxu0 0
    %2447 = vmatpush1.bf16.msra.mxu0 0
    %2448 = vmatprep.subr.bf16.mxu0 0
    %2449 = vmatpush1.bf16.msra.mxu0 0
    %2450 = vmatprep.subr.bf16.mxu0 0
    %2451 = vmatpush1.bf16.msra.mxu0 0
    %2452 = vmatprep.subr.bf16.mxu0 0
    %2453 = vmatpush1.bf16.msra.mxu0 0
    %2454 = vmatprep.mubr.bf16.mxu0 0
    %2455 = vmatmul.mubr.bf16.gmra.mrb[0].mxu0 %v2188
    %v2456 = vpop.f32.mrb[0].mxu0
    %v2457 = vadd.f32 0.0, %v2456
    %v2458 = vpop.f32.mrb[0].mxu0
    %v2459 = vadd.f32 0.0, %v2458
    %v2460 = vpop.f32.mrb[0].mxu0
    %v2461 = vpop.f32.mrb[0].mxu0
    %2462 = vdwg.mxu0
    %v2463 = vadd.f32 %v2184, %v2416
    %v2464 = vadd.f32 %v2185, %v2418
    %v2465 = vadd.f32 %v2186, %v2457
    %v2466 = vadd.f32 %v2187, %v2459
    %v2467 = vxor.u32 %v2463, 2147483648
    %v2468 = vmul.f32 %v2467, 1.442695
    %v2469 = vpow.pop %v2468
    %v2470 = vadd.f32 %v2469, 1.0
    %v2471 = vrcp.pop %v2470
    %v2472 = vmul.f32 1.0, %v2471
    %v2473 = vxor.u32 %v2464, 2147483648
    %v2474 = vmul.f32 %v2473, 1.442695
    %v2475 = vpow.pop %v2474
    %v2476 = vadd.f32 %v2475, 1.0
    %v2477 = vrcp.pop %v2476
    %v2478 = vmul.f32 1.0, %v2477
    %v2479 = vtanh.pop %v2465
    %v2480 = vxor.u32 %v2466, 2147483648
    %v2481 = vmul.f32 %v2480, 1.442695
    %v2482 = vpow.pop %v2481
    %v2483 = vadd.f32 %v2482, 1.0
    %v2484 = vrcp.pop %v2483
    %v2485 = vmul.f32 1.0, %v2484
    %v2486 = vmul.f32 %v2478, %v2176
    %v2487 = vmul.f32 %v2472, %v2479
    %v2488 = vadd.f32 %v2486, %v2487
    %v2489 = vtanh.pop %v2488
    %v2490 = vmul.f32 %v2485, %v2489
    %s2491 = scalar_lea.vmem [#allocation3], 40
    %2492 = vst [vmem:[%s2491] sm:$0xff] %v2490
    %s2493 = smul.u32 6, 4
    %s2494 = smul.addr %s2493, 8
    %s2495 = scalar_lea.vmem [#allocation2], %s2494
    %v2496 = vld [vmem:[%s2495] sm:$0xff]
    %v2497 = vld [vmem:[%s2495 + $0x8] sm:$0xff]
    %v2498 = vld [vmem:[%s2495 + $0x10] sm:$0xff]
    %v2499 = vld [vmem:[%s2495 + $0x18] sm:$0xff]
    %v2500 = vpack.c.bf16 %v2490, %v2490
    %v2501 = vld [vmem:[#allocation6] sm:$0xff]
    %v2502 = vld [vmem:[#allocation6 + $0x8] sm:$0xff]
    %v2503 = vld [vmem:[#allocation6 + $0x10] sm:$0xff]
    %v2504 = vld [vmem:[#allocation6 + $0x18] sm:$0xff]
    %v2505 = vld [vmem:[#allocation6 + $0x20] sm:$0xff]
    %v2506 = vld [vmem:[#allocation6 + $0x28] sm:$0xff]
    %v2507 = vld [vmem:[#allocation6 + $0x30] sm:$0xff]
    %v2508 = vld [vmem:[#allocation6 + $0x38] sm:$0xff]
    %v2509 = vld [vmem:[#allocation6 + $0x40] sm:$0xff]
    %v2510 = vld [vmem:[#allocation6 + $0x48] sm:$0xff]
    %v2511 = vld [vmem:[#allocation6 + $0x50] sm:$0xff]
    %v2512 = vld [vmem:[#allocation6 + $0x58] sm:$0xff]
    %v2513 = vld [vmem:[#allocation6 + $0x60] sm:$0xff]
    %v2514 = vld [vmem:[#allocation6 + $0x68] sm:$0xff]
    %v2515 = vld [vmem:[#allocation6 + $0x70] sm:$0xff]
    %v2516 = vld [vmem:[#allocation6 + $0x78] sm:$0xff]
    %v2517 = vld [vmem:[#allocation6 + $0x80] sm:$0xff]
    %v2518 = vld [vmem:[#allocation6 + $0x88] sm:$0xff]
    %v2519 = vld [vmem:[#allocation6 + $0x90] sm:$0xff]
    %v2520 = vld [vmem:[#allocation6 + $0x98] sm:$0xff]
    %v2521 = vld [vmem:[#allocation6 + $0xa0] sm:$0xff]
    %v2522 = vld [vmem:[#allocation6 + $0xa8] sm:$0xff]
    %v2523 = vld [vmem:[#allocation6 + $0xb0] sm:$0xff]
    %v2524 = vld [vmem:[#allocation6 + $0xb8] sm:$0xff]
    %v2525 = vld [vmem:[#allocation6 + $0xc0] sm:$0xff]
    %v2526 = vld [vmem:[#allocation6 + $0xc8] sm:$0xff]
    %v2527 = vld [vmem:[#allocation6 + $0xd0] sm:$0xff]
    %v2528 = vld [vmem:[#allocation6 + $0xd8] sm:$0xff]
    %v2529 = vld [vmem:[#allocation6 + $0xe0] sm:$0xff]
    %v2530 = vld [vmem:[#allocation6 + $0xe8] sm:$0xff]
    %v2531 = vld [vmem:[#allocation6 + $0xf0] sm:$0xff]
    %v2532 = vld [vmem:[#allocation6 + $0xf8] sm:$0xff]
    %v2565 = vunpack.c.l.b16 %v2501
    %v2566 = vunpack.c.h.b16 %v2501
    %v2567 = vunpack.c.l.b16 %v2502
    %v2568 = vunpack.c.h.b16 %v2502
    %v2569 = vunpack.c.l.b16 %v2503
    %v2570 = vunpack.c.h.b16 %v2503
    %v2571 = vunpack.c.l.b16 %v2504
    %v2572 = vunpack.c.h.b16 %v2504
    %v2573 = vunpack.c.l.b16 %v2505
    %v2574 = vunpack.c.h.b16 %v2505
    %v2575 = vunpack.c.l.b16 %v2506
    %v2576 = vunpack.c.h.b16 %v2506
    %v2577 = vunpack.c.l.b16 %v2507
    %v2578 = vunpack.c.h.b16 %v2507
    %v2579 = vunpack.c.l.b16 %v2508
    %v2580 = vunpack.c.h.b16 %v2508
    %v2581 = vunpack.c.l.b16 %v2509
    %v2582 = vunpack.c.h.b16 %v2509
    %v2583 = vunpack.c.l.b16 %v2510
    %v2584 = vunpack.c.h.b16 %v2510
    %v2585 = vunpack.c.l.b16 %v2511
    %v2586 = vunpack.c.h.b16 %v2511
    %v2587 = vunpack.c.l.b16 %v2512
    %v2588 = vunpack.c.h.b16 %v2512
    %v2589 = vunpack.c.l.b16 %v2513
    %v2590 = vunpack.c.h.b16 %v2513
    %v2591 = vunpack.c.l.b16 %v2514
    %v2592 = vunpack.c.h.b16 %v2514
    %v2593 = vunpack.c.l.b16 %v2515
    %v2594 = vunpack.c.h.b16 %v2515
    %v2595 = vunpack.c.l.b16 %v2516
    %v2596 = vunpack.c.h.b16 %v2516
    %v2597 = vunpack.c.l.b16 %v2517
    %v2598 = vunpack.c.h.b16 %v2517
    %v2599 = vunpack.c.l.b16 %v2518
    %v2600 = vunpack.c.h.b16 %v2518
    %v2601 = vunpack.c.l.b16 %v2519
    %v2602 = vunpack.c.h.b16 %v2519
    %v2603 = vunpack.c.l.b16 %v2520
    %v2604 = vunpack.c.h.b16 %v2520
    %v2605 = vunpack.c.l.b16 %v2521
    %v2606 = vunpack.c.h.b16 %v2521
    %v2607 = vunpack.c.l.b16 %v2522
    %v2608 = vunpack.c.h.b16 %v2522
    %v2609 = vunpack.c.l.b16 %v2523
    %v2610 = vunpack.c.h.b16 %v2523
    %v2611 = vunpack.c.l.b16 %v2524
    %v2612 = vunpack.c.h.b16 %v2524
    %v2613 = vunpack.c.l.b16 %v2525
    %v2614 = vunpack.c.h.b16 %v2525
    %v2615 = vunpack.c.l.b16 %v2526
    %v2616 = vunpack.c.h.b16 %v2526
    %v2617 = vunpack.c.l.b16 %v2527
    %v2618 = vunpack.c.h.b16 %v2527
    %v2619 = vunpack.c.l.b16 %v2528
    %v2620 = vunpack.c.h.b16 %v2528
    %v2621 = vunpack.c.l.b16 %v2529
    %v2622 = vunpack.c.h.b16 %v2529
    %v2623 = vunpack.c.l.b16 %v2530
    %v2624 = vunpack.c.h.b16 %v2530
    %v2625 = vunpack.c.l.b16 %v2531
    %v2626 = vunpack.c.h.b16 %v2531
    %v2627 = vunpack.c.l.b16 %v2532
    %v2628 = vunpack.c.h.b16 %v2532
    %v2629 = vpack.c.b16 %v2569, %v2565
    %v2630 = vpack.c.b16 %v2570, %v2566
    %v2631 = vpack.c.b16 %v2571, %v2567
    %v2632 = vpack.c.b16 %v2572, %v2568
    %v2633 = vpack.c.b16 %v2577, %v2573
    %v2634 = vpack.c.b16 %v2578, %v2574
    %v2635 = vpack.c.b16 %v2579, %v2575
    %v2636 = vpack.c.b16 %v2580, %v2576
    %v2637 = vpack.c.b16 %v2585, %v2581
    %v2638 = vpack.c.b16 %v2586, %v2582
    %v2639 = vpack.c.b16 %v2587, %v2583
    %v2640 = vpack.c.b16 %v2588, %v2584
    %v2641 = vpack.c.b16 %v2593, %v2589
    %v2642 = vpack.c.b16 %v2594, %v2590
    %v2643 = vpack.c.b16 %v2595, %v2591
    %v2644 = vpack.c.b16 %v2596, %v2592
    %v2645 = vpack.c.b16 %v2601, %v2597
    %v2646 = vpack.c.b16 %v2602, %v2598
    %v2647 = vpack.c.b16 %v2603, %v2599
    %v2648 = vpack.c.b16 %v2604, %v2600
    %v2649 = vpack.c.b16 %v2609, %v2605
    %v2650 = vpack.c.b16 %v2610, %v2606
    %v2651 = vpack.c.b16 %v2611, %v2607
    %v2652 = vpack.c.b16 %v2612, %v2608
    %v2653 = vpack.c.b16 %v2617, %v2613
    %v2654 = vpack.c.b16 %v2618, %v2614
    %v2655 = vpack.c.b16 %v2619, %v2615
    %v2656 = vpack.c.b16 %v2620, %v2616
    %v2657 = vpack.c.b16 %v2625, %v2621
    %v2658 = vpack.c.b16 %v2626, %v2622
    %v2659 = vpack.c.b16 %v2627, %v2623
    %v2660 = vpack.c.b16 %v2628, %v2624
    %2693 = vmatprep.subr.bf16.mxu0 %v2630
    %2694 = vmatpush1.bf16.msra.mxu0 %v2629
    %2695 = vmatprep.subr.bf16.mxu0 %v2634
    %2696 = vmatpush1.bf16.msra.mxu0 %v2633
    %2697 = vmatprep.subr.bf16.mxu0 %v2638
    %2698 = vmatpush1.bf16.msra.mxu0 %v2637
    %2699 = vmatprep.subr.bf16.mxu0 %v2642
    %2700 = vmatpush1.bf16.msra.mxu0 %v2641
    %2701 = vmatprep.subr.bf16.mxu0 %v2646
    %2702 = vmatpush1.bf16.msra.mxu0 %v2645
    %2703 = vmatprep.subr.bf16.mxu0 %v2650
    %2704 = vmatpush1.bf16.msra.mxu0 %v2649
    %2705 = vmatprep.subr.bf16.mxu0 %v2654
    %2706 = vmatpush1.bf16.msra.mxu0 %v2653
    %2707 = vmatprep.subr.bf16.mxu0 %v2658
    %2708 = vmatpush1.bf16.msra.mxu0 %v2657
    %2709 = vmatprep.subr.bf16.mxu0 0
    %2710 = vmatpush1.bf16.msra.mxu0 0
    %2711 = vmatprep.subr.bf16.mxu0 0
    %2712 = vmatpush1.bf16.msra.mxu0 0
    %2713 = vmatprep.subr.bf16.mxu0 0
    %2714 = vmatpush1.bf16.msra.mxu0 0
    %2715 = vmatprep.subr.bf16.mxu0 0
    %2716 = vmatpush1.bf16.msra.mxu0 0
    %2717 = vmatprep.subr.bf16.mxu0 0
    %2718 = vmatpush1.bf16.msra.mxu0 0
    %2719 = vmatprep.subr.bf16.mxu0 0
    %2720 = vmatpush1.bf16.msra.mxu0 0
    %2721 = vmatprep.subr.bf16.mxu0 0
    %2722 = vmatpush1.bf16.msra.mxu0 0
    %2723 = vmatprep.subr.bf16.mxu0 0
    %2724 = vmatpush1.bf16.msra.mxu0 0
    %2725 = vmatprep.mubr.bf16.mxu0 0
    %2726 = vmatmul.mubr.bf16.gmra.mrb[0].mxu0 %v2500
    %v2727 = vpop.f32.mrb[0].mxu0
    %v2728 = vadd.f32 0.0, %v2727
    %v2729 = vpop.f32.mrb[0].mxu0
    %v2730 = vadd.f32 0.0, %v2729
    %v2731 = vpop.f32.mrb[0].mxu0
    %v2732 = vpop.f32.mrb[0].mxu0
    %2733 = vdwg.mxu0
    %2734 = vmatprep.subr.bf16.mxu0 %v2632
    %2735 = vmatpush1.bf16.msra.mxu0 %v2631
    %2736 = vmatprep.subr.bf16.mxu0 %v2636
    %2737 = vmatpush1.bf16.msra.mxu0 %v2635
    %2738 = vmatprep.subr.bf16.mxu0 %v2640
    %2739 = vmatpush1.bf16.msra.mxu0 %v2639
    %2740 = vmatprep.subr.bf16.mxu0 %v2644
    %2741 = vmatpush1.bf16.msra.mxu0 %v2643
    %2742 = vmatprep.subr.bf16.mxu0 %v2648
    %2743 = vmatpush1.bf16.msra.mxu0 %v2647
    %2744 = vmatprep.subr.bf16.mxu0 %v2652
    %2745 = vmatpush1.bf16.msra.mxu0 %v2651
    %2746 = vmatprep.subr.bf16.mxu0 %v2656
    %2747 = vmatpush1.bf16.msra.mxu0 %v2655
    %2748 = vmatprep.subr.bf16.mxu0 %v2660
    %2749 = vmatpush1.bf16.msra.mxu0 %v2659
    %2750 = vmatprep.subr.bf16.mxu0 0
    %2751 = vmatpush1.bf16.msra.mxu0 0
    %2752 = vmatprep.subr.bf16.mxu0 0
    %2753 = vmatpush1.bf16.msra.mxu0 0
    %2754 = vmatprep.subr.bf16.mxu0 0
    %2755 = vmatpush1.bf16.msra.mxu0 0
    %2756 = vmatprep.subr.bf16.mxu0 0
    %2757 = vmatpush1.bf16.msra.mxu0 0
    %2758 = vmatprep.subr.bf16.mxu0 0
    %2759 = vmatpush1.bf16.msra.mxu0 0
    %2760 = vmatprep.subr.bf16.mxu0 0
    %2761 = vmatpush1.bf16.msra.mxu0 0
    %2762 = vmatprep.subr.bf16.mxu0 0
    %2763 = vmatpush1.bf16.msra.mxu0 0
    %2764 = vmatprep.subr.bf16.mxu0 0
    %2765 = vmatpush1.bf16.msra.mxu0 0
    %2766 = vmatprep.mubr.bf16.mxu0 0
    %2767 = vmatmul.mubr.bf16.gmra.mrb[0].mxu0 %v2500
    %v2768 = vpop.f32.mrb[0].mxu0
    %v2769 = vadd.f32 0.0, %v2768
    %v2770 = vpop.f32.mrb[0].mxu0
    %v2771 = vadd.f32 0.0, %v2770
    %v2772 = vpop.f32.mrb[0].mxu0
    %v2773 = vpop.f32.mrb[0].mxu0
    %2774 = vdwg.mxu0
    %v2775 = vadd.f32 %v2496, %v2728
    %v2776 = vadd.f32 %v2497, %v2730
    %v2777 = vadd.f32 %v2498, %v2769
    %v2778 = vadd.f32 %v2499, %v2771
    %v2779 = vxor.u32 %v2775, 2147483648
    %v2780 = vmul.f32 %v2779, 1.442695
    %v2781 = vpow.pop %v2780
    %v2782 = vadd.f32 %v2781, 1.0
    %v2783 = vrcp.pop %v2782
    %v2784 = vmul.f32 1.0, %v2783
    %v2785 = vxor.u32 %v2776, 2147483648
    %v2786 = vmul.f32 %v2785, 1.442695
    %v2787 = vpow.pop %v2786
    %v2788 = vadd.f32 %v2787, 1.0
    %v2789 = vrcp.pop %v2788
    %v2790 = vmul.f32 1.0, %v2789
    %v2791 = vtanh.pop %v2777
    %v2792 = vxor.u32 %v2778, 2147483648
    %v2793 = vmul.f32 %v2792, 1.442695
    %v2794 = vpow.pop %v2793
    %v2795 = vadd.f32 %v2794, 1.0
    %v2796 = vrcp.pop %v2795
    %v2797 = vmul.f32 1.0, %v2796
    %v2798 = vmul.f32 %v2790, %v2488
    %v2799 = vmul.f32 %v2784, %v2791
    %v2800 = vadd.f32 %v2798, %v2799
    %v2801 = vtanh.pop %v2800
    %v2802 = vmul.f32 %v2797, %v2801
    %s2803 = scalar_lea.vmem [#allocation3], 48
    %2804 = vst [vmem:[%s2803] sm:$0xff] %v2802
    %s2805 = smul.u32 7, 4
    %s2806 = smul.addr %s2805, 8
    %s2807 = scalar_lea.vmem [#allocation2], %s2806
    %v2808 = vld [vmem:[%s2807] sm:$0xff]
    %v2809 = vld [vmem:[%s2807 + $0x8] sm:$0xff]
    %v2810 = vld [vmem:[%s2807 + $0x10] sm:$0xff]
    %v2811 = vld [vmem:[%s2807 + $0x18] sm:$0xff]
    %v2812 = vpack.c.bf16 %v2802, %v2802
    %v2813 = vld [vmem:[#allocation6] sm:$0xff]
    %v2814 = vld [vmem:[#allocation6 + $0x8] sm:$0xff]
    %v2815 = vld [vmem:[#allocation6 + $0x10] sm:$0xff]
    %v2816 = vld [vmem:[#allocation6 + $0x18] sm:$0xff]
    %v2817 = vld [vmem:[#allocation6 + $0x20] sm:$0xff]
    %v2818 = vld [vmem:[#allocation6 + $0x28] sm:$0xff]
    %v2819 = vld [vmem:[#allocation6 + $0x30] sm:$0xff]
    %v2820 = vld [vmem:[#allocation6 + $0x38] sm:$0xff]
    %v2821 = vld [vmem:[#allocation6 + $0x40] sm:$0xff]
    %v2822 = vld [vmem:[#allocation6 + $0x48] sm:$0xff]
    %v2823 = vld [vmem:[#allocation6 + $0x50] sm:$0xff]
    %v2824 = vld [vmem:[#allocation6 + $0x58] sm:$0xff]
    %v2825 = vld [vmem:[#allocation6 + $0x60] sm:$0xff]
    %v2826 = vld [vmem:[#allocation6 + $0x68] sm:$0xff]
    %v2827 = vld [vmem:[#allocation6 + $0x70] sm:$0xff]
    %v2828 = vld [vmem:[#allocation6 + $0x78] sm:$0xff]
    %v2829 = vld [vmem:[#allocation6 + $0x80] sm:$0xff]
    %v2830 = vld [vmem:[#allocation6 + $0x88] sm:$0xff]
    %v2831 = vld [vmem:[#allocation6 + $0x90] sm:$0xff]
    %v2832 = vld [vmem:[#allocation6 + $0x98] sm:$0xff]
    %v2833 = vld [vmem:[#allocation6 + $0xa0] sm:$0xff]
    %v2834 = vld [vmem:[#allocation6 + $0xa8] sm:$0xff]
    %v2835 = vld [vmem:[#allocation6 + $0xb0] sm:$0xff]
    %v2836 = vld [vmem:[#allocation6 + $0xb8] sm:$0xff]
    %v2837 = vld [vmem:[#allocation6 + $0xc0] sm:$0xff]
    %v2838 = vld [vmem:[#allocation6 + $0xc8] sm:$0xff]
    %v2839 = vld [vmem:[#allocation6 + $0xd0] sm:$0xff]
    %v2840 = vld [vmem:[#allocation6 + $0xd8] sm:$0xff]
    %v2841 = vld [vmem:[#allocation6 + $0xe0] sm:$0xff]
    %v2842 = vld [vmem:[#allocation6 + $0xe8] sm:$0xff]
    %v2843 = vld [vmem:[#allocation6 + $0xf0] sm:$0xff]
    %v2844 = vld [vmem:[#allocation6 + $0xf8] sm:$0xff]
    %v2877 = vunpack.c.l.b16 %v2813
    %v2878 = vunpack.c.h.b16 %v2813
    %v2879 = vunpack.c.l.b16 %v2814
    %v2880 = vunpack.c.h.b16 %v2814
    %v2881 = vunpack.c.l.b16 %v2815
    %v2882 = vunpack.c.h.b16 %v2815
    %v2883 = vunpack.c.l.b16 %v2816
    %v2884 = vunpack.c.h.b16 %v2816
    %v2885 = vunpack.c.l.b16 %v2817
    %v2886 = vunpack.c.h.b16 %v2817
    %v2887 = vunpack.c.l.b16 %v2818
    %v2888 = vunpack.c.h.b16 %v2818
    %v2889 = vunpack.c.l.b16 %v2819
    %v2890 = vunpack.c.h.b16 %v2819
    %v2891 = vunpack.c.l.b16 %v2820
    %v2892 = vunpack.c.h.b16 %v2820
    %v2893 = vunpack.c.l.b16 %v2821
    %v2894 = vunpack.c.h.b16 %v2821
    %v2895 = vunpack.c.l.b16 %v2822
    %v2896 = vunpack.c.h.b16 %v2822
    %v2897 = vunpack.c.l.b16 %v2823
    %v2898 = vunpack.c.h.b16 %v2823
    %v2899 = vunpack.c.l.b16 %v2824
    %v2900 = vunpack.c.h.b16 %v2824
    %v2901 = vunpack.c.l.b16 %v2825
    %v2902 = vunpack.c.h.b16 %v2825
    %v2903 = vunpack.c.l.b16 %v2826
    %v2904 = vunpack.c.h.b16 %v2826
    %v2905 = vunpack.c.l.b16 %v2827
    %v2906 = vunpack.c.h.b16 %v2827
    %v2907 = vunpack.c.l.b16 %v2828
    %v2908 = vunpack.c.h.b16 %v2828
    %v2909 = vunpack.c.l.b16 %v2829
    %v2910 = vunpack.c.h.b16 %v2829
    %v2911 = vunpack.c.l.b16 %v2830
    %v2912 = vunpack.c.h.b16 %v2830
    %v2913 = vunpack.c.l.b16 %v2831
    %v2914 = vunpack.c.h.b16 %v2831
    %v2915 = vunpack.c.l.b16 %v2832
    %v2916 = vunpack.c.h.b16 %v2832
    %v2917 = vunpack.c.l.b16 %v2833
    %v2918 = vunpack.c.h.b16 %v2833
    %v2919 = vunpack.c.l.b16 %v2834
    %v2920 = vunpack.c.h.b16 %v2834
    %v2921 = vunpack.c.l.b16 %v2835
    %v2922 = vunpack.c.h.b16 %v2835
    %v2923 = vunpack.c.l.b16 %v2836
    %v2924 = vunpack.c.h.b16 %v2836
    %v2925 = vunpack.c.l.b16 %v2837
    %v2926 = vunpack.c.h.b16 %v2837
    %v2927 = vunpack.c.l.b16 %v2838
    %v2928 = vunpack.c.h.b16 %v2838
    %v2929 = vunpack.c.l.b16 %v2839
    %v2930 = vunpack.c.h.b16 %v2839
    %v2931 = vunpack.c.l.b16 %v2840
    %v2932 = vunpack.c.h.b16 %v2840
    %v2933 = vunpack.c.l.b16 %v2841
    %v2934 = vunpack.c.h.b16 %v2841
    %v2935 = vunpack.c.l.b16 %v2842
    %v2936 = vunpack.c.h.b16 %v2842
    %v2937 = vunpack.c.l.b16 %v2843
    %v2938 = vunpack.c.h.b16 %v2843
    %v2939 = vunpack.c.l.b16 %v2844
    %v2940 = vunpack.c.h.b16 %v2844
    %v2941 = vpack.c.b16 %v2881, %v2877
    %v2942 = vpack.c.b16 %v2882, %v2878
    %v2943 = vpack.c.b16 %v2883, %v2879
    %v2944 = vpack.c.b16 %v2884, %v2880
    %v2945 = vpack.c.b16 %v2889, %v2885
    %v2946 = vpack.c.b16 %v2890, %v2886
    %v2947 = vpack.c.b16 %v2891, %v2887
    %v2948 = vpack.c.b16 %v2892, %v2888
    %v2949 = vpack.c.b16 %v2897, %v2893
    %v2950 = vpack.c.b16 %v2898, %v2894
    %v2951 = vpack.c.b16 %v2899, %v2895
    %v2952 = vpack.c.b16 %v2900, %v2896
    %v2953 = vpack.c.b16 %v2905, %v2901
    %v2954 = vpack.c.b16 %v2906, %v2902
    %v2955 = vpack.c.b16 %v2907, %v2903
    %v2956 = vpack.c.b16 %v2908, %v2904
    %v2957 = vpack.c.b16 %v2913, %v2909
    %v2958 = vpack.c.b16 %v2914, %v2910
    %v2959 = vpack.c.b16 %v2915, %v2911
    %v2960 = vpack.c.b16 %v2916, %v2912
    %v2961 = vpack.c.b16 %v2921, %v2917
    %v2962 = vpack.c.b16 %v2922, %v2918
    %v2963 = vpack.c.b16 %v2923, %v2919
    %v2964 = vpack.c.b16 %v2924, %v2920
    %v2965 = vpack.c.b16 %v2929, %v2925
    %v2966 = vpack.c.b16 %v2930, %v2926
    %v2967 = vpack.c.b16 %v2931, %v2927
    %v2968 = vpack.c.b16 %v2932, %v2928
    %v2969 = vpack.c.b16 %v2937, %v2933
    %v2970 = vpack.c.b16 %v2938, %v2934
    %v2971 = vpack.c.b16 %v2939, %v2935
    %v2972 = vpack.c.b16 %v2940, %v2936
    %3005 = vmatprep.subr.bf16.mxu0 %v2942
    %3006 = vmatpush1.bf16.msra.mxu0 %v2941
    %3007 = vmatprep.subr.bf16.mxu0 %v2946
    %3008 = vmatpush1.bf16.msra.mxu0 %v2945
    %3009 = vmatprep.subr.bf16.mxu0 %v2950
    %3010 = vmatpush1.bf16.msra.mxu0 %v2949
    %3011 = vmatprep.subr.bf16.mxu0 %v2954
    %3012 = vmatpush1.bf16.msra.mxu0 %v2953
    %3013 = vmatprep.subr.bf16.mxu0 %v2958
    %3014 = vmatpush1.bf16.msra.mxu0 %v2957
    %3015 = vmatprep.subr.bf16.mxu0 %v2962
    %3016 = vmatpush1.bf16.msra.mxu0 %v2961
    %3017 = vmatprep.subr.bf16.mxu0 %v2966
    %3018 = vmatpush1.bf16.msra.mxu0 %v2965
    %3019 = vmatprep.subr.bf16.mxu0 %v2970
    %3020 = vmatpush1.bf16.msra.mxu0 %v2969
    %3021 = vmatprep.subr.bf16.mxu0 0
    %3022 = vmatpush1.bf16.msra.mxu0 0
    %3023 = vmatprep.subr.bf16.mxu0 0
    %3024 = vmatpush1.bf16.msra.mxu0 0
    %3025 = vmatprep.subr.bf16.mxu0 0
    %3026 = vmatpush1.bf16.msra.mxu0 0
    %3027 = vmatprep.subr.bf16.mxu0 0
    %3028 = vmatpush1.bf16.msra.mxu0 0
    %3029 = vmatprep.subr.bf16.mxu0 0
    %3030 = vmatpush1.bf16.msra.mxu0 0
    %3031 = vmatprep.subr.bf16.mxu0 0
    %3032 = vmatpush1.bf16.msra.mxu0 0
    %3033 = vmatprep.subr.bf16.mxu0 0
    %3034 = vmatpush1.bf16.msra.mxu0 0
    %3035 = vmatprep.subr.bf16.mxu0 0
    %3036 = vmatpush1.bf16.msra.mxu0 0
    %3037 = vmatprep.mubr.bf16.mxu0 0
    %3038 = vmatmul.mubr.bf16.gmra.mrb[0].mxu0 %v2812
    %v3039 = vpop.f32.mrb[0].mxu0
    %v3040 = vadd.f32 0.0, %v3039
    %v3041 = vpop.f32.mrb[0].mxu0
    %v3042 = vadd.f32 0.0, %v3041
    %v3043 = vpop.f32.mrb[0].mxu0
    %v3044 = vpop.f32.mrb[0].mxu0
    %3045 = vdwg.mxu0
    %3046 = vmatprep.subr.bf16.mxu0 %v2944
    %3047 = vmatpush1.bf16.msra.mxu0 %v2943
    %3048 = vmatprep.subr.bf16.mxu0 %v2948
    %3049 = vmatpush1.bf16.msra.mxu0 %v2947
    %3050 = vmatprep.subr.bf16.mxu0 %v2952
    %3051 = vmatpush1.bf16.msra.mxu0 %v2951
    %3052 = vmatprep.subr.bf16.mxu0 %v2956
    %3053 = vmatpush1.bf16.msra.mxu0 %v2955
    %3054 = vmatprep.subr.bf16.mxu0 %v2960
    %3055 = vmatpush1.bf16.msra.mxu0 %v2959
    %3056 = vmatprep.subr.bf16.mxu0 %v2964
    %3057 = vmatpush1.bf16.msra.mxu0 %v2963
    %3058 = vmatprep.subr.bf16.mxu0 %v2968
    %3059 = vmatpush1.bf16.msra.mxu0 %v2967
    %3060 = vmatprep.subr.bf16.mxu0 %v2972
    %3061 = vmatpush1.bf16.msra.mxu0 %v2971
    %3062 = vmatprep.subr.bf16.mxu0 0
    %3063 = vmatpush1.bf16.msra.mxu0 0
    %3064 = vmatprep.subr.bf16.mxu0 0
    %3065 = vmatpush1.bf16.msra.mxu0 0
    %3066 = vmatprep.subr.bf16.mxu0 0
    %3067 = vmatpush1.bf16.msra.mxu0 0
    %3068 = vmatprep.subr.bf16.mxu0 0
    %3069 = vmatpush1.bf16.msra.mxu0 0
    %3070 = vmatprep.subr.bf16.mxu0 0
    %3071 = vmatpush1.bf16.msra.mxu0 0
    %3072 = vmatprep.subr.bf16.mxu0 0
    %3073 = vmatpush1.bf16.msra.mxu0 0
    %3074 = vmatprep.subr.bf16.mxu0 0
    %3075 = vmatpush1.bf16.msra.mxu0 0
    %3076 = vmatprep.subr.bf16.mxu0 0
    %3077 = vmatpush1.bf16.msra.mxu0 0
    %3078 = vmatprep.mubr.bf16.mxu0 0
    %3079 = vmatmul.mubr.bf16.gmra.mrb[0].mxu0 %v2812
    %v3080 = vpop.f32.mrb[0].mxu0
    %v3081 = vadd.f32 0.0, %v3080
    %v3082 = vpop.f32.mrb[0].mxu0
    %v3083 = vadd.f32 0.0, %v3082
    %v3084 = vpop.f32.mrb[0].mxu0
    %v3085 = vpop.f32.mrb[0].mxu0
    %3086 = vdwg.mxu0
    %v3087 = vadd.f32 %v2808, %v3040
    %v3088 = vadd.f32 %v2809, %v3042
    %v3089 = vadd.f32 %v2810, %v3081
    %v3090 = vadd.f32 %v2811, %v3083
    %v3091 = vxor.u32 %v3087, 2147483648
    %v3092 = vmul.f32 %v3091, 1.442695
    %v3093 = vpow.pop %v3092
    %v3094 = vadd.f32 %v3093, 1.0
    %v3095 = vrcp.pop %v3094
    %v3096 = vmul.f32 1.0, %v3095
    %v3097 = vxor.u32 %v3088, 2147483648
    %v3098 = vmul.f32 %v3097, 1.442695
    %v3099 = vpow.pop %v3098
    %v3100 = vadd.f32 %v3099, 1.0
    %v3101 = vrcp.pop %v3100
    %v3102 = vmul.f32 1.0, %v3101
    %v3103 = vtanh.pop %v3089
    %v3104 = vxor.u32 %v3090, 2147483648
    %v3105 = vmul.f32 %v3104, 1.442695
    %v3106 = vpow.pop %v3105
    %v3107 = vadd.f32 %v3106, 1.0
    %v3108 = vrcp.pop %v3107
    %v3109 = vmul.f32 1.0, %v3108
    %v3110 = vmul.f32 %v3102, %v2800
    %v3111 = vmul.f32 %v3096, %v3103
    %v3112 = vadd.f32 %v3110, %v3111
    %v3113 = vtanh.pop %v3112
    %v3114 = vmul.f32 %v3109, %v3113
    %s3115 = scalar_lea.vmem [#allocation3], 56
    %3116 = vst [vmem:[%s3115] sm:$0xff] %v3114
    %s3117 = smul.u32 8, 4
    %s3118 = smul.addr %s3117, 8
    %s3119 = scalar_lea.vmem [#allocation2], %s3118
    %v3120 = vld [vmem:[%s3119] sm:$0xff]
    %v3121 = vld [vmem:[%s3119 + $0x8] sm:$0xff]
    %v3122 = vld [vmem:[%s3119 + $0x10] sm:$0xff]
    %v3123 = vld [vmem:[%s3119 + $0x18] sm:$0xff]
    %v3124 = vpack.c.bf16 %v3114, %v3114
    %v3125 = vld [vmem:[#allocation6] sm:$0xff]
    %v3126 = vld [vmem:[#allocation6 + $0x8] sm:$0xff]
    %v3127 = vld [vmem:[#allocation6 + $0x10] sm:$0xff]
    %v3128 = vld [vmem:[#allocation6 + $0x18] sm:$0xff]
    %v3129 = vld [vmem:[#allocation6 + $0x20] sm:$0xff]
    %v3130 = vld [vmem:[#allocation6 + $0x28] sm:$0xff]
    %v3131 = vld [vmem:[#allocation6 + $0x30] sm:$0xff]
    %v3132 = vld [vmem:[#allocation6 + $0x38] sm:$0xff]
    %v3133 = vld [vmem:[#allocation6 + $0x40] sm:$0xff]
    %v3134 = vld [vmem:[#allocation6 + $0x48] sm:$0xff]
    %v3135 = vld [vmem:[#allocation6 + $0x50] sm:$0xff]
    %v3136 = vld [vmem:[#allocation6 + $0x58] sm:$0xff]
    %v3137 = vld [vmem:[#allocation6 + $0x60] sm:$0xff]
    %v3138 = vld [vmem:[#allocation6 + $0x68] sm:$0xff]
    %v3139 = vld [vmem:[#allocation6 + $0x70] sm:$0xff]
    %v3140 = vld [vmem:[#allocation6 + $0x78] sm:$0xff]
    %v3141 = vld [vmem:[#allocation6 + $0x80] sm:$0xff]
    %v3142 = vld [vmem:[#allocation6 + $0x88] sm:$0xff]
    %v3143 = vld [vmem:[#allocation6 + $0x90] sm:$0xff]
    %v3144 = vld [vmem:[#allocation6 + $0x98] sm:$0xff]
    %v3145 = vld [vmem:[#allocation6 + $0xa0] sm:$0xff]
    %v3146 = vld [vmem:[#allocation6 + $0xa8] sm:$0xff]
    %v3147 = vld [vmem:[#allocation6 + $0xb0] sm:$0xff]
    %v3148 = vld [vmem:[#allocation6 + $0xb8] sm:$0xff]
    %v3149 = vld [vmem:[#allocation6 + $0xc0] sm:$0xff]
    %v3150 = vld [vmem:[#allocation6 + $0xc8] sm:$0xff]
    %v3151 = vld [vmem:[#allocation6 + $0xd0] sm:$0xff]
    %v3152 = vld [vmem:[#allocation6 + $0xd8] sm:$0xff]
    %v3153 = vld [vmem:[#allocation6 + $0xe0] sm:$0xff]
    %v3154 = vld [vmem:[#allocation6 + $0xe8] sm:$0xff]
    %v3155 = vld [vmem:[#allocation6 + $0xf0] sm:$0xff]
    %v3156 = vld [vmem:[#allocation6 + $0xf8] sm:$0xff]
    %v3189 = vunpack.c.l.b16 %v3125
    %v3190 = vunpack.c.h.b16 %v3125
    %v3191 = vunpack.c.l.b16 %v3126
    %v3192 = vunpack.c.h.b16 %v3126
    %v3193 = vunpack.c.l.b16 %v3127
    %v3194 = vunpack.c.h.b16 %v3127
    %v3195 = vunpack.c.l.b16 %v3128
    %v3196 = vunpack.c.h.b16 %v3128
    %v3197 = vunpack.c.l.b16 %v3129
    %v3198 = vunpack.c.h.b16 %v3129
    %v3199 = vunpack.c.l.b16 %v3130
    %v3200 = vunpack.c.h.b16 %v3130
    %v3201 = vunpack.c.l.b16 %v3131
    %v3202 = vunpack.c.h.b16 %v3131
    %v3203 = vunpack.c.l.b16 %v3132
    %v3204 = vunpack.c.h.b16 %v3132
    %v3205 = vunpack.c.l.b16 %v3133
    %v3206 = vunpack.c.h.b16 %v3133
    %v3207 = vunpack.c.l.b16 %v3134
    %v3208 = vunpack.c.h.b16 %v3134
    %v3209 = vunpack.c.l.b16 %v3135
    %v3210 = vunpack.c.h.b16 %v3135
    %v3211 = vunpack.c.l.b16 %v3136
    %v3212 = vunpack.c.h.b16 %v3136
    %v3213 = vunpack.c.l.b16 %v3137
    %v3214 = vunpack.c.h.b16 %v3137
    %v3215 = vunpack.c.l.b16 %v3138
    %v3216 = vunpack.c.h.b16 %v3138
    %v3217 = vunpack.c.l.b16 %v3139
    %v3218 = vunpack.c.h.b16 %v3139
    %v3219 = vunpack.c.l.b16 %v3140
    %v3220 = vunpack.c.h.b16 %v3140
    %v3221 = vunpack.c.l.b16 %v3141
    %v3222 = vunpack.c.h.b16 %v3141
    %v3223 = vunpack.c.l.b16 %v3142
    %v3224 = vunpack.c.h.b16 %v3142
    %v3225 = vunpack.c.l.b16 %v3143
    %v3226 = vunpack.c.h.b16 %v3143
    %v3227 = vunpack.c.l.b16 %v3144
    %v3228 = vunpack.c.h.b16 %v3144
    %v3229 = vunpack.c.l.b16 %v3145
    %v3230 = vunpack.c.h.b16 %v3145
    %v3231 = vunpack.c.l.b16 %v3146
    %v3232 = vunpack.c.h.b16 %v3146
    %v3233 = vunpack.c.l.b16 %v3147
    %v3234 = vunpack.c.h.b16 %v3147
    %v3235 = vunpack.c.l.b16 %v3148
    %v3236 = vunpack.c.h.b16 %v3148
    %v3237 = vunpack.c.l.b16 %v3149
    %v3238 = vunpack.c.h.b16 %v3149
    %v3239 = vunpack.c.l.b16 %v3150
    %v3240 = vunpack.c.h.b16 %v3150
    %v3241 = vunpack.c.l.b16 %v3151
    %v3242 = vunpack.c.h.b16 %v3151
    %v3243 = vunpack.c.l.b16 %v3152
    %v3244 = vunpack.c.h.b16 %v3152
    %v3245 = vunpack.c.l.b16 %v3153
    %v3246 = vunpack.c.h.b16 %v3153
    %v3247 = vunpack.c.l.b16 %v3154
    %v3248 = vunpack.c.h.b16 %v3154
    %v3249 = vunpack.c.l.b16 %v3155
    %v3250 = vunpack.c.h.b16 %v3155
    %v3251 = vunpack.c.l.b16 %v3156
    %v3252 = vunpack.c.h.b16 %v3156
    %v3253 = vpack.c.b16 %v3193, %v3189
    %v3254 = vpack.c.b16 %v3194, %v3190
    %v3255 = vpack.c.b16 %v3195, %v3191
    %v3256 = vpack.c.b16 %v3196, %v3192
    %v3257 = vpack.c.b16 %v3201, %v3197
    %v3258 = vpack.c.b16 %v3202, %v3198
    %v3259 = vpack.c.b16 %v3203, %v3199
    %v3260 = vpack.c.b16 %v3204, %v3200
    %v3261 = vpack.c.b16 %v3209, %v3205
    %v3262 = vpack.c.b16 %v3210, %v3206
    %v3263 = vpack.c.b16 %v3211, %v3207
    %v3264 = vpack.c.b16 %v3212, %v3208
    %v3265 = vpack.c.b16 %v3217, %v3213
    %v3266 = vpack.c.b16 %v3218, %v3214
    %v3267 = vpack.c.b16 %v3219, %v3215
    %v3268 = vpack.c.b16 %v3220, %v3216
    %v3269 = vpack.c.b16 %v3225, %v3221
    %v3270 = vpack.c.b16 %v3226, %v3222
    %v3271 = vpack.c.b16 %v3227, %v3223
    %v3272 = vpack.c.b16 %v3228, %v3224
    %v3273 = vpack.c.b16 %v3233, %v3229
    %v3274 = vpack.c.b16 %v3234, %v3230
    %v3275 = vpack.c.b16 %v3235, %v3231
    %v3276 = vpack.c.b16 %v3236, %v3232
    %v3277 = vpack.c.b16 %v3241, %v3237
    %v3278 = vpack.c.b16 %v3242, %v3238
    %v3279 = vpack.c.b16 %v3243, %v3239
    %v3280 = vpack.c.b16 %v3244, %v3240
    %v3281 = vpack.c.b16 %v3249, %v3245
    %v3282 = vpack.c.b16 %v3250, %v3246
    %v3283 = vpack.c.b16 %v3251, %v3247
    %v3284 = vpack.c.b16 %v3252, %v3248
    %3317 = vmatprep.subr.bf16.mxu0 %v3254
    %3318 = vmatpush1.bf16.msra.mxu0 %v3253
    %3319 = vmatprep.subr.bf16.mxu0 %v3258
    %3320 = vmatpush1.bf16.msra.mxu0 %v3257
    %3321 = vmatprep.subr.bf16.mxu0 %v3262
    %3322 = vmatpush1.bf16.msra.mxu0 %v3261
    %3323 = vmatprep.subr.bf16.mxu0 %v3266
    %3324 = vmatpush1.bf16.msra.mxu0 %v3265
    %3325 = vmatprep.subr.bf16.mxu0 %v3270
    %3326 = vmatpush1.bf16.msra.mxu0 %v3269
    %3327 = vmatprep.subr.bf16.mxu0 %v3274
    %3328 = vmatpush1.bf16.msra.mxu0 %v3273
    %3329 = vmatprep.subr.bf16.mxu0 %v3278
    %3330 = vmatpush1.bf16.msra.mxu0 %v3277
    %3331 = vmatprep.subr.bf16.mxu0 %v3282
    %3332 = vmatpush1.bf16.msra.mxu0 %v3281
    %3333 = vmatprep.subr.bf16.mxu0 0
    %3334 = vmatpush1.bf16.msra.mxu0 0
    %3335 = vmatprep.subr.bf16.mxu0 0
    %3336 = vmatpush1.bf16.msra.mxu0 0
    %3337 = vmatprep.subr.bf16.mxu0 0
    %3338 = vmatpush1.bf16.msra.mxu0 0
    %3339 = vmatprep.subr.bf16.mxu0 0
    %3340 = vmatpush1.bf16.msra.mxu0 0
    %3341 = vmatprep.subr.bf16.mxu0 0
    %3342 = vmatpush1.bf16.msra.mxu0 0
    %3343 = vmatprep.subr.bf16.mxu0 0
    %3344 = vmatpush1.bf16.msra.mxu0 0
    %3345 = vmatprep.subr.bf16.mxu0 0
    %3346 = vmatpush1.bf16.msra.mxu0 0
    %3347 = vmatprep.subr.bf16.mxu0 0
    %3348 = vmatpush1.bf16.msra.mxu0 0
    %3349 = vmatprep.mubr.bf16.mxu0 0
    %3350 = vmatmul.mubr.bf16.gmra.mrb[0].mxu0 %v3124
    %v3351 = vpop.f32.mrb[0].mxu0
    %v3352 = vadd.f32 0.0, %v3351
    %v3353 = vpop.f32.mrb[0].mxu0
    %v3354 = vadd.f32 0.0, %v3353
    %v3355 = vpop.f32.mrb[0].mxu0
    %v3356 = vpop.f32.mrb[0].mxu0
    %3357 = vdwg.mxu0
    %3358 = vmatprep.subr.bf16.mxu0 %v3256
    %3359 = vmatpush1.bf16.msra.mxu0 %v3255
    %3360 = vmatprep.subr.bf16.mxu0 %v3260
    %3361 = vmatpush1.bf16.msra.mxu0 %v3259
    %3362 = vmatprep.subr.bf16.mxu0 %v3264
    %3363 = vmatpush1.bf16.msra.mxu0 %v3263
    %3364 = vmatprep.subr.bf16.mxu0 %v3268
    %3365 = vmatpush1.bf16.msra.mxu0 %v3267
    %3366 = vmatprep.subr.bf16.mxu0 %v3272
    %3367 = vmatpush1.bf16.msra.mxu0 %v3271
    %3368 = vmatprep.subr.bf16.mxu0 %v3276
    %3369 = vmatpush1.bf16.msra.mxu0 %v3275
    %3370 = vmatprep.subr.bf16.mxu0 %v3280
    %3371 = vmatpush1.bf16.msra.mxu0 %v3279
    %3372 = vmatprep.subr.bf16.mxu0 %v3284
    %3373 = vmatpush1.bf16.msra.mxu0 %v3283
    %3374 = vmatprep.subr.bf16.mxu0 0
    %3375 = vmatpush1.bf16.msra.mxu0 0
    %3376 = vmatprep.subr.bf16.mxu0 0
    %3377 = vmatpush1.bf16.msra.mxu0 0
    %3378 = vmatprep.subr.bf16.mxu0 0
    %3379 = vmatpush1.bf16.msra.mxu0 0
    %3380 = vmatprep.subr.bf16.mxu0 0
    %3381 = vmatpush1.bf16.msra.mxu0 0
    %3382 = vmatprep.subr.bf16.mxu0 0
    %3383 = vmatpush1.bf16.msra.mxu0 0
    %3384 = vmatprep.subr.bf16.mxu0 0
    %3385 = vmatpush1.bf16.msra.mxu0 0
    %3386 = vmatprep.subr.bf16.mxu0 0
    %3387 = vmatpush1.bf16.msra.mxu0 0
    %3388 = vmatprep.subr.bf16.mxu0 0
    %3389 = vmatpush1.bf16.msra.mxu0 0
    %3390 = vmatprep.mubr.bf16.mxu0 0
    %3391 = vmatmul.mubr.bf16.gmra.mrb[0].mxu0 %v3124
    %v3392 = vpop.f32.mrb[0].mxu0
    %v3393 = vadd.f32 0.0, %v3392
    %v3394 = vpop.f32.mrb[0].mxu0
    %v3395 = vadd.f32 0.0, %v3394
    %v3396 = vpop.f32.mrb[0].mxu0
    %v3397 = vpop.f32.mrb[0].mxu0
    %3398 = vdwg.mxu0
    %v3399 = vadd.f32 %v3120, %v3352
    %v3400 = vadd.f32 %v3121, %v3354
    %v3401 = vadd.f32 %v3122, %v3393
    %v3402 = vadd.f32 %v3123, %v3395
    %v3403 = vxor.u32 %v3399, 2147483648
    %v3404 = vmul.f32 %v3403, 1.442695
    %v3405 = vpow.pop %v3404
    %v3406 = vadd.f32 %v3405, 1.0
    %v3407 = vrcp.pop %v3406
    %v3408 = vmul.f32 1.0, %v3407
    %v3409 = vxor.u32 %v3400, 2147483648
    %v3410 = vmul.f32 %v3409, 1.442695
    %v3411 = vpow.pop %v3410
    %v3412 = vadd.f32 %v3411, 1.0
    %v3413 = vrcp.pop %v3412
    %v3414 = vmul.f32 1.0, %v3413
    %v3415 = vtanh.pop %v3401
    %v3416 = vxor.u32 %v3402, 2147483648
    %v3417 = vmul.f32 %v3416, 1.442695
    %v3418 = vpow.pop %v3417
    %v3419 = vadd.f32 %v3418, 1.0
    %v3420 = vrcp.pop %v3419
    %v3421 = vmul.f32 1.0, %v3420
    %v3422 = vmul.f32 %v3414, %v3112
    %v3423 = vmul.f32 %v3408, %v3415
    %v3424 = vadd.f32 %v3422, %v3423
    %v3425 = vtanh.pop %v3424
    %v3426 = vmul.f32 %v3421, %v3425
    %s3427 = scalar_lea.vmem [#allocation3], 64
    %3428 = vst [vmem:[%s3427] sm:$0xff] %v3426
    %s3429 = smul.u32 9, 4
    %s3430 = smul.addr %s3429, 8
    %s3431 = scalar_lea.vmem [#allocation2], %s3430
    %v3432 = vld [vmem:[%s3431] sm:$0xff]
    %v3433 = vld [vmem:[%s3431 + $0x8] sm:$0xff]
    %v3434 = vld [vmem:[%s3431 + $0x10] sm:$0xff]
    %v3435 = vld [vmem:[%s3431 + $0x18] sm:$0xff]
    %v3436 = vpack.c.bf16 %v3426, %v3426
    %v3437 = vld [vmem:[#allocation6] sm:$0xff]
    %v3438 = vld [vmem:[#allocation6 + $0x8] sm:$0xff]
    %v3439 = vld [vmem:[#allocation6 + $0x10] sm:$0xff]
    %v3440 = vld [vmem:[#allocation6 + $0x18] sm:$0xff]
    %v3441 = vld [vmem:[#allocation6 + $0x20] sm:$0xff]
    %v3442 = vld [vmem:[#allocation6 + $0x28] sm:$0xff]
    %v3443 = vld [vmem:[#allocation6 + $0x30] sm:$0xff]
    %v3444 = vld [vmem:[#allocation6 + $0x38] sm:$0xff]
    %v3445 = vld [vmem:[#allocation6 + $0x40] sm:$0xff]
    %v3446 = vld [vmem:[#allocation6 + $0x48] sm:$0xff]
    %v3447 = vld [vmem:[#allocation6 + $0x50] sm:$0xff]
    %v3448 = vld [vmem:[#allocation6 + $0x58] sm:$0xff]
    %v3449 = vld [vmem:[#allocation6 + $0x60] sm:$0xff]
    %v3450 = vld [vmem:[#allocation6 + $0x68] sm:$0xff]
    %v3451 = vld [vmem:[#allocation6 + $0x70] sm:$0xff]
    %v3452 = vld [vmem:[#allocation6 + $0x78] sm:$0xff]
    %v3453 = vld [vmem:[#allocation6 + $0x80] sm:$0xff]
    %v3454 = vld [vmem:[#allocation6 + $0x88] sm:$0xff]
    %v3455 = vld [vmem:[#allocation6 + $0x90] sm:$0xff]
    %v3456 = vld [vmem:[#allocation6 + $0x98] sm:$0xff]
    %v3457 = vld [vmem:[#allocation6 + $0xa0] sm:$0xff]
    %v3458 = vld [vmem:[#allocation6 + $0xa8] sm:$0xff]
    %v3459 = vld [vmem:[#allocation6 + $0xb0] sm:$0xff]
    %v3460 = vld [vmem:[#allocation6 + $0xb8] sm:$0xff]
    %v3461 = vld [vmem:[#allocation6 + $0xc0] sm:$0xff]
    %v3462 = vld [vmem:[#allocation6 + $0xc8] sm:$0xff]
    %v3463 = vld [vmem:[#allocation6 + $0xd0] sm:$0xff]
    %v3464 = vld [vmem:[#allocation6 + $0xd8] sm:$0xff]
    %v3465 = vld [vmem:[#allocation6 + $0xe0] sm:$0xff]
    %v3466 = vld [vmem:[#allocation6 + $0xe8] sm:$0xff]
    %v3467 = vld [vmem:[#allocation6 + $0xf0] sm:$0xff]
    %v3468 = vld [vmem:[#allocation6 + $0xf8] sm:$0xff]
    %v3501 = vunpack.c.l.b16 %v3437
    %v3502 = vunpack.c.h.b16 %v3437
    %v3503 = vunpack.c.l.b16 %v3438
    %v3504 = vunpack.c.h.b16 %v3438
    %v3505 = vunpack.c.l.b16 %v3439
    %v3506 = vunpack.c.h.b16 %v3439
    %v3507 = vunpack.c.l.b16 %v3440
    %v3508 = vunpack.c.h.b16 %v3440
    %v3509 = vunpack.c.l.b16 %v3441
    %v3510 = vunpack.c.h.b16 %v3441
    %v3511 = vunpack.c.l.b16 %v3442
    %v3512 = vunpack.c.h.b16 %v3442
    %v3513 = vunpack.c.l.b16 %v3443
    %v3514 = vunpack.c.h.b16 %v3443
    %v3515 = vunpack.c.l.b16 %v3444
    %v3516 = vunpack.c.h.b16 %v3444
    %v3517 = vunpack.c.l.b16 %v3445
    %v3518 = vunpack.c.h.b16 %v3445
    %v3519 = vunpack.c.l.b16 %v3446
    %v3520 = vunpack.c.h.b16 %v3446
    %v3521 = vunpack.c.l.b16 %v3447
    %v3522 = vunpack.c.h.b16 %v3447
    %v3523 = vunpack.c.l.b16 %v3448
    %v3524 = vunpack.c.h.b16 %v3448
    %v3525 = vunpack.c.l.b16 %v3449
    %v3526 = vunpack.c.h.b16 %v3449
    %v3527 = vunpack.c.l.b16 %v3450
    %v3528 = vunpack.c.h.b16 %v3450
    %v3529 = vunpack.c.l.b16 %v3451
    %v3530 = vunpack.c.h.b16 %v3451
    %v3531 = vunpack.c.l.b16 %v3452
    %v3532 = vunpack.c.h.b16 %v3452
    %v3533 = vunpack.c.l.b16 %v3453
    %v3534 = vunpack.c.h.b16 %v3453
    %v3535 = vunpack.c.l.b16 %v3454
    %v3536 = vunpack.c.h.b16 %v3454
    %v3537 = vunpack.c.l.b16 %v3455
    %v3538 = vunpack.c.h.b16 %v3455
    %v3539 = vunpack.c.l.b16 %v3456
    %v3540 = vunpack.c.h.b16 %v3456
    %v3541 = vunpack.c.l.b16 %v3457
    %v3542 = vunpack.c.h.b16 %v3457
    %v3543 = vunpack.c.l.b16 %v3458
    %v3544 = vunpack.c.h.b16 %v3458
    %v3545 = vunpack.c.l.b16 %v3459
    %v3546 = vunpack.c.h.b16 %v3459
    %v3547 = vunpack.c.l.b16 %v3460
    %v3548 = vunpack.c.h.b16 %v3460
    %v3549 = vunpack.c.l.b16 %v3461
    %v3550 = vunpack.c.h.b16 %v3461
    %v3551 = vunpack.c.l.b16 %v3462
    %v3552 = vunpack.c.h.b16 %v3462
    %v3553 = vunpack.c.l.b16 %v3463
    %v3554 = vunpack.c.h.b16 %v3463
    %v3555 = vunpack.c.l.b16 %v3464
    %v3556 = vunpack.c.h.b16 %v3464
    %v3557 = vunpack.c.l.b16 %v3465
    %v3558 = vunpack.c.h.b16 %v3465
    %v3559 = vunpack.c.l.b16 %v3466
    %v3560 = vunpack.c.h.b16 %v3466
    %v3561 = vunpack.c.l.b16 %v3467
    %v3562 = vunpack.c.h.b16 %v3467
    %v3563 = vunpack.c.l.b16 %v3468
    %v3564 = vunpack.c.h.b16 %v3468
    %v3565 = vpack.c.b16 %v3505, %v3501
    %v3566 = vpack.c.b16 %v3506, %v3502
    %v3567 = vpack.c.b16 %v3507, %v3503
    %v3568 = vpack.c.b16 %v3508, %v3504
    %v3569 = vpack.c.b16 %v3513, %v3509
    %v3570 = vpack.c.b16 %v3514, %v3510
    %v3571 = vpack.c.b16 %v3515, %v3511
    %v3572 = vpack.c.b16 %v3516, %v3512
    %v3573 = vpack.c.b16 %v3521, %v3517
    %v3574 = vpack.c.b16 %v3522, %v3518
    %v3575 = vpack.c.b16 %v3523, %v3519
    %v3576 = vpack.c.b16 %v3524, %v3520
    %v3577 = vpack.c.b16 %v3529, %v3525
    %v3578 = vpack.c.b16 %v3530, %v3526
    %v3579 = vpack.c.b16 %v3531, %v3527
    %v3580 = vpack.c.b16 %v3532, %v3528
    %v3581 = vpack.c.b16 %v3537, %v3533
    %v3582 = vpack.c.b16 %v3538, %v3534
    %v3583 = vpack.c.b16 %v3539, %v3535
    %v3584 = vpack.c.b16 %v3540, %v3536
    %v3585 = vpack.c.b16 %v3545, %v3541
    %v3586 = vpack.c.b16 %v3546, %v3542
    %v3587 = vpack.c.b16 %v3547, %v3543
    %v3588 = vpack.c.b16 %v3548, %v3544
    %v3589 = vpack.c.b16 %v3553, %v3549
    %v3590 = vpack.c.b16 %v3554, %v3550
    %v3591 = vpack.c.b16 %v3555, %v3551
    %v3592 = vpack.c.b16 %v3556, %v3552
    %v3593 = vpack.c.b16 %v3561, %v3557
    %v3594 = vpack.c.b16 %v3562, %v3558
    %v3595 = vpack.c.b16 %v3563, %v3559
    %v3596 = vpack.c.b16 %v3564, %v3560
    %3629 = vmatprep.subr.bf16.mxu0 %v3566
    %3630 = vmatpush1.bf16.msra.mxu0 %v3565
    %3631 = vmatprep.subr.bf16.mxu0 %v3570
    %3632 = vmatpush1.bf16.msra.mxu0 %v3569
    %3633 = vmatprep.subr.bf16.mxu0 %v3574
    %3634 = vmatpush1.bf16.msra.mxu0 %v3573
    %3635 = vmatprep.subr.bf16.mxu0 %v3578
    %3636 = vmatpush1.bf16.msra.mxu0 %v3577
    %3637 = vmatprep.subr.bf16.mxu0 %v3582
    %3638 = vmatpush1.bf16.msra.mxu0 %v3581
    %3639 = vmatprep.subr.bf16.mxu0 %v3586
    %3640 = vmatpush1.bf16.msra.mxu0 %v3585
    %3641 = vmatprep.subr.bf16.mxu0 %v3590
    %3642 = vmatpush1.bf16.msra.mxu0 %v3589
    %3643 = vmatprep.subr.bf16.mxu0 %v3594
    %3644 = vmatpush1.bf16.msra.mxu0 %v3593
    %3645 = vmatprep.subr.bf16.mxu0 0
    %3646 = vmatpush1.bf16.msra.mxu0 0
    %3647 = vmatprep.subr.bf16.mxu0 0
    %3648 = vmatpush1.bf16.msra.mxu0 0
    %3649 = vmatprep.subr.bf16.mxu0 0
    %3650 = vmatpush1.bf16.msra.mxu0 0
    %3651 = vmatprep.subr.bf16.mxu0 0
    %3652 = vmatpush1.bf16.msra.mxu0 0
    %3653 = vmatprep.subr.bf16.mxu0 0
    %3654 = vmatpush1.bf16.msra.mxu0 0
    %3655 = vmatprep.subr.bf16.mxu0 0
    %3656 = vmatpush1.bf16.msra.mxu0 0
    %3657 = vmatprep.subr.bf16.mxu0 0
    %3658 = vmatpush1.bf16.msra.mxu0 0
    %3659 = vmatprep.subr.bf16.mxu0 0
    %3660 = vmatpush1.bf16.msra.mxu0 0
    %3661 = vmatprep.mubr.bf16.mxu0 0
    %3662 = vmatmul.mubr.bf16.gmra.mrb[0].mxu0 %v3436
    %v3663 = vpop.f32.mrb[0].mxu0
    %v3664 = vadd.f32 0.0, %v3663
    %v3665 = vpop.f32.mrb[0].mxu0
    %v3666 = vadd.f32 0.0, %v3665
    %v3667 = vpop.f32.mrb[0].mxu0
    %v3668 = vpop.f32.mrb[0].mxu0
    %3669 = vdwg.mxu0
    %3670 = vmatprep.subr.bf16.mxu0 %v3568
    %3671 = vmatpush1.bf16.msra.mxu0 %v3567
    %3672 = vmatprep.subr.bf16.mxu0 %v3572
    %3673 = vmatpush1.bf16.msra.mxu0 %v3571
    %3674 = vmatprep.subr.bf16.mxu0 %v3576
    %3675 = vmatpush1.bf16.msra.mxu0 %v3575
    %3676 = vmatprep.subr.bf16.mxu0 %v3580
    %3677 = vmatpush1.bf16.msra.mxu0 %v3579
    %3678 = vmatprep.subr.bf16.mxu0 %v3584
    %3679 = vmatpush1.bf16.msra.mxu0 %v3583
    %3680 = vmatprep.subr.bf16.mxu0 %v3588
    %3681 = vmatpush1.bf16.msra.mxu0 %v3587
    %3682 = vmatprep.subr.bf16.mxu0 %v3592
    %3683 = vmatpush1.bf16.msra.mxu0 %v3591
    %3684 = vmatprep.subr.bf16.mxu0 %v3596
    %3685 = vmatpush1.bf16.msra.mxu0 %v3595
    %3686 = vmatprep.subr.bf16.mxu0 0
    %3687 = vmatpush1.bf16.msra.mxu0 0
    %3688 = vmatprep.subr.bf16.mxu0 0
    %3689 = vmatpush1.bf16.msra.mxu0 0
    %3690 = vmatprep.subr.bf16.mxu0 0
    %3691 = vmatpush1.bf16.msra.mxu0 0
    %3692 = vmatprep.subr.bf16.mxu0 0
    %3693 = vmatpush1.bf16.msra.mxu0 0
    %3694 = vmatprep.subr.bf16.mxu0 0
    %3695 = vmatpush1.bf16.msra.mxu0 0
    %3696 = vmatprep.subr.bf16.mxu0 0
    %3697 = vmatpush1.bf16.msra.mxu0 0
    %3698 = vmatprep.subr.bf16.mxu0 0
    %3699 = vmatpush1.bf16.msra.mxu0 0
    %3700 = vmatprep.subr.bf16.mxu0 0
    %3701 = vmatpush1.bf16.msra.mxu0 0
    %3702 = vmatprep.mubr.bf16.mxu0 0
    %3703 = vmatmul.mubr.bf16.gmra.mrb[0].mxu0 %v3436
    %v3704 = vpop.f32.mrb[0].mxu0
    %v3705 = vadd.f32 0.0, %v3704
    %v3706 = vpop.f32.mrb[0].mxu0
    %v3707 = vadd.f32 0.0, %v3706
    %v3708 = vpop.f32.mrb[0].mxu0
    %v3709 = vpop.f32.mrb[0].mxu0
    %3710 = vdwg.mxu0
    %v3711 = vadd.f32 %v3432, %v3664
    %v3712 = vadd.f32 %v3433, %v3666
    %v3713 = vadd.f32 %v3434, %v3705
    %v3714 = vadd.f32 %v3435, %v3707
    %v3715 = vxor.u32 %v3711, 2147483648
    %v3716 = vmul.f32 %v3715, 1.442695
    %v3717 = vpow.pop %v3716
    %v3718 = vadd.f32 %v3717, 1.0
    %v3719 = vrcp.pop %v3718
    %v3720 = vmul.f32 1.0, %v3719
    %v3721 = vxor.u32 %v3712, 2147483648
    %v3722 = vmul.f32 %v3721, 1.442695
    %v3723 = vpow.pop %v3722
    %v3724 = vadd.f32 %v3723, 1.0
    %v3725 = vrcp.pop %v3724
    %v3726 = vmul.f32 1.0, %v3725
    %v3727 = vtanh.pop %v3713
    %v3728 = vxor.u32 %v3714, 2147483648
    %v3729 = vmul.f32 %v3728, 1.442695
    %v3730 = vpow.pop %v3729
    %v3731 = vadd.f32 %v3730, 1.0
    %v3732 = vrcp.pop %v3731
    %v3733 = vmul.f32 1.0, %v3732
    %v3734 = vmul.f32 %v3726, %v3424
    %v3735 = vmul.f32 %v3720, %v3727
    %v3736 = vadd.f32 %v3734, %v3735
    %v3737 = vtanh.pop %v3736
    %v3738 = vmul.f32 %v3733, %v3737
    %s3739 = scalar_lea.vmem [#allocation3], 72
    %3740 = vst [vmem:[%s3739] sm:$0xff] %v3738
    %s3741 = smul.u32 10, 4
    %s3742 = smul.addr %s3741, 8
    %s3743 = scalar_lea.vmem [#allocation2], %s3742
    %v3744 = vld [vmem:[%s3743] sm:$0xff]
    %v3745 = vld [vmem:[%s3743 + $0x8] sm:$0xff]
    %v3746 = vld [vmem:[%s3743 + $0x10] sm:$0xff]
    %v3747 = vld [vmem:[%s3743 + $0x18] sm:$0xff]
    %v3748 = vpack.c.bf16 %v3738, %v3738
    %v3749 = vld [vmem:[#allocation6] sm:$0xff]
    %v3750 = vld [vmem:[#allocation6 + $0x8] sm:$0xff]
    %v3751 = vld [vmem:[#allocation6 + $0x10] sm:$0xff]
    %v3752 = vld [vmem:[#allocation6 + $0x18] sm:$0xff]
    %v3753 = vld [vmem:[#allocation6 + $0x20] sm:$0xff]
    %v3754 = vld [vmem:[#allocation6 + $0x28] sm:$0xff]
    %v3755 = vld [vmem:[#allocation6 + $0x30] sm:$0xff]
    %v3756 = vld [vmem:[#allocation6 + $0x38] sm:$0xff]
    %v3757 = vld [vmem:[#allocation6 + $0x40] sm:$0xff]
    %v3758 = vld [vmem:[#allocation6 + $0x48] sm:$0xff]
    %v3759 = vld [vmem:[#allocation6 + $0x50] sm:$0xff]
    %v3760 = vld [vmem:[#allocation6 + $0x58] sm:$0xff]
    %v3761 = vld [vmem:[#allocation6 + $0x60] sm:$0xff]
    %v3762 = vld [vmem:[#allocation6 + $0x68] sm:$0xff]
    %v3763 = vld [vmem:[#allocation6 + $0x70] sm:$0xff]
    %v3764 = vld [vmem:[#allocation6 + $0x78] sm:$0xff]
    %v3765 = vld [vmem:[#allocation6 + $0x80] sm:$0xff]
    %v3766 = vld [vmem:[#allocation6 + $0x88] sm:$0xff]
    %v3767 = vld [vmem:[#allocation6 + $0x90] sm:$0xff]
    %v3768 = vld [vmem:[#allocation6 + $0x98] sm:$0xff]
    %v3769 = vld [vmem:[#allocation6 + $0xa0] sm:$0xff]
    %v3770 = vld [vmem:[#allocation6 + $0xa8] sm:$0xff]
    %v3771 = vld [vmem:[#allocation6 + $0xb0] sm:$0xff]
    %v3772 = vld [vmem:[#allocation6 + $0xb8] sm:$0xff]
    %v3773 = vld [vmem:[#allocation6 + $0xc0] sm:$0xff]
    %v3774 = vld [vmem:[#allocation6 + $0xc8] sm:$0xff]
    %v3775 = vld [vmem:[#allocation6 + $0xd0] sm:$0xff]
    %v3776 = vld [vmem:[#allocation6 + $0xd8] sm:$0xff]
    %v3777 = vld [vmem:[#allocation6 + $0xe0] sm:$0xff]
    %v3778 = vld [vmem:[#allocation6 + $0xe8] sm:$0xff]
    %v3779 = vld [vmem:[#allocation6 + $0xf0] sm:$0xff]
    %v3780 = vld [vmem:[#allocation6 + $0xf8] sm:$0xff]
    %v3813 = vunpack.c.l.b16 %v3749
    %v3814 = vunpack.c.h.b16 %v3749
    %v3815 = vunpack.c.l.b16 %v3750
    %v3816 = vunpack.c.h.b16 %v3750
    %v3817 = vunpack.c.l.b16 %v3751
    %v3818 = vunpack.c.h.b16 %v3751
    %v3819 = vunpack.c.l.b16 %v3752
    %v3820 = vunpack.c.h.b16 %v3752
    %v3821 = vunpack.c.l.b16 %v3753
    %v3822 = vunpack.c.h.b16 %v3753
    %v3823 = vunpack.c.l.b16 %v3754
    %v3824 = vunpack.c.h.b16 %v3754
    %v3825 = vunpack.c.l.b16 %v3755
    %v3826 = vunpack.c.h.b16 %v3755
    %v3827 = vunpack.c.l.b16 %v3756
    %v3828 = vunpack.c.h.b16 %v3756
    %v3829 = vunpack.c.l.b16 %v3757
    %v3830 = vunpack.c.h.b16 %v3757
    %v3831 = vunpack.c.l.b16 %v3758
    %v3832 = vunpack.c.h.b16 %v3758
    %v3833 = vunpack.c.l.b16 %v3759
    %v3834 = vunpack.c.h.b16 %v3759
    %v3835 = vunpack.c.l.b16 %v3760
    %v3836 = vunpack.c.h.b16 %v3760
    %v3837 = vunpack.c.l.b16 %v3761
    %v3838 = vunpack.c.h.b16 %v3761
    %v3839 = vunpack.c.l.b16 %v3762
    %v3840 = vunpack.c.h.b16 %v3762
    %v3841 = vunpack.c.l.b16 %v3763
    %v3842 = vunpack.c.h.b16 %v3763
    %v3843 = vunpack.c.l.b16 %v3764
    %v3844 = vunpack.c.h.b16 %v3764
    %v3845 = vunpack.c.l.b16 %v3765
    %v3846 = vunpack.c.h.b16 %v3765
    %v3847 = vunpack.c.l.b16 %v3766
    %v3848 = vunpack.c.h.b16 %v3766
    %v3849 = vunpack.c.l.b16 %v3767
    %v3850 = vunpack.c.h.b16 %v3767
    %v3851 = vunpack.c.l.b16 %v3768
    %v3852 = vunpack.c.h.b16 %v3768
    %v3853 = vunpack.c.l.b16 %v3769
    %v3854 = vunpack.c.h.b16 %v3769
    %v3855 = vunpack.c.l.b16 %v3770
    %v3856 = vunpack.c.h.b16 %v3770
    %v3857 = vunpack.c.l.b16 %v3771
    %v3858 = vunpack.c.h.b16 %v3771
    %v3859 = vunpack.c.l.b16 %v3772
    %v3860 = vunpack.c.h.b16 %v3772
    %v3861 = vunpack.c.l.b16 %v3773
    %v3862 = vunpack.c.h.b16 %v3773
    %v3863 = vunpack.c.l.b16 %v3774
    %v3864 = vunpack.c.h.b16 %v3774
    %v3865 = vunpack.c.l.b16 %v3775
    %v3866 = vunpack.c.h.b16 %v3775
    %v3867 = vunpack.c.l.b16 %v3776
    %v3868 = vunpack.c.h.b16 %v3776
    %v3869 = vunpack.c.l.b16 %v3777
    %v3870 = vunpack.c.h.b16 %v3777
    %v3871 = vunpack.c.l.b16 %v3778
    %v3872 = vunpack.c.h.b16 %v3778
    %v3873 = vunpack.c.l.b16 %v3779
    %v3874 = vunpack.c.h.b16 %v3779
    %v3875 = vunpack.c.l.b16 %v3780
    %v3876 = vunpack.c.h.b16 %v3780
    %v3877 = vpack.c.b16 %v3817, %v3813
    %v3878 = vpack.c.b16 %v3818, %v3814
    %v3879 = vpack.c.b16 %v3819, %v3815
    %v3880 = vpack.c.b16 %v3820, %v3816
    %v3881 = vpack.c.b16 %v3825, %v3821
    %v3882 = vpack.c.b16 %v3826, %v3822
    %v3883 = vpack.c.b16 %v3827, %v3823
    %v3884 = vpack.c.b16 %v3828, %v3824
    %v3885 = vpack.c.b16 %v3833, %v3829
    %v3886 = vpack.c.b16 %v3834, %v3830
    %v3887 = vpack.c.b16 %v3835, %v3831
    %v3888 = vpack.c.b16 %v3836, %v3832
    %v3889 = vpack.c.b16 %v3841, %v3837
    %v3890 = vpack.c.b16 %v3842, %v3838
    %v3891 = vpack.c.b16 %v3843, %v3839
    %v3892 = vpack.c.b16 %v3844, %v3840
    %v3893 = vpack.c.b16 %v3849, %v3845
    %v3894 = vpack.c.b16 %v3850, %v3846
    %v3895 = vpack.c.b16 %v3851, %v3847
    %v3896 = vpack.c.b16 %v3852, %v3848
    %v3897 = vpack.c.b16 %v3857, %v3853
    %v3898 = vpack.c.b16 %v3858, %v3854
    %v3899 = vpack.c.b16 %v3859, %v3855
    %v3900 = vpack.c.b16 %v3860, %v3856
    %v3901 = vpack.c.b16 %v3865, %v3861
    %v3902 = vpack.c.b16 %v3866, %v3862
    %v3903 = vpack.c.b16 %v3867, %v3863
    %v3904 = vpack.c.b16 %v3868, %v3864
    %v3905 = vpack.c.b16 %v3873, %v3869
    %v3906 = vpack.c.b16 %v3874, %v3870
    %v3907 = vpack.c.b16 %v3875, %v3871
    %v3908 = vpack.c.b16 %v3876, %v3872
    %3941 = vmatprep.subr.bf16.mxu0 %v3878
    %3942 = vmatpush1.bf16.msra.mxu0 %v3877
    %3943 = vmatprep.subr.bf16.mxu0 %v3882
    %3944 = vmatpush1.bf16.msra.mxu0 %v3881
    %3945 = vmatprep.subr.bf16.mxu0 %v3886
    %3946 = vmatpush1.bf16.msra.mxu0 %v3885
    %3947 = vmatprep.subr.bf16.mxu0 %v3890
    %3948 = vmatpush1.bf16.msra.mxu0 %v3889
    %3949 = vmatprep.subr.bf16.mxu0 %v3894
    %3950 = vmatpush1.bf16.msra.mxu0 %v3893
    %3951 = vmatprep.subr.bf16.mxu0 %v3898
    %3952 = vmatpush1.bf16.msra.mxu0 %v3897
    %3953 = vmatprep.subr.bf16.mxu0 %v3902
    %3954 = vmatpush1.bf16.msra.mxu0 %v3901
    %3955 = vmatprep.subr.bf16.mxu0 %v3906
    %3956 = vmatpush1.bf16.msra.mxu0 %v3905
    %3957 = vmatprep.subr.bf16.mxu0 0
    %3958 = vmatpush1.bf16.msra.mxu0 0
    %3959 = vmatprep.subr.bf16.mxu0 0
    %3960 = vmatpush1.bf16.msra.mxu0 0
    %3961 = vmatprep.subr.bf16.mxu0 0
    %3962 = vmatpush1.bf16.msra.mxu0 0
    %3963 = vmatprep.subr.bf16.mxu0 0
    %3964 = vmatpush1.bf16.msra.mxu0 0
    %3965 = vmatprep.subr.bf16.mxu0 0
    %3966 = vmatpush1.bf16.msra.mxu0 0
    %3967 = vmatprep.subr.bf16.mxu0 0
    %3968 = vmatpush1.bf16.msra.mxu0 0
    %3969 = vmatprep.subr.bf16.mxu0 0
    %3970 = vmatpush1.bf16.msra.mxu0 0
    %3971 = vmatprep.subr.bf16.mxu0 0
    %3972 = vmatpush1.bf16.msra.mxu0 0
    %3973 = vmatprep.mubr.bf16.mxu0 0
    %3974 = vmatmul.mubr.bf16.gmra.mrb[0].mxu0 %v3748
    %v3975 = vpop.f32.mrb[0].mxu0
    %v3976 = vadd.f32 0.0, %v3975
    %v3977 = vpop.f32.mrb[0].mxu0
    %v3978 = vadd.f32 0.0, %v3977
    %v3979 = vpop.f32.mrb[0].mxu0
    %v3980 = vpop.f32.mrb[0].mxu0
    %3981 = vdwg.mxu0
    %3982 = vmatprep.subr.bf16.mxu0 %v3880
    %3983 = vmatpush1.bf16.msra.mxu0 %v3879
    %3984 = vmatprep.subr.bf16.mxu0 %v3884
    %3985 = vmatpush1.bf16.msra.mxu0 %v3883
    %3986 = vmatprep.subr.bf16.mxu0 %v3888
    %3987 = vmatpush1.bf16.msra.mxu0 %v3887
    %3988 = vmatprep.subr.bf16.mxu0 %v3892
    %3989 = vmatpush1.bf16.msra.mxu0 %v3891
    %3990 = vmatprep.subr.bf16.mxu0 %v3896
    %3991 = vmatpush1.bf16.msra.mxu0 %v3895
    %3992 = vmatprep.subr.bf16.mxu0 %v3900
    %3993 = vmatpush1.bf16.msra.mxu0 %v3899
    %3994 = vmatprep.subr.bf16.mxu0 %v3904
    %3995 = vmatpush1.bf16.msra.mxu0 %v3903
    %3996 = vmatprep.subr.bf16.mxu0 %v3908
    %3997 = vmatpush1.bf16.msra.mxu0 %v3907
    %3998 = vmatprep.subr.bf16.mxu0 0
    %3999 = vmatpush1.bf16.msra.mxu0 0
    %4000 = vmatprep.subr.bf16.mxu0 0
    %4001 = vmatpush1.bf16.msra.mxu0 0
    %4002 = vmatprep.subr.bf16.mxu0 0
    %4003 = vmatpush1.bf16.msra.mxu0 0
    %4004 = vmatprep.subr.bf16.mxu0 0
    %4005 = vmatpush1.bf16.msra.mxu0 0
    %4006 = vmatprep.subr.bf16.mxu0 0
    %4007 = vmatpush1.bf16.msra.mxu0 0
    %4008 = vmatprep.subr.bf16.mxu0 0
    %4009 = vmatpush1.bf16.msra.mxu0 0
    %4010 = vmatprep.subr.bf16.mxu0 0
    %4011 = vmatpush1.bf16.msra.mxu0 0
    %4012 = vmatprep.subr.bf16.mxu0 0
    %4013 = vmatpush1.bf16.msra.mxu0 0
    %4014 = vmatprep.mubr.bf16.mxu0 0
    %4015 = vmatmul.mubr.bf16.gmra.mrb[0].mxu0 %v3748
    %v4016 = vpop.f32.mrb[0].mxu0
    %v4017 = vadd.f32 0.0, %v4016
    %v4018 = vpop.f32.mrb[0].mxu0
    %v4019 = vadd.f32 0.0, %v4018
    %v4020 = vpop.f32.mrb[0].mxu0
    %v4021 = vpop.f32.mrb[0].mxu0
    %4022 = vdwg.mxu0
    %v4023 = vadd.f32 %v3744, %v3976
    %v4024 = vadd.f32 %v3745, %v3978
    %v4025 = vadd.f32 %v3746, %v4017
    %v4026 = vadd.f32 %v3747, %v4019
    %v4027 = vxor.u32 %v4023, 2147483648
    %v4028 = vmul.f32 %v4027, 1.442695
    %v4029 = vpow.pop %v4028
    %v4030 = vadd.f32 %v4029, 1.0
    %v4031 = vrcp.pop %v4030
    %v4032 = vmul.f32 1.0, %v4031
    %v4033 = vxor.u32 %v4024, 2147483648
    %v4034 = vmul.f32 %v4033, 1.442695
    %v4035 = vpow.pop %v4034
    %v4036 = vadd.f32 %v4035, 1.0
    %v4037 = vrcp.pop %v4036
    %v4038 = vmul.f32 1.0, %v4037
    %v4039 = vtanh.pop %v4025
    %v4040 = vxor.u32 %v4026, 2147483648
    %v4041 = vmul.f32 %v4040, 1.442695
    %v4042 = vpow.pop %v4041
    %v4043 = vadd.f32 %v4042, 1.0
    %v4044 = vrcp.pop %v4043
    %v4045 = vmul.f32 1.0, %v4044
    %v4046 = vmul.f32 %v4038, %v3736
    %v4047 = vmul.f32 %v4032, %v4039
    %v4048 = vadd.f32 %v4046, %v4047
    %v4049 = vtanh.pop %v4048
    %v4050 = vmul.f32 %v4045, %v4049
    %s4051 = scalar_lea.vmem [#allocation3], 80
    %4052 = vst [vmem:[%s4051] sm:$0xff] %v4050
    %s4053 = smul.u32 11, 4
    %s4054 = smul.addr %s4053, 8
    %s4055 = scalar_lea.vmem [#allocation2], %s4054
    %v4056 = vld [vmem:[%s4055] sm:$0xff]
    %v4057 = vld [vmem:[%s4055 + $0x8] sm:$0xff]
    %v4058 = vld [vmem:[%s4055 + $0x10] sm:$0xff]
    %v4059 = vld [vmem:[%s4055 + $0x18] sm:$0xff]
    %v4060 = vpack.c.bf16 %v4050, %v4050
    %v4061 = vld [vmem:[#allocation6] sm:$0xff]
    %v4062 = vld [vmem:[#allocation6 + $0x8] sm:$0xff]
    %v4063 = vld [vmem:[#allocation6 + $0x10] sm:$0xff]
    %v4064 = vld [vmem:[#allocation6 + $0x18] sm:$0xff]
    %v4065 = vld [vmem:[#allocation6 + $0x20] sm:$0xff]
    %v4066 = vld [vmem:[#allocation6 + $0x28] sm:$0xff]
    %v4067 = vld [vmem:[#allocation6 + $0x30] sm:$0xff]
    %v4068 = vld [vmem:[#allocation6 + $0x38] sm:$0xff]
    %v4069 = vld [vmem:[#allocation6 + $0x40] sm:$0xff]
    %v4070 = vld [vmem:[#allocation6 + $0x48] sm:$0xff]
    %v4071 = vld [vmem:[#allocation6 + $0x50] sm:$0xff]
    %v4072 = vld [vmem:[#allocation6 + $0x58] sm:$0xff]
    %v4073 = vld [vmem:[#allocation6 + $0x60] sm:$0xff]
    %v4074 = vld [vmem:[#allocation6 + $0x68] sm:$0xff]
    %v4075 = vld [vmem:[#allocation6 + $0x70] sm:$0xff]
    %v4076 = vld [vmem:[#allocation6 + $0x78] sm:$0xff]
    %v4077 = vld [vmem:[#allocation6 + $0x80] sm:$0xff]
    %v4078 = vld [vmem:[#allocation6 + $0x88] sm:$0xff]
    %v4079 = vld [vmem:[#allocation6 + $0x90] sm:$0xff]
    %v4080 = vld [vmem:[#allocation6 + $0x98] sm:$0xff]
    %v4081 = vld [vmem:[#allocation6 + $0xa0] sm:$0xff]
    %v4082 = vld [vmem:[#allocation6 + $0xa8] sm:$0xff]
    %v4083 = vld [vmem:[#allocation6 + $0xb0] sm:$0xff]
    %v4084 = vld [vmem:[#allocation6 + $0xb8] sm:$0xff]
    %v4085 = vld [vmem:[#allocation6 + $0xc0] sm:$0xff]
    %v4086 = vld [vmem:[#allocation6 + $0xc8] sm:$0xff]
    %v4087 = vld [vmem:[#allocation6 + $0xd0] sm:$0xff]
    %v4088 = vld [vmem:[#allocation6 + $0xd8] sm:$0xff]
    %v4089 = vld [vmem:[#allocation6 + $0xe0] sm:$0xff]
    %v4090 = vld [vmem:[#allocation6 + $0xe8] sm:$0xff]
    %v4091 = vld [vmem:[#allocation6 + $0xf0] sm:$0xff]
    %v4092 = vld [vmem:[#allocation6 + $0xf8] sm:$0xff]
    %v4125 = vunpack.c.l.b16 %v4061
    %v4126 = vunpack.c.h.b16 %v4061
    %v4127 = vunpack.c.l.b16 %v4062
    %v4128 = vunpack.c.h.b16 %v4062
    %v4129 = vunpack.c.l.b16 %v4063
    %v4130 = vunpack.c.h.b16 %v4063
    %v4131 = vunpack.c.l.b16 %v4064
    %v4132 = vunpack.c.h.b16 %v4064
    %v4133 = vunpack.c.l.b16 %v4065
    %v4134 = vunpack.c.h.b16 %v4065
    %v4135 = vunpack.c.l.b16 %v4066
    %v4136 = vunpack.c.h.b16 %v4066
    %v4137 = vunpack.c.l.b16 %v4067
    %v4138 = vunpack.c.h.b16 %v4067
    %v4139 = vunpack.c.l.b16 %v4068
    %v4140 = vunpack.c.h.b16 %v4068
    %v4141 = vunpack.c.l.b16 %v4069
    %v4142 = vunpack.c.h.b16 %v4069
    %v4143 = vunpack.c.l.b16 %v4070
    %v4144 = vunpack.c.h.b16 %v4070
    %v4145 = vunpack.c.l.b16 %v4071
    %v4146 = vunpack.c.h.b16 %v4071
    %v4147 = vunpack.c.l.b16 %v4072
    %v4148 = vunpack.c.h.b16 %v4072
    %v4149 = vunpack.c.l.b16 %v4073
    %v4150 = vunpack.c.h.b16 %v4073
    %v4151 = vunpack.c.l.b16 %v4074
    %v4152 = vunpack.c.h.b16 %v4074
    %v4153 = vunpack.c.l.b16 %v4075
    %v4154 = vunpack.c.h.b16 %v4075
    %v4155 = vunpack.c.l.b16 %v4076
    %v4156 = vunpack.c.h.b16 %v4076
    %v4157 = vunpack.c.l.b16 %v4077
    %v4158 = vunpack.c.h.b16 %v4077
    %v4159 = vunpack.c.l.b16 %v4078
    %v4160 = vunpack.c.h.b16 %v4078
    %v4161 = vunpack.c.l.b16 %v4079
    %v4162 = vunpack.c.h.b16 %v4079
    %v4163 = vunpack.c.l.b16 %v4080
    %v4164 = vunpack.c.h.b16 %v4080
    %v4165 = vunpack.c.l.b16 %v4081
    %v4166 = vunpack.c.h.b16 %v4081
    %v4167 = vunpack.c.l.b16 %v4082
    %v4168 = vunpack.c.h.b16 %v4082
    %v4169 = vunpack.c.l.b16 %v4083
    %v4170 = vunpack.c.h.b16 %v4083
    %v4171 = vunpack.c.l.b16 %v4084
    %v4172 = vunpack.c.h.b16 %v4084
    %v4173 = vunpack.c.l.b16 %v4085
    %v4174 = vunpack.c.h.b16 %v4085
    %v4175 = vunpack.c.l.b16 %v4086
    %v4176 = vunpack.c.h.b16 %v4086
    %v4177 = vunpack.c.l.b16 %v4087
    %v4178 = vunpack.c.h.b16 %v4087
    %v4179 = vunpack.c.l.b16 %v4088
    %v4180 = vunpack.c.h.b16 %v4088
    %v4181 = vunpack.c.l.b16 %v4089
    %v4182 = vunpack.c.h.b16 %v4089
    %v4183 = vunpack.c.l.b16 %v4090
    %v4184 = vunpack.c.h.b16 %v4090
    %v4185 = vunpack.c.l.b16 %v4091
    %v4186 = vunpack.c.h.b16 %v4091
    %v4187 = vunpack.c.l.b16 %v4092
    %v4188 = vunpack.c.h.b16 %v4092
    %v4189 = vpack.c.b16 %v4129, %v4125
    %v4190 = vpack.c.b16 %v4130, %v4126
    %v4191 = vpack.c.b16 %v4131, %v4127
    %v4192 = vpack.c.b16 %v4132, %v4128
    %v4193 = vpack.c.b16 %v4137, %v4133
    %v4194 = vpack.c.b16 %v4138, %v4134
    %v4195 = vpack.c.b16 %v4139, %v4135
    %v4196 = vpack.c.b16 %v4140, %v4136
    %v4197 = vpack.c.b16 %v4145, %v4141
    %v4198 = vpack.c.b16 %v4146, %v4142
    %v4199 = vpack.c.b16 %v4147, %v4143
    %v4200 = vpack.c.b16 %v4148, %v4144
    %v4201 = vpack.c.b16 %v4153, %v4149
    %v4202 = vpack.c.b16 %v4154, %v4150
    %v4203 = vpack.c.b16 %v4155, %v4151
    %v4204 = vpack.c.b16 %v4156, %v4152
    %v4205 = vpack.c.b16 %v4161, %v4157
    %v4206 = vpack.c.b16 %v4162, %v4158
    %v4207 = vpack.c.b16 %v4163, %v4159
    %v4208 = vpack.c.b16 %v4164, %v4160
    %v4209 = vpack.c.b16 %v4169, %v4165
    %v4210 = vpack.c.b16 %v4170, %v4166
    %v4211 = vpack.c.b16 %v4171, %v4167
    %v4212 = vpack.c.b16 %v4172, %v4168
    %v4213 = vpack.c.b16 %v4177, %v4173
    %v4214 = vpack.c.b16 %v4178, %v4174
    %v4215 = vpack.c.b16 %v4179, %v4175
    %v4216 = vpack.c.b16 %v4180, %v4176
    %v4217 = vpack.c.b16 %v4185, %v4181
    %v4218 = vpack.c.b16 %v4186, %v4182
    %v4219 = vpack.c.b16 %v4187, %v4183
    %v4220 = vpack.c.b16 %v4188, %v4184
    %4253 = vmatprep.subr.bf16.mxu0 %v4190
    %4254 = vmatpush1.bf16.msra.mxu0 %v4189
    %4255 = vmatprep.subr.bf16.mxu0 %v4194
    %4256 = vmatpush1.bf16.msra.mxu0 %v4193
    %4257 = vmatprep.subr.bf16.mxu0 %v4198
    %4258 = vmatpush1.bf16.msra.mxu0 %v4197
    %4259 = vmatprep.subr.bf16.mxu0 %v4202
    %4260 = vmatpush1.bf16.msra.mxu0 %v4201
    %4261 = vmatprep.subr.bf16.mxu0 %v4206
    %4262 = vmatpush1.bf16.msra.mxu0 %v4205
    %4263 = vmatprep.subr.bf16.mxu0 %v4210
    %4264 = vmatpush1.bf16.msra.mxu0 %v4209
    %4265 = vmatprep.subr.bf16.mxu0 %v4214
    %4266 = vmatpush1.bf16.msra.mxu0 %v4213
    %4267 = vmatprep.subr.bf16.mxu0 %v4218
    %4268 = vmatpush1.bf16.msra.mxu0 %v4217
    %4269 = vmatprep.subr.bf16.mxu0 0
    %4270 = vmatpush1.bf16.msra.mxu0 0
    %4271 = vmatprep.subr.bf16.mxu0 0
    %4272 = vmatpush1.bf16.msra.mxu0 0
    %4273 = vmatprep.subr.bf16.mxu0 0
    %4274 = vmatpush1.bf16.msra.mxu0 0
    %4275 = vmatprep.subr.bf16.mxu0 0
    %4276 = vmatpush1.bf16.msra.mxu0 0
    %4277 = vmatprep.subr.bf16.mxu0 0
    %4278 = vmatpush1.bf16.msra.mxu0 0
    %4279 = vmatprep.subr.bf16.mxu0 0
    %4280 = vmatpush1.bf16.msra.mxu0 0
    %4281 = vmatprep.subr.bf16.mxu0 0
    %4282 = vmatpush1.bf16.msra.mxu0 0
    %4283 = vmatprep.subr.bf16.mxu0 0
    %4284 = vmatpush1.bf16.msra.mxu0 0
    %4285 = vmatprep.mubr.bf16.mxu0 0
    %4286 = vmatmul.mubr.bf16.gmra.mrb[0].mxu0 %v4060
    %v4287 = vpop.f32.mrb[0].mxu0
    %v4288 = vadd.f32 0.0, %v4287
    %v4289 = vpop.f32.mrb[0].mxu0
    %v4290 = vadd.f32 0.0, %v4289
    %v4291 = vpop.f32.mrb[0].mxu0
    %v4292 = vpop.f32.mrb[0].mxu0
    %4293 = vdwg.mxu0
    %4294 = vmatprep.subr.bf16.mxu0 %v4192
    %4295 = vmatpush1.bf16.msra.mxu0 %v4191
    %4296 = vmatprep.subr.bf16.mxu0 %v4196
    %4297 = vmatpush1.bf16.msra.mxu0 %v4195
    %4298 = vmatprep.subr.bf16.mxu0 %v4200
    %4299 = vmatpush1.bf16.msra.mxu0 %v4199
    %4300 = vmatprep.subr.bf16.mxu0 %v4204
    %4301 = vmatpush1.bf16.msra.mxu0 %v4203
    %4302 = vmatprep.subr.bf16.mxu0 %v4208
    %4303 = vmatpush1.bf16.msra.mxu0 %v4207
    %4304 = vmatprep.subr.bf16.mxu0 %v4212
    %4305 = vmatpush1.bf16.msra.mxu0 %v4211
    %4306 = vmatprep.subr.bf16.mxu0 %v4216
    %4307 = vmatpush1.bf16.msra.mxu0 %v4215
    %4308 = vmatprep.subr.bf16.mxu0 %v4220
    %4309 = vmatpush1.bf16.msra.mxu0 %v4219
    %4310 = vmatprep.subr.bf16.mxu0 0
    %4311 = vmatpush1.bf16.msra.mxu0 0
    %4312 = vmatprep.subr.bf16.mxu0 0
    %4313 = vmatpush1.bf16.msra.mxu0 0
    %4314 = vmatprep.subr.bf16.mxu0 0
    %4315 = vmatpush1.bf16.msra.mxu0 0
    %4316 = vmatprep.subr.bf16.mxu0 0
    %4317 = vmatpush1.bf16.msra.mxu0 0
    %4318 = vmatprep.subr.bf16.mxu0 0
    %4319 = vmatpush1.bf16.msra.mxu0 0
    %4320 = vmatprep.subr.bf16.mxu0 0
    %4321 = vmatpush1.bf16.msra.mxu0 0
    %4322 = vmatprep.subr.bf16.mxu0 0
    %4323 = vmatpush1.bf16.msra.mxu0 0
    %4324 = vmatprep.subr.bf16.mxu0 0
    %4325 = vmatpush1.bf16.msra.mxu0 0
    %4326 = vmatprep.mubr.bf16.mxu0 0
    %4327 = vmatmul.mubr.bf16.gmra.mrb[0].mxu0 %v4060
    %v4328 = vpop.f32.mrb[0].mxu0
    %v4329 = vadd.f32 0.0, %v4328
    %v4330 = vpop.f32.mrb[0].mxu0
    %v4331 = vadd.f32 0.0, %v4330
    %v4332 = vpop.f32.mrb[0].mxu0
    %v4333 = vpop.f32.mrb[0].mxu0
    %4334 = vdwg.mxu0
    %v4335 = vadd.f32 %v4056, %v4288
    %v4336 = vadd.f32 %v4057, %v4290
    %v4337 = vadd.f32 %v4058, %v4329
    %v4338 = vadd.f32 %v4059, %v4331
    %v4339 = vxor.u32 %v4335, 2147483648
    %v4340 = vmul.f32 %v4339, 1.442695
    %v4341 = vpow.pop %v4340
    %v4342 = vadd.f32 %v4341, 1.0
    %v4343 = vrcp.pop %v4342
    %v4344 = vmul.f32 1.0, %v4343
    %v4345 = vxor.u32 %v4336, 2147483648
    %v4346 = vmul.f32 %v4345, 1.442695
    %v4347 = vpow.pop %v4346
    %v4348 = vadd.f32 %v4347, 1.0
    %v4349 = vrcp.pop %v4348
    %v4350 = vmul.f32 1.0, %v4349
    %v4351 = vtanh.pop %v4337
    %v4352 = vxor.u32 %v4338, 2147483648
    %v4353 = vmul.f32 %v4352, 1.442695
    %v4354 = vpow.pop %v4353
    %v4355 = vadd.f32 %v4354, 1.0
    %v4356 = vrcp.pop %v4355
    %v4357 = vmul.f32 1.0, %v4356
    %v4358 = vmul.f32 %v4350, %v4048
    %v4359 = vmul.f32 %v4344, %v4351
    %v4360 = vadd.f32 %v4358, %v4359
    %v4361 = vtanh.pop %v4360
    %v4362 = vmul.f32 %v4357, %v4361
    %s4363 = scalar_lea.vmem [#allocation3], 88
    %4364 = vst [vmem:[%s4363] sm:$0xff] %v4362
    %s4365 = smul.u32 12, 4
    %s4366 = smul.addr %s4365, 8
    %s4367 = scalar_lea.vmem [#allocation2], %s4366
    %v4368 = vld [vmem:[%s4367] sm:$0xff]
    %v4369 = vld [vmem:[%s4367 + $0x8] sm:$0xff]
    %v4370 = vld [vmem:[%s4367 + $0x10] sm:$0xff]
    %v4371 = vld [vmem:[%s4367 + $0x18] sm:$0xff]
    %v4372 = vpack.c.bf16 %v4362, %v4362
    %v4373 = vld [vmem:[#allocation6] sm:$0xff]
    %v4374 = vld [vmem:[#allocation6 + $0x8] sm:$0xff]
    %v4375 = vld [vmem:[#allocation6 + $0x10] sm:$0xff]
    %v4376 = vld [vmem:[#allocation6 + $0x18] sm:$0xff]
    %v4377 = vld [vmem:[#allocation6 + $0x20] sm:$0xff]
    %v4378 = vld [vmem:[#allocation6 + $0x28] sm:$0xff]
    %v4379 = vld [vmem:[#allocation6 + $0x30] sm:$0xff]
    %v4380 = vld [vmem:[#allocation6 + $0x38] sm:$0xff]
    %v4381 = vld [vmem:[#allocation6 + $0x40] sm:$0xff]
    %v4382 = vld [vmem:[#allocation6 + $0x48] sm:$0xff]
    %v4383 = vld [vmem:[#allocation6 + $0x50] sm:$0xff]
    %v4384 = vld [vmem:[#allocation6 + $0x58] sm:$0xff]
    %v4385 = vld [vmem:[#allocation6 + $0x60] sm:$0xff]
    %v4386 = vld [vmem:[#allocation6 + $0x68] sm:$0xff]
    %v4387 = vld [vmem:[#allocation6 + $0x70] sm:$0xff]
    %v4388 = vld [vmem:[#allocation6 + $0x78] sm:$0xff]
    %v4389 = vld [vmem:[#allocation6 + $0x80] sm:$0xff]
    %v4390 = vld [vmem:[#allocation6 + $0x88] sm:$0xff]
    %v4391 = vld [vmem:[#allocation6 + $0x90] sm:$0xff]
    %v4392 = vld [vmem:[#allocation6 + $0x98] sm:$0xff]
    %v4393 = vld [vmem:[#allocation6 + $0xa0] sm:$0xff]
    %v4394 = vld [vmem:[#allocation6 + $0xa8] sm:$0xff]
    %v4395 = vld [vmem:[#allocation6 + $0xb0] sm:$0xff]
    %v4396 = vld [vmem:[#allocation6 + $0xb8] sm:$0xff]
    %v4397 = vld [vmem:[#allocation6 + $0xc0] sm:$0xff]
    %v4398 = vld [vmem:[#allocation6 + $0xc8] sm:$0xff]
    %v4399 = vld [vmem:[#allocation6 + $0xd0] sm:$0xff]
    %v4400 = vld [vmem:[#allocation6 + $0xd8] sm:$0xff]
    %v4401 = vld [vmem:[#allocation6 + $0xe0] sm:$0xff]
    %v4402 = vld [vmem:[#allocation6 + $0xe8] sm:$0xff]
    %v4403 = vld [vmem:[#allocation6 + $0xf0] sm:$0xff]
    %v4404 = vld [vmem:[#allocation6 + $0xf8] sm:$0xff]
    %v4437 = vunpack.c.l.b16 %v4373
    %v4438 = vunpack.c.h.b16 %v4373
    %v4439 = vunpack.c.l.b16 %v4374
    %v4440 = vunpack.c.h.b16 %v4374
    %v4441 = vunpack.c.l.b16 %v4375
    %v4442 = vunpack.c.h.b16 %v4375
    %v4443 = vunpack.c.l.b16 %v4376
    %v4444 = vunpack.c.h.b16 %v4376
    %v4445 = vunpack.c.l.b16 %v4377
    %v4446 = vunpack.c.h.b16 %v4377
    %v4447 = vunpack.c.l.b16 %v4378
    %v4448 = vunpack.c.h.b16 %v4378
    %v4449 = vunpack.c.l.b16 %v4379
    %v4450 = vunpack.c.h.b16 %v4379
    %v4451 = vunpack.c.l.b16 %v4380
    %v4452 = vunpack.c.h.b16 %v4380
    %v4453 = vunpack.c.l.b16 %v4381
    %v4454 = vunpack.c.h.b16 %v4381
    %v4455 = vunpack.c.l.b16 %v4382
    %v4456 = vunpack.c.h.b16 %v4382
    %v4457 = vunpack.c.l.b16 %v4383
    %v4458 = vunpack.c.h.b16 %v4383
    %v4459 = vunpack.c.l.b16 %v4384
    %v4460 = vunpack.c.h.b16 %v4384
    %v4461 = vunpack.c.l.b16 %v4385
    %v4462 = vunpack.c.h.b16 %v4385
    %v4463 = vunpack.c.l.b16 %v4386
    %v4464 = vunpack.c.h.b16 %v4386
    %v4465 = vunpack.c.l.b16 %v4387
    %v4466 = vunpack.c.h.b16 %v4387
    %v4467 = vunpack.c.l.b16 %v4388
    %v4468 = vunpack.c.h.b16 %v4388
    %v4469 = vunpack.c.l.b16 %v4389
    %v4470 = vunpack.c.h.b16 %v4389
    %v4471 = vunpack.c.l.b16 %v4390
    %v4472 = vunpack.c.h.b16 %v4390
    %v4473 = vunpack.c.l.b16 %v4391
    %v4474 = vunpack.c.h.b16 %v4391
    %v4475 = vunpack.c.l.b16 %v4392
    %v4476 = vunpack.c.h.b16 %v4392
    %v4477 = vunpack.c.l.b16 %v4393
    %v4478 = vunpack.c.h.b16 %v4393
    %v4479 = vunpack.c.l.b16 %v4394
    %v4480 = vunpack.c.h.b16 %v4394
    %v4481 = vunpack.c.l.b16 %v4395
    %v4482 = vunpack.c.h.b16 %v4395
    %v4483 = vunpack.c.l.b16 %v4396
    %v4484 = vunpack.c.h.b16 %v4396
    %v4485 = vunpack.c.l.b16 %v4397
    %v4486 = vunpack.c.h.b16 %v4397
    %v4487 = vunpack.c.l.b16 %v4398
    %v4488 = vunpack.c.h.b16 %v4398
    %v4489 = vunpack.c.l.b16 %v4399
    %v4490 = vunpack.c.h.b16 %v4399
    %v4491 = vunpack.c.l.b16 %v4400
    %v4492 = vunpack.c.h.b16 %v4400
    %v4493 = vunpack.c.l.b16 %v4401
    %v4494 = vunpack.c.h.b16 %v4401
    %v4495 = vunpack.c.l.b16 %v4402
    %v4496 = vunpack.c.h.b16 %v4402
    %v4497 = vunpack.c.l.b16 %v4403
    %v4498 = vunpack.c.h.b16 %v4403
    %v4499 = vunpack.c.l.b16 %v4404
    %v4500 = vunpack.c.h.b16 %v4404
    %v4501 = vpack.c.b16 %v4441, %v4437
    %v4502 = vpack.c.b16 %v4442, %v4438
    %v4503 = vpack.c.b16 %v4443, %v4439
    %v4504 = vpack.c.b16 %v4444, %v4440
    %v4505 = vpack.c.b16 %v4449, %v4445
    %v4506 = vpack.c.b16 %v4450, %v4446
    %v4507 = vpack.c.b16 %v4451, %v4447
    %v4508 = vpack.c.b16 %v4452, %v4448
    %v4509 = vpack.c.b16 %v4457, %v4453
    %v4510 = vpack.c.b16 %v4458, %v4454
    %v4511 = vpack.c.b16 %v4459, %v4455
    %v4512 = vpack.c.b16 %v4460, %v4456
    %v4513 = vpack.c.b16 %v4465, %v4461
    %v4514 = vpack.c.b16 %v4466, %v4462
    %v4515 = vpack.c.b16 %v4467, %v4463
    %v4516 = vpack.c.b16 %v4468, %v4464
    %v4517 = vpack.c.b16 %v4473, %v4469
    %v4518 = vpack.c.b16 %v4474, %v4470
    %v4519 = vpack.c.b16 %v4475, %v4471
    %v4520 = vpack.c.b16 %v4476, %v4472
    %v4521 = vpack.c.b16 %v4481, %v4477
    %v4522 = vpack.c.b16 %v4482, %v4478
    %v4523 = vpack.c.b16 %v4483, %v4479
    %v4524 = vpack.c.b16 %v4484, %v4480
    %v4525 = vpack.c.b16 %v4489, %v4485
    %v4526 = vpack.c.b16 %v4490, %v4486
    %v4527 = vpack.c.b16 %v4491, %v4487
    %v4528 = vpack.c.b16 %v4492, %v4488
    %v4529 = vpack.c.b16 %v4497, %v4493
    %v4530 = vpack.c.b16 %v4498, %v4494
    %v4531 = vpack.c.b16 %v4499, %v4495
    %v4532 = vpack.c.b16 %v4500, %v4496
    %4565 = vmatprep.subr.bf16.mxu0 %v4502
    %4566 = vmatpush1.bf16.msra.mxu0 %v4501
    %4567 = vmatprep.subr.bf16.mxu0 %v4506
    %4568 = vmatpush1.bf16.msra.mxu0 %v4505
    %4569 = vmatprep.subr.bf16.mxu0 %v4510
    %4570 = vmatpush1.bf16.msra.mxu0 %v4509
    %4571 = vmatprep.subr.bf16.mxu0 %v4514
    %4572 = vmatpush1.bf16.msra.mxu0 %v4513
    %4573 = vmatprep.subr.bf16.mxu0 %v4518
    %4574 = vmatpush1.bf16.msra.mxu0 %v4517
    %4575 = vmatprep.subr.bf16.mxu0 %v4522
    %4576 = vmatpush1.bf16.msra.mxu0 %v4521
    %4577 = vmatprep.subr.bf16.mxu0 %v4526
    %4578 = vmatpush1.bf16.msra.mxu0 %v4525
    %4579 = vmatprep.subr.bf16.mxu0 %v4530
    %4580 = vmatpush1.bf16.msra.mxu0 %v4529
    %4581 = vmatprep.subr.bf16.mxu0 0
    %4582 = vmatpush1.bf16.msra.mxu0 0
    %4583 = vmatprep.subr.bf16.mxu0 0
    %4584 = vmatpush1.bf16.msra.mxu0 0
    %4585 = vmatprep.subr.bf16.mxu0 0
    %4586 = vmatpush1.bf16.msra.mxu0 0
    %4587 = vmatprep.subr.bf16.mxu0 0
    %4588 = vmatpush1.bf16.msra.mxu0 0
    %4589 = vmatprep.subr.bf16.mxu0 0
    %4590 = vmatpush1.bf16.msra.mxu0 0
    %4591 = vmatprep.subr.bf16.mxu0 0
    %4592 = vmatpush1.bf16.msra.mxu0 0
    %4593 = vmatprep.subr.bf16.mxu0 0
    %4594 = vmatpush1.bf16.msra.mxu0 0
    %4595 = vmatprep.subr.bf16.mxu0 0
    %4596 = vmatpush1.bf16.msra.mxu0 0
    %4597 = vmatprep.mubr.bf16.mxu0 0
    %4598 = vmatmul.mubr.bf16.gmra.mrb[0].mxu0 %v4372
    %v4599 = vpop.f32.mrb[0].mxu0
    %v4600 = vadd.f32 0.0, %v4599
    %v4601 = vpop.f32.mrb[0].mxu0
    %v4602 = vadd.f32 0.0, %v4601
    %v4603 = vpop.f32.mrb[0].mxu0
    %v4604 = vpop.f32.mrb[0].mxu0
    %4605 = vdwg.mxu0
    %4606 = vmatprep.subr.bf16.mxu0 %v4504
    %4607 = vmatpush1.bf16.msra.mxu0 %v4503
    %4608 = vmatprep.subr.bf16.mxu0 %v4508
    %4609 = vmatpush1.bf16.msra.mxu0 %v4507
    %4610 = vmatprep.subr.bf16.mxu0 %v4512
    %4611 = vmatpush1.bf16.msra.mxu0 %v4511
    %4612 = vmatprep.subr.bf16.mxu0 %v4516
    %4613 = vmatpush1.bf16.msra.mxu0 %v4515
    %4614 = vmatprep.subr.bf16.mxu0 %v4520
    %4615 = vmatpush1.bf16.msra.mxu0 %v4519
    %4616 = vmatprep.subr.bf16.mxu0 %v4524
    %4617 = vmatpush1.bf16.msra.mxu0 %v4523
    %4618 = vmatprep.subr.bf16.mxu0 %v4528
    %4619 = vmatpush1.bf16.msra.mxu0 %v4527
    %4620 = vmatprep.subr.bf16.mxu0 %v4532
    %4621 = vmatpush1.bf16.msra.mxu0 %v4531
    %4622 = vmatprep.subr.bf16.mxu0 0
    %4623 = vmatpush1.bf16.msra.mxu0 0
    %4624 = vmatprep.subr.bf16.mxu0 0
    %4625 = vmatpush1.bf16.msra.mxu0 0
    %4626 = vmatprep.subr.bf16.mxu0 0
    %4627 = vmatpush1.bf16.msra.mxu0 0
    %4628 = vmatprep.subr.bf16.mxu0 0
    %4629 = vmatpush1.bf16.msra.mxu0 0
    %4630 = vmatprep.subr.bf16.mxu0 0
    %4631 = vmatpush1.bf16.msra.mxu0 0
    %4632 = vmatprep.subr.bf16.mxu0 0
    %4633 = vmatpush1.bf16.msra.mxu0 0
    %4634 = vmatprep.subr.bf16.mxu0 0
    %4635 = vmatpush1.bf16.msra.mxu0 0
    %4636 = vmatprep.subr.bf16.mxu0 0
    %4637 = vmatpush1.bf16.msra.mxu0 0
    %4638 = vmatprep.mubr.bf16.mxu0 0
    %4639 = vmatmul.mubr.bf16.gmra.mrb[0].mxu0 %v4372
    %v4640 = vpop.f32.mrb[0].mxu0
    %v4641 = vadd.f32 0.0, %v4640
    %v4642 = vpop.f32.mrb[0].mxu0
    %v4643 = vadd.f32 0.0, %v4642
    %v4644 = vpop.f32.mrb[0].mxu0
    %v4645 = vpop.f32.mrb[0].mxu0
    %4646 = vdwg.mxu0
    %v4647 = vadd.f32 %v4368, %v4600
    %v4648 = vadd.f32 %v4369, %v4602
    %v4649 = vadd.f32 %v4370, %v4641
    %v4650 = vadd.f32 %v4371, %v4643
    %v4651 = vxor.u32 %v4647, 2147483648
    %v4652 = vmul.f32 %v4651, 1.442695
    %v4653 = vpow.pop %v4652
    %v4654 = vadd.f32 %v4653, 1.0
    %v4655 = vrcp.pop %v4654
    %v4656 = vmul.f32 1.0, %v4655
    %v4657 = vxor.u32 %v4648, 2147483648
    %v4658 = vmul.f32 %v4657, 1.442695
    %v4659 = vpow.pop %v4658
    %v4660 = vadd.f32 %v4659, 1.0
    %v4661 = vrcp.pop %v4660
    %v4662 = vmul.f32 1.0, %v4661
    %v4663 = vtanh.pop %v4649
    %v4664 = vxor.u32 %v4650, 2147483648
    %v4665 = vmul.f32 %v4664, 1.442695
    %v4666 = vpow.pop %v4665
    %v4667 = vadd.f32 %v4666, 1.0
    %v4668 = vrcp.pop %v4667
    %v4669 = vmul.f32 1.0, %v4668
    %v4670 = vmul.f32 %v4662, %v4360
    %v4671 = vmul.f32 %v4656, %v4663
    %v4672 = vadd.f32 %v4670, %v4671
    %v4673 = vtanh.pop %v4672
    %v4674 = vmul.f32 %v4669, %v4673
    %s4675 = scalar_lea.vmem [#allocation3], 96
    %4676 = vst [vmem:[%s4675] sm:$0xff] %v4674
    %s4677 = smul.u32 13, 4
    %s4678 = smul.addr %s4677, 8
    %s4679 = scalar_lea.vmem [#allocation2], %s4678
    %v4680 = vld [vmem:[%s4679] sm:$0xff]
    %v4681 = vld [vmem:[%s4679 + $0x8] sm:$0xff]
    %v4682 = vld [vmem:[%s4679 + $0x10] sm:$0xff]
    %v4683 = vld [vmem:[%s4679 + $0x18] sm:$0xff]
    %v4684 = vpack.c.bf16 %v4674, %v4674
    %v4685 = vld [vmem:[#allocation6] sm:$0xff]
    %v4686 = vld [vmem:[#allocation6 + $0x8] sm:$0xff]
    %v4687 = vld [vmem:[#allocation6 + $0x10] sm:$0xff]
    %v4688 = vld [vmem:[#allocation6 + $0x18] sm:$0xff]
    %v4689 = vld [vmem:[#allocation6 + $0x20] sm:$0xff]
    %v4690 = vld [vmem:[#allocation6 + $0x28] sm:$0xff]
    %v4691 = vld [vmem:[#allocation6 + $0x30] sm:$0xff]
    %v4692 = vld [vmem:[#allocation6 + $0x38] sm:$0xff]
    %v4693 = vld [vmem:[#allocation6 + $0x40] sm:$0xff]
    %v4694 = vld [vmem:[#allocation6 + $0x48] sm:$0xff]
    %v4695 = vld [vmem:[#allocation6 + $0x50] sm:$0xff]
    %v4696 = vld [vmem:[#allocation6 + $0x58] sm:$0xff]
    %v4697 = vld [vmem:[#allocation6 + $0x60] sm:$0xff]
    %v4698 = vld [vmem:[#allocation6 + $0x68] sm:$0xff]
    %v4699 = vld [vmem:[#allocation6 + $0x70] sm:$0xff]
    %v4700 = vld [vmem:[#allocation6 + $0x78] sm:$0xff]
    %v4701 = vld [vmem:[#allocation6 + $0x80] sm:$0xff]
    %v4702 = vld [vmem:[#allocation6 + $0x88] sm:$0xff]
    %v4703 = vld [vmem:[#allocation6 + $0x90] sm:$0xff]
    %v4704 = vld [vmem:[#allocation6 + $0x98] sm:$0xff]
    %v4705 = vld [vmem:[#allocation6 + $0xa0] sm:$0xff]
    %v4706 = vld [vmem:[#allocation6 + $0xa8] sm:$0xff]
    %v4707 = vld [vmem:[#allocation6 + $0xb0] sm:$0xff]
    %v4708 = vld [vmem:[#allocation6 + $0xb8] sm:$0xff]
    %v4709 = vld [vmem:[#allocation6 + $0xc0] sm:$0xff]
    %v4710 = vld [vmem:[#allocation6 + $0xc8] sm:$0xff]
    %v4711 = vld [vmem:[#allocation6 + $0xd0] sm:$0xff]
    %v4712 = vld [vmem:[#allocation6 + $0xd8] sm:$0xff]
    %v4713 = vld [vmem:[#allocation6 + $0xe0] sm:$0xff]
    %v4714 = vld [vmem:[#allocation6 + $0xe8] sm:$0xff]
    %v4715 = vld [vmem:[#allocation6 + $0xf0] sm:$0xff]
    %v4716 = vld [vmem:[#allocation6 + $0xf8] sm:$0xff]
    %v4749 = vunpack.c.l.b16 %v4685
    %v4750 = vunpack.c.h.b16 %v4685
    %v4751 = vunpack.c.l.b16 %v4686
    %v4752 = vunpack.c.h.b16 %v4686
    %v4753 = vunpack.c.l.b16 %v4687
    %v4754 = vunpack.c.h.b16 %v4687
    %v4755 = vunpack.c.l.b16 %v4688
    %v4756 = vunpack.c.h.b16 %v4688
    %v4757 = vunpack.c.l.b16 %v4689
    %v4758 = vunpack.c.h.b16 %v4689
    %v4759 = vunpack.c.l.b16 %v4690
    %v4760 = vunpack.c.h.b16 %v4690
    %v4761 = vunpack.c.l.b16 %v4691
    %v4762 = vunpack.c.h.b16 %v4691
    %v4763 = vunpack.c.l.b16 %v4692
    %v4764 = vunpack.c.h.b16 %v4692
    %v4765 = vunpack.c.l.b16 %v4693
    %v4766 = vunpack.c.h.b16 %v4693
    %v4767 = vunpack.c.l.b16 %v4694
    %v4768 = vunpack.c.h.b16 %v4694
    %v4769 = vunpack.c.l.b16 %v4695
    %v4770 = vunpack.c.h.b16 %v4695
    %v4771 = vunpack.c.l.b16 %v4696
    %v4772 = vunpack.c.h.b16 %v4696
    %v4773 = vunpack.c.l.b16 %v4697
    %v4774 = vunpack.c.h.b16 %v4697
    %v4775 = vunpack.c.l.b16 %v4698
    %v4776 = vunpack.c.h.b16 %v4698
    %v4777 = vunpack.c.l.b16 %v4699
    %v4778 = vunpack.c.h.b16 %v4699
    %v4779 = vunpack.c.l.b16 %v4700
    %v4780 = vunpack.c.h.b16 %v4700
    %v4781 = vunpack.c.l.b16 %v4701
    %v4782 = vunpack.c.h.b16 %v4701
    %v4783 = vunpack.c.l.b16 %v4702
    %v4784 = vunpack.c.h.b16 %v4702
    %v4785 = vunpack.c.l.b16 %v4703
    %v4786 = vunpack.c.h.b16 %v4703
    %v4787 = vunpack.c.l.b16 %v4704
    %v4788 = vunpack.c.h.b16 %v4704
    %v4789 = vunpack.c.l.b16 %v4705
    %v4790 = vunpack.c.h.b16 %v4705
    %v4791 = vunpack.c.l.b16 %v4706
    %v4792 = vunpack.c.h.b16 %v4706
    %v4793 = vunpack.c.l.b16 %v4707
    %v4794 = vunpack.c.h.b16 %v4707
    %v4795 = vunpack.c.l.b16 %v4708
    %v4796 = vunpack.c.h.b16 %v4708
    %v4797 = vunpack.c.l.b16 %v4709
    %v4798 = vunpack.c.h.b16 %v4709
    %v4799 = vunpack.c.l.b16 %v4710
    %v4800 = vunpack.c.h.b16 %v4710
    %v4801 = vunpack.c.l.b16 %v4711
    %v4802 = vunpack.c.h.b16 %v4711
    %v4803 = vunpack.c.l.b16 %v4712
    %v4804 = vunpack.c.h.b16 %v4712
    %v4805 = vunpack.c.l.b16 %v4713
    %v4806 = vunpack.c.h.b16 %v4713
    %v4807 = vunpack.c.l.b16 %v4714
    %v4808 = vunpack.c.h.b16 %v4714
    %v4809 = vunpack.c.l.b16 %v4715
    %v4810 = vunpack.c.h.b16 %v4715
    %v4811 = vunpack.c.l.b16 %v4716
    %v4812 = vunpack.c.h.b16 %v4716
    %v4813 = vpack.c.b16 %v4753, %v4749
    %v4814 = vpack.c.b16 %v4754, %v4750
    %v4815 = vpack.c.b16 %v4755, %v4751
    %v4816 = vpack.c.b16 %v4756, %v4752
    %v4817 = vpack.c.b16 %v4761, %v4757
    %v4818 = vpack.c.b16 %v4762, %v4758
    %v4819 = vpack.c.b16 %v4763, %v4759
    %v4820 = vpack.c.b16 %v4764, %v4760
    %v4821 = vpack.c.b16 %v4769, %v4765
    %v4822 = vpack.c.b16 %v4770, %v4766
    %v4823 = vpack.c.b16 %v4771, %v4767
    %v4824 = vpack.c.b16 %v4772, %v4768
    %v4825 = vpack.c.b16 %v4777, %v4773
    %v4826 = vpack.c.b16 %v4778, %v4774
    %v4827 = vpack.c.b16 %v4779, %v4775
    %v4828 = vpack.c.b16 %v4780, %v4776
    %v4829 = vpack.c.b16 %v4785, %v4781
    %v4830 = vpack.c.b16 %v4786, %v4782
    %v4831 = vpack.c.b16 %v4787, %v4783
    %v4832 = vpack.c.b16 %v4788, %v4784
    %v4833 = vpack.c.b16 %v4793, %v4789
    %v4834 = vpack.c.b16 %v4794, %v4790
    %v4835 = vpack.c.b16 %v4795, %v4791
    %v4836 = vpack.c.b16 %v4796, %v4792
    %v4837 = vpack.c.b16 %v4801, %v4797
    %v4838 = vpack.c.b16 %v4802, %v4798
    %v4839 = vpack.c.b16 %v4803, %v4799
    %v4840 = vpack.c.b16 %v4804, %v4800
    %v4841 = vpack.c.b16 %v4809, %v4805
    %v4842 = vpack.c.b16 %v4810, %v4806
    %v4843 = vpack.c.b16 %v4811, %v4807
    %v4844 = vpack.c.b16 %v4812, %v4808
    %4877 = vmatprep.subr.bf16.mxu0 %v4814
    %4878 = vmatpush1.bf16.msra.mxu0 %v4813
    %4879 = vmatprep.subr.bf16.mxu0 %v4818
    %4880 = vmatpush1.bf16.msra.mxu0 %v4817
    %4881 = vmatprep.subr.bf16.mxu0 %v4822
    %4882 = vmatpush1.bf16.msra.mxu0 %v4821
    %4883 = vmatprep.subr.bf16.mxu0 %v4826
    %4884 = vmatpush1.bf16.msra.mxu0 %v4825
    %4885 = vmatprep.subr.bf16.mxu0 %v4830
    %4886 = vmatpush1.bf16.msra.mxu0 %v4829
    %4887 = vmatprep.subr.bf16.mxu0 %v4834
    %4888 = vmatpush1.bf16.msra.mxu0 %v4833
    %4889 = vmatprep.subr.bf16.mxu0 %v4838
    %4890 = vmatpush1.bf16.msra.mxu0 %v4837
    %4891 = vmatprep.subr.bf16.mxu0 %v4842
    %4892 = vmatpush1.bf16.msra.mxu0 %v4841
    %4893 = vmatprep.subr.bf16.mxu0 0
    %4894 = vmatpush1.bf16.msra.mxu0 0
    %4895 = vmatprep.subr.bf16.mxu0 0
    %4896 = vmatpush1.bf16.msra.mxu0 0
    %4897 = vmatprep.subr.bf16.mxu0 0
    %4898 = vmatpush1.bf16.msra.mxu0 0
    %4899 = vmatprep.subr.bf16.mxu0 0
    %4900 = vmatpush1.bf16.msra.mxu0 0
    %4901 = vmatprep.subr.bf16.mxu0 0
    %4902 = vmatpush1.bf16.msra.mxu0 0
    %4903 = vmatprep.subr.bf16.mxu0 0
    %4904 = vmatpush1.bf16.msra.mxu0 0
    %4905 = vmatprep.subr.bf16.mxu0 0
    %4906 = vmatpush1.bf16.msra.mxu0 0
    %4907 = vmatprep.subr.bf16.mxu0 0
    %4908 = vmatpush1.bf16.msra.mxu0 0
    %4909 = vmatprep.mubr.bf16.mxu0 0
    %4910 = vmatmul.mubr.bf16.gmra.mrb[0].mxu0 %v4684
    %v4911 = vpop.f32.mrb[0].mxu0
    %v4912 = vadd.f32 0.0, %v4911
    %v4913 = vpop.f32.mrb[0].mxu0
    %v4914 = vadd.f32 0.0, %v4913
    %v4915 = vpop.f32.mrb[0].mxu0
    %v4916 = vpop.f32.mrb[0].mxu0
    %4917 = vdwg.mxu0
    %4918 = vmatprep.subr.bf16.mxu0 %v4816
    %4919 = vmatpush1.bf16.msra.mxu0 %v4815
    %4920 = vmatprep.subr.bf16.mxu0 %v4820
    %4921 = vmatpush1.bf16.msra.mxu0 %v4819
    %4922 = vmatprep.subr.bf16.mxu0 %v4824
    %4923 = vmatpush1.bf16.msra.mxu0 %v4823
    %4924 = vmatprep.subr.bf16.mxu0 %v4828
    %4925 = vmatpush1.bf16.msra.mxu0 %v4827
    %4926 = vmatprep.subr.bf16.mxu0 %v4832
    %4927 = vmatpush1.bf16.msra.mxu0 %v4831
    %4928 = vmatprep.subr.bf16.mxu0 %v4836
    %4929 = vmatpush1.bf16.msra.mxu0 %v4835
    %4930 = vmatprep.subr.bf16.mxu0 %v4840
    %4931 = vmatpush1.bf16.msra.mxu0 %v4839
    %4932 = vmatprep.subr.bf16.mxu0 %v4844
    %4933 = vmatpush1.bf16.msra.mxu0 %v4843
    %4934 = vmatprep.subr.bf16.mxu0 0
    %4935 = vmatpush1.bf16.msra.mxu0 0
    %4936 = vmatprep.subr.bf16.mxu0 0
    %4937 = vmatpush1.bf16.msra.mxu0 0
    %4938 = vmatprep.subr.bf16.mxu0 0
    %4939 = vmatpush1.bf16.msra.mxu0 0
    %4940 = vmatprep.subr.bf16.mxu0 0
    %4941 = vmatpush1.bf16.msra.mxu0 0
    %4942 = vmatprep.subr.bf16.mxu0 0
    %4943 = vmatpush1.bf16.msra.mxu0 0
    %4944 = vmatprep.subr.bf16.mxu0 0
    %4945 = vmatpush1.bf16.msra.mxu0 0
    %4946 = vmatprep.subr.bf16.mxu0 0
    %4947 = vmatpush1.bf16.msra.mxu0 0
    %4948 = vmatprep.subr.bf16.mxu0 0
    %4949 = vmatpush1.bf16.msra.mxu0 0
    %4950 = vmatprep.mubr.bf16.mxu0 0
    %4951 = vmatmul.mubr.bf16.gmra.mrb[0].mxu0 %v4684
    %v4952 = vpop.f32.mrb[0].mxu0
    %v4953 = vadd.f32 0.0, %v4952
    %v4954 = vpop.f32.mrb[0].mxu0
    %v4955 = vadd.f32 0.0, %v4954
    %v4956 = vpop.f32.mrb[0].mxu0
    %v4957 = vpop.f32.mrb[0].mxu0
    %4958 = vdwg.mxu0
    %v4959 = vadd.f32 %v4680, %v4912
    %v4960 = vadd.f32 %v4681, %v4914
    %v4961 = vadd.f32 %v4682, %v4953
    %v4962 = vadd.f32 %v4683, %v4955
    %v4963 = vxor.u32 %v4959, 2147483648
    %v4964 = vmul.f32 %v4963, 1.442695
    %v4965 = vpow.pop %v4964
    %v4966 = vadd.f32 %v4965, 1.0
    %v4967 = vrcp.pop %v4966
    %v4968 = vmul.f32 1.0, %v4967
    %v4969 = vxor.u32 %v4960, 2147483648
    %v4970 = vmul.f32 %v4969, 1.442695
    %v4971 = vpow.pop %v4970
    %v4972 = vadd.f32 %v4971, 1.0
    %v4973 = vrcp.pop %v4972
    %v4974 = vmul.f32 1.0, %v4973
    %v4975 = vtanh.pop %v4961
    %v4976 = vxor.u32 %v4962, 2147483648
    %v4977 = vmul.f32 %v4976, 1.442695
    %v4978 = vpow.pop %v4977
    %v4979 = vadd.f32 %v4978, 1.0
    %v4980 = vrcp.pop %v4979
    %v4981 = vmul.f32 1.0, %v4980
    %v4982 = vmul.f32 %v4974, %v4672
    %v4983 = vmul.f32 %v4968, %v4975
    %v4984 = vadd.f32 %v4982, %v4983
    %v4985 = vtanh.pop %v4984
    %v4986 = vmul.f32 %v4981, %v4985
    %s4987 = scalar_lea.vmem [#allocation3], 104
    %4988 = vst [vmem:[%s4987] sm:$0xff] %v4986
    %s4989 = smul.u32 14, 4
    %s4990 = smul.addr %s4989, 8
    %s4991 = scalar_lea.vmem [#allocation2], %s4990
    %v4992 = vld [vmem:[%s4991] sm:$0xff]
    %v4993 = vld [vmem:[%s4991 + $0x8] sm:$0xff]
    %v4994 = vld [vmem:[%s4991 + $0x10] sm:$0xff]
    %v4995 = vld [vmem:[%s4991 + $0x18] sm:$0xff]
    %v4996 = vpack.c.bf16 %v4986, %v4986
    %v4997 = vld [vmem:[#allocation6] sm:$0xff]
    %v4998 = vld [vmem:[#allocation6 + $0x8] sm:$0xff]
    %v4999 = vld [vmem:[#allocation6 + $0x10] sm:$0xff]
    %v5000 = vld [vmem:[#allocation6 + $0x18] sm:$0xff]
    %v5001 = vld [vmem:[#allocation6 + $0x20] sm:$0xff]
    %v5002 = vld [vmem:[#allocation6 + $0x28] sm:$0xff]
    %v5003 = vld [vmem:[#allocation6 + $0x30] sm:$0xff]
    %v5004 = vld [vmem:[#allocation6 + $0x38] sm:$0xff]
    %v5005 = vld [vmem:[#allocation6 + $0x40] sm:$0xff]
    %v5006 = vld [vmem:[#allocation6 + $0x48] sm:$0xff]
    %v5007 = vld [vmem:[#allocation6 + $0x50] sm:$0xff]
    %v5008 = vld [vmem:[#allocation6 + $0x58] sm:$0xff]
    %v5009 = vld [vmem:[#allocation6 + $0x60] sm:$0xff]
    %v5010 = vld [vmem:[#allocation6 + $0x68] sm:$0xff]
    %v5011 = vld [vmem:[#allocation6 + $0x70] sm:$0xff]
    %v5012 = vld [vmem:[#allocation6 + $0x78] sm:$0xff]
    %v5013 = vld [vmem:[#allocation6 + $0x80] sm:$0xff]
    %v5014 = vld [vmem:[#allocation6 + $0x88] sm:$0xff]
    %v5015 = vld [vmem:[#allocation6 + $0x90] sm:$0xff]
    %v5016 = vld [vmem:[#allocation6 + $0x98] sm:$0xff]
    %v5017 = vld [vmem:[#allocation6 + $0xa0] sm:$0xff]
    %v5018 = vld [vmem:[#allocation6 + $0xa8] sm:$0xff]
    %v5019 = vld [vmem:[#allocation6 + $0xb0] sm:$0xff]
    %v5020 = vld [vmem:[#allocation6 + $0xb8] sm:$0xff]
    %v5021 = vld [vmem:[#allocation6 + $0xc0] sm:$0xff]
    %v5022 = vld [vmem:[#allocation6 + $0xc8] sm:$0xff]
    %v5023 = vld [vmem:[#allocation6 + $0xd0] sm:$0xff]
    %v5024 = vld [vmem:[#allocation6 + $0xd8] sm:$0xff]
    %v5025 = vld [vmem:[#allocation6 + $0xe0] sm:$0xff]
    %v5026 = vld [vmem:[#allocation6 + $0xe8] sm:$0xff]
    %v5027 = vld [vmem:[#allocation6 + $0xf0] sm:$0xff]
    %v5028 = vld [vmem:[#allocation6 + $0xf8] sm:$0xff]
    %v5061 = vunpack.c.l.b16 %v4997
    %v5062 = vunpack.c.h.b16 %v4997
    %v5063 = vunpack.c.l.b16 %v4998
    %v5064 = vunpack.c.h.b16 %v4998
    %v5065 = vunpack.c.l.b16 %v4999
    %v5066 = vunpack.c.h.b16 %v4999
    %v5067 = vunpack.c.l.b16 %v5000
    %v5068 = vunpack.c.h.b16 %v5000
    %v5069 = vunpack.c.l.b16 %v5001
    %v5070 = vunpack.c.h.b16 %v5001
    %v5071 = vunpack.c.l.b16 %v5002
    %v5072 = vunpack.c.h.b16 %v5002
    %v5073 = vunpack.c.l.b16 %v5003
    %v5074 = vunpack.c.h.b16 %v5003
    %v5075 = vunpack.c.l.b16 %v5004
    %v5076 = vunpack.c.h.b16 %v5004
    %v5077 = vunpack.c.l.b16 %v5005
    %v5078 = vunpack.c.h.b16 %v5005
    %v5079 = vunpack.c.l.b16 %v5006
    %v5080 = vunpack.c.h.b16 %v5006
    %v5081 = vunpack.c.l.b16 %v5007
    %v5082 = vunpack.c.h.b16 %v5007
    %v5083 = vunpack.c.l.b16 %v5008
    %v5084 = vunpack.c.h.b16 %v5008
    %v5085 = vunpack.c.l.b16 %v5009
    %v5086 = vunpack.c.h.b16 %v5009
    %v5087 = vunpack.c.l.b16 %v5010
    %v5088 = vunpack.c.h.b16 %v5010
    %v5089 = vunpack.c.l.b16 %v5011
    %v5090 = vunpack.c.h.b16 %v5011
    %v5091 = vunpack.c.l.b16 %v5012
    %v5092 = vunpack.c.h.b16 %v5012
    %v5093 = vunpack.c.l.b16 %v5013
    %v5094 = vunpack.c.h.b16 %v5013
    %v5095 = vunpack.c.l.b16 %v5014
    %v5096 = vunpack.c.h.b16 %v5014
    %v5097 = vunpack.c.l.b16 %v5015
    %v5098 = vunpack.c.h.b16 %v5015
    %v5099 = vunpack.c.l.b16 %v5016
    %v5100 = vunpack.c.h.b16 %v5016
    %v5101 = vunpack.c.l.b16 %v5017
    %v5102 = vunpack.c.h.b16 %v5017
    %v5103 = vunpack.c.l.b16 %v5018
    %v5104 = vunpack.c.h.b16 %v5018
    %v5105 = vunpack.c.l.b16 %v5019
    %v5106 = vunpack.c.h.b16 %v5019
    %v5107 = vunpack.c.l.b16 %v5020
    %v5108 = vunpack.c.h.b16 %v5020
    %v5109 = vunpack.c.l.b16 %v5021
    %v5110 = vunpack.c.h.b16 %v5021
    %v5111 = vunpack.c.l.b16 %v5022
    %v5112 = vunpack.c.h.b16 %v5022
    %v5113 = vunpack.c.l.b16 %v5023
    %v5114 = vunpack.c.h.b16 %v5023
    %v5115 = vunpack.c.l.b16 %v5024
    %v5116 = vunpack.c.h.b16 %v5024
    %v5117 = vunpack.c.l.b16 %v5025
    %v5118 = vunpack.c.h.b16 %v5025
    %v5119 = vunpack.c.l.b16 %v5026
    %v5120 = vunpack.c.h.b16 %v5026
    %v5121 = vunpack.c.l.b16 %v5027
    %v5122 = vunpack.c.h.b16 %v5027
    %v5123 = vunpack.c.l.b16 %v5028
    %v5124 = vunpack.c.h.b16 %v5028
    %v5125 = vpack.c.b16 %v5065, %v5061
    %v5126 = vpack.c.b16 %v5066, %v5062
    %v5127 = vpack.c.b16 %v5067, %v5063
    %v5128 = vpack.c.b16 %v5068, %v5064
    %v5129 = vpack.c.b16 %v5073, %v5069
    %v5130 = vpack.c.b16 %v5074, %v5070
    %v5131 = vpack.c.b16 %v5075, %v5071
    %v5132 = vpack.c.b16 %v5076, %v5072
    %v5133 = vpack.c.b16 %v5081, %v5077
    %v5134 = vpack.c.b16 %v5082, %v5078
    %v5135 = vpack.c.b16 %v5083, %v5079
    %v5136 = vpack.c.b16 %v5084, %v5080
    %v5137 = vpack.c.b16 %v5089, %v5085
    %v5138 = vpack.c.b16 %v5090, %v5086
    %v5139 = vpack.c.b16 %v5091, %v5087
    %v5140 = vpack.c.b16 %v5092, %v5088
    %v5141 = vpack.c.b16 %v5097, %v5093
    %v5142 = vpack.c.b16 %v5098, %v5094
    %v5143 = vpack.c.b16 %v5099, %v5095
    %v5144 = vpack.c.b16 %v5100, %v5096
    %v5145 = vpack.c.b16 %v5105, %v5101
    %v5146 = vpack.c.b16 %v5106, %v5102
    %v5147 = vpack.c.b16 %v5107, %v5103
    %v5148 = vpack.c.b16 %v5108, %v5104
    %v5149 = vpack.c.b16 %v5113, %v5109
    %v5150 = vpack.c.b16 %v5114, %v5110
    %v5151 = vpack.c.b16 %v5115, %v5111
    %v5152 = vpack.c.b16 %v5116, %v5112
    %v5153 = vpack.c.b16 %v5121, %v5117
    %v5154 = vpack.c.b16 %v5122, %v5118
    %v5155 = vpack.c.b16 %v5123, %v5119
    %v5156 = vpack.c.b16 %v5124, %v5120
    %5189 = vmatprep.subr.bf16.mxu0 %v5126
    %5190 = vmatpush1.bf16.msra.mxu0 %v5125
    %5191 = vmatprep.subr.bf16.mxu0 %v5130
    %5192 = vmatpush1.bf16.msra.mxu0 %v5129
    %5193 = vmatprep.subr.bf16.mxu0 %v5134
    %5194 = vmatpush1.bf16.msra.mxu0 %v5133
    %5195 = vmatprep.subr.bf16.mxu0 %v5138
    %5196 = vmatpush1.bf16.msra.mxu0 %v5137
    %5197 = vmatprep.subr.bf16.mxu0 %v5142
    %5198 = vmatpush1.bf16.msra.mxu0 %v5141
    %5199 = vmatprep.subr.bf16.mxu0 %v5146
    %5200 = vmatpush1.bf16.msra.mxu0 %v5145
    %5201 = vmatprep.subr.bf16.mxu0 %v5150
    %5202 = vmatpush1.bf16.msra.mxu0 %v5149
    %5203 = vmatprep.subr.bf16.mxu0 %v5154
    %5204 = vmatpush1.bf16.msra.mxu0 %v5153
    %5205 = vmatprep.subr.bf16.mxu0 0
    %5206 = vmatpush1.bf16.msra.mxu0 0
    %5207 = vmatprep.subr.bf16.mxu0 0
    %5208 = vmatpush1.bf16.msra.mxu0 0
    %5209 = vmatprep.subr.bf16.mxu0 0
    %5210 = vmatpush1.bf16.msra.mxu0 0
    %5211 = vmatprep.subr.bf16.mxu0 0
    %5212 = vmatpush1.bf16.msra.mxu0 0
    %5213 = vmatprep.subr.bf16.mxu0 0
    %5214 = vmatpush1.bf16.msra.mxu0 0
    %5215 = vmatprep.subr.bf16.mxu0 0
    %5216 = vmatpush1.bf16.msra.mxu0 0
    %5217 = vmatprep.subr.bf16.mxu0 0
    %5218 = vmatpush1.bf16.msra.mxu0 0
    %5219 = vmatprep.subr.bf16.mxu0 0
    %5220 = vmatpush1.bf16.msra.mxu0 0
    %5221 = vmatprep.mubr.bf16.mxu0 0
    %5222 = vmatmul.mubr.bf16.gmra.mrb[0].mxu0 %v4996
    %v5223 = vpop.f32.mrb[0].mxu0
    %v5224 = vadd.f32 0.0, %v5223
    %v5225 = vpop.f32.mrb[0].mxu0
    %v5226 = vadd.f32 0.0, %v5225
    %v5227 = vpop.f32.mrb[0].mxu0
    %v5228 = vpop.f32.mrb[0].mxu0
    %5229 = vdwg.mxu0
    %5230 = vmatprep.subr.bf16.mxu0 %v5128
    %5231 = vmatpush1.bf16.msra.mxu0 %v5127
    %5232 = vmatprep.subr.bf16.mxu0 %v5132
    %5233 = vmatpush1.bf16.msra.mxu0 %v5131
    %5234 = vmatprep.subr.bf16.mxu0 %v5136
    %5235 = vmatpush1.bf16.msra.mxu0 %v5135
    %5236 = vmatprep.subr.bf16.mxu0 %v5140
    %5237 = vmatpush1.bf16.msra.mxu0 %v5139
    %5238 = vmatprep.subr.bf16.mxu0 %v5144
    %5239 = vmatpush1.bf16.msra.mxu0 %v5143
    %5240 = vmatprep.subr.bf16.mxu0 %v5148
    %5241 = vmatpush1.bf16.msra.mxu0 %v5147
    %5242 = vmatprep.subr.bf16.mxu0 %v5152
    %5243 = vmatpush1.bf16.msra.mxu0 %v5151
    %5244 = vmatprep.subr.bf16.mxu0 %v5156
    %5245 = vmatpush1.bf16.msra.mxu0 %v5155
    %5246 = vmatprep.subr.bf16.mxu0 0
    %5247 = vmatpush1.bf16.msra.mxu0 0
    %5248 = vmatprep.subr.bf16.mxu0 0
    %5249 = vmatpush1.bf16.msra.mxu0 0
    %5250 = vmatprep.subr.bf16.mxu0 0
    %5251 = vmatpush1.bf16.msra.mxu0 0
    %5252 = vmatprep.subr.bf16.mxu0 0
    %5253 = vmatpush1.bf16.msra.mxu0 0
    %5254 = vmatprep.subr.bf16.mxu0 0
    %5255 = vmatpush1.bf16.msra.mxu0 0
    %5256 = vmatprep.subr.bf16.mxu0 0
    %5257 = vmatpush1.bf16.msra.mxu0 0
    %5258 = vmatprep.subr.bf16.mxu0 0
    %5259 = vmatpush1.bf16.msra.mxu0 0
    %5260 = vmatprep.subr.bf16.mxu0 0
    %5261 = vmatpush1.bf16.msra.mxu0 0
    %5262 = vmatprep.mubr.bf16.mxu0 0
    %5263 = vmatmul.mubr.bf16.gmra.mrb[0].mxu0 %v4996
    %v5264 = vpop.f32.mrb[0].mxu0
    %v5265 = vadd.f32 0.0, %v5264
    %v5266 = vpop.f32.mrb[0].mxu0
    %v5267 = vadd.f32 0.0, %v5266
    %v5268 = vpop.f32.mrb[0].mxu0
    %v5269 = vpop.f32.mrb[0].mxu0
    %5270 = vdwg.mxu0
    %v5271 = vadd.f32 %v4992, %v5224
    %v5272 = vadd.f32 %v4993, %v5226
    %v5273 = vadd.f32 %v4994, %v5265
    %v5274 = vadd.f32 %v4995, %v5267
    %v5275 = vxor.u32 %v5271, 2147483648
    %v5276 = vmul.f32 %v5275, 1.442695
    %v5277 = vpow.pop %v5276
    %v5278 = vadd.f32 %v5277, 1.0
    %v5279 = vrcp.pop %v5278
    %v5280 = vmul.f32 1.0, %v5279
    %v5281 = vxor.u32 %v5272, 2147483648
    %v5282 = vmul.f32 %v5281, 1.442695
    %v5283 = vpow.pop %v5282
    %v5284 = vadd.f32 %v5283, 1.0
    %v5285 = vrcp.pop %v5284
    %v5286 = vmul.f32 1.0, %v5285
    %v5287 = vtanh.pop %v5273
    %v5288 = vxor.u32 %v5274, 2147483648
    %v5289 = vmul.f32 %v5288, 1.442695
    %v5290 = vpow.pop %v5289
    %v5291 = vadd.f32 %v5290, 1.0
    %v5292 = vrcp.pop %v5291
    %v5293 = vmul.f32 1.0, %v5292
    %v5294 = vmul.f32 %v5286, %v4984
    %v5295 = vmul.f32 %v5280, %v5287
    %v5296 = vadd.f32 %v5294, %v5295
    %v5297 = vtanh.pop %v5296
    %v5298 = vmul.f32 %v5293, %v5297
    %s5299 = scalar_lea.vmem [#allocation3], 112
    %5300 = vst [vmem:[%s5299] sm:$0xff] %v5298
    %s5301 = smul.u32 15, 4
    %s5302 = smul.addr %s5301, 8
    %s5303 = scalar_lea.vmem [#allocation2], %s5302
    %v5304 = vld [vmem:[%s5303] sm:$0xff]
    %v5305 = vld [vmem:[%s5303 + $0x8] sm:$0xff]
    %v5306 = vld [vmem:[%s5303 + $0x10] sm:$0xff]
    %v5307 = vld [vmem:[%s5303 + $0x18] sm:$0xff]
    %v5308 = vpack.c.bf16 %v5298, %v5298
    %v5309 = vld [vmem:[#allocation6] sm:$0xff]
    %v5310 = vld [vmem:[#allocation6 + $0x8] sm:$0xff]
    %v5311 = vld [vmem:[#allocation6 + $0x10] sm:$0xff]
    %v5312 = vld [vmem:[#allocation6 + $0x18] sm:$0xff]
    %v5313 = vld [vmem:[#allocation6 + $0x20] sm:$0xff]
    %v5314 = vld [vmem:[#allocation6 + $0x28] sm:$0xff]
    %v5315 = vld [vmem:[#allocation6 + $0x30] sm:$0xff]
    %v5316 = vld [vmem:[#allocation6 + $0x38] sm:$0xff]
    %v5317 = vld [vmem:[#allocation6 + $0x40] sm:$0xff]
    %v5318 = vld [vmem:[#allocation6 + $0x48] sm:$0xff]
    %v5319 = vld [vmem:[#allocation6 + $0x50] sm:$0xff]
    %v5320 = vld [vmem:[#allocation6 + $0x58] sm:$0xff]
    %v5321 = vld [vmem:[#allocation6 + $0x60] sm:$0xff]
    %v5322 = vld [vmem:[#allocation6 + $0x68] sm:$0xff]
    %v5323 = vld [vmem:[#allocation6 + $0x70] sm:$0xff]
    %v5324 = vld [vmem:[#allocation6 + $0x78] sm:$0xff]
    %v5325 = vld [vmem:[#allocation6 + $0x80] sm:$0xff]
    %v5326 = vld [vmem:[#allocation6 + $0x88] sm:$0xff]
    %v5327 = vld [vmem:[#allocation6 + $0x90] sm:$0xff]
    %v5328 = vld [vmem:[#allocation6 + $0x98] sm:$0xff]
    %v5329 = vld [vmem:[#allocation6 + $0xa0] sm:$0xff]
    %v5330 = vld [vmem:[#allocation6 + $0xa8] sm:$0xff]
    %v5331 = vld [vmem:[#allocation6 + $0xb0] sm:$0xff]
    %v5332 = vld [vmem:[#allocation6 + $0xb8] sm:$0xff]
    %v5333 = vld [vmem:[#allocation6 + $0xc0] sm:$0xff]
    %v5334 = vld [vmem:[#allocation6 + $0xc8] sm:$0xff]
    %v5335 = vld [vmem:[#allocation6 + $0xd0] sm:$0xff]
    %v5336 = vld [vmem:[#allocation6 + $0xd8] sm:$0xff]
    %v5337 = vld [vmem:[#allocation6 + $0xe0] sm:$0xff]
    %v5338 = vld [vmem:[#allocation6 + $0xe8] sm:$0xff]
    %v5339 = vld [vmem:[#allocation6 + $0xf0] sm:$0xff]
    %v5340 = vld [vmem:[#allocation6 + $0xf8] sm:$0xff]
    %v5373 = vunpack.c.l.b16 %v5309
    %v5374 = vunpack.c.h.b16 %v5309
    %v5375 = vunpack.c.l.b16 %v5310
    %v5376 = vunpack.c.h.b16 %v5310
    %v5377 = vunpack.c.l.b16 %v5311
    %v5378 = vunpack.c.h.b16 %v5311
    %v5379 = vunpack.c.l.b16 %v5312
    %v5380 = vunpack.c.h.b16 %v5312
    %v5381 = vunpack.c.l.b16 %v5313
    %v5382 = vunpack.c.h.b16 %v5313
    %v5383 = vunpack.c.l.b16 %v5314
    %v5384 = vunpack.c.h.b16 %v5314
    %v5385 = vunpack.c.l.b16 %v5315
    %v5386 = vunpack.c.h.b16 %v5315
    %v5387 = vunpack.c.l.b16 %v5316
    %v5388 = vunpack.c.h.b16 %v5316
    %v5389 = vunpack.c.l.b16 %v5317
    %v5390 = vunpack.c.h.b16 %v5317
    %v5391 = vunpack.c.l.b16 %v5318
    %v5392 = vunpack.c.h.b16 %v5318
    %v5393 = vunpack.c.l.b16 %v5319
    %v5394 = vunpack.c.h.b16 %v5319
    %v5395 = vunpack.c.l.b16 %v5320
    %v5396 = vunpack.c.h.b16 %v5320
    %v5397 = vunpack.c.l.b16 %v5321
    %v5398 = vunpack.c.h.b16 %v5321
    %v5399 = vunpack.c.l.b16 %v5322
    %v5400 = vunpack.c.h.b16 %v5322
    %v5401 = vunpack.c.l.b16 %v5323
    %v5402 = vunpack.c.h.b16 %v5323
    %v5403 = vunpack.c.l.b16 %v5324
    %v5404 = vunpack.c.h.b16 %v5324
    %v5405 = vunpack.c.l.b16 %v5325
    %v5406 = vunpack.c.h.b16 %v5325
    %v5407 = vunpack.c.l.b16 %v5326
    %v5408 = vunpack.c.h.b16 %v5326
    %v5409 = vunpack.c.l.b16 %v5327
    %v5410 = vunpack.c.h.b16 %v5327
    %v5411 = vunpack.c.l.b16 %v5328
    %v5412 = vunpack.c.h.b16 %v5328
    %v5413 = vunpack.c.l.b16 %v5329
    %v5414 = vunpack.c.h.b16 %v5329
    %v5415 = vunpack.c.l.b16 %v5330
    %v5416 = vunpack.c.h.b16 %v5330
    %v5417 = vunpack.c.l.b16 %v5331
    %v5418 = vunpack.c.h.b16 %v5331
    %v5419 = vunpack.c.l.b16 %v5332
    %v5420 = vunpack.c.h.b16 %v5332
    %v5421 = vunpack.c.l.b16 %v5333
    %v5422 = vunpack.c.h.b16 %v5333
    %v5423 = vunpack.c.l.b16 %v5334
    %v5424 = vunpack.c.h.b16 %v5334
    %v5425 = vunpack.c.l.b16 %v5335
    %v5426 = vunpack.c.h.b16 %v5335
    %v5427 = vunpack.c.l.b16 %v5336
    %v5428 = vunpack.c.h.b16 %v5336
    %v5429 = vunpack.c.l.b16 %v5337
    %v5430 = vunpack.c.h.b16 %v5337
    %v5431 = vunpack.c.l.b16 %v5338
    %v5432 = vunpack.c.h.b16 %v5338
    %v5433 = vunpack.c.l.b16 %v5339
    %v5434 = vunpack.c.h.b16 %v5339
    %v5435 = vunpack.c.l.b16 %v5340
    %v5436 = vunpack.c.h.b16 %v5340
    %v5437 = vpack.c.b16 %v5377, %v5373
    %v5438 = vpack.c.b16 %v5378, %v5374
    %v5439 = vpack.c.b16 %v5379, %v5375
    %v5440 = vpack.c.b16 %v5380, %v5376
    %v5441 = vpack.c.b16 %v5385, %v5381
    %v5442 = vpack.c.b16 %v5386, %v5382
    %v5443 = vpack.c.b16 %v5387, %v5383
    %v5444 = vpack.c.b16 %v5388, %v5384
    %v5445 = vpack.c.b16 %v5393, %v5389
    %v5446 = vpack.c.b16 %v5394, %v5390
    %v5447 = vpack.c.b16 %v5395, %v5391
    %v5448 = vpack.c.b16 %v5396, %v5392
    %v5449 = vpack.c.b16 %v5401, %v5397
    %v5450 = vpack.c.b16 %v5402, %v5398
    %v5451 = vpack.c.b16 %v5403, %v5399
    %v5452 = vpack.c.b16 %v5404, %v5400
    %v5453 = vpack.c.b16 %v5409, %v5405
    %v5454 = vpack.c.b16 %v5410, %v5406
    %v5455 = vpack.c.b16 %v5411, %v5407
    %v5456 = vpack.c.b16 %v5412, %v5408
    %v5457 = vpack.c.b16 %v5417, %v5413
    %v5458 = vpack.c.b16 %v5418, %v5414
    %v5459 = vpack.c.b16 %v5419, %v5415
    %v5460 = vpack.c.b16 %v5420, %v5416
    %v5461 = vpack.c.b16 %v5425, %v5421
    %v5462 = vpack.c.b16 %v5426, %v5422
    %v5463 = vpack.c.b16 %v5427, %v5423
    %v5464 = vpack.c.b16 %v5428, %v5424
    %v5465 = vpack.c.b16 %v5433, %v5429
    %v5466 = vpack.c.b16 %v5434, %v5430
    %v5467 = vpack.c.b16 %v5435, %v5431
    %v5468 = vpack.c.b16 %v5436, %v5432
    %5501 = vmatprep.subr.bf16.mxu0 %v5438
    %5502 = vmatpush1.bf16.msra.mxu0 %v5437
    %5503 = vmatprep.subr.bf16.mxu0 %v5442
    %5504 = vmatpush1.bf16.msra.mxu0 %v5441
    %5505 = vmatprep.subr.bf16.mxu0 %v5446
    %5506 = vmatpush1.bf16.msra.mxu0 %v5445
    %5507 = vmatprep.subr.bf16.mxu0 %v5450
    %5508 = vmatpush1.bf16.msra.mxu0 %v5449
    %5509 = vmatprep.subr.bf16.mxu0 %v5454
    %5510 = vmatpush1.bf16.msra.mxu0 %v5453
    %5511 = vmatprep.subr.bf16.mxu0 %v5458
    %5512 = vmatpush1.bf16.msra.mxu0 %v5457
    %5513 = vmatprep.subr.bf16.mxu0 %v5462
    %5514 = vmatpush1.bf16.msra.mxu0 %v5461
    %5515 = vmatprep.subr.bf16.mxu0 %v5466
    %5516 = vmatpush1.bf16.msra.mxu0 %v5465
    %5517 = vmatprep.subr.bf16.mxu0 0
    %5518 = vmatpush1.bf16.msra.mxu0 0
    %5519 = vmatprep.subr.bf16.mxu0 0
    %5520 = vmatpush1.bf16.msra.mxu0 0
    %5521 = vmatprep.subr.bf16.mxu0 0
    %5522 = vmatpush1.bf16.msra.mxu0 0
    %5523 = vmatprep.subr.bf16.mxu0 0
    %5524 = vmatpush1.bf16.msra.mxu0 0
    %5525 = vmatprep.subr.bf16.mxu0 0
    %5526 = vmatpush1.bf16.msra.mxu0 0
    %5527 = vmatprep.subr.bf16.mxu0 0
    %5528 = vmatpush1.bf16.msra.mxu0 0
    %5529 = vmatprep.subr.bf16.mxu0 0
    %5530 = vmatpush1.bf16.msra.mxu0 0
    %5531 = vmatprep.subr.bf16.mxu0 0
    %5532 = vmatpush1.bf16.msra.mxu0 0
    %5533 = vmatprep.mubr.bf16.mxu0 0
    %5534 = vmatmul.mubr.bf16.gmra.mrb[0].mxu0 %v5308
    %v5535 = vpop.f32.mrb[0].mxu0
    %v5536 = vadd.f32 0.0, %v5535
    %v5537 = vpop.f32.mrb[0].mxu0
    %v5538 = vadd.f32 0.0, %v5537
    %v5539 = vpop.f32.mrb[0].mxu0
    %v5540 = vpop.f32.mrb[0].mxu0
    %5541 = vdwg.mxu0
    %5542 = vmatprep.subr.bf16.mxu0 %v5440
    %5543 = vmatpush1.bf16.msra.mxu0 %v5439
    %5544 = vmatprep.subr.bf16.mxu0 %v5444
    %5545 = vmatpush1.bf16.msra.mxu0 %v5443
    %5546 = vmatprep.subr.bf16.mxu0 %v5448
    %5547 = vmatpush1.bf16.msra.mxu0 %v5447
    %5548 = vmatprep.subr.bf16.mxu0 %v5452
    %5549 = vmatpush1.bf16.msra.mxu0 %v5451
    %5550 = vmatprep.subr.bf16.mxu0 %v5456
    %5551 = vmatpush1.bf16.msra.mxu0 %v5455
    %5552 = vmatprep.subr.bf16.mxu0 %v5460
    %5553 = vmatpush1.bf16.msra.mxu0 %v5459
    %5554 = vmatprep.subr.bf16.mxu0 %v5464
    %5555 = vmatpush1.bf16.msra.mxu0 %v5463
    %5556 = vmatprep.subr.bf16.mxu0 %v5468
    %5557 = vmatpush1.bf16.msra.mxu0 %v5467
    %5558 = vmatprep.subr.bf16.mxu0 0
    %5559 = vmatpush1.bf16.msra.mxu0 0
    %5560 = vmatprep.subr.bf16.mxu0 0
    %5561 = vmatpush1.bf16.msra.mxu0 0
    %5562 = vmatprep.subr.bf16.mxu0 0
    %5563 = vmatpush1.bf16.msra.mxu0 0
    %5564 = vmatprep.subr.bf16.mxu0 0
    %5565 = vmatpush1.bf16.msra.mxu0 0
    %5566 = vmatprep.subr.bf16.mxu0 0
    %5567 = vmatpush1.bf16.msra.mxu0 0
    %5568 = vmatprep.subr.bf16.mxu0 0
    %5569 = vmatpush1.bf16.msra.mxu0 0
    %5570 = vmatprep.subr.bf16.mxu0 0
    %5571 = vmatpush1.bf16.msra.mxu0 0
    %5572 = vmatprep.subr.bf16.mxu0 0
    %5573 = vmatpush1.bf16.msra.mxu0 0
    %5574 = vmatprep.mubr.bf16.mxu0 0
    %5575 = vmatmul.mubr.bf16.gmra.mrb[0].mxu0 %v5308
    %v5576 = vpop.f32.mrb[0].mxu0
    %v5577 = vadd.f32 0.0, %v5576
    %v5578 = vpop.f32.mrb[0].mxu0
    %v5579 = vadd.f32 0.0, %v5578
    %v5580 = vpop.f32.mrb[0].mxu0
    %v5581 = vpop.f32.mrb[0].mxu0
    %5582 = vdwg.mxu0
    %v5583 = vadd.f32 %v5304, %v5536
    %v5584 = vadd.f32 %v5305, %v5538
    %v5585 = vadd.f32 %v5306, %v5577
    %v5586 = vadd.f32 %v5307, %v5579
    %v5587 = vxor.u32 %v5583, 2147483648
    %v5588 = vmul.f32 %v5587, 1.442695
    %v5589 = vpow.pop %v5588
    %v5590 = vadd.f32 %v5589, 1.0
    %v5591 = vrcp.pop %v5590
    %v5592 = vmul.f32 1.0, %v5591
    %v5593 = vxor.u32 %v5584, 2147483648
    %v5594 = vmul.f32 %v5593, 1.442695
    %v5595 = vpow.pop %v5594
    %v5596 = vadd.f32 %v5595, 1.0
    %v5597 = vrcp.pop %v5596
    %v5598 = vmul.f32 1.0, %v5597
    %v5599 = vtanh.pop %v5585
    %v5600 = vxor.u32 %v5586, 2147483648
    %v5601 = vmul.f32 %v5600, 1.442695
    %v5602 = vpow.pop %v5601
    %v5603 = vadd.f32 %v5602, 1.0
    %v5604 = vrcp.pop %v5603
    %v5605 = vmul.f32 1.0, %v5604
    %v5606 = vmul.f32 %v5598, %v5296
    %v5607 = vmul.f32 %v5592, %v5599
    %v5608 = vadd.f32 %v5606, %v5607
    %v5609 = vtanh.pop %v5608
    %v5610 = vmul.f32 %v5605, %v5609
    %s5611 = scalar_lea.vmem [#allocation3], 120
    %5612 = vst [vmem:[%s5611] sm:$0xff] %v5610
    %v5613 = vld [vmem:[#allocation4] sm:$0xf]
    %v5614 = vld [vmem:[#allocation4 + $0x4] sm:$0xf]
    %v5615 = vld [vmem:[#allocation4 + $0x8] sm:$0xf]
    %v5616 = vld [vmem:[#allocation3] sm:$0xff]
    %v5617 = vld [vmem:[#allocation3 + $0x8] sm:$0xff]
    %v5618 = vld [vmem:[#allocation3 + $0x10] sm:$0xff]
    %v5619 = vld [vmem:[#allocation3 + $0x18] sm:$0xff]
    %v5620 = vld [vmem:[#allocation3 + $0x20] sm:$0xff]
    %v5621 = vld [vmem:[#allocation3 + $0x28] sm:$0xff]
    %v5622 = vld [vmem:[#allocation3 + $0x30] sm:$0xff]
    %v5623 = vld [vmem:[#allocation3 + $0x38] sm:$0xff]
    %v5624 = vld [vmem:[#allocation3 + $0x40] sm:$0xff]
    %v5625 = vld [vmem:[#allocation3 + $0x48] sm:$0xff]
    %v5626 = vld [vmem:[#allocation3 + $0x50] sm:$0xff]
    %v5627 = vld [vmem:[#allocation3 + $0x58] sm:$0xff]
    %v5628 = vld [vmem:[#allocation3 + $0x60] sm:$0xff]
    %v5629 = vld [vmem:[#allocation3 + $0x68] sm:$0xff]
    %v5630 = vld [vmem:[#allocation3 + $0x70] sm:$0xff]
    %v5631 = vld [vmem:[#allocation3 + $0x78] sm:$0xff]
    %v5632 = vpack.c.bf16 %v5617, %v5616
    %v5633 = vpack.c.bf16 %v5619, %v5618
    %v5634 = vpack.c.bf16 %v5621, %v5620
    %v5635 = vpack.c.bf16 %v5623, %v5622
    %v5636 = vpack.c.bf16 %v5625, %v5624
    %v5637 = vpack.c.bf16 %v5627, %v5626
    %v5638 = vpack.c.bf16 %v5629, %v5628
    %v5639 = vpack.c.bf16 %v5631, %v5630
    %v5643 = vunpack.c.l.b16 %v5613
    %v5644 = vunpack.c.l.b16 %v5614
    %v5645 = vunpack.c.l.b16 %v5615
    %v5646 = vpack.c.b16 %v5644, %v5643
    %v5647 = vpack.c.b16 %v5645, %v5645
    %5650 = vmatprep.subr.bf16.mxu0 0
    %5651 = vmatpush1.bf16.msra.mxu0 %v5632
    %5652 = vmatprep.subr.bf16.mxu0 0
    %5653 = vmatpush1.bf16.msra.mxu0 %v5633
    %5654 = vmatprep.subr.bf16.mxu0 0
    %5655 = vmatpush1.bf16.msra.mxu0 %v5634
    %5656 = vmatprep.subr.bf16.mxu0 0
    %5657 = vmatpush1.bf16.msra.mxu0 %v5635
    %5658 = vmatprep.subr.bf16.mxu0 0
    %5659 = vmatpush1.bf16.msra.mxu0 %v5636
    %5660 = vmatprep.subr.bf16.mxu0 0
    %5661 = vmatpush1.bf16.msra.mxu0 %v5637
    %5662 = vmatprep.subr.bf16.mxu0 0
    %5663 = vmatpush1.bf16.msra.mxu0 %v5638
    %5664 = vmatprep.subr.bf16.mxu0 0
    %5665 = vmatpush1.bf16.msra.mxu0 %v5639
    %5666 = vmatprep.subr.bf16.mxu0 0
    %5667 = vmatpush1.bf16.msra.mxu0 0
    %5668 = vmatprep.subr.bf16.mxu0 0
    %5669 = vmatpush1.bf16.msra.mxu0 0
    %5670 = vmatprep.subr.bf16.mxu0 0
    %5671 = vmatpush1.bf16.msra.mxu0 0
    %5672 = vmatprep.subr.bf16.mxu0 0
    %5673 = vmatpush1.bf16.msra.mxu0 0
    %5674 = vmatprep.subr.bf16.mxu0 0
    %5675 = vmatpush1.bf16.msra.mxu0 0
    %5676 = vmatprep.subr.bf16.mxu0 0
    %5677 = vmatpush1.bf16.msra.mxu0 0
    %5678 = vmatprep.subr.bf16.mxu0 0
    %5679 = vmatpush1.bf16.msra.mxu0 0
    %5680 = vmatprep.subr.bf16.mxu0 0
    %5681 = vmatpush1.bf16.msra.mxu0 0
    %5682 = vmatprep.mubr.bf16.mxu0 0
    %5683 = vmatmul.mubr.bf16.gmra.mrb[0].mxu0 %v5646
    %v5684 = vpop.f32.mrb[0].mxu0
    %v5685 = vadd.f32 0.0, %v5684
    %v5686 = vpop.f32.mrb[0].mxu0
    %v5687 = vpop.f32.mrb[0].mxu0
    %v5688 = vadd.f32 0.0, %v5687
    %v5689 = vpop.f32.mrb[0].mxu0
    %5690 = vmatprep.mubr.bf16.mxu0 0
    %5691 = vmatmul.mubr.bf16.gmra.mrb[0].mxu0 %v5647
    %v5692 = vpop.f32.mrb[0].mxu0
    %v5693 = vadd.f32 0.0, %v5692
    %v5694 = vpop.f32.mrb[0].mxu0
    %v5695 = vpop.f32.mrb[0].mxu0
    %v5696 = vpop.f32.mrb[0].mxu0
    %5697 = vdwg.mxu0
    %v5698 = vpack.c.bf16 %v5688, %v5685
    %v5699 = vpack.c.bf16 %v5693, %v5693
    %v5700 = vld [vmem:[%s5] sm:$0xf]
    %v5701 = vld [vmem:[%s5 + $0x4] sm:$0xf]
    %v5702 = vld [vmem:[%s5 + $0x8] sm:$0xf]
    %v5703 = vld [vmem:[%s5 + $0xc] sm:$0xf]
    %v5704 = vld [vmem:[%s5 + $0x10] sm:$0xf]
    %v5705 = vld [vmem:[%s5 + $0x14] sm:$0xf]
    %v5706 = vld [vmem:[%s5 + $0x18] sm:$0xf]
    %v5707 = vld [vmem:[%s5 + $0x1c] sm:$0xf]
    %v5708 = vld [vmem:[%s5 + $0x20] sm:$0xf]
    %v5709 = vld [vmem:[%s5 + $0x24] sm:$0xf]
    %v5710 = vld [vmem:[%s5 + $0x28] sm:$0xf]
    %v5711 = vld [vmem:[%s5 + $0x2c] sm:$0xf]
    %v5712 = vld [vmem:[%s5 + $0x30] sm:$0xf]
    %v5713 = vld [vmem:[%s5 + $0x34] sm:$0xf]
    %v5714 = vld [vmem:[%s5 + $0x38] sm:$0xf]
    %v5715 = vld [vmem:[%s5 + $0x3c] sm:$0xf]
    %v5716 = vld [vmem:[%s6] sm:$0x1]
    %v5718 = vlaneseq
    %v5719 = vshrl.u32 %v5718, 7
    %v5720 = vsub.s32 0, %v5719
    %v5721 = vrot.slane %v5716, %v5720
    %v5739 = vunpack.c.l.b16 %v5700
    %v5740 = vunpack.c.l.b16 %v5701
    %v5741 = vunpack.c.l.b16 %v5702
    %v5742 = vunpack.c.l.b16 %v5703
    %v5743 = vunpack.c.l.b16 %v5704
    %v5744 = vunpack.c.l.b16 %v5705
    %v5745 = vunpack.c.l.b16 %v5706
    %v5746 = vunpack.c.l.b16 %v5707
    %v5747 = vunpack.c.l.b16 %v5708
    %v5748 = vunpack.c.l.b16 %v5709
    %v5749 = vunpack.c.l.b16 %v5710
    %v5750 = vunpack.c.l.b16 %v5711
    %v5751 = vunpack.c.l.b16 %v5712
    %v5752 = vunpack.c.l.b16 %v5713
    %v5753 = vunpack.c.l.b16 %v5714
    %v5754 = vunpack.c.l.b16 %v5715
    %v5755 = vpack.c.b16 %v5740, %v5739
    %v5756 = vpack.c.b16 %v5742, %v5741
    %v5757 = vpack.c.b16 %v5744, %v5743
    %v5758 = vpack.c.b16 %v5746, %v5745
    %v5759 = vpack.c.b16 %v5748, %v5747
    %v5760 = vpack.c.b16 %v5750, %v5749
    %v5761 = vpack.c.b16 %v5752, %v5751
    %v5762 = vpack.c.b16 %v5754, %v5753
    %5771 = vmatprep.subr.bf16.mxu0 0
    %5772 = vmatpush1.bf16.msra.mxu0 %v5755
    %5773 = vmatprep.subr.bf16.mxu0 0
    %5774 = vmatpush1.bf16.msra.mxu0 %v5756
    %5775 = vmatprep.subr.bf16.mxu0 0
    %5776 = vmatpush1.bf16.msra.mxu0 %v5757
    %5777 = vmatprep.subr.bf16.mxu0 0
    %5778 = vmatpush1.bf16.msra.mxu0 %v5758
    %5779 = vmatprep.subr.bf16.mxu0 0
    %5780 = vmatpush1.bf16.msra.mxu0 %v5759
    %5781 = vmatprep.subr.bf16.mxu0 0
    %5782 = vmatpush1.bf16.msra.mxu0 %v5760
    %5783 = vmatprep.subr.bf16.mxu0 0
    %5784 = vmatpush1.bf16.msra.mxu0 %v5761
    %5785 = vmatprep.subr.bf16.mxu0 0
    %5786 = vmatpush1.bf16.msra.mxu0 %v5762
    %5787 = vmatprep.subr.bf16.mxu0 0
    %5788 = vmatpush1.bf16.msra.mxu0 0
    %5789 = vmatprep.subr.bf16.mxu0 0
    %5790 = vmatpush1.bf16.msra.mxu0 0
    %5791 = vmatprep.subr.bf16.mxu0 0
    %5792 = vmatpush1.bf16.msra.mxu0 0
    %5793 = vmatprep.subr.bf16.mxu0 0
    %5794 = vmatpush1.bf16.msra.mxu0 0
    %5795 = vmatprep.subr.bf16.mxu0 0
    %5796 = vmatpush1.bf16.msra.mxu0 0
    %5797 = vmatprep.subr.bf16.mxu0 0
    %5798 = vmatpush1.bf16.msra.mxu0 0
    %5799 = vmatprep.subr.bf16.mxu0 0
    %5800 = vmatpush1.bf16.msra.mxu0 0
    %5801 = vmatprep.subr.bf16.mxu0 0
    %5802 = vmatpush1.bf16.msra.mxu0 0
    %5803 = vmatprep.mubr.bf16.mxu0 0
    %5804 = vmatmul.mubr.bf16.gmra.mrb[0].mxu0 %v5698
    %v5805 = vpop.f32.mrb[0].mxu0
    %v5806 = vadd.f32 %v5721, %v5805
    %v5807 = vpop.f32.mrb[0].mxu0
    %v5808 = vpop.f32.mrb[0].mxu0
    %v5809 = vadd.f32 %v5721, %v5808
    %v5810 = vpop.f32.mrb[0].mxu0
    %5811 = vmatprep.mubr.bf16.mxu0 0
    %5812 = vmatmul.mubr.bf16.gmra.mrb[0].mxu0 %v5699
    %v5813 = vpop.f32.mrb[0].mxu0
    %v5814 = vadd.f32 %v5721, %v5813
    %v5815 = vpop.f32.mrb[0].mxu0
    %v5816 = vpop.f32.mrb[0].mxu0
    %v5817 = vpop.f32.mrb[0].mxu0
    %5818 = vdwg.mxu0
    %v5819 = vmax.f32 %v5806, 0.0
    %v5820 = vmax.f32 %v5809, 0.0
    %v5821 = vmax.f32 %v5814, 0.0
    %v5822 = vpack.c.bf16 %v5820, %v5819
    %v5823 = vpack.c.bf16 %v5821, %v5821
    %v5824 = vld [vmem:[#allocation8] sm:$0xf]
    %v5825 = vld [vmem:[#allocation8 + $0x4] sm:$0xf]
    %v5826 = vld [vmem:[#allocation8 + $0x8] sm:$0xf]
    %v5827 = vld [vmem:[#allocation8 + $0xc] sm:$0xf]
    %v5828 = vld [vmem:[#allocation8 + $0x10] sm:$0xf]
    %v5829 = vld [vmem:[#allocation8 + $0x14] sm:$0xf]
    %v5830 = vld [vmem:[#allocation8 + $0x18] sm:$0xf]
    %v5831 = vld [vmem:[#allocation8 + $0x1c] sm:$0xf]
    %v5832 = vld [vmem:[#allocation8 + $0x20] sm:$0xf]
    %v5833 = vld [vmem:[#allocation8 + $0x24] sm:$0xf]
    %v5834 = vld [vmem:[#allocation8 + $0x28] sm:$0xf]
    %v5835 = vld [vmem:[#allocation8 + $0x2c] sm:$0xf]
    %v5836 = vld [vmem:[#allocation8 + $0x30] sm:$0xf]
    %v5837 = vld [vmem:[#allocation8 + $0x34] sm:$0xf]
    %v5838 = vld [vmem:[#allocation8 + $0x38] sm:$0xf]
    %v5839 = vld [vmem:[#allocation8 + $0x3c] sm:$0xf]
    %v5840 = vld [vmem:[%s8] sm:$0x1]
    %v5842 = vlaneseq
    %v5843 = vshrl.u32 %v5842, 7
    %v5844 = vsub.s32 0, %v5843
    %v5845 = vrot.slane %v5840, %v5844
    %v5863 = vunpack.c.l.b16 %v5824
    %v5864 = vunpack.c.l.b16 %v5825
    %v5865 = vunpack.c.l.b16 %v5826
    %v5866 = vunpack.c.l.b16 %v5827
    %v5867 = vunpack.c.l.b16 %v5828
    %v5868 = vunpack.c.l.b16 %v5829
    %v5869 = vunpack.c.l.b16 %v5830
    %v5870 = vunpack.c.l.b16 %v5831
    %v5871 = vunpack.c.l.b16 %v5832
    %v5872 = vunpack.c.l.b16 %v5833
    %v5873 = vunpack.c.l.b16 %v5834
    %v5874 = vunpack.c.l.b16 %v5835
    %v5875 = vunpack.c.l.b16 %v5836
    %v5876 = vunpack.c.l.b16 %v5837
    %v5877 = vunpack.c.l.b16 %v5838
    %v5878 = vunpack.c.l.b16 %v5839
    %v5879 = vpack.c.b16 %v5864, %v5863
    %v5880 = vpack.c.b16 %v5866, %v5865
    %v5881 = vpack.c.b16 %v5868, %v5867
    %v5882 = vpack.c.b16 %v5870, %v5869
    %v5883 = vpack.c.b16 %v5872, %v5871
    %v5884 = vpack.c.b16 %v5874, %v5873
    %v5885 = vpack.c.b16 %v5876, %v5875
    %v5886 = vpack.c.b16 %v5878, %v5877
    %5895 = vmatprep.subr.bf16.mxu0 0
    %5896 = vmatpush1.bf16.msra.mxu0 %v5879
    %5897 = vmatprep.subr.bf16.mxu0 0
    %5898 = vmatpush1.bf16.msra.mxu0 %v5880
    %5899 = vmatprep.subr.bf16.mxu0 0
    %5900 = vmatpush1.bf16.msra.mxu0 %v5881
    %5901 = vmatprep.subr.bf16.mxu0 0
    %5902 = vmatpush1.bf16.msra.mxu0 %v5882
    %5903 = vmatprep.subr.bf16.mxu0 0
    %5904 = vmatpush1.bf16.msra.mxu0 %v5883
    %5905 = vmatprep.subr.bf16.mxu0 0
    %5906 = vmatpush1.bf16.msra.mxu0 %v5884
    %5907 = vmatprep.subr.bf16.mxu0 0
    %5908 = vmatpush1.bf16.msra.mxu0 %v5885
    %5909 = vmatprep.subr.bf16.mxu0 0
    %5910 = vmatpush1.bf16.msra.mxu0 %v5886
    %5911 = vmatprep.subr.bf16.mxu0 0
    %5912 = vmatpush1.bf16.msra.mxu0 0
    %5913 = vmatprep.subr.bf16.mxu0 0
    %5914 = vmatpush1.bf16.msra.mxu0 0
    %5915 = vmatprep.subr.bf16.mxu0 0
    %5916 = vmatpush1.bf16.msra.mxu0 0
    %5917 = vmatprep.subr.bf16.mxu0 0
    %5918 = vmatpush1.bf16.msra.mxu0 0
    %5919 = vmatprep.subr.bf16.mxu0 0
    %5920 = vmatpush1.bf16.msra.mxu0 0
    %5921 = vmatprep.subr.bf16.mxu0 0
    %5922 = vmatpush1.bf16.msra.mxu0 0
    %5923 = vmatprep.subr.bf16.mxu0 0
    %5924 = vmatpush1.bf16.msra.mxu0 0
    %5925 = vmatprep.subr.bf16.mxu0 0
    %5926 = vmatpush1.bf16.msra.mxu0 0
    %5927 = vmatprep.mubr.bf16.mxu0 0
    %5928 = vmatmul.mubr.bf16.gmra.mrb[0].mxu0 %v5822
    %v5929 = vpop.f32.mrb[0].mxu0
    %v5930 = vadd.f32 %v5845, %v5929
    %v5931 = vpop.f32.mrb[0].mxu0
    %v5932 = vpop.f32.mrb[0].mxu0
    %v5933 = vadd.f32 %v5845, %v5932
    %v5934 = vpop.f32.mrb[0].mxu0
    %5935 = vmatprep.mubr.bf16.mxu0 0
    %5936 = vmatmul.mubr.bf16.gmra.mrb[0].mxu0 %v5823
    %v5937 = vpop.f32.mrb[0].mxu0
    %v5938 = vadd.f32 %v5845, %v5937
    %v5939 = vpop.f32.mrb[0].mxu0
    %v5940 = vpop.f32.mrb[0].mxu0
    %v5941 = vpop.f32.mrb[0].mxu0
    %5942 = vdwg.mxu0
    %v5943 = vmax.f32 %v5930, 0.0
    %v5944 = vmax.f32 %v5933, 0.0
    %v5945 = vmax.f32 %v5938, 0.0
    %v5946 = vpack.c.bf16 %v5944, %v5943
    %v5947 = vpack.c.bf16 %v5945, %v5945
    %v5948 = vld [vmem:[#allocation9] sm:$0xf]
    %v5949 = vld [vmem:[#allocation9 + $0x4] sm:$0xf]
    %v5950 = vld [vmem:[#allocation9 + $0x8] sm:$0xf]
    %v5951 = vld [vmem:[#allocation9 + $0xc] sm:$0xf]
    %v5952 = vld [vmem:[#allocation9 + $0x10] sm:$0xf]
    %v5953 = vld [vmem:[#allocation9 + $0x14] sm:$0xf]
    %v5954 = vld [vmem:[#allocation9 + $0x18] sm:$0xf]
    %v5955 = vld [vmem:[#allocation9 + $0x1c] sm:$0xf]
    %v5956 = vld [vmem:[#allocation9 + $0x20] sm:$0xf]
    %v5957 = vld [vmem:[#allocation9 + $0x24] sm:$0xf]
    %v5958 = vld [vmem:[#allocation9 + $0x28] sm:$0xf]
    %v5959 = vld [vmem:[#allocation9 + $0x2c] sm:$0xf]
    %v5960 = vld [vmem:[#allocation9 + $0x30] sm:$0xf]
    %v5961 = vld [vmem:[#allocation9 + $0x34] sm:$0xf]
    %v5962 = vld [vmem:[#allocation9 + $0x38] sm:$0xf]
    %v5963 = vld [vmem:[#allocation9 + $0x3c] sm:$0xf]
    %v5964 = vld [vmem:[%s10] sm:$0x1]
    %v5966 = vlaneseq
    %v5967 = vshrl.u32 %v5966, 7
    %v5968 = vsub.s32 0, %v5967
    %v5969 = vrot.slane %v5964, %v5968
    %v5987 = vunpack.c.l.b16 %v5948
    %v5988 = vunpack.c.l.b16 %v5949
    %v5989 = vunpack.c.l.b16 %v5950
    %v5990 = vunpack.c.l.b16 %v5951
    %v5991 = vunpack.c.l.b16 %v5952
    %v5992 = vunpack.c.l.b16 %v5953
    %v5993 = vunpack.c.l.b16 %v5954
    %v5994 = vunpack.c.l.b16 %v5955
    %v5995 = vunpack.c.l.b16 %v5956
    %v5996 = vunpack.c.l.b16 %v5957
    %v5997 = vunpack.c.l.b16 %v5958
    %v5998 = vunpack.c.l.b16 %v5959
    %v5999 = vunpack.c.l.b16 %v5960
    %v6000 = vunpack.c.l.b16 %v5961
    %v6001 = vunpack.c.l.b16 %v5962
    %v6002 = vunpack.c.l.b16 %v5963
    %v6003 = vpack.c.b16 %v5988, %v5987
    %v6004 = vpack.c.b16 %v5990, %v5989
    %v6005 = vpack.c.b16 %v5992, %v5991
    %v6006 = vpack.c.b16 %v5994, %v5993
    %v6007 = vpack.c.b16 %v5996, %v5995
    %v6008 = vpack.c.b16 %v5998, %v5997
    %v6009 = vpack.c.b16 %v6000, %v5999
    %v6010 = vpack.c.b16 %v6002, %v6001
    %6019 = vmatprep.subr.bf16.mxu0 0
    %6020 = vmatpush1.bf16.msra.mxu0 %v6003
    %6021 = vmatprep.subr.bf16.mxu0 0
    %6022 = vmatpush1.bf16.msra.mxu0 %v6004
    %6023 = vmatprep.subr.bf16.mxu0 0
    %6024 = vmatpush1.bf16.msra.mxu0 %v6005
    %6025 = vmatprep.subr.bf16.mxu0 0
    %6026 = vmatpush1.bf16.msra.mxu0 %v6006
    %6027 = vmatprep.subr.bf16.mxu0 0
    %6028 = vmatpush1.bf16.msra.mxu0 %v6007
    %6029 = vmatprep.subr.bf16.mxu0 0
    %6030 = vmatpush1.bf16.msra.mxu0 %v6008
    %6031 = vmatprep.subr.bf16.mxu0 0
    %6032 = vmatpush1.bf16.msra.mxu0 %v6009
    %6033 = vmatprep.subr.bf16.mxu0 0
    %6034 = vmatpush1.bf16.msra.mxu0 %v6010
    %6035 = vmatprep.subr.bf16.mxu0 0
    %6036 = vmatpush1.bf16.msra.mxu0 0
    %6037 = vmatprep.subr.bf16.mxu0 0
    %6038 = vmatpush1.bf16.msra.mxu0 0
    %6039 = vmatprep.subr.bf16.mxu0 0
    %6040 = vmatpush1.bf16.msra.mxu0 0
    %6041 = vmatprep.subr.bf16.mxu0 0
    %6042 = vmatpush1.bf16.msra.mxu0 0
    %6043 = vmatprep.subr.bf16.mxu0 0
    %6044 = vmatpush1.bf16.msra.mxu0 0
    %6045 = vmatprep.subr.bf16.mxu0 0
    %6046 = vmatpush1.bf16.msra.mxu0 0
    %6047 = vmatprep.subr.bf16.mxu0 0
    %6048 = vmatpush1.bf16.msra.mxu0 0
    %6049 = vmatprep.subr.bf16.mxu0 0
    %6050 = vmatpush1.bf16.msra.mxu0 0
    %6051 = vmatprep.mubr.bf16.mxu0 0
    %6052 = vmatmul.mubr.bf16.gmra.mrb[0].mxu0 %v5946
    %v6053 = vpop.f32.mrb[0].mxu0
    %v6054 = vadd.f32 %v5969, %v6053
    %v6055 = vpop.f32.mrb[0].mxu0
    %v6056 = vpop.f32.mrb[0].mxu0
    %v6057 = vadd.f32 %v5969, %v6056
    %v6058 = vpop.f32.mrb[0].mxu0
    %6059 = vmatprep.mubr.bf16.mxu0 0
    %6060 = vmatmul.mubr.bf16.gmra.mrb[0].mxu0 %v5947
    %v6061 = vpop.f32.mrb[0].mxu0
    %v6062 = vadd.f32 %v5969, %v6061
    %v6063 = vpop.f32.mrb[0].mxu0
    %v6064 = vpop.f32.mrb[0].mxu0
    %v6065 = vpop.f32.mrb[0].mxu0
    %6066 = vdwg.mxu0
    %v6067 = vmax.f32 %v6054, 0.0
    %v6068 = vmax.f32 %v6057, 0.0
    %v6069 = vmax.f32 %v6062, 0.0
    %v6070 = vpack.c.bf16 %v6068, %v6067
    %v6071 = vpack.c.bf16 %v6069, %v6069
    %v6072 = vld [vmem:[#allocation11] sm:$0xf]
    %v6073 = vld [vmem:[#allocation11 + $0x4] sm:$0xf]
    %v6074 = vld [vmem:[#allocation11 + $0x8] sm:$0xf]
    %v6075 = vld [vmem:[#allocation11 + $0xc] sm:$0xf]
    %v6076 = vld [vmem:[#allocation11 + $0x10] sm:$0xf]
    %v6077 = vld [vmem:[#allocation11 + $0x14] sm:$0xf]
    %v6078 = vld [vmem:[#allocation11 + $0x18] sm:$0xf]
    %v6079 = vld [vmem:[#allocation11 + $0x1c] sm:$0xf]
    %v6080 = vld [vmem:[#allocation11 + $0x20] sm:$0xf]
    %v6081 = vld [vmem:[#allocation11 + $0x24] sm:$0xf]
    %v6082 = vld [vmem:[#allocation11 + $0x28] sm:$0xf]
    %v6083 = vld [vmem:[#allocation11 + $0x2c] sm:$0xf]
    %v6084 = vld [vmem:[#allocation11 + $0x30] sm:$0xf]
    %v6085 = vld [vmem:[#allocation11 + $0x34] sm:$0xf]
    %v6086 = vld [vmem:[#allocation11 + $0x38] sm:$0xf]
    %v6087 = vld [vmem:[#allocation11 + $0x3c] sm:$0xf]
    %v6088 = vld [vmem:[%s12] sm:$0x1]
    %v6090 = vlaneseq
    %v6091 = vshrl.u32 %v6090, 7
    %v6092 = vsub.s32 0, %v6091
    %v6093 = vrot.slane %v6088, %v6092
    %v6111 = vunpack.c.l.b16 %v6072
    %v6112 = vunpack.c.l.b16 %v6073
    %v6113 = vunpack.c.l.b16 %v6074
    %v6114 = vunpack.c.l.b16 %v6075
    %v6115 = vunpack.c.l.b16 %v6076
    %v6116 = vunpack.c.l.b16 %v6077
    %v6117 = vunpack.c.l.b16 %v6078
    %v6118 = vunpack.c.l.b16 %v6079
    %v6119 = vunpack.c.l.b16 %v6080
    %v6120 = vunpack.c.l.b16 %v6081
    %v6121 = vunpack.c.l.b16 %v6082
    %v6122 = vunpack.c.l.b16 %v6083
    %v6123 = vunpack.c.l.b16 %v6084
    %v6124 = vunpack.c.l.b16 %v6085
    %v6125 = vunpack.c.l.b16 %v6086
    %v6126 = vunpack.c.l.b16 %v6087
    %v6127 = vpack.c.b16 %v6112, %v6111
    %v6128 = vpack.c.b16 %v6114, %v6113
    %v6129 = vpack.c.b16 %v6116, %v6115
    %v6130 = vpack.c.b16 %v6118, %v6117
    %v6131 = vpack.c.b16 %v6120, %v6119
    %v6132 = vpack.c.b16 %v6122, %v6121
    %v6133 = vpack.c.b16 %v6124, %v6123
    %v6134 = vpack.c.b16 %v6126, %v6125
    %6143 = vmatprep.subr.bf16.mxu0 0
    %6144 = vmatpush1.bf16.msra.mxu0 %v6127
    %6145 = vmatprep.subr.bf16.mxu0 0
    %6146 = vmatpush1.bf16.msra.mxu0 %v6128
    %6147 = vmatprep.subr.bf16.mxu0 0
    %6148 = vmatpush1.bf16.msra.mxu0 %v6129
    %6149 = vmatprep.subr.bf16.mxu0 0
    %6150 = vmatpush1.bf16.msra.mxu0 %v6130
    %6151 = vmatprep.subr.bf16.mxu0 0
    %6152 = vmatpush1.bf16.msra.mxu0 %v6131
    %6153 = vmatprep.subr.bf16.mxu0 0
    %6154 = vmatpush1.bf16.msra.mxu0 %v6132
    %6155 = vmatprep.subr.bf16.mxu0 0
    %6156 = vmatpush1.bf16.msra.mxu0 %v6133
    %6157 = vmatprep.subr.bf16.mxu0 0
    %6158 = vmatpush1.bf16.msra.mxu0 %v6134
    %6159 = vmatprep.subr.bf16.mxu0 0
    %6160 = vmatpush1.bf16.msra.mxu0 0
    %6161 = vmatprep.subr.bf16.mxu0 0
    %6162 = vmatpush1.bf16.msra.mxu0 0
    %6163 = vmatprep.subr.bf16.mxu0 0
    %6164 = vmatpush1.bf16.msra.mxu0 0
    %6165 = vmatprep.subr.bf16.mxu0 0
    %6166 = vmatpush1.bf16.msra.mxu0 0
    %6167 = vmatprep.subr.bf16.mxu0 0
    %6168 = vmatpush1.bf16.msra.mxu0 0
    %6169 = vmatprep.subr.bf16.mxu0 0
    %6170 = vmatpush1.bf16.msra.mxu0 0
    %6171 = vmatprep.subr.bf16.mxu0 0
    %6172 = vmatpush1.bf16.msra.mxu0 0
    %6173 = vmatprep.subr.bf16.mxu0 0
    %6174 = vmatpush1.bf16.msra.mxu0 0
    %6175 = vmatprep.mubr.bf16.mxu0 0
    %6176 = vmatmul.mubr.bf16.gmra.mrb[0].mxu0 %v6070
    %v6177 = vpop.f32.mrb[0].mxu0
    %v6178 = vadd.f32 %v6093, %v6177
    %v6179 = vpop.f32.mrb[0].mxu0
    %v6180 = vpop.f32.mrb[0].mxu0
    %v6181 = vadd.f32 %v6093, %v6180
    %v6182 = vpop.f32.mrb[0].mxu0
    %6183 = vmatprep.mubr.bf16.mxu0 0
    %6184 = vmatmul.mubr.bf16.gmra.mrb[0].mxu0 %v6071
    %v6185 = vpop.f32.mrb[0].mxu0
    %v6186 = vadd.f32 %v6093, %v6185
    %v6187 = vpop.f32.mrb[0].mxu0
    %v6188 = vpop.f32.mrb[0].mxu0
    %v6189 = vpop.f32.mrb[0].mxu0
    %6190 = vdwg.mxu0
    %v6191 = vmax.f32 %v6178, 0.0
    %v6192 = vmax.f32 %v6181, 0.0
    %v6193 = vmax.f32 %v6186, 0.0
    %v6194 = vpack.c.bf16 %v6192, %v6191
    %v6195 = vpack.c.bf16 %v6193, %v6193
    %v6196 = vld [vmem:[#allocation12] sm:$0xf]
    %v6197 = vld [vmem:[#allocation12 + $0x4] sm:$0xf]
    %v6198 = vld [vmem:[#allocation12 + $0x8] sm:$0xf]
    %v6199 = vld [vmem:[#allocation12 + $0xc] sm:$0xf]
    %v6200 = vld [vmem:[#allocation12 + $0x10] sm:$0xf]
    %v6201 = vld [vmem:[#allocation12 + $0x14] sm:$0xf]
    %v6202 = vld [vmem:[#allocation12 + $0x18] sm:$0xf]
    %v6203 = vld [vmem:[#allocation12 + $0x1c] sm:$0xf]
    %v6204 = vld [vmem:[#allocation12 + $0x20] sm:$0xf]
    %v6205 = vld [vmem:[#allocation12 + $0x24] sm:$0xf]
    %v6206 = vld [vmem:[#allocation12 + $0x28] sm:$0xf]
    %v6207 = vld [vmem:[#allocation12 + $0x2c] sm:$0xf]
    %v6208 = vld [vmem:[#allocation12 + $0x30] sm:$0xf]
    %v6209 = vld [vmem:[#allocation12 + $0x34] sm:$0xf]
    %v6210 = vld [vmem:[#allocation12 + $0x38] sm:$0xf]
    %v6211 = vld [vmem:[#allocation12 + $0x3c] sm:$0xf]
    %v6212 = vld [vmem:[%s14] sm:$0x1]
    %v6214 = vlaneseq
    %v6215 = vshrl.u32 %v6214, 7
    %v6216 = vsub.s32 0, %v6215
    %v6217 = vrot.slane %v6212, %v6216
    %v6235 = vunpack.c.l.b16 %v6196
    %v6236 = vunpack.c.l.b16 %v6197
    %v6237 = vunpack.c.l.b16 %v6198
    %v6238 = vunpack.c.l.b16 %v6199
    %v6239 = vunpack.c.l.b16 %v6200
    %v6240 = vunpack.c.l.b16 %v6201
    %v6241 = vunpack.c.l.b16 %v6202
    %v6242 = vunpack.c.l.b16 %v6203
    %v6243 = vunpack.c.l.b16 %v6204
    %v6244 = vunpack.c.l.b16 %v6205
    %v6245 = vunpack.c.l.b16 %v6206
    %v6246 = vunpack.c.l.b16 %v6207
    %v6247 = vunpack.c.l.b16 %v6208
    %v6248 = vunpack.c.l.b16 %v6209
    %v6249 = vunpack.c.l.b16 %v6210
    %v6250 = vunpack.c.l.b16 %v6211
    %v6251 = vpack.c.b16 %v6236, %v6235
    %v6252 = vpack.c.b16 %v6238, %v6237
    %v6253 = vpack.c.b16 %v6240, %v6239
    %v6254 = vpack.c.b16 %v6242, %v6241
    %v6255 = vpack.c.b16 %v6244, %v6243
    %v6256 = vpack.c.b16 %v6246, %v6245
    %v6257 = vpack.c.b16 %v6248, %v6247
    %v6258 = vpack.c.b16 %v6250, %v6249
    %6267 = vmatprep.subr.bf16.mxu0 0
    %6268 = vmatpush1.bf16.msra.mxu0 %v6251
    %6269 = vmatprep.subr.bf16.mxu0 0
    %6270 = vmatpush1.bf16.msra.mxu0 %v6252
    %6271 = vmatprep.subr.bf16.mxu0 0
    %6272 = vmatpush1.bf16.msra.mxu0 %v6253
    %6273 = vmatprep.subr.bf16.mxu0 0
    %6274 = vmatpush1.bf16.msra.mxu0 %v6254
    %6275 = vmatprep.subr.bf16.mxu0 0
    %6276 = vmatpush1.bf16.msra.mxu0 %v6255
    %6277 = vmatprep.subr.bf16.mxu0 0
    %6278 = vmatpush1.bf16.msra.mxu0 %v6256
    %6279 = vmatprep.subr.bf16.mxu0 0
    %6280 = vmatpush1.bf16.msra.mxu0 %v6257
    %6281 = vmatprep.subr.bf16.mxu0 0
    %6282 = vmatpush1.bf16.msra.mxu0 %v6258
    %6283 = vmatprep.subr.bf16.mxu0 0
    %6284 = vmatpush1.bf16.msra.mxu0 0
    %6285 = vmatprep.subr.bf16.mxu0 0
    %6286 = vmatpush1.bf16.msra.mxu0 0
    %6287 = vmatprep.subr.bf16.mxu0 0
    %6288 = vmatpush1.bf16.msra.mxu0 0
    %6289 = vmatprep.subr.bf16.mxu0 0
    %6290 = vmatpush1.bf16.msra.mxu0 0
    %6291 = vmatprep.subr.bf16.mxu0 0
    %6292 = vmatpush1.bf16.msra.mxu0 0
    %6293 = vmatprep.subr.bf16.mxu0 0
    %6294 = vmatpush1.bf16.msra.mxu0 0
    %6295 = vmatprep.subr.bf16.mxu0 0
    %6296 = vmatpush1.bf16.msra.mxu0 0
    %6297 = vmatprep.subr.bf16.mxu0 0
    %6298 = vmatpush1.bf16.msra.mxu0 0
    %6299 = vmatprep.mubr.bf16.mxu0 0
    %6300 = vmatmul.mubr.bf16.gmra.mrb[0].mxu0 %v6194
    %v6301 = vpop.f32.mrb[0].mxu0
    %v6302 = vadd.f32 %v6217, %v6301
    %v6303 = vpop.f32.mrb[0].mxu0
    %v6304 = vpop.f32.mrb[0].mxu0
    %v6305 = vadd.f32 %v6217, %v6304
    %v6306 = vpop.f32.mrb[0].mxu0
    %6307 = vmatprep.mubr.bf16.mxu0 0
    %6308 = vmatmul.mubr.bf16.gmra.mrb[0].mxu0 %v6195
    %v6309 = vpop.f32.mrb[0].mxu0
    %v6310 = vadd.f32 %v6217, %v6309
    %v6311 = vpop.f32.mrb[0].mxu0
    %v6312 = vpop.f32.mrb[0].mxu0
    %v6313 = vpop.f32.mrb[0].mxu0
    %6314 = vdwg.mxu0
    %v6315 = vmax.f32 %v6302, 0.0
    %v6316 = vmax.f32 %v6305, 0.0
    %v6317 = vmax.f32 %v6310, 0.0
    %v6318 = vpack.c.bf16 %v6316, %v6315
    %v6319 = vpack.c.bf16 %v6317, %v6317
    %v6320 = vld [vmem:[#allocation14] sm:$0xf]
    %v6321 = vld [vmem:[#allocation14 + $0x4] sm:$0xf]
    %v6322 = vld [vmem:[#allocation14 + $0x8] sm:$0xf]
    %v6323 = vld [vmem:[#allocation14 + $0xc] sm:$0xf]
    %v6324 = vld [vmem:[#allocation14 + $0x10] sm:$0xf]
    %v6325 = vld [vmem:[#allocation14 + $0x14] sm:$0xf]
    %v6326 = vld [vmem:[#allocation14 + $0x18] sm:$0xf]
    %v6327 = vld [vmem:[#allocation14 + $0x1c] sm:$0xf]
    %v6328 = vld [vmem:[#allocation14 + $0x20] sm:$0xf]
    %v6329 = vld [vmem:[#allocation14 + $0x24] sm:$0xf]
    %v6330 = vld [vmem:[#allocation14 + $0x28] sm:$0xf]
    %v6331 = vld [vmem:[#allocation14 + $0x2c] sm:$0xf]
    %v6332 = vld [vmem:[#allocation14 + $0x30] sm:$0xf]
    %v6333 = vld [vmem:[#allocation14 + $0x34] sm:$0xf]
    %v6334 = vld [vmem:[#allocation14 + $0x38] sm:$0xf]
    %v6335 = vld [vmem:[#allocation14 + $0x3c] sm:$0xf]
    %v6336 = vld [vmem:[%s16] sm:$0x1]
    %v6338 = vlaneseq
    %v6339 = vshrl.u32 %v6338, 7
    %v6340 = vsub.s32 0, %v6339
    %v6341 = vrot.slane %v6336, %v6340
    %v6359 = vunpack.c.l.b16 %v6320
    %v6360 = vunpack.c.l.b16 %v6321
    %v6361 = vunpack.c.l.b16 %v6322
    %v6362 = vunpack.c.l.b16 %v6323
    %v6363 = vunpack.c.l.b16 %v6324
    %v6364 = vunpack.c.l.b16 %v6325
    %v6365 = vunpack.c.l.b16 %v6326
    %v6366 = vunpack.c.l.b16 %v6327
    %v6367 = vunpack.c.l.b16 %v6328
    %v6368 = vunpack.c.l.b16 %v6329
    %v6369 = vunpack.c.l.b16 %v6330
    %v6370 = vunpack.c.l.b16 %v6331
    %v6371 = vunpack.c.l.b16 %v6332
    %v6372 = vunpack.c.l.b16 %v6333
    %v6373 = vunpack.c.l.b16 %v6334
    %v6374 = vunpack.c.l.b16 %v6335
    %v6375 = vpack.c.b16 %v6360, %v6359
    %v6376 = vpack.c.b16 %v6362, %v6361
    %v6377 = vpack.c.b16 %v6364, %v6363
    %v6378 = vpack.c.b16 %v6366, %v6365
    %v6379 = vpack.c.b16 %v6368, %v6367
    %v6380 = vpack.c.b16 %v6370, %v6369
    %v6381 = vpack.c.b16 %v6372, %v6371
    %v6382 = vpack.c.b16 %v6374, %v6373
    %6391 = vmatprep.subr.bf16.mxu0 0
    %6392 = vmatpush1.bf16.msra.mxu0 %v6375
    %6393 = vmatprep.subr.bf16.mxu0 0
    %6394 = vmatpush1.bf16.msra.mxu0 %v6376
    %6395 = vmatprep.subr.bf16.mxu0 0
    %6396 = vmatpush1.bf16.msra.mxu0 %v6377
    %6397 = vmatprep.subr.bf16.mxu0 0
    %6398 = vmatpush1.bf16.msra.mxu0 %v6378
    %6399 = vmatprep.subr.bf16.mxu0 0
    %6400 = vmatpush1.bf16.msra.mxu0 %v6379
    %6401 = vmatprep.subr.bf16.mxu0 0
    %6402 = vmatpush1.bf16.msra.mxu0 %v6380
    %6403 = vmatprep.subr.bf16.mxu0 0
    %6404 = vmatpush1.bf16.msra.mxu0 %v6381
    %6405 = vmatprep.subr.bf16.mxu0 0
    %6406 = vmatpush1.bf16.msra.mxu0 %v6382
    %6407 = vmatprep.subr.bf16.mxu0 0
    %6408 = vmatpush1.bf16.msra.mxu0 0
    %6409 = vmatprep.subr.bf16.mxu0 0
    %6410 = vmatpush1.bf16.msra.mxu0 0
    %6411 = vmatprep.subr.bf16.mxu0 0
    %6412 = vmatpush1.bf16.msra.mxu0 0
    %6413 = vmatprep.subr.bf16.mxu0 0
    %6414 = vmatpush1.bf16.msra.mxu0 0
    %6415 = vmatprep.subr.bf16.mxu0 0
    %6416 = vmatpush1.bf16.msra.mxu0 0
    %6417 = vmatprep.subr.bf16.mxu0 0
    %6418 = vmatpush1.bf16.msra.mxu0 0
    %6419 = vmatprep.subr.bf16.mxu0 0
    %6420 = vmatpush1.bf16.msra.mxu0 0
    %6421 = vmatprep.subr.bf16.mxu0 0
    %6422 = vmatpush1.bf16.msra.mxu0 0
    %6423 = vmatprep.mubr.bf16.mxu0 0
    %6424 = vmatmul.mubr.bf16.gmra.mrb[0].mxu0 %v6318
    %v6425 = vpop.f32.mrb[0].mxu0
    %v6426 = vadd.f32 %v6341, %v6425
    %v6427 = vpop.f32.mrb[0].mxu0
    %v6428 = vpop.f32.mrb[0].mxu0
    %v6429 = vadd.f32 %v6341, %v6428
    %v6430 = vpop.f32.mrb[0].mxu0
    %6431 = vmatprep.mubr.bf16.mxu0 0
    %6432 = vmatmul.mubr.bf16.gmra.mrb[0].mxu0 %v6319
    %v6433 = vpop.f32.mrb[0].mxu0
    %v6434 = vadd.f32 %v6341, %v6433
    %v6435 = vpop.f32.mrb[0].mxu0
    %v6436 = vpop.f32.mrb[0].mxu0
    %v6437 = vpop.f32.mrb[0].mxu0
    %6438 = vdwg.mxu0
    %v6439 = vmax.f32 %v6426, 0.0
    %v6440 = vmax.f32 %v6429, 0.0
    %v6441 = vmax.f32 %v6434, 0.0
    %v6442 = vpack.c.bf16 %v6440, %v6439
    %v6443 = vpack.c.bf16 %v6441, %v6441
    %v6444 = vld [vmem:[%s17] sm:$0xf]
    %v6445 = vld [vmem:[%s17 + $0x4] sm:$0xf]
    %v6446 = vld [vmem:[%s17 + $0x8] sm:$0xf]
    %v6447 = vld [vmem:[%s17 + $0xc] sm:$0xf]
    %v6448 = vld [vmem:[%s17 + $0x10] sm:$0xf]
    %v6449 = vld [vmem:[%s17 + $0x14] sm:$0xf]
    %v6450 = vld [vmem:[%s17 + $0x18] sm:$0xf]
    %v6451 = vld [vmem:[%s17 + $0x1c] sm:$0xf]
    %v6452 = vld [vmem:[%s17 + $0x20] sm:$0xf]
    %v6453 = vld [vmem:[%s17 + $0x24] sm:$0xf]
    %v6454 = vld [vmem:[%s17 + $0x28] sm:$0xf]
    %v6455 = vld [vmem:[%s17 + $0x2c] sm:$0xf]
    %v6456 = vld [vmem:[%s17 + $0x30] sm:$0xf]
    %v6457 = vld [vmem:[%s17 + $0x34] sm:$0xf]
    %v6458 = vld [vmem:[%s17 + $0x38] sm:$0xf]
    %v6459 = vld [vmem:[%s17 + $0x3c] sm:$0xf]
    %v6460 = vld [vmem:[%s18] sm:$0x1]
    %v6462 = vlaneseq
    %v6463 = vshrl.u32 %v6462, 7
    %v6464 = vsub.s32 0, %v6463
    %v6465 = vrot.slane %v6460, %v6464
    %v6483 = vunpack.c.l.b16 %v6444
    %v6484 = vunpack.c.l.b16 %v6445
    %v6485 = vunpack.c.l.b16 %v6446
    %v6486 = vunpack.c.l.b16 %v6447
    %v6487 = vunpack.c.l.b16 %v6448
    %v6488 = vunpack.c.l.b16 %v6449
    %v6489 = vunpack.c.l.b16 %v6450
    %v6490 = vunpack.c.l.b16 %v6451
    %v6491 = vunpack.c.l.b16 %v6452
    %v6492 = vunpack.c.l.b16 %v6453
    %v6493 = vunpack.c.l.b16 %v6454
    %v6494 = vunpack.c.l.b16 %v6455
    %v6495 = vunpack.c.l.b16 %v6456
    %v6496 = vunpack.c.l.b16 %v6457
    %v6497 = vunpack.c.l.b16 %v6458
    %v6498 = vunpack.c.l.b16 %v6459
    %v6499 = vpack.c.b16 %v6484, %v6483
    %v6500 = vpack.c.b16 %v6486, %v6485
    %v6501 = vpack.c.b16 %v6488, %v6487
    %v6502 = vpack.c.b16 %v6490, %v6489
    %v6503 = vpack.c.b16 %v6492, %v6491
    %v6504 = vpack.c.b16 %v6494, %v6493
    %v6505 = vpack.c.b16 %v6496, %v6495
    %v6506 = vpack.c.b16 %v6498, %v6497
    %6515 = vmatprep.subr.bf16.mxu0 0
    %6516 = vmatpush1.bf16.msra.mxu0 %v6499
    %6517 = vmatprep.subr.bf16.mxu0 0
    %6518 = vmatpush1.bf16.msra.mxu0 %v6500
    %6519 = vmatprep.subr.bf16.mxu0 0
    %6520 = vmatpush1.bf16.msra.mxu0 %v6501
    %6521 = vmatprep.subr.bf16.mxu0 0
    %6522 = vmatpush1.bf16.msra.mxu0 %v6502
    %6523 = vmatprep.subr.bf16.mxu0 0
    %6524 = vmatpush1.bf16.msra.mxu0 %v6503
    %6525 = vmatprep.subr.bf16.mxu0 0
    %6526 = vmatpush1.bf16.msra.mxu0 %v6504
    %6527 = vmatprep.subr.bf16.mxu0 0
    %6528 = vmatpush1.bf16.msra.mxu0 %v6505
    %6529 = vmatprep.subr.bf16.mxu0 0
    %6530 = vmatpush1.bf16.msra.mxu0 %v6506
    %6531 = vmatprep.subr.bf16.mxu0 0
    %6532 = vmatpush1.bf16.msra.mxu0 0
    %6533 = vmatprep.subr.bf16.mxu0 0
    %6534 = vmatpush1.bf16.msra.mxu0 0
    %6535 = vmatprep.subr.bf16.mxu0 0
    %6536 = vmatpush1.bf16.msra.mxu0 0
    %6537 = vmatprep.subr.bf16.mxu0 0
    %6538 = vmatpush1.bf16.msra.mxu0 0
    %6539 = vmatprep.subr.bf16.mxu0 0
    %6540 = vmatpush1.bf16.msra.mxu0 0
    %6541 = vmatprep.subr.bf16.mxu0 0
    %6542 = vmatpush1.bf16.msra.mxu0 0
    %6543 = vmatprep.subr.bf16.mxu0 0
    %6544 = vmatpush1.bf16.msra.mxu0 0
    %6545 = vmatprep.subr.bf16.mxu0 0
    %6546 = vmatpush1.bf16.msra.mxu0 0
    %6547 = vmatprep.mubr.bf16.mxu0 0
    %6548 = vmatmul.mubr.bf16.gmra.mrb[0].mxu0 %v6442
    %v6549 = vpop.f32.mrb[0].mxu0
    %v6550 = vadd.f32 %v6465, %v6549
    %v6551 = vpop.f32.mrb[0].mxu0
    %v6552 = vpop.f32.mrb[0].mxu0
    %v6553 = vadd.f32 %v6465, %v6552
    %v6554 = vpop.f32.mrb[0].mxu0
    %6555 = vmatprep.mubr.bf16.mxu0 0
    %6556 = vmatmul.mubr.bf16.gmra.mrb[0].mxu0 %v6443
    %v6557 = vpop.f32.mrb[0].mxu0
    %v6558 = vadd.f32 %v6465, %v6557
    %v6559 = vpop.f32.mrb[0].mxu0
    %v6560 = vpop.f32.mrb[0].mxu0
    %v6561 = vpop.f32.mrb[0].mxu0
    %6562 = vdwg.mxu0
    %vm6563 = vcmask 15360
    %v6564 = vsel %vm6563, %v6550, -inf
    %6565 = vmax.xlane.f32.xlu0 %v6564
    %v6566 = vpop.xlane.xlu0 %6565
    %v6567 = vsel %vm6563, %v6553, -inf
    %6568 = vmax.xlane.f32.xlu0 %v6567
    %v6569 = vpop.xlane.xlu0 %6568
    %v6570 = vsel %vm6563, %v6558, -inf
    %6571 = vmax.xlane.f32.xlu0 %v6570
    %v6572 = vpop.xlane.xlu0 %6571
    %v6573 = vsub.f32 %v6550, %v6566
    %v6574 = vsub.f32 %v6553, %v6569
    %v6575 = vsub.f32 %v6558, %v6572
    %v6576 = vmul.f32 %v6573, 1.442695
    %v6577 = vpow.pop %v6576
    %v6578 = vmul.f32 %v6574, 1.442695
    %v6579 = vpow.pop %v6578
    %v6580 = vmul.f32 %v6575, 1.442695
    %v6581 = vpow.pop %v6580
    %v6582 = vsel %vm6563, %v6577, 0.0
    %6583 = vadd.xlane.f32.xlu0 %v6582
    %v6584 = vpop.xlane.xlu0 %6583
    %v6585 = vsel %vm6563, %v6579, 0.0
    %6586 = vadd.xlane.f32.xlu0 %v6585
    %v6587 = vpop.xlane.xlu0 %6586
    %v6588 = vsel %vm6563, %v6581, 0.0
    %6589 = vadd.xlane.f32.xlu0 %v6588
    %v6590 = vpop.xlane.xlu0 %6589
    %v6591 = vrcp.pop %v6584
    %v6592 = vmul.f32 %v6577, %v6591
    %v6593 = vrcp.pop %v6587
    %v6594 = vmul.f32 %v6579, %v6593
    %v6595 = vrcp.pop %v6590
    %v6596 = vmul.f32 %v6581, %v6595
    %vm6600 = vcmask 1041408
    %v6601 = vrot.slane %v6592, 6
    %v6602 = vrot.slane %v6594, 6
    %v6603 = vsel %vm6600, %v6601, %v6602
    %v6604 = vrot.slane %v6596, 6
    %v6605 = vsel %vm6600, %v6602, %v6604
    %v6610 = vsel %vm6600, 0.0, %v6601
    %v6611 = vsel %vm6600, %v6604, 0.0
    %vm6614 = vcmask 1046528
    %v6615 = vrot.slane %v6610, 1
    %v6616 = vrot.slane %v6603, 1
    %v6617 = vsel %vm6614, %v6615, %v6616
    %v6618 = vrot.slane %v6605, 1
    %v6619 = vsel %vm6614, %v6616, %v6618
    %v6620 = vrot.slane %v6611, 1
    %v6621 = vsel %vm6614, %v6618, %v6620
    %v6625 = vadd.f32 %v6610, %v6617
    %v6626 = vadd.f32 %v6603, %v6619
    %v6627 = vadd.f32 %v6605, %v6621
    %vm6628 = vcmask 1045504
    %v6629 = vrot.slane %v6610, 2
    %v6630 = vrot.slane %v6603, 2
    %v6631 = vsel %vm6628, %v6629, %v6630
    %v6632 = vrot.slane %v6605, 2
    %v6633 = vsel %vm6628, %v6630, %v6632
    %v6634 = vrot.slane %v6611, 2
    %v6635 = vsel %vm6628, %v6632, %v6634
    %v6639 = vadd.f32 %v6625, %v6631
    %v6640 = vadd.f32 %v6626, %v6633
    %v6641 = vadd.f32 %v6627, %v6635
    %vm6642 = vcmask 1044480
    %v6643 = vrot.slane %v6610, 3
    %v6644 = vrot.slane %v6603, 3
    %v6645 = vsel %vm6642, %v6643, %v6644
    %v6646 = vrot.slane %v6605, 3
    %v6647 = vsel %vm6642, %v6644, %v6646
    %v6648 = vrot.slane %v6611, 3
    %v6649 = vsel %vm6642, %v6646, %v6648
    %v6653 = vadd.f32 %v6639, %v6645
    %v6654 = vadd.f32 %v6640, %v6647
    %v6655 = vadd.f32 %v6641, %v6649
    %vm6656 = vcmask 1043456
    %v6657 = vrot.slane %v6610, 4
    %v6658 = vrot.slane %v6603, 4
    %v6659 = vsel %vm6656, %v6657, %v6658
    %v6660 = vrot.slane %v6605, 4
    %v6661 = vsel %vm6656, %v6658, %v6660
    %v6662 = vrot.slane %v6611, 4
    %v6663 = vsel %vm6656, %v6660, %v6662
    %v6667 = vadd.f32 %v6653, %v6659
    %v6668 = vadd.f32 %v6654, %v6661
    %v6669 = vadd.f32 %v6655, %v6663
    %v6670 = vmul.f32 %v6667, 0.2
    %v6671 = vmul.f32 %v6668, 0.2
    %v6672 = vmul.f32 %v6669, 0.2
    %v6673 = vlaneseq
    %v6674 = vshrl.u32 %v6673, 7
    %v6675 = vadd.s32 %v6674, 8
    %v6676 = vadd.s32 %v6674, 16
    %vm6677 = vcmp.lt.s32.totalorder %v6674, 2
    %vm6678 = vcmp.lt.s32.totalorder %v6675, 2
    %vm6679 = vcmp.lt.s32.totalorder %v6676, 2
    %vm6680 = vcmp.ge.s32.totalorder %v6674, 18
    %vm6681 = vcmp.ge.s32.totalorder %v6675, 18
    %vm6682 = vcmp.ge.s32.totalorder %v6676, 18
    %vm6683 = vmor %vm6677, %vm6680
    %vm6684 = vmor %vm6678, %vm6681
    %vm6685 = vmor %vm6679, %vm6682
    %v6686 = vsel %vm6683, %v6592, %v6670
    %v6687 = vsel %vm6684, %v6594, %v6671
    %v6688 = vsel %vm6685, %v6596, %v6672
    %6689 = vst.msk [vmem:[%s19] sm:$0xff] %vm6563, %v6686
    %6690 = vst.msk [vmem:[%s19 + $0x8] sm:$0xff] %vm6563, %v6687
    %vm6691 = vcmask 11264
    %6692 = vst.msk [vmem:[%s19 + $0x10] sm:$0xf] %vm6691, %v6688
    // Predicated region
    $region106: #{tpu_custom_call.1} parent=1 // pred_check
      _
    $region107: #{tpu_custom_call.1} parent=1 // pred_check_branch
      %6694 = sbr.rel (0) target = $region109
    $region108: #{tpu_custom_call.1} parent=1 // pred_region
      _
    $region109: #{tpu_custom_call.1} parent=1 // pred_fallthru
      _
    // Predicated region
    $region110: #{tpu_custom_call.1} parent=1 // pred_check
      _
    $region111: #{tpu_custom_call.1} parent=1 // pred_check_branch
      %6696 = sbr.rel (0) target = $region113
    $region112: #{tpu_custom_call.1} parent=1 // pred_region
      _
    $region113: #{tpu_custom_call.1} parent=1 // pred_fallthru
      _
    %6697 = vsyncpa [#allocation5], 1
    %6698 = vsyncpa [#allocation7], 1
    %6699 = vsyncpa [#allocation10], 1
    %6700 = vsyncpa [#allocation13], 1

</llo_original>
